<compile_context>
chip_gen: v5e
topology: v5e:2x2
jax: 0.10.0
libtpu: 0.0.40
codegen_flags: <defaults>
</compile_context>

<pallas_src>
import jax
import jax.numpy as jnp
import numpy as np
from jax import lax
from jax.experimental import pallas as pl
from jax.experimental.pallas import tpu as pltpu

K = 10                    # conv kernel size
STRIDE = 2
CIN = 3
IN_HW = 32                # CIFAR spatial size implied by 144 = 12*12 flatten
OUT_HW = (IN_HW - K) // STRIDE + 1      # 12
NPATCH = OUT_HW * OUT_HW                # 144
NCLASS = 10
NCLASS_PAD = 128                        # lane-padded class dim (slice [:10] outside)
LANES = 128                             # batch samples per lane group
HALF = IN_HW // STRIDE                  # 16  (even/odd split spatial size)
A_MAX = K // STRIDE                     # 5   (kh = 2*a + p, kw = 2*b + q)


def _cnn_kernel(x_ref, wconv_ref, bconv_ref, wfc_ref, bfc_ref, out_ref, flat_ref):
    # x_ref    : (TBO, 2, 2, 3, 16, 16, 128) f32 VMEM
    #            x_ref[t, p, q, c, i, j, l] = x[sample, c, 2i+p, 2j+q]
    # wconv_ref: (300,) f32 SMEM   -- conv filter, OIHW flatten: c*100 + kh*10 + kw
    # bconv_ref: (1,)   f32 SMEM
    # wfc_ref  : (128, 144) f32 VMEM  -- fc weight, rows >= 10 are zero
    # bfc_ref  : (128, 1)   f32 VMEM  -- fc bias, rows >= 10 are zero
    # out_ref  : (128, TBO*128) f32   -- logits transposed (class, sample)
    # flat_ref : (144, 128) f32 VMEM scratch -- conv output in .view(-1,144) order
    tbo = x_ref.shape[0]

    for t in range(tbo):                      # static loop over 128-sample groups
        def row_body(a, acc):
            # kh = 2*a + p (a dynamic, leading-dim slice -> cheap)
            # kw = 2*b + q (b, q static   -> static sublane slice)
            for p in range(2):
                for c in range(CIN):
                    base = c * (K * K) + p * K
                    for q in range(2):
                        for b in range(A_MAX):
                            w = wconv_ref[base + 2 * a * K + 2 * b + q]
                            slab = x_ref[t, p, q, c,
                                         pl.ds(a, OUT_HW), b:b + OUT_HW, :]
                            acc = acc + w * slab        # (12,12,128) VPU FMA
            return acc

        acc = lax.fori_loop(0, A_MAX, row_body,
                            jnp.zeros((OUT_HW, OUT_HW, LANES), jnp.float32))

        conv = jnp.maximum(acc + bconv_ref[0], 0.0)     # conv bias + ReLU
        # Stage rows into (144, 128): row index oh*12 + ow == PyTorch .view(-1,144).
        for oh in range(OUT_HW):
            flat_ref[oh * OUT_HW:(oh + 1) * OUT_HW, :] = conv[oh]
        logits = jnp.dot(wfc_ref[...], flat_ref[...],
                         preferred_element_type=jnp.float32)    # (128,128) on MXU
        out_ref[:, t * LANES:(t + 1) * LANES] = logits + bfc_ref[...]


def _split_even_odd(x):
    """(N_pad, 3, 32, 32) f32 -> (G, 2, 2, 3, 16, 16, 128) with
    out[g, p, q, c, i, j, l] = x[g*128 + l, c, 2*i + p, 2*j + q]."""
    n = x.shape[0]
    g = n // LANES
    xs = x.reshape(g, LANES, CIN, HALF, 2, HALF, 2)     # (g, l, c, i, p, j, q)
    return xs.transpose(0, 4, 6, 2, 3, 5, 1)            # (g, p, q, c, i, j, l)


def _pick_groups_per_step(num_groups):
    """Generation-gated batch tiling: 128-sample groups per grid step."""
    if num_groups <= 1:
        return 1
    try:
        vmem_bytes = int(pltpu.get_tpu_info().vmem_capacity_bytes)
    except Exception:
        vmem_bytes = 64 * 1024 * 1024
    # ~1.5 MiB of f32 input per group (double-buffered): take more groups/step on
    # 128 MiB-VMEM single-TC chips (v5e/v6e), fewer on v7x (64 MiB/TC, 2 TCs),
    # and always keep >= 2 grid steps so the "parallel" axis can feed both cores.
    cap = 4 if vmem_bytes >= 96 * 1024 * 1024 else 2
    cap = max(1, min(cap, num_groups // 2))
    gps = min(cap, num_groups)
    while num_groups % gps:
        gps -= 1
    return gps


def simple_cnn_one_filter(x, conv_w, conv_b, fc_w, fc_b):
    """Forward pass matching the PyTorch module.

    x: (N, 3, 32, 32) f32 NCHW, conv_w: (1, 3, 10, 10) OIHW, conv_b: (1,),
    fc_w: (10, 144), fc_b: (10,)  ->  (N, 10) f32
    """
    N = x.shape[0]
    x = x.astype(jnp.float32)
    G = pl.cdiv(N, LANES)
    N_pad = G * LANES
    if N_pad != N:
        x = jnp.pad(x, ((0, N_pad - N), (0, 0), (0, 0), (0, 0)))

    x_split = _split_even_odd(x)                               # 12 KB/sample, f32

    w_conv = conv_w.reshape(CIN * K * K).astype(jnp.float32)   # SMEM scalars
    b_conv = conv_b.reshape(1).astype(jnp.float32)
    w_fc = jnp.zeros((NCLASS_PAD, NPATCH), jnp.float32)
    w_fc = w_fc.at[:NCLASS, :].set(fc_w.astype(jnp.float32))
    b_fc = jnp.zeros((NCLASS_PAD, 1), jnp.float32)
    b_fc = b_fc.at[:NCLASS, 0].set(fc_b.astype(jnp.float32))

    tbo = _pick_groups_per_step(G)
    grid = (G // tbo,)

    out_t = pl.pallas_call(
        _cnn_kernel,
        out_shape=jax.ShapeDtypeStruct((NCLASS_PAD, N_pad), jnp.float32),
        grid=grid,
        in_specs=[
            pl.BlockSpec((tbo, 2, 2, CIN, HALF, HALF, LANES),
                         lambda g: (g, 0, 0, 0, 0, 0, 0)),
            pl.BlockSpec(memory_space=pltpu.MemorySpace.SMEM),   # conv weight (300,)
            pl.BlockSpec(memory_space=pltpu.MemorySpace.SMEM),   # conv bias (1,)
            pl.BlockSpec((NCLASS_PAD, NPATCH), lambda g: (0, 0)),
            pl.BlockSpec((NCLASS_PAD, 1), lambda g: (0, 0)),
        ],
        out_specs=pl.BlockSpec((NCLASS_PAD, tbo * LANES), lambda g: (0, g)),
        scratch_shapes=[pltpu.VMEM((NPATCH, LANES), jnp.float32)],
        compiler_params=pltpu.CompilerParams(
            dimension_semantics=("parallel",),
            vmem_limit_bytes=32 * 1024 * 1024),
    )(x_split, w_conv, b_conv, w_fc, b_fc)

    return out_t[:NCLASS, :N].T


def _ref_forward(x, conv_w, conv_b, fc_w, fc_b):
    # Pure-JAX reference (matches PyTorch semantics).
    conv = lax.conv_general_dilated(
        x, conv_w, window_strides=(STRIDE, STRIDE), padding="VALID",
        dimension_numbers=("NCHW", "OIHW", "NCHW"))
    conv = conv + conv_b.reshape(1, 1, 1, 1)
    conv = jnp.maximum(conv, 0.0)
    flat = conv.reshape(-1, NPATCH)
    return flat @ fc_w.T + fc_b[None, :]


if __name__ == "__main__":
    key = jax.random.PRNGKey(0)
    k_x, k_cw, k_cb, k_fw, k_fb = jax.random.split(key, 5)

    N = 2
    x = jax.random.normal(k_x, (N, CIN, IN_HW, IN_HW), dtype=jnp.float32)

    # Deterministic parameter init (PyTorch-style uniform bounds, synthetic values).
    conv_fan_in = CIN * K * K
    cbound = 1.0 / np.sqrt(conv_fan_in)
    conv_w = jax.random.uniform(k_cw, (1, CIN, K, K), jnp.float32, -cbound, cbound)
    conv_b = jax.random.uniform(k_cb, (1,), jnp.float32, -cbound, cbound)

    fbound = 1.0 / np.sqrt(NPATCH)
    fc_w = jax.random.uniform(k_fw, (NCLASS, NPATCH), jnp.float32, -fbound, fbound)
    fc_b = jax.random.uniform(k_fb, (NCLASS,), jnp.float32, -fbound, fbound)

    out = simple_cnn_one_filter(x, conv_w, conv_b, fc_w, fc_b)
    out = jax.block_until_ready(out)

    ref = jax.block_until_ready(_ref_forward(x, conv_w, conv_b, fc_w, fc_b))
    assert out.shape == (N, NCLASS)
    np.testing.assert_allclose(np.asarray(out), np.asarray(ref), rtol=1e-2, atol=1e-2)

    print("KERNEL_OK")
</pallas_src>

<mosaic_0001>
module attributes {stable_mosaic.version = 11 : i64} {
  func.func @_cnn_kernel(%arg0: i32, %arg1: memref<1x2x2x3x16x16x128xf32, #tpu.memory_space<vmem>>, %arg2: memref<300xf32, #tpu.memory_space<smem>>, %arg3: memref<1xf32, #tpu.memory_space<smem>>, %arg4: memref<128x144xf32, #tpu.memory_space<vmem>>, %arg5: memref<128x1xf32, #tpu.memory_space<vmem>>, %arg6: memref<128x128xf32, #tpu.memory_space<vmem>>, %arg7: memref<144x128xf32, #tpu.memory_space<vmem>>) attributes {dimension_semantics = [#tpu.dimension_semantics<parallel>], iteration_bounds = array<i64: 1>, scalar_prefetch = 0 : i64, scratch_operands = 1 : i64, tpu.core_type = #tpu.core_type<tc>, window_params = [{transform_indices = @transform_0, window_bounds = array<i64: 1, 2, 2, 3, 16, 16, 128>}, {transform_indices = @transform_1, window_bounds = array<i64: 300>}, {transform_indices = @transform_2, window_bounds = array<i64: 1>}, {pipeline_mode = #tpu.pipeline_mode<synchronous>, transform_indices = @transform_3, window_bounds = array<i64: 128, 144>}, {pipeline_mode = #tpu.pipeline_mode<synchronous>, transform_indices = @transform_4, window_bounds = array<i64: 128, 1>}, {transform_indices = @transform_5, window_bounds = array<i64: 128, 128>}]} {
    %cst = arith.constant 0.000000e+00 : f32
    %0 = vector.broadcast %cst : f32 to vector<12x12x128xf32>
    %c0_i32 = arith.constant 0 : i32
    %c5_i32 = arith.constant 5 : i32
    %1 = arith.addi %c0_i32, %c5_i32 : i32
    %c1_i32 = arith.constant 1 : i32
    %2 = scf.for %arg8 = %c0_i32 to %1 step %c1_i32 iter_args(%arg9 = %0) -> (vector<12x12x128xf32>)  : i32 {
      %c2_i32 = arith.constant 2 : i32
      %51 = arith.muli %c2_i32, %arg8 : i32
      %c10_i32 = arith.constant 10 : i32
      %52 = arith.muli %51, %c10_i32 : i32
      %c0_i32_24 = arith.constant 0 : i32
      %53 = arith.addi %c0_i32_24, %52 : i32
      %c0_i32_25 = arith.constant 0 : i32
      %54 = arith.addi %53, %c0_i32_25 : i32
      %c0_i32_26 = arith.constant 0 : i32
      %55 = arith.addi %54, %c0_i32_26 : i32
      %56 = arith.index_cast %55 : i32 to index
      %57 = memref.load %arg2[%56] : memref<300xf32, #tpu.memory_space<smem>>
      %c0_27 = arith.constant 0 : index
      %c0_28 = arith.constant 0 : index
      %c0_29 = arith.constant 0 : index
      %c0_30 = arith.constant 0 : index
      %58 = arith.index_cast %arg8 : i32 to index
      %c0_31 = arith.constant 0 : index
      %c0_32 = arith.constant 0 : index
      %59 = vector.load %arg1[%c0_27, %c0_28, %c0_29, %c0_30, %58, %c0_31, %c0_32] : memref<1x2x2x3x16x16x128xf32, #tpu.memory_space<vmem>>, vector<1x1x1x1x12x12x128xf32>
      %60 = vector.shape_cast %59 : vector<1x1x1x1x12x12x128xf32> to vector<12x12x128xf32>
      %61 = vector.broadcast %57 : f32 to vector<12x12x128xf32>
      %62 = arith.mulf %61, %60 : vector<12x12x128xf32>
      %63 = arith.addf %arg9, %62 : vector<12x12x128xf32>
      %c2_i32_33 = arith.constant 2 : i32
      %64 = arith.muli %c2_i32_33, %arg8 : i32
      %c10_i32_34 = arith.constant 10 : i32
      %65 = arith.muli %64, %c10_i32_34 : i32
      %c0_i32_35 = arith.constant 0 : i32
      %66 = arith.addi %c0_i32_35, %65 : i32
      %c2_i32_36 = arith.constant 2 : i32
      %67 = arith.addi %66, %c2_i32_36 : i32
      %c0_i32_37 = arith.constant 0 : i32
      %68 = arith.addi %67, %c0_i32_37 : i32
      %69 = arith.index_cast %68 : i32 to index
      %70 = memref.load %arg2[%69] : memref<300xf32, #tpu.memory_space<smem>>
      %c0_38 = arith.constant 0 : index
      %c0_39 = arith.constant 0 : index
      %c0_40 = arith.constant 0 : index
      %c0_41 = arith.constant 0 : index
      %71 = arith.index_cast %arg8 : i32 to index
      %c1 = arith.constant 1 : index
      %c0_42 = arith.constant 0 : index
      %72 = vector.load %arg1[%c0_38, %c0_39, %c0_40, %c0_41, %71, %c1, %c0_42] : memref<1x2x2x3x16x16x128xf32, #tpu.memory_space<vmem>>, vector<1x1x1x1x12x12x128xf32>
      %73 = vector.shape_cast %72 : vector<1x1x1x1x12x12x128xf32> to vector<12x12x128xf32>
      %74 = vector.broadcast %70 : f32 to vector<12x12x128xf32>
      %75 = arith.mulf %74, %73 : vector<12x12x128xf32>
      %76 = arith.addf %63, %75 : vector<12x12x128xf32>
      %c2_i32_43 = arith.constant 2 : i32
      %77 = arith.muli %c2_i32_43, %arg8 : i32
      %c10_i32_44 = arith.constant 10 : i32
      %78 = arith.muli %77, %c10_i32_44 : i32
      %c0_i32_45 = arith.constant 0 : i32
      %79 = arith.addi %c0_i32_45, %78 : i32
      %c4_i32 = arith.constant 4 : i32
      %80 = arith.addi %79, %c4_i32 : i32
      %c0_i32_46 = arith.constant 0 : i32
      %81 = arith.addi %80, %c0_i32_46 : i32
      %82 = arith.index_cast %81 : i32 to index
      %83 = memref.load %arg2[%82] : memref<300xf32, #tpu.memory_space<smem>>
      %c0_47 = arith.constant 0 : index
      %c0_48 = arith.constant 0 : index
      %c0_49 = arith.constant 0 : index
      %c0_50 = arith.constant 0 : index
      %84 = arith.index_cast %arg8 : i32 to index
      %c2 = arith.constant 2 : index
      %c0_51 = arith.constant 0 : index
      %85 = vector.load %arg1[%c0_47, %c0_48, %c0_49, %c0_50, %84, %c2, %c0_51] : memref<1x2x2x3x16x16x128xf32, #tpu.memory_space<vmem>>, vector<1x1x1x1x12x12x128xf32>
      %86 = vector.shape_cast %85 : vector<1x1x1x1x12x12x128xf32> to vector<12x12x128xf32>
      %87 = vector.broadcast %83 : f32 to vector<12x12x128xf32>
      %88 = arith.mulf %87, %86 : vector<12x12x128xf32>
      %89 = arith.addf %76, %88 : vector<12x12x128xf32>
      %c2_i32_52 = arith.constant 2 : i32
      %90 = arith.muli %c2_i32_52, %arg8 : i32
      %c10_i32_53 = arith.constant 10 : i32
      %91 = arith.muli %90, %c10_i32_53 : i32
      %c0_i32_54 = arith.constant 0 : i32
      %92 = arith.addi %c0_i32_54, %91 : i32
      %c6_i32 = arith.constant 6 : i32
      %93 = arith.addi %92, %c6_i32 : i32
      %c0_i32_55 = arith.constant 0 : i32
      %94 = arith.addi %93, %c0_i32_55 : i32
      %95 = arith.index_cast %94 : i32 to index
      %96 = memref.load %arg2[%95] : memref<300xf32, #tpu.memory_space<smem>>
      %c0_56 = arith.constant 0 : index
      %c0_57 = arith.constant 0 : index
      %c0_58 = arith.constant 0 : index
      %c0_59 = arith.constant 0 : index
      %97 = arith.index_cast %arg8 : i32 to index
      %c3 = arith.constant 3 : index
      %c0_60 = arith.constant 0 : index
      %98 = vector.load %arg1[%c0_56, %c0_57, %c0_58, %c0_59, %97, %c3, %c0_60] : memref<1x2x2x3x16x16x128xf32, #tpu.memory_space<vmem>>, vector<1x1x1x1x12x12x128xf32>
      %99 = vector.shape_cast %98 : vector<1x1x1x1x12x12x128xf32> to vector<12x12x128xf32>
      %100 = vector.broadcast %96 : f32 to vector<12x12x128xf32>
      %101 = arith.mulf %100, %99 : vector<12x12x128xf32>
      %102 = arith.addf %89, %101 : vector<12x12x128xf32>
      %c2_i32_61 = arith.constant 2 : i32
      %103 = arith.muli %c2_i32_61, %arg8 : i32
      %c10_i32_62 = arith.constant 10 : i32
      %104 = arith.muli %103, %c10_i32_62 : i32
      %c0_i32_63 = arith.constant 0 : i32
      %105 = arith.addi %c0_i32_63, %104 : i32
      %c8_i32 = arith.constant 8 : i32
      %106 = arith.addi %105, %c8_i32 : i32
      %c0_i32_64 = arith.constant 0 : i32
      %107 = arith.addi %106, %c0_i32_64 : i32
      %108 = arith.index_cast %107 : i32 to index
      %109 = memref.load %arg2[%108] : memref<300xf32, #tpu.memory_space<smem>>
      %c0_65 = arith.constant 0 : index
      %c0_66 = arith.constant 0 : index
      %c0_67 = arith.constant 0 : index
      %c0_68 = arith.constant 0 : index
      %110 = arith.index_cast %arg8 : i32 to index
      %c4 = arith.constant 4 : index
      %c0_69 = arith.constant 0 : index
      %111 = vector.load %arg1[%c0_65, %c0_66, %c0_67, %c0_68, %110, %c4, %c0_69] : memref<1x2x2x3x16x16x128xf32, #tpu.memory_space<vmem>>, vector<1x1x1x1x12x12x128xf32>
      %112 = vector.shape_cast %111 : vector<1x1x1x1x12x12x128xf32> to vector<12x12x128xf32>
      %113 = vector.broadcast %109 : f32 to vector<12x12x128xf32>
      %114 = arith.mulf %113, %112 : vector<12x12x128xf32>
      %115 = arith.addf %102, %114 : vector<12x12x128xf32>
      %c2_i32_70 = arith.constant 2 : i32
      %116 = arith.muli %c2_i32_70, %arg8 : i32
      %c10_i32_71 = arith.constant 10 : i32
      %117 = arith.muli %116, %c10_i32_71 : i32
      %c0_i32_72 = arith.constant 0 : i32
      %118 = arith.addi %c0_i32_72, %117 : i32
      %c0_i32_73 = arith.constant 0 : i32
      %119 = arith.addi %118, %c0_i32_73 : i32
      %c1_i32_74 = arith.constant 1 : i32
      %120 = arith.addi %119, %c1_i32_74 : i32
      %121 = arith.index_cast %120 : i32 to index
      %122 = memref.load %arg2[%121] : memref<300xf32, #tpu.memory_space<smem>>
      %c0_75 = arith.constant 0 : index
      %c0_76 = arith.constant 0 : index
      %c1_77 = arith.constant 1 : index
      %c0_78 = arith.constant 0 : index
      %123 = arith.index_cast %arg8 : i32 to index
      %c0_79 = arith.constant 0 : index
      %c0_80 = arith.constant 0 : index
      %124 = vector.load %arg1[%c0_75, %c0_76, %c1_77, %c0_78, %123, %c0_79, %c0_80] : memref<1x2x2x3x16x16x128xf32, #tpu.memory_space<vmem>>, vector<1x1x1x1x12x12x128xf32>
      %125 = vector.shape_cast %124 : vector<1x1x1x1x12x12x128xf32> to vector<12x12x128xf32>
      %126 = vector.broadcast %122 : f32 to vector<12x12x128xf32>
      %127 = arith.mulf %126, %125 : vector<12x12x128xf32>
      %128 = arith.addf %115, %127 : vector<12x12x128xf32>
      %c2_i32_81 = arith.constant 2 : i32
      %129 = arith.muli %c2_i32_81, %arg8 : i32
      %c10_i32_82 = arith.constant 10 : i32
      %130 = arith.muli %129, %c10_i32_82 : i32
      %c0_i32_83 = arith.constant 0 : i32
      %131 = arith.addi %c0_i32_83, %130 : i32
      %c2_i32_84 = arith.constant 2 : i32
      %132 = arith.addi %131, %c2_i32_84 : i32
      %c1_i32_85 = arith.constant 1 : i32
      %133 = arith.addi %132, %c1_i32_85 : i32
      %134 = arith.index_cast %133 : i32 to index
      %135 = memref.load %arg2[%134] : memref<300xf32, #tpu.memory_space<smem>>
      %c0_86 = arith.constant 0 : index
      %c0_87 = arith.constant 0 : index
      %c1_88 = arith.constant 1 : index
      %c0_89 = arith.constant 0 : index
      %136 = arith.index_cast %arg8 : i32 to index
      %c1_90 = arith.constant 1 : index
      %c0_91 = arith.constant 0 : index
      %137 = vector.load %arg1[%c0_86, %c0_87, %c1_88, %c0_89, %136, %c1_90, %c0_91] : memref<1x2x2x3x16x16x128xf32, #tpu.memory_space<vmem>>, vector<1x1x1x1x12x12x128xf32>
      %138 = vector.shape_cast %137 : vector<1x1x1x1x12x12x128xf32> to vector<12x12x128xf32>
      %139 = vector.broadcast %135 : f32 to vector<12x12x128xf32>
      %140 = arith.mulf %139, %138 : vector<12x12x128xf32>
      %141 = arith.addf %128, %140 : vector<12x12x128xf32>
      %c2_i32_92 = arith.constant 2 : i32
      %142 = arith.muli %c2_i32_92, %arg8 : i32
      %c10_i32_93 = arith.constant 10 : i32
      %143 = arith.muli %142, %c10_i32_93 : i32
      %c0_i32_94 = arith.constant 0 : i32
      %144 = arith.addi %c0_i32_94, %143 : i32
      %c4_i32_95 = arith.constant 4 : i32
      %145 = arith.addi %144, %c4_i32_95 : i32
      %c1_i32_96 = arith.constant 1 : i32
      %146 = arith.addi %145, %c1_i32_96 : i32
      %147 = arith.index_cast %146 : i32 to index
      %148 = memref.load %arg2[%147] : memref<300xf32, #tpu.memory_space<smem>>
      %c0_97 = arith.constant 0 : index
      %c0_98 = arith.constant 0 : index
      %c1_99 = arith.constant 1 : index
      %c0_100 = arith.constant 0 : index
      %149 = arith.index_cast %arg8 : i32 to index
      %c2_101 = arith.constant 2 : index
      %c0_102 = arith.constant 0 : index
      %150 = vector.load %arg1[%c0_97, %c0_98, %c1_99, %c0_100, %149, %c2_101, %c0_102] : memref<1x2x2x3x16x16x128xf32, #tpu.memory_space<vmem>>, vector<1x1x1x1x12x12x128xf32>
      %151 = vector.shape_cast %150 : vector<1x1x1x1x12x12x128xf32> to vector<12x12x128xf32>
      %152 = vector.broadcast %148 : f32 to vector<12x12x128xf32>
      %153 = arith.mulf %152, %151 : vector<12x12x128xf32>
      %154 = arith.addf %141, %153 : vector<12x12x128xf32>
      %c2_i32_103 = arith.constant 2 : i32
      %155 = arith.muli %c2_i32_103, %arg8 : i32
      %c10_i32_104 = arith.constant 10 : i32
      %156 = arith.muli %155, %c10_i32_104 : i32
      %c0_i32_105 = arith.constant 0 : i32
      %157 = arith.addi %c0_i32_105, %156 : i32
      %c6_i32_106 = arith.constant 6 : i32
      %158 = arith.addi %157, %c6_i32_106 : i32
      %c1_i32_107 = arith.constant 1 : i32
      %159 = arith.addi %158, %c1_i32_107 : i32
      %160 = arith.index_cast %159 : i32 to index
      %161 = memref.load %arg2[%160] : memref<300xf32, #tpu.memory_space<smem>>
      %c0_108 = arith.constant 0 : index
      %c0_109 = arith.constant 0 : index
      %c1_110 = arith.constant 1 : index
      %c0_111 = arith.constant 0 : index
      %162 = arith.index_cast %arg8 : i32 to index
      %c3_112 = arith.constant 3 : index
      %c0_113 = arith.constant 0 : index
      %163 = vector.load %arg1[%c0_108, %c0_109, %c1_110, %c0_111, %162, %c3_112, %c0_113] : memref<1x2x2x3x16x16x128xf32, #tpu.memory_space<vmem>>, vector<1x1x1x1x12x12x128xf32>
      %164 = vector.shape_cast %163 : vector<1x1x1x1x12x12x128xf32> to vector<12x12x128xf32>
      %165 = vector.broadcast %161 : f32 to vector<12x12x128xf32>
      %166 = arith.mulf %165, %164 : vector<12x12x128xf32>
      %167 = arith.addf %154, %166 : vector<12x12x128xf32>
      %c2_i32_114 = arith.constant 2 : i32
      %168 = arith.muli %c2_i32_114, %arg8 : i32
      %c10_i32_115 = arith.constant 10 : i32
      %169 = arith.muli %168, %c10_i32_115 : i32
      %c0_i32_116 = arith.constant 0 : i32
      %170 = arith.addi %c0_i32_116, %169 : i32
      %c8_i32_117 = arith.constant 8 : i32
      %171 = arith.addi %170, %c8_i32_117 : i32
      %c1_i32_118 = arith.constant 1 : i32
      %172 = arith.addi %171, %c1_i32_118 : i32
      %173 = arith.index_cast %172 : i32 to index
      %174 = memref.load %arg2[%173] : memref<300xf32, #tpu.memory_space<smem>>
      %c0_119 = arith.constant 0 : index
      %c0_120 = arith.constant 0 : index
      %c1_121 = arith.constant 1 : index
      %c0_122 = arith.constant 0 : index
      %175 = arith.index_cast %arg8 : i32 to index
      %c4_123 = arith.constant 4 : index
      %c0_124 = arith.constant 0 : index
      %176 = vector.load %arg1[%c0_119, %c0_120, %c1_121, %c0_122, %175, %c4_123, %c0_124] : memref<1x2x2x3x16x16x128xf32, #tpu.memory_space<vmem>>, vector<1x1x1x1x12x12x128xf32>
      %177 = vector.shape_cast %176 : vector<1x1x1x1x12x12x128xf32> to vector<12x12x128xf32>
      %178 = vector.broadcast %174 : f32 to vector<12x12x128xf32>
      %179 = arith.mulf %178, %177 : vector<12x12x128xf32>
      %180 = arith.addf %167, %179 : vector<12x12x128xf32>
      %c2_i32_125 = arith.constant 2 : i32
      %181 = arith.muli %c2_i32_125, %arg8 : i32
      %c10_i32_126 = arith.constant 10 : i32
      %182 = arith.muli %181, %c10_i32_126 : i32
      %c100_i32 = arith.constant 100 : i32
      %183 = arith.addi %c100_i32, %182 : i32
      %c0_i32_127 = arith.constant 0 : i32
      %184 = arith.addi %183, %c0_i32_127 : i32
      %c0_i32_128 = arith.constant 0 : i32
      %185 = arith.addi %184, %c0_i32_128 : i32
      %186 = arith.index_cast %185 : i32 to index
      %187 = memref.load %arg2[%186] : memref<300xf32, #tpu.memory_space<smem>>
      %c0_129 = arith.constant 0 : index
      %c0_130 = arith.constant 0 : index
      %c0_131 = arith.constant 0 : index
      %c1_132 = arith.constant 1 : index
      %188 = arith.index_cast %arg8 : i32 to index
      %c0_133 = arith.constant 0 : index
      %c0_134 = arith.constant 0 : index
      %189 = vector.load %arg1[%c0_129, %c0_130, %c0_131, %c1_132, %188, %c0_133, %c0_134] : memref<1x2x2x3x16x16x128xf32, #tpu.memory_space<vmem>>, vector<1x1x1x1x12x12x128xf32>
      %190 = vector.shape_cast %189 : vector<1x1x1x1x12x12x128xf32> to vector<12x12x128xf32>
      %191 = vector.broadcast %187 : f32 to vector<12x12x128xf32>
      %192 = arith.mulf %191, %190 : vector<12x12x128xf32>
      %193 = arith.addf %180, %192 : vector<12x12x128xf32>
      %c2_i32_135 = arith.constant 2 : i32
      %194 = arith.muli %c2_i32_135, %arg8 : i32
      %c10_i32_136 = arith.constant 10 : i32
      %195 = arith.muli %194, %c10_i32_136 : i32
      %c100_i32_137 = arith.constant 100 : i32
      %196 = arith.addi %c100_i32_137, %195 : i32
      %c2_i32_138 = arith.constant 2 : i32
      %197 = arith.addi %196, %c2_i32_138 : i32
      %c0_i32_139 = arith.constant 0 : i32
      %198 = arith.addi %197, %c0_i32_139 : i32
      %199 = arith.index_cast %198 : i32 to index
      %200 = memref.load %arg2[%199] : memref<300xf32, #tpu.memory_space<smem>>
      %c0_140 = arith.constant 0 : index
      %c0_141 = arith.constant 0 : index
      %c0_142 = arith.constant 0 : index
      %c1_143 = arith.constant 1 : index
      %201 = arith.index_cast %arg8 : i32 to index
      %c1_144 = arith.constant 1 : index
      %c0_145 = arith.constant 0 : index
      %202 = vector.load %arg1[%c0_140, %c0_141, %c0_142, %c1_143, %201, %c1_144, %c0_145] : memref<1x2x2x3x16x16x128xf32, #tpu.memory_space<vmem>>, vector<1x1x1x1x12x12x128xf32>
      %203 = vector.shape_cast %202 : vector<1x1x1x1x12x12x128xf32> to vector<12x12x128xf32>
      %204 = vector.broadcast %200 : f32 to vector<12x12x128xf32>
      %205 = arith.mulf %204, %203 : vector<12x12x128xf32>
      %206 = arith.addf %193, %205 : vector<12x12x128xf32>
      %c2_i32_146 = arith.constant 2 : i32
      %207 = arith.muli %c2_i32_146, %arg8 : i32
      %c10_i32_147 = arith.constant 10 : i32
      %208 = arith.muli %207, %c10_i32_147 : i32
      %c100_i32_148 = arith.constant 100 : i32
      %209 = arith.addi %c100_i32_148, %208 : i32
      %c4_i32_149 = arith.constant 4 : i32
      %210 = arith.addi %209, %c4_i32_149 : i32
      %c0_i32_150 = arith.constant 0 : i32
      %211 = arith.addi %210, %c0_i32_150 : i32
      %212 = arith.index_cast %211 : i32 to index
      %213 = memref.load %arg2[%212] : memref<300xf32, #tpu.memory_space<smem>>
      %c0_151 = arith.constant 0 : index
      %c0_152 = arith.constant 0 : index
      %c0_153 = arith.constant 0 : index
      %c1_154 = arith.constant 1 : index
      %214 = arith.index_cast %arg8 : i32 to index
      %c2_155 = arith.constant 2 : index
      %c0_156 = arith.constant 0 : index
      %215 = vector.load %arg1[%c0_151, %c0_152, %c0_153, %c1_154, %214, %c2_155, %c0_156] : memref<1x2x2x3x16x16x128xf32, #tpu.memory_space<vmem>>, vector<1x1x1x1x12x12x128xf32>
      %216 = vector.shape_cast %215 : vector<1x1x1x1x12x12x128xf32> to vector<12x12x128xf32>
      %217 = vector.broadcast %213 : f32 to vector<12x12x128xf32>
      %218 = arith.mulf %217, %216 : vector<12x12x128xf32>
      %219 = arith.addf %206, %218 : vector<12x12x128xf32>
      %c2_i32_157 = arith.constant 2 : i32
      %220 = arith.muli %c2_i32_157, %arg8 : i32
      %c10_i32_158 = arith.constant 10 : i32
      %221 = arith.muli %220, %c10_i32_158 : i32
      %c100_i32_159 = arith.constant 100 : i32
      %222 = arith.addi %c100_i32_159, %221 : i32
      %c6_i32_160 = arith.constant 6 : i32
      %223 = arith.addi %222, %c6_i32_160 : i32
      %c0_i32_161 = arith.constant 0 : i32
      %224 = arith.addi %223, %c0_i32_161 : i32
      %225 = arith.index_cast %224 : i32 to index
      %226 = memref.load %arg2[%225] : memref<300xf32, #tpu.memory_space<smem>>
      %c0_162 = arith.constant 0 : index
      %c0_163 = arith.constant 0 : index
      %c0_164 = arith.constant 0 : index
      %c1_165 = arith.constant 1 : index
      %227 = arith.index_cast %arg8 : i32 to index
      %c3_166 = arith.constant 3 : index
      %c0_167 = arith.constant 0 : index
      %228 = vector.load %arg1[%c0_162, %c0_163, %c0_164, %c1_165, %227, %c3_166, %c0_167] : memref<1x2x2x3x16x16x128xf32, #tpu.memory_space<vmem>>, vector<1x1x1x1x12x12x128xf32>
      %229 = vector.shape_cast %228 : vector<1x1x1x1x12x12x128xf32> to vector<12x12x128xf32>
      %230 = vector.broadcast %226 : f32 to vector<12x12x128xf32>
      %231 = arith.mulf %230, %229 : vector<12x12x128xf32>
      %232 = arith.addf %219, %231 : vector<12x12x128xf32>
      %c2_i32_168 = arith.constant 2 : i32
      %233 = arith.muli %c2_i32_168, %arg8 : i32
      %c10_i32_169 = arith.constant 10 : i32
      %234 = arith.muli %233, %c10_i32_169 : i32
      %c100_i32_170 = arith.constant 100 : i32
      %235 = arith.addi %c100_i32_170, %234 : i32
      %c8_i32_171 = arith.constant 8 : i32
      %236 = arith.addi %235, %c8_i32_171 : i32
      %c0_i32_172 = arith.constant 0 : i32
      %237 = arith.addi %236, %c0_i32_172 : i32
      %238 = arith.index_cast %237 : i32 to index
      %239 = memref.load %arg2[%238] : memref<300xf32, #tpu.memory_space<smem>>
      %c0_173 = arith.constant 0 : index
      %c0_174 = arith.constant 0 : index
      %c0_175 = arith.constant 0 : index
      %c1_176 = arith.constant 1 : index
      %240 = arith.index_cast %arg8 : i32 to index
      %c4_177 = arith.constant 4 : index
      %c0_178 = arith.constant 0 : index
      %241 = vector.load %arg1[%c0_173, %c0_174, %c0_175, %c1_176, %240, %c4_177, %c0_178] : memref<1x2x2x3x16x16x128xf32, #tpu.memory_space<vmem>>, vector<1x1x1x1x12x12x128xf32>
      %242 = vector.shape_cast %241 : vector<1x1x1x1x12x12x128xf32> to vector<12x12x128xf32>
      %243 = vector.broadcast %239 : f32 to vector<12x12x128xf32>
      %244 = arith.mulf %243, %242 : vector<12x12x128xf32>
      %245 = arith.addf %232, %244 : vector<12x12x128xf32>
      %c2_i32_179 = arith.constant 2 : i32
      %246 = arith.muli %c2_i32_179, %arg8 : i32
      %c10_i32_180 = arith.constant 10 : i32
      %247 = arith.muli %246, %c10_i32_180 : i32
      %c100_i32_181 = arith.constant 100 : i32
      %248 = arith.addi %c100_i32_181, %247 : i32
      %c0_i32_182 = arith.constant 0 : i32
      %249 = arith.addi %248, %c0_i32_182 : i32
      %c1_i32_183 = arith.constant 1 : i32
      %250 = arith.addi %249, %c1_i32_183 : i32
      %251 = arith.index_cast %250 : i32 to index
      %252 = memref.load %arg2[%251] : memref<300xf32, #tpu.memory_space<smem>>
      %c0_184 = arith.constant 0 : index
      %c0_185 = arith.constant 0 : index
      %c1_186 = arith.constant 1 : index
      %c1_187 = arith.constant 1 : index
      %253 = arith.index_cast %arg8 : i32 to index
      %c0_188 = arith.constant 0 : index
      %c0_189 = arith.constant 0 : index
      %254 = vector.load %arg1[%c0_184, %c0_185, %c1_186, %c1_187, %253, %c0_188, %c0_189] : memref<1x2x2x3x16x16x128xf32, #tpu.memory_space<vmem>>, vector<1x1x1x1x12x12x128xf32>
      %255 = vector.shape_cast %254 : vector<1x1x1x1x12x12x128xf32> to vector<12x12x128xf32>
      %256 = vector.broadcast %252 : f32 to vector<12x12x128xf32>
      %257 = arith.mulf %256, %255 : vector<12x12x128xf32>
      %258 = arith.addf %245, %257 : vector<12x12x128xf32>
      %c2_i32_190 = arith.constant 2 : i32
      %259 = arith.muli %c2_i32_190, %arg8 : i32
      %c10_i32_191 = arith.constant 10 : i32
      %260 = arith.muli %259, %c10_i32_191 : i32
      %c100_i32_192 = arith.constant 100 : i32
      %261 = arith.addi %c100_i32_192, %260 : i32
      %c2_i32_193 = arith.constant 2 : i32
      %262 = arith.addi %261, %c2_i32_193 : i32
      %c1_i32_194 = arith.constant 1 : i32
      %263 = arith.addi %262, %c1_i32_194 : i32
      %264 = arith.index_cast %263 : i32 to index
      %265 = memref.load %arg2[%264] : memref<300xf32, #tpu.memory_space<smem>>
      %c0_195 = arith.constant 0 : index
      %c0_196 = arith.constant 0 : index
      %c1_197 = arith.constant 1 : index
      %c1_198 = arith.constant 1 : index
      %266 = arith.index_cast %arg8 : i32 to index
      %c1_199 = arith.constant 1 : index
      %c0_200 = arith.constant 0 : index
      %267 = vector.load %arg1[%c0_195, %c0_196, %c1_197, %c1_198, %266, %c1_199, %c0_200] : memref<1x2x2x3x16x16x128xf32, #tpu.memory_space<vmem>>, vector<1x1x1x1x12x12x128xf32>
      %268 = vector.shape_cast %267 : vector<1x1x1x1x12x12x128xf32> to vector<12x12x128xf32>
      %269 = vector.broadcast %265 : f32 to vector<12x12x128xf32>
      %270 = arith.mulf %269, %268 : vector<12x12x128xf32>
      %271 = arith.addf %258, %270 : vector<12x12x128xf32>
      %c2_i32_201 = arith.constant 2 : i32
      %272 = arith.muli %c2_i32_201, %arg8 : i32
      %c10_i32_202 = arith.constant 10 : i32
      %273 = arith.muli %272, %c10_i32_202 : i32
      %c100_i32_203 = arith.constant 100 : i32
      %274 = arith.addi %c100_i32_203, %273 : i32
      %c4_i32_204 = arith.constant 4 : i32
      %275 = arith.addi %274, %c4_i32_204 : i32
      %c1_i32_205 = arith.constant 1 : i32
      %276 = arith.addi %275, %c1_i32_205 : i32
      %277 = arith.index_cast %276 : i32 to index
      %278 = memref.load %arg2[%277] : memref<300xf32, #tpu.memory_space<smem>>
      %c0_206 = arith.constant 0 : index
      %c0_207 = arith.constant 0 : index
      %c1_208 = arith.constant 1 : index
      %c1_209 = arith.constant 1 : index
      %279 = arith.index_cast %arg8 : i32 to index
      %c2_210 = arith.constant 2 : index
      %c0_211 = arith.constant 0 : index
      %280 = vector.load %arg1[%c0_206, %c0_207, %c1_208, %c1_209, %279, %c2_210, %c0_211] : memref<1x2x2x3x16x16x128xf32, #tpu.memory_space<vmem>>, vector<1x1x1x1x12x12x128xf32>
      %281 = vector.shape_cast %280 : vector<1x1x1x1x12x12x128xf32> to vector<12x12x128xf32>
      %282 = vector.broadcast %278 : f32 to vector<12x12x128xf32>
      %283 = arith.mulf %282, %281 : vector<12x12x128xf32>
      %284 = arith.addf %271, %283 : vector<12x12x128xf32>
      %c2_i32_212 = arith.constant 2 : i32
      %285 = arith.muli %c2_i32_212, %arg8 : i32
      %c10_i32_213 = arith.constant 10 : i32
      %286 = arith.muli %285, %c10_i32_213 : i32
      %c100_i32_214 = arith.constant 100 : i32
      %287 = arith.addi %c100_i32_214, %286 : i32
      %c6_i32_215 = arith.constant 6 : i32
      %288 = arith.addi %287, %c6_i32_215 : i32
      %c1_i32_216 = arith.constant 1 : i32
      %289 = arith.addi %288, %c1_i32_216 : i32
      %290 = arith.index_cast %289 : i32 to index
      %291 = memref.load %arg2[%290] : memref<300xf32, #tpu.memory_space<smem>>
      %c0_217 = arith.constant 0 : index
      %c0_218 = arith.constant 0 : index
      %c1_219 = arith.constant 1 : index
      %c1_220 = arith.constant 1 : index
      %292 = arith.index_cast %arg8 : i32 to index
      %c3_221 = arith.constant 3 : index
      %c0_222 = arith.constant 0 : index
      %293 = vector.load %arg1[%c0_217, %c0_218, %c1_219, %c1_220, %292, %c3_221, %c0_222] : memref<1x2x2x3x16x16x128xf32, #tpu.memory_space<vmem>>, vector<1x1x1x1x12x12x128xf32>
      %294 = vector.shape_cast %293 : vector<1x1x1x1x12x12x128xf32> to vector<12x12x128xf32>
      %295 = vector.broadcast %291 : f32 to vector<12x12x128xf32>
      %296 = arith.mulf %295, %294 : vector<12x12x128xf32>
      %297 = arith.addf %284, %296 : vector<12x12x128xf32>
      %c2_i32_223 = arith.constant 2 : i32
      %298 = arith.muli %c2_i32_223, %arg8 : i32
      %c10_i32_224 = arith.constant 10 : i32
      %299 = arith.muli %298, %c10_i32_224 : i32
      %c100_i32_225 = arith.constant 100 : i32
      %300 = arith.addi %c100_i32_225, %299 : i32
      %c8_i32_226 = arith.constant 8 : i32
      %301 = arith.addi %300, %c8_i32_226 : i32
      %c1_i32_227 = arith.constant 1 : i32
      %302 = arith.addi %301, %c1_i32_227 : i32
      %303 = arith.index_cast %302 : i32 to index
      %304 = memref.load %arg2[%303] : memref<300xf32, #tpu.memory_space<smem>>
      %c0_228 = arith.constant 0 : index
      %c0_229 = arith.constant 0 : index
      %c1_230 = arith.constant 1 : index
      %c1_231 = arith.constant 1 : index
      %305 = arith.index_cast %arg8 : i32 to index
      %c4_232 = arith.constant 4 : index
      %c0_233 = arith.constant 0 : index
      %306 = vector.load %arg1[%c0_228, %c0_229, %c1_230, %c1_231, %305, %c4_232, %c0_233] : memref<1x2x2x3x16x16x128xf32, #tpu.memory_space<vmem>>, vector<1x1x1x1x12x12x128xf32>
      %307 = vector.shape_cast %306 : vector<1x1x1x1x12x12x128xf32> to vector<12x12x128xf32>
      %308 = vector.broadcast %304 : f32 to vector<12x12x128xf32>
      %309 = arith.mulf %308, %307 : vector<12x12x128xf32>
      %310 = arith.addf %297, %309 : vector<12x12x128xf32>
      %c2_i32_234 = arith.constant 2 : i32
      %311 = arith.muli %c2_i32_234, %arg8 : i32
      %c10_i32_235 = arith.constant 10 : i32
      %312 = arith.muli %311, %c10_i32_235 : i32
      %c200_i32 = arith.constant 200 : i32
      %313 = arith.addi %c200_i32, %312 : i32
      %c0_i32_236 = arith.constant 0 : i32
      %314 = arith.addi %313, %c0_i32_236 : i32
      %c0_i32_237 = arith.constant 0 : i32
      %315 = arith.addi %314, %c0_i32_237 : i32
      %316 = arith.index_cast %315 : i32 to index
      %317 = memref.load %arg2[%316] : memref<300xf32, #tpu.memory_space<smem>>
      %c0_238 = arith.constant 0 : index
      %c0_239 = arith.constant 0 : index
      %c0_240 = arith.constant 0 : index
      %c2_241 = arith.constant 2 : index
      %318 = arith.index_cast %arg8 : i32 to index
      %c0_242 = arith.constant 0 : index
      %c0_243 = arith.constant 0 : index
      %319 = vector.load %arg1[%c0_238, %c0_239, %c0_240, %c2_241, %318, %c0_242, %c0_243] : memref<1x2x2x3x16x16x128xf32, #tpu.memory_space<vmem>>, vector<1x1x1x1x12x12x128xf32>
      %320 = vector.shape_cast %319 : vector<1x1x1x1x12x12x128xf32> to vector<12x12x128xf32>
      %321 = vector.broadcast %317 : f32 to vector<12x12x128xf32>
      %322 = arith.mulf %321, %320 : vector<12x12x128xf32>
      %323 = arith.addf %310, %322 : vector<12x12x128xf32>
      %c2_i32_244 = arith.constant 2 : i32
      %324 = arith.muli %c2_i32_244, %arg8 : i32
      %c10_i32_245 = arith.constant 10 : i32
      %325 = arith.muli %324, %c10_i32_245 : i32
      %c200_i32_246 = arith.constant 200 : i32
      %326 = arith.addi %c200_i32_246, %325 : i32
      %c2_i32_247 = arith.constant 2 : i32
      %327 = arith.addi %326, %c2_i32_247 : i32
      %c0_i32_248 = arith.constant 0 : i32
      %328 = arith.addi %327, %c0_i32_248 : i32
      %329 = arith.index_cast %328 : i32 to index
      %330 = memref.load %arg2[%329] : memref<300xf32, #tpu.memory_space<smem>>
      %c0_249 = arith.constant 0 : index
      %c0_250 = arith.constant 0 : index
      %c0_251 = arith.constant 0 : index
      %c2_252 = arith.constant 2 : index
      %331 = arith.index_cast %arg8 : i32 to index
      %c1_253 = arith.constant 1 : index
      %c0_254 = arith.constant 0 : index
      %332 = vector.load %arg1[%c0_249, %c0_250, %c0_251, %c2_252, %331, %c1_253, %c0_254] : memref<1x2x2x3x16x16x128xf32, #tpu.memory_space<vmem>>, vector<1x1x1x1x12x12x128xf32>
      %333 = vector.shape_cast %332 : vector<1x1x1x1x12x12x128xf32> to vector<12x12x128xf32>
      %334 = vector.broadcast %330 : f32 to vector<12x12x128xf32>
      %335 = arith.mulf %334, %333 : vector<12x12x128xf32>
      %336 = arith.addf %323, %335 : vector<12x12x128xf32>
      %c2_i32_255 = arith.constant 2 : i32
      %337 = arith.muli %c2_i32_255, %arg8 : i32
      %c10_i32_256 = arith.constant 10 : i32
      %338 = arith.muli %337, %c10_i32_256 : i32
      %c200_i32_257 = arith.constant 200 : i32
      %339 = arith.addi %c200_i32_257, %338 : i32
      %c4_i32_258 = arith.constant 4 : i32
      %340 = arith.addi %339, %c4_i32_258 : i32
      %c0_i32_259 = arith.constant 0 : i32
      %341 = arith.addi %340, %c0_i32_259 : i32
      %342 = arith.index_cast %341 : i32 to index
      %343 = memref.load %arg2[%342] : memref<300xf32, #tpu.memory_space<smem>>
      %c0_260 = arith.constant 0 : index
      %c0_261 = arith.constant 0 : index
      %c0_262 = arith.constant 0 : index
      %c2_263 = arith.constant 2 : index
      %344 = arith.index_cast %arg8 : i32 to index
      %c2_264 = arith.constant 2 : index
      %c0_265 = arith.constant 0 : index
      %345 = vector.load %arg1[%c0_260, %c0_261, %c0_262, %c2_263, %344, %c2_264, %c0_265] : memref<1x2x2x3x16x16x128xf32, #tpu.memory_space<vmem>>, vector<1x1x1x1x12x12x128xf32>
      %346 = vector.shape_cast %345 : vector<1x1x1x1x12x12x128xf32> to vector<12x12x128xf32>
      %347 = vector.broadcast %343 : f32 to vector<12x12x128xf32>
      %348 = arith.mulf %347, %346 : vector<12x12x128xf32>
      %349 = arith.addf %336, %348 : vector<12x12x128xf32>
      %c2_i32_266 = arith.constant 2 : i32
      %350 = arith.muli %c2_i32_266, %arg8 : i32
      %c10_i32_267 = arith.constant 10 : i32
      %351 = arith.muli %350, %c10_i32_267 : i32
      %c200_i32_268 = arith.constant 200 : i32
      %352 = arith.addi %c200_i32_268, %351 : i32
      %c6_i32_269 = arith.constant 6 : i32
      %353 = arith.addi %352, %c6_i32_269 : i32
      %c0_i32_270 = arith.constant 0 : i32
      %354 = arith.addi %353, %c0_i32_270 : i32
      %355 = arith.index_cast %354 : i32 to index
      %356 = memref.load %arg2[%355] : memref<300xf32, #tpu.memory_space<smem>>
      %c0_271 = arith.constant 0 : index
      %c0_272 = arith.constant 0 : index
      %c0_273 = arith.constant 0 : index
      %c2_274 = arith.constant 2 : index
      %357 = arith.index_cast %arg8 : i32 to index
      %c3_275 = arith.constant 3 : index
      %c0_276 = arith.constant 0 : index
      %358 = vector.load %arg1[%c0_271, %c0_272, %c0_273, %c2_274, %357, %c3_275, %c0_276] : memref<1x2x2x3x16x16x128xf32, #tpu.memory_space<vmem>>, vector<1x1x1x1x12x12x128xf32>
      %359 = vector.shape_cast %358 : vector<1x1x1x1x12x12x128xf32> to vector<12x12x128xf32>
      %360 = vector.broadcast %356 : f32 to vector<12x12x128xf32>
      %361 = arith.mulf %360, %359 : vector<12x12x128xf32>
      %362 = arith.addf %349, %361 : vector<12x12x128xf32>
      %c2_i32_277 = arith.constant 2 : i32
      %363 = arith.muli %c2_i32_277, %arg8 : i32
      %c10_i32_278 = arith.constant 10 : i32
      %364 = arith.muli %363, %c10_i32_278 : i32
      %c200_i32_279 = arith.constant 200 : i32
      %365 = arith.addi %c200_i32_279, %364 : i32
      %c8_i32_280 = arith.constant 8 : i32
      %366 = arith.addi %365, %c8_i32_280 : i32
      %c0_i32_281 = arith.constant 0 : i32
      %367 = arith.addi %366, %c0_i32_281 : i32
      %368 = arith.index_cast %367 : i32 to index
      %369 = memref.load %arg2[%368] : memref<300xf32, #tpu.memory_space<smem>>
      %c0_282 = arith.constant 0 : index
      %c0_283 = arith.constant 0 : index
      %c0_284 = arith.constant 0 : index
      %c2_285 = arith.constant 2 : index
      %370 = arith.index_cast %arg8 : i32 to index
      %c4_286 = arith.constant 4 : index
      %c0_287 = arith.constant 0 : index
      %371 = vector.load %arg1[%c0_282, %c0_283, %c0_284, %c2_285, %370, %c4_286, %c0_287] : memref<1x2x2x3x16x16x128xf32, #tpu.memory_space<vmem>>, vector<1x1x1x1x12x12x128xf32>
      %372 = vector.shape_cast %371 : vector<1x1x1x1x12x12x128xf32> to vector<12x12x128xf32>
      %373 = vector.broadcast %369 : f32 to vector<12x12x128xf32>
      %374 = arith.mulf %373, %372 : vector<12x12x128xf32>
      %375 = arith.addf %362, %374 : vector<12x12x128xf32>
      %c2_i32_288 = arith.constant 2 : i32
      %376 = arith.muli %c2_i32_288, %arg8 : i32
      %c10_i32_289 = arith.constant 10 : i32
      %377 = arith.muli %376, %c10_i32_289 : i32
      %c200_i32_290 = arith.constant 200 : i32
      %378 = arith.addi %c200_i32_290, %377 : i32
      %c0_i32_291 = arith.constant 0 : i32
      %379 = arith.addi %378, %c0_i32_291 : i32
      %c1_i32_292 = arith.constant 1 : i32
      %380 = arith.addi %379, %c1_i32_292 : i32
      %381 = arith.index_cast %380 : i32 to index
      %382 = memref.load %arg2[%381] : memref<300xf32, #tpu.memory_space<smem>>
      %c0_293 = arith.constant 0 : index
      %c0_294 = arith.constant 0 : index
      %c1_295 = arith.constant 1 : index
      %c2_296 = arith.constant 2 : index
      %383 = arith.index_cast %arg8 : i32 to index
      %c0_297 = arith.constant 0 : index
      %c0_298 = arith.constant 0 : index
      %384 = vector.load %arg1[%c0_293, %c0_294, %c1_295, %c2_296, %383, %c0_297, %c0_298] : memref<1x2x2x3x16x16x128xf32, #tpu.memory_space<vmem>>, vector<1x1x1x1x12x12x128xf32>
      %385 = vector.shape_cast %384 : vector<1x1x1x1x12x12x128xf32> to vector<12x12x128xf32>
      %386 = vector.broadcast %382 : f32 to vector<12x12x128xf32>
      %387 = arith.mulf %386, %385 : vector<12x12x128xf32>
      %388 = arith.addf %375, %387 : vector<12x12x128xf32>
      %c2_i32_299 = arith.constant 2 : i32
      %389 = arith.muli %c2_i32_299, %arg8 : i32
      %c10_i32_300 = arith.constant 10 : i32
      %390 = arith.muli %389, %c10_i32_300 : i32
      %c200_i32_301 = arith.constant 200 : i32
      %391 = arith.addi %c200_i32_301, %390 : i32
      %c2_i32_302 = arith.constant 2 : i32
      %392 = arith.addi %391, %c2_i32_302 : i32
      %c1_i32_303 = arith.constant 1 : i32
      %393 = arith.addi %392, %c1_i32_303 : i32
      %394 = arith.index_cast %393 : i32 to index
      %395 = memref.load %arg2[%394] : memref<300xf32, #tpu.memory_space<smem>>
      %c0_304 = arith.constant 0 : index
      %c0_305 = arith.constant 0 : index
      %c1_306 = arith.constant 1 : index
      %c2_307 = arith.constant 2 : index
      %396 = arith.index_cast %arg8 : i32 to index
      %c1_308 = arith.constant 1 : index
      %c0_309 = arith.constant 0 : index
      %397 = vector.load %arg1[%c0_304, %c0_305, %c1_306, %c2_307, %396, %c1_308, %c0_309] : memref<1x2x2x3x16x16x128xf32, #tpu.memory_space<vmem>>, vector<1x1x1x1x12x12x128xf32>
      %398 = vector.shape_cast %397 : vector<1x1x1x1x12x12x128xf32> to vector<12x12x128xf32>
      %399 = vector.broadcast %395 : f32 to vector<12x12x128xf32>
      %400 = arith.mulf %399, %398 : vector<12x12x128xf32>
      %401 = arith.addf %388, %400 : vector<12x12x128xf32>
      %c2_i32_310 = arith.constant 2 : i32
      %402 = arith.muli %c2_i32_310, %arg8 : i32
      %c10_i32_311 = arith.constant 10 : i32
      %403 = arith.muli %402, %c10_i32_311 : i32
      %c200_i32_312 = arith.constant 200 : i32
      %404 = arith.addi %c200_i32_312, %403 : i32
      %c4_i32_313 = arith.constant 4 : i32
      %405 = arith.addi %404, %c4_i32_313 : i32
      %c1_i32_314 = arith.constant 1 : i32
      %406 = arith.addi %405, %c1_i32_314 : i32
      %407 = arith.index_cast %406 : i32 to index
      %408 = memref.load %arg2[%407] : memref<300xf32, #tpu.memory_space<smem>>
      %c0_315 = arith.constant 0 : index
      %c0_316 = arith.constant 0 : index
      %c1_317 = arith.constant 1 : index
      %c2_318 = arith.constant 2 : index
      %409 = arith.index_cast %arg8 : i32 to index
      %c2_319 = arith.constant 2 : index
      %c0_320 = arith.constant 0 : index
      %410 = vector.load %arg1[%c0_315, %c0_316, %c1_317, %c2_318, %409, %c2_319, %c0_320] : memref<1x2x2x3x16x16x128xf32, #tpu.memory_space<vmem>>, vector<1x1x1x1x12x12x128xf32>
      %411 = vector.shape_cast %410 : vector<1x1x1x1x12x12x128xf32> to vector<12x12x128xf32>
      %412 = vector.broadcast %408 : f32 to vector<12x12x128xf32>
      %413 = arith.mulf %412, %411 : vector<12x12x128xf32>
      %414 = arith.addf %401, %413 : vector<12x12x128xf32>
      %c2_i32_321 = arith.constant 2 : i32
      %415 = arith.muli %c2_i32_321, %arg8 : i32
      %c10_i32_322 = arith.constant 10 : i32
      %416 = arith.muli %415, %c10_i32_322 : i32
      %c200_i32_323 = arith.constant 200 : i32
      %417 = arith.addi %c200_i32_323, %416 : i32
      %c6_i32_324 = arith.constant 6 : i32
      %418 = arith.addi %417, %c6_i32_324 : i32
      %c1_i32_325 = arith.constant 1 : i32
      %419 = arith.addi %418, %c1_i32_325 : i32
      %420 = arith.index_cast %419 : i32 to index
      %421 = memref.load %arg2[%420] : memref<300xf32, #tpu.memory_space<smem>>
      %c0_326 = arith.constant 0 : index
      %c0_327 = arith.constant 0 : index
      %c1_328 = arith.constant 1 : index
      %c2_329 = arith.constant 2 : index
      %422 = arith.index_cast %arg8 : i32 to index
      %c3_330 = arith.constant 3 : index
      %c0_331 = arith.constant 0 : index
      %423 = vector.load %arg1[%c0_326, %c0_327, %c1_328, %c2_329, %422, %c3_330, %c0_331] : memref<1x2x2x3x16x16x128xf32, #tpu.memory_space<vmem>>, vector<1x1x1x1x12x12x128xf32>
      %424 = vector.shape_cast %423 : vector<1x1x1x1x12x12x128xf32> to vector<12x12x128xf32>
      %425 = vector.broadcast %421 : f32 to vector<12x12x128xf32>
      %426 = arith.mulf %425, %424 : vector<12x12x128xf32>
      %427 = arith.addf %414, %426 : vector<12x12x128xf32>
      %c2_i32_332 = arith.constant 2 : i32
      %428 = arith.muli %c2_i32_332, %arg8 : i32
      %c10_i32_333 = arith.constant 10 : i32
      %429 = arith.muli %428, %c10_i32_333 : i32
      %c200_i32_334 = arith.constant 200 : i32
      %430 = arith.addi %c200_i32_334, %429 : i32
      %c8_i32_335 = arith.constant 8 : i32
      %431 = arith.addi %430, %c8_i32_335 : i32
      %c1_i32_336 = arith.constant 1 : i32
      %432 = arith.addi %431, %c1_i32_336 : i32
      %433 = arith.index_cast %432 : i32 to index
      %434 = memref.load %arg2[%433] : memref<300xf32, #tpu.memory_space<smem>>
      %c0_337 = arith.constant 0 : index
      %c0_338 = arith.constant 0 : index
      %c1_339 = arith.constant 1 : index
      %c2_340 = arith.constant 2 : index
      %435 = arith.index_cast %arg8 : i32 to index
      %c4_341 = arith.constant 4 : index
      %c0_342 = arith.constant 0 : index
      %436 = vector.load %arg1[%c0_337, %c0_338, %c1_339, %c2_340, %435, %c4_341, %c0_342] : memref<1x2x2x3x16x16x128xf32, #tpu.memory_space<vmem>>, vector<1x1x1x1x12x12x128xf32>
      %437 = vector.shape_cast %436 : vector<1x1x1x1x12x12x128xf32> to vector<12x12x128xf32>
      %438 = vector.broadcast %434 : f32 to vector<12x12x128xf32>
      %439 = arith.mulf %438, %437 : vector<12x12x128xf32>
      %440 = arith.addf %427, %439 : vector<12x12x128xf32>
      %c2_i32_343 = arith.constant 2 : i32
      %441 = arith.muli %c2_i32_343, %arg8 : i32
      %c10_i32_344 = arith.constant 10 : i32
      %442 = arith.muli %441, %c10_i32_344 : i32
      %c10_i32_345 = arith.constant 10 : i32
      %443 = arith.addi %c10_i32_345, %442 : i32
      %c0_i32_346 = arith.constant 0 : i32
      %444 = arith.addi %443, %c0_i32_346 : i32
      %c0_i32_347 = arith.constant 0 : i32
      %445 = arith.addi %444, %c0_i32_347 : i32
      %446 = arith.index_cast %445 : i32 to index
      %447 = memref.load %arg2[%446] : memref<300xf32, #tpu.memory_space<smem>>
      %c0_348 = arith.constant 0 : index
      %c1_349 = arith.constant 1 : index
      %c0_350 = arith.constant 0 : index
      %c0_351 = arith.constant 0 : index
      %448 = arith.index_cast %arg8 : i32 to index
      %c0_352 = arith.constant 0 : index
      %c0_353 = arith.constant 0 : index
      %449 = vector.load %arg1[%c0_348, %c1_349, %c0_350, %c0_351, %448, %c0_352, %c0_353] : memref<1x2x2x3x16x16x128xf32, #tpu.memory_space<vmem>>, vector<1x1x1x1x12x12x128xf32>
      %450 = vector.shape_cast %449 : vector<1x1x1x1x12x12x128xf32> to vector<12x12x128xf32>
      %451 = vector.broadcast %447 : f32 to vector<12x12x128xf32>
      %452 = arith.mulf %451, %450 : vector<12x12x128xf32>
      %453 = arith.addf %440, %452 : vector<12x12x128xf32>
      %c2_i32_354 = arith.constant 2 : i32
      %454 = arith.muli %c2_i32_354, %arg8 : i32
      %c10_i32_355 = arith.constant 10 : i32
      %455 = arith.muli %454, %c10_i32_355 : i32
      %c10_i32_356 = arith.constant 10 : i32
      %456 = arith.addi %c10_i32_356, %455 : i32
      %c2_i32_357 = arith.constant 2 : i32
      %457 = arith.addi %456, %c2_i32_357 : i32
      %c0_i32_358 = arith.constant 0 : i32
      %458 = arith.addi %457, %c0_i32_358 : i32
      %459 = arith.index_cast %458 : i32 to index
      %460 = memref.load %arg2[%459] : memref<300xf32, #tpu.memory_space<smem>>
      %c0_359 = arith.constant 0 : index
      %c1_360 = arith.constant 1 : index
      %c0_361 = arith.constant 0 : index
      %c0_362 = arith.constant 0 : index
      %461 = arith.index_cast %arg8 : i32 to index
      %c1_363 = arith.constant 1 : index
      %c0_364 = arith.constant 0 : index
      %462 = vector.load %arg1[%c0_359, %c1_360, %c0_361, %c0_362, %461, %c1_363, %c0_364] : memref<1x2x2x3x16x16x128xf32, #tpu.memory_space<vmem>>, vector<1x1x1x1x12x12x128xf32>
      %463 = vector.shape_cast %462 : vector<1x1x1x1x12x12x128xf32> to vector<12x12x128xf32>
      %464 = vector.broadcast %460 : f32 to vector<12x12x128xf32>
      %465 = arith.mulf %464, %463 : vector<12x12x128xf32>
      %466 = arith.addf %453, %465 : vector<12x12x128xf32>
      %c2_i32_365 = arith.constant 2 : i32
      %467 = arith.muli %c2_i32_365, %arg8 : i32
      %c10_i32_366 = arith.constant 10 : i32
      %468 = arith.muli %467, %c10_i32_366 : i32
      %c10_i32_367 = arith.constant 10 : i32
      %469 = arith.addi %c10_i32_367, %468 : i32
      %c4_i32_368 = arith.constant 4 : i32
      %470 = arith.addi %469, %c4_i32_368 : i32
      %c0_i32_369 = arith.constant 0 : i32
      %471 = arith.addi %470, %c0_i32_369 : i32
      %472 = arith.index_cast %471 : i32 to index
      %473 = memref.load %arg2[%472] : memref<300xf32, #tpu.memory_space<smem>>
      %c0_370 = arith.constant 0 : index
      %c1_371 = arith.constant 1 : index
      %c0_372 = arith.constant 0 : index
      %c0_373 = arith.constant 0 : index
      %474 = arith.index_cast %arg8 : i32 to index
      %c2_374 = arith.constant 2 : index
      %c0_375 = arith.constant 0 : index
      %475 = vector.load %arg1[%c0_370, %c1_371, %c0_372, %c0_373, %474, %c2_374, %c0_375] : memref<1x2x2x3x16x16x128xf32, #tpu.memory_space<vmem>>, vector<1x1x1x1x12x12x128xf32>
      %476 = vector.shape_cast %475 : vector<1x1x1x1x12x12x128xf32> to vector<12x12x128xf32>
      %477 = vector.broadcast %473 : f32 to vector<12x12x128xf32>
      %478 = arith.mulf %477, %476 : vector<12x12x128xf32>
      %479 = arith.addf %466, %478 : vector<12x12x128xf32>
      %c2_i32_376 = arith.constant 2 : i32
      %480 = arith.muli %c2_i32_376, %arg8 : i32
      %c10_i32_377 = arith.constant 10 : i32
      %481 = arith.muli %480, %c10_i32_377 : i32
      %c10_i32_378 = arith.constant 10 : i32
      %482 = arith.addi %c10_i32_378, %481 : i32
      %c6_i32_379 = arith.constant 6 : i32
      %483 = arith.addi %482, %c6_i32_379 : i32
      %c0_i32_380 = arith.constant 0 : i32
      %484 = arith.addi %483, %c0_i32_380 : i32
      %485 = arith.index_cast %484 : i32 to index
      %486 = memref.load %arg2[%485] : memref<300xf32, #tpu.memory_space<smem>>
      %c0_381 = arith.constant 0 : index
      %c1_382 = arith.constant 1 : index
      %c0_383 = arith.constant 0 : index
      %c0_384 = arith.constant 0 : index
      %487 = arith.index_cast %arg8 : i32 to index
      %c3_385 = arith.constant 3 : index
      %c0_386 = arith.constant 0 : index
      %488 = vector.load %arg1[%c0_381, %c1_382, %c0_383, %c0_384, %487, %c3_385, %c0_386] : memref<1x2x2x3x16x16x128xf32, #tpu.memory_space<vmem>>, vector<1x1x1x1x12x12x128xf32>
      %489 = vector.shape_cast %488 : vector<1x1x1x1x12x12x128xf32> to vector<12x12x128xf32>
      %490 = vector.broadcast %486 : f32 to vector<12x12x128xf32>
      %491 = arith.mulf %490, %489 : vector<12x12x128xf32>
      %492 = arith.addf %479, %491 : vector<12x12x128xf32>
      %c2_i32_387 = arith.constant 2 : i32
      %493 = arith.muli %c2_i32_387, %arg8 : i32
      %c10_i32_388 = arith.constant 10 : i32
      %494 = arith.muli %493, %c10_i32_388 : i32
      %c10_i32_389 = arith.constant 10 : i32
      %495 = arith.addi %c10_i32_389, %494 : i32
      %c8_i32_390 = arith.constant 8 : i32
      %496 = arith.addi %495, %c8_i32_390 : i32
      %c0_i32_391 = arith.constant 0 : i32
      %497 = arith.addi %496, %c0_i32_391 : i32
      %498 = arith.index_cast %497 : i32 to index
      %499 = memref.load %arg2[%498] : memref<300xf32, #tpu.memory_space<smem>>
      %c0_392 = arith.constant 0 : index
      %c1_393 = arith.constant 1 : index
      %c0_394 = arith.constant 0 : index
      %c0_395 = arith.constant 0 : index
      %500 = arith.index_cast %arg8 : i32 to index
      %c4_396 = arith.constant 4 : index
      %c0_397 = arith.constant 0 : index
      %501 = vector.load %arg1[%c0_392, %c1_393, %c0_394, %c0_395, %500, %c4_396, %c0_397] : memref<1x2x2x3x16x16x128xf32, #tpu.memory_space<vmem>>, vector<1x1x1x1x12x12x128xf32>
      %502 = vector.shape_cast %501 : vector<1x1x1x1x12x12x128xf32> to vector<12x12x128xf32>
      %503 = vector.broadcast %499 : f32 to vector<12x12x128xf32>
      %504 = arith.mulf %503, %502 : vector<12x12x128xf32>
      %505 = arith.addf %492, %504 : vector<12x12x128xf32>
      %c2_i32_398 = arith.constant 2 : i32
      %506 = arith.muli %c2_i32_398, %arg8 : i32
      %c10_i32_399 = arith.constant 10 : i32
      %507 = arith.muli %506, %c10_i32_399 : i32
      %c10_i32_400 = arith.constant 10 : i32
      %508 = arith.addi %c10_i32_400, %507 : i32
      %c0_i32_401 = arith.constant 0 : i32
      %509 = arith.addi %508, %c0_i32_401 : i32
      %c1_i32_402 = arith.constant 1 : i32
      %510 = arith.addi %509, %c1_i32_402 : i32
      %511 = arith.index_cast %510 : i32 to index
      %512 = memref.load %arg2[%511] : memref<300xf32, #tpu.memory_space<smem>>
      %c0_403 = arith.constant 0 : index
      %c1_404 = arith.constant 1 : index
      %c1_405 = arith.constant 1 : index
      %c0_406 = arith.constant 0 : index
      %513 = arith.index_cast %arg8 : i32 to index
      %c0_407 = arith.constant 0 : index
      %c0_408 = arith.constant 0 : index
      %514 = vector.load %arg1[%c0_403, %c1_404, %c1_405, %c0_406, %513, %c0_407, %c0_408] : memref<1x2x2x3x16x16x128xf32, #tpu.memory_space<vmem>>, vector<1x1x1x1x12x12x128xf32>
      %515 = vector.shape_cast %514 : vector<1x1x1x1x12x12x128xf32> to vector<12x12x128xf32>
      %516 = vector.broadcast %512 : f32 to vector<12x12x128xf32>
      %517 = arith.mulf %516, %515 : vector<12x12x128xf32>
      %518 = arith.addf %505, %517 : vector<12x12x128xf32>
      %c2_i32_409 = arith.constant 2 : i32
      %519 = arith.muli %c2_i32_409, %arg8 : i32
      %c10_i32_410 = arith.constant 10 : i32
      %520 = arith.muli %519, %c10_i32_410 : i32
      %c10_i32_411 = arith.constant 10 : i32
      %521 = arith.addi %c10_i32_411, %520 : i32
      %c2_i32_412 = arith.constant 2 : i32
      %522 = arith.addi %521, %c2_i32_412 : i32
      %c1_i32_413 = arith.constant 1 : i32
      %523 = arith.addi %522, %c1_i32_413 : i32
      %524 = arith.index_cast %523 : i32 to index
      %525 = memref.load %arg2[%524] : memref<300xf32, #tpu.memory_space<smem>>
      %c0_414 = arith.constant 0 : index
      %c1_415 = arith.constant 1 : index
      %c1_416 = arith.constant 1 : index
      %c0_417 = arith.constant 0 : index
      %526 = arith.index_cast %arg8 : i32 to index
      %c1_418 = arith.constant 1 : index
      %c0_419 = arith.constant 0 : index
      %527 = vector.load %arg1[%c0_414, %c1_415, %c1_416, %c0_417, %526, %c1_418, %c0_419] : memref<1x2x2x3x16x16x128xf32, #tpu.memory_space<vmem>>, vector<1x1x1x1x12x12x128xf32>
      %528 = vector.shape_cast %527 : vector<1x1x1x1x12x12x128xf32> to vector<12x12x128xf32>
      %529 = vector.broadcast %525 : f32 to vector<12x12x128xf32>
      %530 = arith.mulf %529, %528 : vector<12x12x128xf32>
      %531 = arith.addf %518, %530 : vector<12x12x128xf32>
      %c2_i32_420 = arith.constant 2 : i32
      %532 = arith.muli %c2_i32_420, %arg8 : i32
      %c10_i32_421 = arith.constant 10 : i32
      %533 = arith.muli %532, %c10_i32_421 : i32
      %c10_i32_422 = arith.constant 10 : i32
      %534 = arith.addi %c10_i32_422, %533 : i32
      %c4_i32_423 = arith.constant 4 : i32
      %535 = arith.addi %534, %c4_i32_423 : i32
      %c1_i32_424 = arith.constant 1 : i32
      %536 = arith.addi %535, %c1_i32_424 : i32
      %537 = arith.index_cast %536 : i32 to index
      %538 = memref.load %arg2[%537] : memref<300xf32, #tpu.memory_space<smem>>
      %c0_425 = arith.constant 0 : index
      %c1_426 = arith.constant 1 : index
      %c1_427 = arith.constant 1 : index
      %c0_428 = arith.constant 0 : index
      %539 = arith.index_cast %arg8 : i32 to index
      %c2_429 = arith.constant 2 : index
      %c0_430 = arith.constant 0 : index
      %540 = vector.load %arg1[%c0_425, %c1_426, %c1_427, %c0_428, %539, %c2_429, %c0_430] : memref<1x2x2x3x16x16x128xf32, #tpu.memory_space<vmem>>, vector<1x1x1x1x12x12x128xf32>
      %541 = vector.shape_cast %540 : vector<1x1x1x1x12x12x128xf32> to vector<12x12x128xf32>
      %542 = vector.broadcast %538 : f32 to vector<12x12x128xf32>
      %543 = arith.mulf %542, %541 : vector<12x12x128xf32>
      %544 = arith.addf %531, %543 : vector<12x12x128xf32>
      %c2_i32_431 = arith.constant 2 : i32
      %545 = arith.muli %c2_i32_431, %arg8 : i32
      %c10_i32_432 = arith.constant 10 : i32
      %546 = arith.muli %545, %c10_i32_432 : i32
      %c10_i32_433 = arith.constant 10 : i32
      %547 = arith.addi %c10_i32_433, %546 : i32
      %c6_i32_434 = arith.constant 6 : i32
      %548 = arith.addi %547, %c6_i32_434 : i32
      %c1_i32_435 = arith.constant 1 : i32
      %549 = arith.addi %548, %c1_i32_435 : i32
      %550 = arith.index_cast %549 : i32 to index
      %551 = memref.load %arg2[%550] : memref<300xf32, #tpu.memory_space<smem>>
      %c0_436 = arith.constant 0 : index
      %c1_437 = arith.constant 1 : index
      %c1_438 = arith.constant 1 : index
      %c0_439 = arith.constant 0 : index
      %552 = arith.index_cast %arg8 : i32 to index
      %c3_440 = arith.constant 3 : index
      %c0_441 = arith.constant 0 : index
      %553 = vector.load %arg1[%c0_436, %c1_437, %c1_438, %c0_439, %552, %c3_440, %c0_441] : memref<1x2x2x3x16x16x128xf32, #tpu.memory_space<vmem>>, vector<1x1x1x1x12x12x128xf32>
      %554 = vector.shape_cast %553 : vector<1x1x1x1x12x12x128xf32> to vector<12x12x128xf32>
      %555 = vector.broadcast %551 : f32 to vector<12x12x128xf32>
      %556 = arith.mulf %555, %554 : vector<12x12x128xf32>
      %557 = arith.addf %544, %556 : vector<12x12x128xf32>
      %c2_i32_442 = arith.constant 2 : i32
      %558 = arith.muli %c2_i32_442, %arg8 : i32
      %c10_i32_443 = arith.constant 10 : i32
      %559 = arith.muli %558, %c10_i32_443 : i32
      %c10_i32_444 = arith.constant 10 : i32
      %560 = arith.addi %c10_i32_444, %559 : i32
      %c8_i32_445 = arith.constant 8 : i32
      %561 = arith.addi %560, %c8_i32_445 : i32
      %c1_i32_446 = arith.constant 1 : i32
      %562 = arith.addi %561, %c1_i32_446 : i32
      %563 = arith.index_cast %562 : i32 to index
      %564 = memref.load %arg2[%563] : memref<300xf32, #tpu.memory_space<smem>>
      %c0_447 = arith.constant 0 : index
      %c1_448 = arith.constant 1 : index
      %c1_449 = arith.constant 1 : index
      %c0_450 = arith.constant 0 : index
      %565 = arith.index_cast %arg8 : i32 to index
      %c4_451 = arith.constant 4 : index
      %c0_452 = arith.constant 0 : index
      %566 = vector.load %arg1[%c0_447, %c1_448, %c1_449, %c0_450, %565, %c4_451, %c0_452] : memref<1x2x2x3x16x16x128xf32, #tpu.memory_space<vmem>>, vector<1x1x1x1x12x12x128xf32>
      %567 = vector.shape_cast %566 : vector<1x1x1x1x12x12x128xf32> to vector<12x12x128xf32>
      %568 = vector.broadcast %564 : f32 to vector<12x12x128xf32>
      %569 = arith.mulf %568, %567 : vector<12x12x128xf32>
      %570 = arith.addf %557, %569 : vector<12x12x128xf32>
      %c2_i32_453 = arith.constant 2 : i32
      %571 = arith.muli %c2_i32_453, %arg8 : i32
      %c10_i32_454 = arith.constant 10 : i32
      %572 = arith.muli %571, %c10_i32_454 : i32
      %c110_i32 = arith.constant 110 : i32
      %573 = arith.addi %c110_i32, %572 : i32
      %c0_i32_455 = arith.constant 0 : i32
      %574 = arith.addi %573, %c0_i32_455 : i32
      %c0_i32_456 = arith.constant 0 : i32
      %575 = arith.addi %574, %c0_i32_456 : i32
      %576 = arith.index_cast %575 : i32 to index
      %577 = memref.load %arg2[%576] : memref<300xf32, #tpu.memory_space<smem>>
      %c0_457 = arith.constant 0 : index
      %c1_458 = arith.constant 1 : index
      %c0_459 = arith.constant 0 : index
      %c1_460 = arith.constant 1 : index
      %578 = arith.index_cast %arg8 : i32 to index
      %c0_461 = arith.constant 0 : index
      %c0_462 = arith.constant 0 : index
      %579 = vector.load %arg1[%c0_457, %c1_458, %c0_459, %c1_460, %578, %c0_461, %c0_462] : memref<1x2x2x3x16x16x128xf32, #tpu.memory_space<vmem>>, vector<1x1x1x1x12x12x128xf32>
      %580 = vector.shape_cast %579 : vector<1x1x1x1x12x12x128xf32> to vector<12x12x128xf32>
      %581 = vector.broadcast %577 : f32 to vector<12x12x128xf32>
      %582 = arith.mulf %581, %580 : vector<12x12x128xf32>
      %583 = arith.addf %570, %582 : vector<12x12x128xf32>
      %c2_i32_463 = arith.constant 2 : i32
      %584 = arith.muli %c2_i32_463, %arg8 : i32
      %c10_i32_464 = arith.constant 10 : i32
      %585 = arith.muli %584, %c10_i32_464 : i32
      %c110_i32_465 = arith.constant 110 : i32
      %586 = arith.addi %c110_i32_465, %585 : i32
      %c2_i32_466 = arith.constant 2 : i32
      %587 = arith.addi %586, %c2_i32_466 : i32
      %c0_i32_467 = arith.constant 0 : i32
      %588 = arith.addi %587, %c0_i32_467 : i32
      %589 = arith.index_cast %588 : i32 to index
      %590 = memref.load %arg2[%589] : memref<300xf32, #tpu.memory_space<smem>>
      %c0_468 = arith.constant 0 : index
      %c1_469 = arith.constant 1 : index
      %c0_470 = arith.constant 0 : index
      %c1_471 = arith.constant 1 : index
      %591 = arith.index_cast %arg8 : i32 to index
      %c1_472 = arith.constant 1 : index
      %c0_473 = arith.constant 0 : index
      %592 = vector.load %arg1[%c0_468, %c1_469, %c0_470, %c1_471, %591, %c1_472, %c0_473] : memref<1x2x2x3x16x16x128xf32, #tpu.memory_space<vmem>>, vector<1x1x1x1x12x12x128xf32>
      %593 = vector.shape_cast %592 : vector<1x1x1x1x12x12x128xf32> to vector<12x12x128xf32>
      %594 = vector.broadcast %590 : f32 to vector<12x12x128xf32>
      %595 = arith.mulf %594, %593 : vector<12x12x128xf32>
      %596 = arith.addf %583, %595 : vector<12x12x128xf32>
      %c2_i32_474 = arith.constant 2 : i32
      %597 = arith.muli %c2_i32_474, %arg8 : i32
      %c10_i32_475 = arith.constant 10 : i32
      %598 = arith.muli %597, %c10_i32_475 : i32
      %c110_i32_476 = arith.constant 110 : i32
      %599 = arith.addi %c110_i32_476, %598 : i32
      %c4_i32_477 = arith.constant 4 : i32
      %600 = arith.addi %599, %c4_i32_477 : i32
      %c0_i32_478 = arith.constant 0 : i32
      %601 = arith.addi %600, %c0_i32_478 : i32
      %602 = arith.index_cast %601 : i32 to index
      %603 = memref.load %arg2[%602] : memref<300xf32, #tpu.memory_space<smem>>
      %c0_479 = arith.constant 0 : index
      %c1_480 = arith.constant 1 : index
      %c0_481 = arith.constant 0 : index
      %c1_482 = arith.constant 1 : index
      %604 = arith.index_cast %arg8 : i32 to index
      %c2_483 = arith.constant 2 : index
      %c0_484 = arith.constant 0 : index
      %605 = vector.load %arg1[%c0_479, %c1_480, %c0_481, %c1_482, %604, %c2_483, %c0_484] : memref<1x2x2x3x16x16x128xf32, #tpu.memory_space<vmem>>, vector<1x1x1x1x12x12x128xf32>
      %606 = vector.shape_cast %605 : vector<1x1x1x1x12x12x128xf32> to vector<12x12x128xf32>
      %607 = vector.broadcast %603 : f32 to vector<12x12x128xf32>
      %608 = arith.mulf %607, %606 : vector<12x12x128xf32>
      %609 = arith.addf %596, %608 : vector<12x12x128xf32>
      %c2_i32_485 = arith.constant 2 : i32
      %610 = arith.muli %c2_i32_485, %arg8 : i32
      %c10_i32_486 = arith.constant 10 : i32
      %611 = arith.muli %610, %c10_i32_486 : i32
      %c110_i32_487 = arith.constant 110 : i32
      %612 = arith.addi %c110_i32_487, %611 : i32
      %c6_i32_488 = arith.constant 6 : i32
      %613 = arith.addi %612, %c6_i32_488 : i32
      %c0_i32_489 = arith.constant 0 : i32
      %614 = arith.addi %613, %c0_i32_489 : i32
      %615 = arith.index_cast %614 : i32 to index
      %616 = memref.load %arg2[%615] : memref<300xf32, #tpu.memory_space<smem>>
      %c0_490 = arith.constant 0 : index
      %c1_491 = arith.constant 1 : index
      %c0_492 = arith.constant 0 : index
      %c1_493 = arith.constant 1 : index
      %617 = arith.index_cast %arg8 : i32 to index
      %c3_494 = arith.constant 3 : index
      %c0_495 = arith.constant 0 : index
      %618 = vector.load %arg1[%c0_490, %c1_491, %c0_492, %c1_493, %617, %c3_494, %c0_495] : memref<1x2x2x3x16x16x128xf32, #tpu.memory_space<vmem>>, vector<1x1x1x1x12x12x128xf32>
      %619 = vector.shape_cast %618 : vector<1x1x1x1x12x12x128xf32> to vector<12x12x128xf32>
      %620 = vector.broadcast %616 : f32 to vector<12x12x128xf32>
      %621 = arith.mulf %620, %619 : vector<12x12x128xf32>
      %622 = arith.addf %609, %621 : vector<12x12x128xf32>
      %c2_i32_496 = arith.constant 2 : i32
      %623 = arith.muli %c2_i32_496, %arg8 : i32
      %c10_i32_497 = arith.constant 10 : i32
      %624 = arith.muli %623, %c10_i32_497 : i32
      %c110_i32_498 = arith.constant 110 : i32
      %625 = arith.addi %c110_i32_498, %624 : i32
      %c8_i32_499 = arith.constant 8 : i32
      %626 = arith.addi %625, %c8_i32_499 : i32
      %c0_i32_500 = arith.constant 0 : i32
      %627 = arith.addi %626, %c0_i32_500 : i32
      %628 = arith.index_cast %627 : i32 to index
      %629 = memref.load %arg2[%628] : memref<300xf32, #tpu.memory_space<smem>>
      %c0_501 = arith.constant 0 : index
      %c1_502 = arith.constant 1 : index
      %c0_503 = arith.constant 0 : index
      %c1_504 = arith.constant 1 : index
      %630 = arith.index_cast %arg8 : i32 to index
      %c4_505 = arith.constant 4 : index
      %c0_506 = arith.constant 0 : index
      %631 = vector.load %arg1[%c0_501, %c1_502, %c0_503, %c1_504, %630, %c4_505, %c0_506] : memref<1x2x2x3x16x16x128xf32, #tpu.memory_space<vmem>>, vector<1x1x1x1x12x12x128xf32>
      %632 = vector.shape_cast %631 : vector<1x1x1x1x12x12x128xf32> to vector<12x12x128xf32>
      %633 = vector.broadcast %629 : f32 to vector<12x12x128xf32>
      %634 = arith.mulf %633, %632 : vector<12x12x128xf32>
      %635 = arith.addf %622, %634 : vector<12x12x128xf32>
      %c2_i32_507 = arith.constant 2 : i32
      %636 = arith.muli %c2_i32_507, %arg8 : i32
      %c10_i32_508 = arith.constant 10 : i32
      %637 = arith.muli %636, %c10_i32_508 : i32
      %c110_i32_509 = arith.constant 110 : i32
      %638 = arith.addi %c110_i32_509, %637 : i32
      %c0_i32_510 = arith.constant 0 : i32
      %639 = arith.addi %638, %c0_i32_510 : i32
      %c1_i32_511 = arith.constant 1 : i32
      %640 = arith.addi %639, %c1_i32_511 : i32
      %641 = arith.index_cast %640 : i32 to index
      %642 = memref.load %arg2[%641] : memref<300xf32, #tpu.memory_space<smem>>
      %c0_512 = arith.constant 0 : index
      %c1_513 = arith.constant 1 : index
      %c1_514 = arith.constant 1 : index
      %c1_515 = arith.constant 1 : index
      %643 = arith.index_cast %arg8 : i32 to index
      %c0_516 = arith.constant 0 : index
      %c0_517 = arith.constant 0 : index
      %644 = vector.load %arg1[%c0_512, %c1_513, %c1_514, %c1_515, %643, %c0_516, %c0_517] : memref<1x2x2x3x16x16x128xf32, #tpu.memory_space<vmem>>, vector<1x1x1x1x12x12x128xf32>
      %645 = vector.shape_cast %644 : vector<1x1x1x1x12x12x128xf32> to vector<12x12x128xf32>
      %646 = vector.broadcast %642 : f32 to vector<12x12x128xf32>
      %647 = arith.mulf %646, %645 : vector<12x12x128xf32>
      %648 = arith.addf %635, %647 : vector<12x12x128xf32>
      %c2_i32_518 = arith.constant 2 : i32
      %649 = arith.muli %c2_i32_518, %arg8 : i32
      %c10_i32_519 = arith.constant 10 : i32
      %650 = arith.muli %649, %c10_i32_519 : i32
      %c110_i32_520 = arith.constant 110 : i32
      %651 = arith.addi %c110_i32_520, %650 : i32
      %c2_i32_521 = arith.constant 2 : i32
      %652 = arith.addi %651, %c2_i32_521 : i32
      %c1_i32_522 = arith.constant 1 : i32
      %653 = arith.addi %652, %c1_i32_522 : i32
      %654 = arith.index_cast %653 : i32 to index
      %655 = memref.load %arg2[%654] : memref<300xf32, #tpu.memory_space<smem>>
      %c0_523 = arith.constant 0 : index
      %c1_524 = arith.constant 1 : index
      %c1_525 = arith.constant 1 : index
      %c1_526 = arith.constant 1 : index
      %656 = arith.index_cast %arg8 : i32 to index
      %c1_527 = arith.constant 1 : index
      %c0_528 = arith.constant 0 : index
      %657 = vector.load %arg1[%c0_523, %c1_524, %c1_525, %c1_526, %656, %c1_527, %c0_528] : memref<1x2x2x3x16x16x128xf32, #tpu.memory_space<vmem>>, vector<1x1x1x1x12x12x128xf32>
      %658 = vector.shape_cast %657 : vector<1x1x1x1x12x12x128xf32> to vector<12x12x128xf32>
      %659 = vector.broadcast %655 : f32 to vector<12x12x128xf32>
      %660 = arith.mulf %659, %658 : vector<12x12x128xf32>
      %661 = arith.addf %648, %660 : vector<12x12x128xf32>
      %c2_i32_529 = arith.constant 2 : i32
      %662 = arith.muli %c2_i32_529, %arg8 : i32
      %c10_i32_530 = arith.constant 10 : i32
      %663 = arith.muli %662, %c10_i32_530 : i32
      %c110_i32_531 = arith.constant 110 : i32
      %664 = arith.addi %c110_i32_531, %663 : i32
      %c4_i32_532 = arith.constant 4 : i32
      %665 = arith.addi %664, %c4_i32_532 : i32
      %c1_i32_533 = arith.constant 1 : i32
      %666 = arith.addi %665, %c1_i32_533 : i32
      %667 = arith.index_cast %666 : i32 to index
      %668 = memref.load %arg2[%667] : memref<300xf32, #tpu.memory_space<smem>>
      %c0_534 = arith.constant 0 : index
      %c1_535 = arith.constant 1 : index
      %c1_536 = arith.constant 1 : index
      %c1_537 = arith.constant 1 : index
      %669 = arith.index_cast %arg8 : i32 to index
      %c2_538 = arith.constant 2 : index
      %c0_539 = arith.constant 0 : index
      %670 = vector.load %arg1[%c0_534, %c1_535, %c1_536, %c1_537, %669, %c2_538, %c0_539] : memref<1x2x2x3x16x16x128xf32, #tpu.memory_space<vmem>>, vector<1x1x1x1x12x12x128xf32>
      %671 = vector.shape_cast %670 : vector<1x1x1x1x12x12x128xf32> to vector<12x12x128xf32>
      %672 = vector.broadcast %668 : f32 to vector<12x12x128xf32>
      %673 = arith.mulf %672, %671 : vector<12x12x128xf32>
      %674 = arith.addf %661, %673 : vector<12x12x128xf32>
      %c2_i32_540 = arith.constant 2 : i32
      %675 = arith.muli %c2_i32_540, %arg8 : i32
      %c10_i32_541 = arith.constant 10 : i32
      %676 = arith.muli %675, %c10_i32_541 : i32
      %c110_i32_542 = arith.constant 110 : i32
      %677 = arith.addi %c110_i32_542, %676 : i32
      %c6_i32_543 = arith.constant 6 : i32
      %678 = arith.addi %677, %c6_i32_543 : i32
      %c1_i32_544 = arith.constant 1 : i32
      %679 = arith.addi %678, %c1_i32_544 : i32
      %680 = arith.index_cast %679 : i32 to index
      %681 = memref.load %arg2[%680] : memref<300xf32, #tpu.memory_space<smem>>
      %c0_545 = arith.constant 0 : index
      %c1_546 = arith.constant 1 : index
      %c1_547 = arith.constant 1 : index
      %c1_548 = arith.constant 1 : index
      %682 = arith.index_cast %arg8 : i32 to index
      %c3_549 = arith.constant 3 : index
      %c0_550 = arith.constant 0 : index
      %683 = vector.load %arg1[%c0_545, %c1_546, %c1_547, %c1_548, %682, %c3_549, %c0_550] : memref<1x2x2x3x16x16x128xf32, #tpu.memory_space<vmem>>, vector<1x1x1x1x12x12x128xf32>
      %684 = vector.shape_cast %683 : vector<1x1x1x1x12x12x128xf32> to vector<12x12x128xf32>
      %685 = vector.broadcast %681 : f32 to vector<12x12x128xf32>
      %686 = arith.mulf %685, %684 : vector<12x12x128xf32>
      %687 = arith.addf %674, %686 : vector<12x12x128xf32>
      %c2_i32_551 = arith.constant 2 : i32
      %688 = arith.muli %c2_i32_551, %arg8 : i32
      %c10_i32_552 = arith.constant 10 : i32
      %689 = arith.muli %688, %c10_i32_552 : i32
      %c110_i32_553 = arith.constant 110 : i32
      %690 = arith.addi %c110_i32_553, %689 : i32
      %c8_i32_554 = arith.constant 8 : i32
      %691 = arith.addi %690, %c8_i32_554 : i32
      %c1_i32_555 = arith.constant 1 : i32
      %692 = arith.addi %691, %c1_i32_555 : i32
      %693 = arith.index_cast %692 : i32 to index
      %694 = memref.load %arg2[%693] : memref<300xf32, #tpu.memory_space<smem>>
      %c0_556 = arith.constant 0 : index
      %c1_557 = arith.constant 1 : index
      %c1_558 = arith.constant 1 : index
      %c1_559 = arith.constant 1 : index
      %695 = arith.index_cast %arg8 : i32 to index
      %c4_560 = arith.constant 4 : index
      %c0_561 = arith.constant 0 : index
      %696 = vector.load %arg1[%c0_556, %c1_557, %c1_558, %c1_559, %695, %c4_560, %c0_561] : memref<1x2x2x3x16x16x128xf32, #tpu.memory_space<vmem>>, vector<1x1x1x1x12x12x128xf32>
      %697 = vector.shape_cast %696 : vector<1x1x1x1x12x12x128xf32> to vector<12x12x128xf32>
      %698 = vector.broadcast %694 : f32 to vector<12x12x128xf32>
      %699 = arith.mulf %698, %697 : vector<12x12x128xf32>
      %700 = arith.addf %687, %699 : vector<12x12x128xf32>
      %c2_i32_562 = arith.constant 2 : i32
      %701 = arith.muli %c2_i32_562, %arg8 : i32
      %c10_i32_563 = arith.constant 10 : i32
      %702 = arith.muli %701, %c10_i32_563 : i32
      %c210_i32 = arith.constant 210 : i32
      %703 = arith.addi %c210_i32, %702 : i32
      %c0_i32_564 = arith.constant 0 : i32
      %704 = arith.addi %703, %c0_i32_564 : i32
      %c0_i32_565 = arith.constant 0 : i32
      %705 = arith.addi %704, %c0_i32_565 : i32
      %706 = arith.index_cast %705 : i32 to index
      %707 = memref.load %arg2[%706] : memref<300xf32, #tpu.memory_space<smem>>
      %c0_566 = arith.constant 0 : index
      %c1_567 = arith.constant 1 : index
      %c0_568 = arith.constant 0 : index
      %c2_569 = arith.constant 2 : index
      %708 = arith.index_cast %arg8 : i32 to index
      %c0_570 = arith.constant 0 : index
      %c0_571 = arith.constant 0 : index
      %709 = vector.load %arg1[%c0_566, %c1_567, %c0_568, %c2_569, %708, %c0_570, %c0_571] : memref<1x2x2x3x16x16x128xf32, #tpu.memory_space<vmem>>, vector<1x1x1x1x12x12x128xf32>
      %710 = vector.shape_cast %709 : vector<1x1x1x1x12x12x128xf32> to vector<12x12x128xf32>
      %711 = vector.broadcast %707 : f32 to vector<12x12x128xf32>
      %712 = arith.mulf %711, %710 : vector<12x12x128xf32>
      %713 = arith.addf %700, %712 : vector<12x12x128xf32>
      %c2_i32_572 = arith.constant 2 : i32
      %714 = arith.muli %c2_i32_572, %arg8 : i32
      %c10_i32_573 = arith.constant 10 : i32
      %715 = arith.muli %714, %c10_i32_573 : i32
      %c210_i32_574 = arith.constant 210 : i32
      %716 = arith.addi %c210_i32_574, %715 : i32
      %c2_i32_575 = arith.constant 2 : i32
      %717 = arith.addi %716, %c2_i32_575 : i32
      %c0_i32_576 = arith.constant 0 : i32
      %718 = arith.addi %717, %c0_i32_576 : i32
      %719 = arith.index_cast %718 : i32 to index
      %720 = memref.load %arg2[%719] : memref<300xf32, #tpu.memory_space<smem>>
      %c0_577 = arith.constant 0 : index
      %c1_578 = arith.constant 1 : index
      %c0_579 = arith.constant 0 : index
      %c2_580 = arith.constant 2 : index
      %721 = arith.index_cast %arg8 : i32 to index
      %c1_581 = arith.constant 1 : index
      %c0_582 = arith.constant 0 : index
      %722 = vector.load %arg1[%c0_577, %c1_578, %c0_579, %c2_580, %721, %c1_581, %c0_582] : memref<1x2x2x3x16x16x128xf32, #tpu.memory_space<vmem>>, vector<1x1x1x1x12x12x128xf32>
      %723 = vector.shape_cast %722 : vector<1x1x1x1x12x12x128xf32> to vector<12x12x128xf32>
      %724 = vector.broadcast %720 : f32 to vector<12x12x128xf32>
      %725 = arith.mulf %724, %723 : vector<12x12x128xf32>
      %726 = arith.addf %713, %725 : vector<12x12x128xf32>
      %c2_i32_583 = arith.constant 2 : i32
      %727 = arith.muli %c2_i32_583, %arg8 : i32
      %c10_i32_584 = arith.constant 10 : i32
      %728 = arith.muli %727, %c10_i32_584 : i32
      %c210_i32_585 = arith.constant 210 : i32
      %729 = arith.addi %c210_i32_585, %728 : i32
      %c4_i32_586 = arith.constant 4 : i32
      %730 = arith.addi %729, %c4_i32_586 : i32
      %c0_i32_587 = arith.constant 0 : i32
      %731 = arith.addi %730, %c0_i32_587 : i32
      %732 = arith.index_cast %731 : i32 to index
      %733 = memref.load %arg2[%732] : memref<300xf32, #tpu.memory_space<smem>>
      %c0_588 = arith.constant 0 : index
      %c1_589 = arith.constant 1 : index
      %c0_590 = arith.constant 0 : index
      %c2_591 = arith.constant 2 : index
      %734 = arith.index_cast %arg8 : i32 to index
      %c2_592 = arith.constant 2 : index
      %c0_593 = arith.constant 0 : index
      %735 = vector.load %arg1[%c0_588, %c1_589, %c0_590, %c2_591, %734, %c2_592, %c0_593] : memref<1x2x2x3x16x16x128xf32, #tpu.memory_space<vmem>>, vector<1x1x1x1x12x12x128xf32>
      %736 = vector.shape_cast %735 : vector<1x1x1x1x12x12x128xf32> to vector<12x12x128xf32>
      %737 = vector.broadcast %733 : f32 to vector<12x12x128xf32>
      %738 = arith.mulf %737, %736 : vector<12x12x128xf32>
      %739 = arith.addf %726, %738 : vector<12x12x128xf32>
      %c2_i32_594 = arith.constant 2 : i32
      %740 = arith.muli %c2_i32_594, %arg8 : i32
      %c10_i32_595 = arith.constant 10 : i32
      %741 = arith.muli %740, %c10_i32_595 : i32
      %c210_i32_596 = arith.constant 210 : i32
      %742 = arith.addi %c210_i32_596, %741 : i32
      %c6_i32_597 = arith.constant 6 : i32
      %743 = arith.addi %742, %c6_i32_597 : i32
      %c0_i32_598 = arith.constant 0 : i32
      %744 = arith.addi %743, %c0_i32_598 : i32
      %745 = arith.index_cast %744 : i32 to index
      %746 = memref.load %arg2[%745] : memref<300xf32, #tpu.memory_space<smem>>
      %c0_599 = arith.constant 0 : index
      %c1_600 = arith.constant 1 : index
      %c0_601 = arith.constant 0 : index
      %c2_602 = arith.constant 2 : index
      %747 = arith.index_cast %arg8 : i32 to index
      %c3_603 = arith.constant 3 : index
      %c0_604 = arith.constant 0 : index
      %748 = vector.load %arg1[%c0_599, %c1_600, %c0_601, %c2_602, %747, %c3_603, %c0_604] : memref<1x2x2x3x16x16x128xf32, #tpu.memory_space<vmem>>, vector<1x1x1x1x12x12x128xf32>
      %749 = vector.shape_cast %748 : vector<1x1x1x1x12x12x128xf32> to vector<12x12x128xf32>
      %750 = vector.broadcast %746 : f32 to vector<12x12x128xf32>
      %751 = arith.mulf %750, %749 : vector<12x12x128xf32>
      %752 = arith.addf %739, %751 : vector<12x12x128xf32>
      %c2_i32_605 = arith.constant 2 : i32
      %753 = arith.muli %c2_i32_605, %arg8 : i32
      %c10_i32_606 = arith.constant 10 : i32
      %754 = arith.muli %753, %c10_i32_606 : i32
      %c210_i32_607 = arith.constant 210 : i32
      %755 = arith.addi %c210_i32_607, %754 : i32
      %c8_i32_608 = arith.constant 8 : i32
      %756 = arith.addi %755, %c8_i32_608 : i32
      %c0_i32_609 = arith.constant 0 : i32
      %757 = arith.addi %756, %c0_i32_609 : i32
      %758 = arith.index_cast %757 : i32 to index
      %759 = memref.load %arg2[%758] : memref<300xf32, #tpu.memory_space<smem>>
      %c0_610 = arith.constant 0 : index
      %c1_611 = arith.constant 1 : index
      %c0_612 = arith.constant 0 : index
      %c2_613 = arith.constant 2 : index
      %760 = arith.index_cast %arg8 : i32 to index
      %c4_614 = arith.constant 4 : index
      %c0_615 = arith.constant 0 : index
      %761 = vector.load %arg1[%c0_610, %c1_611, %c0_612, %c2_613, %760, %c4_614, %c0_615] : memref<1x2x2x3x16x16x128xf32, #tpu.memory_space<vmem>>, vector<1x1x1x1x12x12x128xf32>
      %762 = vector.shape_cast %761 : vector<1x1x1x1x12x12x128xf32> to vector<12x12x128xf32>
      %763 = vector.broadcast %759 : f32 to vector<12x12x128xf32>
      %764 = arith.mulf %763, %762 : vector<12x12x128xf32>
      %765 = arith.addf %752, %764 : vector<12x12x128xf32>
      %c2_i32_616 = arith.constant 2 : i32
      %766 = arith.muli %c2_i32_616, %arg8 : i32
      %c10_i32_617 = arith.constant 10 : i32
      %767 = arith.muli %766, %c10_i32_617 : i32
      %c210_i32_618 = arith.constant 210 : i32
      %768 = arith.addi %c210_i32_618, %767 : i32
      %c0_i32_619 = arith.constant 0 : i32
      %769 = arith.addi %768, %c0_i32_619 : i32
      %c1_i32_620 = arith.constant 1 : i32
      %770 = arith.addi %769, %c1_i32_620 : i32
      %771 = arith.index_cast %770 : i32 to index
      %772 = memref.load %arg2[%771] : memref<300xf32, #tpu.memory_space<smem>>
      %c0_621 = arith.constant 0 : index
      %c1_622 = arith.constant 1 : index
      %c1_623 = arith.constant 1 : index
      %c2_624 = arith.constant 2 : index
      %773 = arith.index_cast %arg8 : i32 to index
      %c0_625 = arith.constant 0 : index
      %c0_626 = arith.constant 0 : index
      %774 = vector.load %arg1[%c0_621, %c1_622, %c1_623, %c2_624, %773, %c0_625, %c0_626] : memref<1x2x2x3x16x16x128xf32, #tpu.memory_space<vmem>>, vector<1x1x1x1x12x12x128xf32>
      %775 = vector.shape_cast %774 : vector<1x1x1x1x12x12x128xf32> to vector<12x12x128xf32>
      %776 = vector.broadcast %772 : f32 to vector<12x12x128xf32>
      %777 = arith.mulf %776, %775 : vector<12x12x128xf32>
      %778 = arith.addf %765, %777 : vector<12x12x128xf32>
      %c2_i32_627 = arith.constant 2 : i32
      %779 = arith.muli %c2_i32_627, %arg8 : i32
      %c10_i32_628 = arith.constant 10 : i32
      %780 = arith.muli %779, %c10_i32_628 : i32
      %c210_i32_629 = arith.constant 210 : i32
      %781 = arith.addi %c210_i32_629, %780 : i32
      %c2_i32_630 = arith.constant 2 : i32
      %782 = arith.addi %781, %c2_i32_630 : i32
      %c1_i32_631 = arith.constant 1 : i32
      %783 = arith.addi %782, %c1_i32_631 : i32
      %784 = arith.index_cast %783 : i32 to index
      %785 = memref.load %arg2[%784] : memref<300xf32, #tpu.memory_space<smem>>
      %c0_632 = arith.constant 0 : index
      %c1_633 = arith.constant 1 : index
      %c1_634 = arith.constant 1 : index
      %c2_635 = arith.constant 2 : index
      %786 = arith.index_cast %arg8 : i32 to index
      %c1_636 = arith.constant 1 : index
      %c0_637 = arith.constant 0 : index
      %787 = vector.load %arg1[%c0_632, %c1_633, %c1_634, %c2_635, %786, %c1_636, %c0_637] : memref<1x2x2x3x16x16x128xf32, #tpu.memory_space<vmem>>, vector<1x1x1x1x12x12x128xf32>
      %788 = vector.shape_cast %787 : vector<1x1x1x1x12x12x128xf32> to vector<12x12x128xf32>
      %789 = vector.broadcast %785 : f32 to vector<12x12x128xf32>
      %790 = arith.mulf %789, %788 : vector<12x12x128xf32>
      %791 = arith.addf %778, %790 : vector<12x12x128xf32>
      %c2_i32_638 = arith.constant 2 : i32
      %792 = arith.muli %c2_i32_638, %arg8 : i32
      %c10_i32_639 = arith.constant 10 : i32
      %793 = arith.muli %792, %c10_i32_639 : i32
      %c210_i32_640 = arith.constant 210 : i32
      %794 = arith.addi %c210_i32_640, %793 : i32
      %c4_i32_641 = arith.constant 4 : i32
      %795 = arith.addi %794, %c4_i32_641 : i32
      %c1_i32_642 = arith.constant 1 : i32
      %796 = arith.addi %795, %c1_i32_642 : i32
      %797 = arith.index_cast %796 : i32 to index
      %798 = memref.load %arg2[%797] : memref<300xf32, #tpu.memory_space<smem>>
      %c0_643 = arith.constant 0 : index
      %c1_644 = arith.constant 1 : index
      %c1_645 = arith.constant 1 : index
      %c2_646 = arith.constant 2 : index
      %799 = arith.index_cast %arg8 : i32 to index
      %c2_647 = arith.constant 2 : index
      %c0_648 = arith.constant 0 : index
      %800 = vector.load %arg1[%c0_643, %c1_644, %c1_645, %c2_646, %799, %c2_647, %c0_648] : memref<1x2x2x3x16x16x128xf32, #tpu.memory_space<vmem>>, vector<1x1x1x1x12x12x128xf32>
      %801 = vector.shape_cast %800 : vector<1x1x1x1x12x12x128xf32> to vector<12x12x128xf32>
      %802 = vector.broadcast %798 : f32 to vector<12x12x128xf32>
      %803 = arith.mulf %802, %801 : vector<12x12x128xf32>
      %804 = arith.addf %791, %803 : vector<12x12x128xf32>
      %c2_i32_649 = arith.constant 2 : i32
      %805 = arith.muli %c2_i32_649, %arg8 : i32
      %c10_i32_650 = arith.constant 10 : i32
      %806 = arith.muli %805, %c10_i32_650 : i32
      %c210_i32_651 = arith.constant 210 : i32
      %807 = arith.addi %c210_i32_651, %806 : i32
      %c6_i32_652 = arith.constant 6 : i32
      %808 = arith.addi %807, %c6_i32_652 : i32
      %c1_i32_653 = arith.constant 1 : i32
      %809 = arith.addi %808, %c1_i32_653 : i32
      %810 = arith.index_cast %809 : i32 to index
      %811 = memref.load %arg2[%810] : memref<300xf32, #tpu.memory_space<smem>>
      %c0_654 = arith.constant 0 : index
      %c1_655 = arith.constant 1 : index
      %c1_656 = arith.constant 1 : index
      %c2_657 = arith.constant 2 : index
      %812 = arith.index_cast %arg8 : i32 to index
      %c3_658 = arith.constant 3 : index
      %c0_659 = arith.constant 0 : index
      %813 = vector.load %arg1[%c0_654, %c1_655, %c1_656, %c2_657, %812, %c3_658, %c0_659] : memref<1x2x2x3x16x16x128xf32, #tpu.memory_space<vmem>>, vector<1x1x1x1x12x12x128xf32>
      %814 = vector.shape_cast %813 : vector<1x1x1x1x12x12x128xf32> to vector<12x12x128xf32>
      %815 = vector.broadcast %811 : f32 to vector<12x12x128xf32>
      %816 = arith.mulf %815, %814 : vector<12x12x128xf32>
      %817 = arith.addf %804, %816 : vector<12x12x128xf32>
      %c2_i32_660 = arith.constant 2 : i32
      %818 = arith.muli %c2_i32_660, %arg8 : i32
      %c10_i32_661 = arith.constant 10 : i32
      %819 = arith.muli %818, %c10_i32_661 : i32
      %c210_i32_662 = arith.constant 210 : i32
      %820 = arith.addi %c210_i32_662, %819 : i32
      %c8_i32_663 = arith.constant 8 : i32
      %821 = arith.addi %820, %c8_i32_663 : i32
      %c1_i32_664 = arith.constant 1 : i32
      %822 = arith.addi %821, %c1_i32_664 : i32
      %823 = arith.index_cast %822 : i32 to index
      %824 = memref.load %arg2[%823] : memref<300xf32, #tpu.memory_space<smem>>
      %c0_665 = arith.constant 0 : index
      %c1_666 = arith.constant 1 : index
      %c1_667 = arith.constant 1 : index
      %c2_668 = arith.constant 2 : index
      %825 = arith.index_cast %arg8 : i32 to index
      %c4_669 = arith.constant 4 : index
      %c0_670 = arith.constant 0 : index
      %826 = vector.load %arg1[%c0_665, %c1_666, %c1_667, %c2_668, %825, %c4_669, %c0_670] : memref<1x2x2x3x16x16x128xf32, #tpu.memory_space<vmem>>, vector<1x1x1x1x12x12x128xf32>
      %827 = vector.shape_cast %826 : vector<1x1x1x1x12x12x128xf32> to vector<12x12x128xf32>
      %828 = vector.broadcast %824 : f32 to vector<12x12x128xf32>
      %829 = arith.mulf %828, %827 : vector<12x12x128xf32>
      %830 = arith.addf %817, %829 : vector<12x12x128xf32>
      scf.yield %830 : vector<12x12x128xf32>
    }
    %c5_i32_0 = arith.constant 5 : i32
    %c0 = arith.constant 0 : index
    %3 = memref.load %arg3[%c0] : memref<1xf32, #tpu.memory_space<smem>>
    %4 = vector.broadcast %3 : f32 to vector<12x12x128xf32>
    %5 = arith.addf %2, %4 : vector<12x12x128xf32>
    %cst_1 = arith.constant 0.000000e+00 : f32
    %6 = vector.broadcast %cst_1 : f32 to vector<12x12x128xf32>
    %7 = arith.maximumf %5, %6 : vector<12x12x128xf32>
    %8 = vector.extract_strided_slice %7 {offsets = [0, 0, 0], sizes = [1, 12, 128], strides = [1, 1, 1]} : vector<12x12x128xf32> to vector<1x12x128xf32>
    %9 = vector.shape_cast %8 : vector<1x12x128xf32> to vector<12x128xf32>
    %c0_2 = arith.constant 0 : index
    %c0_3 = arith.constant 0 : index
    %10 = vector.load %arg7[%c0_2, %c0_3] : memref<144x128xf32, #tpu.memory_space<vmem>>, vector<12x128xf32>
    tpu.vector_store %arg7[%c0_2, %c0_3], %9 {strides = array<i32>} : memref<144x128xf32, #tpu.memory_space<vmem>>, vector<12x128xf32>,
    %11 = vector.extract_strided_slice %7 {offsets = [1, 0, 0], sizes = [1, 12, 128], strides = [1, 1, 1]} : vector<12x12x128xf32> to vector<1x12x128xf32>
    %12 = vector.shape_cast %11 : vector<1x12x128xf32> to vector<12x128xf32>
    %c12 = arith.constant 12 : index
    %c0_4 = arith.constant 0 : index
    %13 = vector.load %arg7[%c12, %c0_4] : memref<144x128xf32, #tpu.memory_space<vmem>>, vector<12x128xf32>
    tpu.vector_store %arg7[%c12, %c0_4], %12 {strides = array<i32>} : memref<144x128xf32, #tpu.memory_space<vmem>>, vector<12x128xf32>,
    %14 = vector.extract_strided_slice %7 {offsets = [2, 0, 0], sizes = [1, 12, 128], strides = [1, 1, 1]} : vector<12x12x128xf32> to vector<1x12x128xf32>
    %15 = vector.shape_cast %14 : vector<1x12x128xf32> to vector<12x128xf32>
    %c24 = arith.constant 24 : index
    %c0_5 = arith.constant 0 : index
    %16 = vector.load %arg7[%c24, %c0_5] : memref<144x128xf32, #tpu.memory_space<vmem>>, vector<12x128xf32>
    tpu.vector_store %arg7[%c24, %c0_5], %15 {strides = array<i32>} : memref<144x128xf32, #tpu.memory_space<vmem>>, vector<12x128xf32>,
    %17 = vector.extract_strided_slice %7 {offsets = [3, 0, 0], sizes = [1, 12, 128], strides = [1, 1, 1]} : vector<12x12x128xf32> to vector<1x12x128xf32>
    %18 = vector.shape_cast %17 : vector<1x12x128xf32> to vector<12x128xf32>
    %c36 = arith.constant 36 : index
    %c0_6 = arith.constant 0 : index
    %19 = vector.load %arg7[%c36, %c0_6] : memref<144x128xf32, #tpu.memory_space<vmem>>, vector<12x128xf32>
    tpu.vector_store %arg7[%c36, %c0_6], %18 {strides = array<i32>} : memref<144x128xf32, #tpu.memory_space<vmem>>, vector<12x128xf32>,
    %20 = vector.extract_strided_slice %7 {offsets = [4, 0, 0], sizes = [1, 12, 128], strides = [1, 1, 1]} : vector<12x12x128xf32> to vector<1x12x128xf32>
    %21 = vector.shape_cast %20 : vector<1x12x128xf32> to vector<12x128xf32>
    %c48 = arith.constant 48 : index
    %c0_7 = arith.constant 0 : index
    %22 = vector.load %arg7[%c48, %c0_7] : memref<144x128xf32, #tpu.memory_space<vmem>>, vector<12x128xf32>
    tpu.vector_store %arg7[%c48, %c0_7], %21 {strides = array<i32>} : memref<144x128xf32, #tpu.memory_space<vmem>>, vector<12x128xf32>,
    %23 = vector.extract_strided_slice %7 {offsets = [5, 0, 0], sizes = [1, 12, 128], strides = [1, 1, 1]} : vector<12x12x128xf32> to vector<1x12x128xf32>
    %24 = vector.shape_cast %23 : vector<1x12x128xf32> to vector<12x128xf32>
    %c60 = arith.constant 60 : index
    %c0_8 = arith.constant 0 : index
    %25 = vector.load %arg7[%c60, %c0_8] : memref<144x128xf32, #tpu.memory_space<vmem>>, vector<12x128xf32>
    tpu.vector_store %arg7[%c60, %c0_8], %24 {strides = array<i32>} : memref<144x128xf32, #tpu.memory_space<vmem>>, vector<12x128xf32>,
    %26 = vector.extract_strided_slice %7 {offsets = [6, 0, 0], sizes = [1, 12, 128], strides = [1, 1, 1]} : vector<12x12x128xf32> to vector<1x12x128xf32>
    %27 = vector.shape_cast %26 : vector<1x12x128xf32> to vector<12x128xf32>
    %c72 = arith.constant 72 : index
    %c0_9 = arith.constant 0 : index
    %28 = vector.load %arg7[%c72, %c0_9] : memref<144x128xf32, #tpu.memory_space<vmem>>, vector<12x128xf32>
    tpu.vector_store %arg7[%c72, %c0_9], %27 {strides = array<i32>} : memref<144x128xf32, #tpu.memory_space<vmem>>, vector<12x128xf32>,
    %29 = vector.extract_strided_slice %7 {offsets = [7, 0, 0], sizes = [1, 12, 128], strides = [1, 1, 1]} : vector<12x12x128xf32> to vector<1x12x128xf32>
    %30 = vector.shape_cast %29 : vector<1x12x128xf32> to vector<12x128xf32>
    %c84 = arith.constant 84 : index
    %c0_10 = arith.constant 0 : index
    %31 = vector.load %arg7[%c84, %c0_10] : memref<144x128xf32, #tpu.memory_space<vmem>>, vector<12x128xf32>
    tpu.vector_store %arg7[%c84, %c0_10], %30 {strides = array<i32>} : memref<144x128xf32, #tpu.memory_space<vmem>>, vector<12x128xf32>,
    %32 = vector.extract_strided_slice %7 {offsets = [8, 0, 0], sizes = [1, 12, 128], strides = [1, 1, 1]} : vector<12x12x128xf32> to vector<1x12x128xf32>
    %33 = vector.shape_cast %32 : vector<1x12x128xf32> to vector<12x128xf32>
    %c96 = arith.constant 96 : index
    %c0_11 = arith.constant 0 : index
    %34 = vector.load %arg7[%c96, %c0_11] : memref<144x128xf32, #tpu.memory_space<vmem>>, vector<12x128xf32>
    tpu.vector_store %arg7[%c96, %c0_11], %33 {strides = array<i32>} : memref<144x128xf32, #tpu.memory_space<vmem>>, vector<12x128xf32>,
    %35 = vector.extract_strided_slice %7 {offsets = [9, 0, 0], sizes = [1, 12, 128], strides = [1, 1, 1]} : vector<12x12x128xf32> to vector<1x12x128xf32>
    %36 = vector.shape_cast %35 : vector<1x12x128xf32> to vector<12x128xf32>
    %c108 = arith.constant 108 : index
    %c0_12 = arith.constant 0 : index
    %37 = vector.load %arg7[%c108, %c0_12] : memref<144x128xf32, #tpu.memory_space<vmem>>, vector<12x128xf32>
    tpu.vector_store %arg7[%c108, %c0_12], %36 {strides = array<i32>} : memref<144x128xf32, #tpu.memory_space<vmem>>, vector<12x128xf32>,
    %38 = vector.extract_strided_slice %7 {offsets = [10, 0, 0], sizes = [1, 12, 128], strides = [1, 1, 1]} : vector<12x12x128xf32> to vector<1x12x128xf32>
    %39 = vector.shape_cast %38 : vector<1x12x128xf32> to vector<12x128xf32>
    %c120 = arith.constant 120 : index
    %c0_13 = arith.constant 0 : index
    %40 = vector.load %arg7[%c120, %c0_13] : memref<144x128xf32, #tpu.memory_space<vmem>>, vector<12x128xf32>
    tpu.vector_store %arg7[%c120, %c0_13], %39 {strides = array<i32>} : memref<144x128xf32, #tpu.memory_space<vmem>>, vector<12x128xf32>,
    %41 = vector.extract_strided_slice %7 {offsets = [11, 0, 0], sizes = [1, 12, 128], strides = [1, 1, 1]} : vector<12x12x128xf32> to vector<1x12x128xf32>
    %42 = vector.shape_cast %41 : vector<1x12x128xf32> to vector<12x128xf32>
    %c132 = arith.constant 132 : index
    %c0_14 = arith.constant 0 : index
    %43 = vector.load %arg7[%c132, %c0_14] : memref<144x128xf32, #tpu.memory_space<vmem>>, vector<12x128xf32>
    tpu.vector_store %arg7[%c132, %c0_14], %42 {strides = array<i32>} : memref<144x128xf32, #tpu.memory_space<vmem>>, vector<12x128xf32>,
    %c0_15 = arith.constant 0 : index
    %c0_16 = arith.constant 0 : index
    %44 = vector.load %arg4[%c0_15, %c0_16] : memref<128x144xf32, #tpu.memory_space<vmem>>, vector<128x144xf32>
    %c0_17 = arith.constant 0 : index
    %c0_18 = arith.constant 0 : index
    %45 = vector.load %arg7[%c0_17, %c0_18] : memref<144x128xf32, #tpu.memory_space<vmem>>, vector<144x128xf32>
    %cst_19 = arith.constant dense<0.000000e+00> : vector<128x128xf32>
    %46 = tpu.matmul %44, %45, %cst_19 {dimension_numbers = #tpu.dot_dimension_numbers<[1], [0], [0], [1], [0, 0, 1, 1], [], []>} : vector<128x144xf32>, vector<144x128xf32>, vector<128x128xf32> -> vector<128x128xf32>
    %c0_20 = arith.constant 0 : index
    %c0_21 = arith.constant 0 : index
    %47 = vector.load %arg5[%c0_20, %c0_21] : memref<128x1xf32, #tpu.memory_space<vmem>>, vector<128x1xf32>
    %48 = vector.broadcast %47 : vector<128x1xf32> to vector<128x128xf32>
    %49 = arith.addf %46, %48 : vector<128x128xf32>
    %c0_22 = arith.constant 0 : index
    %c0_23 = arith.constant 0 : index
    %50 = vector.load %arg6[%c0_22, %c0_23] : memref<128x128xf32, #tpu.memory_space<vmem>>, vector<128x128xf32>
    tpu.vector_store %arg6[%c0_22, %c0_23], %49 {strides = array<i32>} : memref<128x128xf32, #tpu.memory_space<vmem>>, vector<128x128xf32>,
    return
  }
  func.func @transform_0(%arg0: i32) -> (i32, i32, i32, i32, i32, i32, i32) {
    %c0_i32 = arith.constant 0 : i32
    %c0_i32_0 = arith.constant 0 : i32
    %c0_i32_1 = arith.constant 0 : i32
    %c0_i32_2 = arith.constant 0 : i32
    %c0_i32_3 = arith.constant 0 : i32
    %c0_i32_4 = arith.constant 0 : i32
    %c0_i32_5 = arith.constant 0 : i32
    return %arg0, %c0_i32, %c0_i32_0, %c0_i32_1, %c0_i32_2, %c0_i32_3, %c0_i32_4 : i32, i32, i32, i32, i32, i32, i32
  }
  func.func @transform_1(%arg0: i32) -> i32 {
    %c0_i32 = arith.constant 0 : i32
    %c0_i32_0 = arith.constant 0 : i32
    return %c0_i32 : i32
  }
  func.func @transform_2(%arg0: i32) -> i32 {
    %c0_i32 = arith.constant 0 : i32
    %c0_i32_0 = arith.constant 0 : i32
    return %c0_i32 : i32
  }
  func.func @transform_3(%arg0: i32) -> (i32, i32) {
    %c0_i32 = arith.constant 0 : i32
    %c0_i32_0 = arith.constant 0 : i32
    %c0_i32_1 = arith.constant 0 : i32
    return %c0_i32, %c0_i32_0 : i32, i32
  }
  func.func @transform_4(%arg0: i32) -> (i32, i32) {
    %c0_i32 = arith.constant 0 : i32
    %c0_i32_0 = arith.constant 0 : i32
    %c0_i32_1 = arith.constant 0 : i32
    return %c0_i32, %c0_i32_0 : i32, i32
  }
  func.func @transform_5(%arg0: i32) -> (i32, i32) {
    %c0_i32 = arith.constant 0 : i32
    %c0_i32_0 = arith.constant 0 : i32
    return %c0_i32, %arg0 : i32, i32
  }
}

</mosaic_0001>

<llo_original>
// kernel: tpu_custom_call.1
$region0: #{tpu_custom_call.1}
  #allocation0 [shape = 'u32[]', space=smem, size = 0x4, offset = 0x4, fixed_abs, tag = 'smem constant byte address 0x4 - core index']
  #allocation1 [shape = 'u32[72,128]{1,0:T(1,128)}', space=vmem, size = 0x9000, scoped, tag = 'internal scratch']
  #allocation2 [shape = 'f32[144,128]{1,0:T(8,128)}', space=vmem, size = 0x12000, scoped, tag = 'scratch operand']
  #allocation3 [shape = 'f32[1]{0:T(128)S(6)}', space=smem, size = 0x200, scoped, tag = 'scoped memory for tpu_custom_call.1']
  %s0 = inlined_call_operand.hbm [shape: f32[1,2,2,3,16,16,128], index: 0, kind: input, shape index: {}]
  %s1 = inlined_call_operand.hbm [shape: f32[300], index: 1, kind: input, shape index: {}]
  %s2 = inlined_call_operand.<no memory space> [shape: f32[1], index: 2, kind: input, shape index: {}]
  %s3 = inlined_call_operand.vmem [shape: f32[128,144], index: 3, kind: input, shape index: {}]
  %s4 = inlined_call_operand.vmem [shape: f32[128,1], index: 4, kind: input, shape index: {}]
  %s5 = inlined_call_operand.hbm [shape: f32[128,128], index: 5, kind: output, shape index: {}]
  %s6 = sld [smem:[#allocation0]]
  $region45: #{tpu_custom_call.1} parent=0
    _
  %s8 = ssub.s32 1, %s6
  %s9 = scalar_select 0, %s8, %s6
  %10 = sst [smem:[#allocation3]] %s2
  $region1: #{tpu_custom_call.1} parent=0
    #allocation4 [shape = 'u8[1572864]{0}', space=vmem, size = 0x180000, scoped, tag = 'input window, operand 0, single buffered']
    #allocation5 [shape = 's32[1]{0}', space=sflag, size = 0x4, scoped, tag = 'scoped memory for tpu_custom_call.1']
    #allocation6 [shape = 's32[1]{0}', space=sflag, size = 0x4, scoped, tag = 'scoped memory for tpu_custom_call.1']
    #allocation7 [shape = 's32[1]{0}', space=sflag, size = 0x4, scoped, tag = 'scoped memory for tpu_custom_call.1']
    #allocation8 [shape = 'u8[1536]{0}', space=smem, size = 0x600, scoped, tag = 'input window, operand 1, single buffered']
    #allocation9 [shape = 'u8[65536]{0}', space=vmem, size = 0x10000, scoped, tag = 'output window, operand 0, single buffered']
    %11 = vsyncpa [#allocation5], 0
    %12 = vsyncpa [#allocation7], 0
    %13 = vsyncpa [#allocation6], 0
    // Predicated region
    $region2: #{tpu_custom_call.1} parent=1 // pred_check
      _
    $region3: #{tpu_custom_call.1} parent=1 // pred_check_branch
      %15 = sbr.rel (0) target = $region5
    $region4: #{tpu_custom_call.1} parent=1 // pred_region
      %17 = vsyncadd [#allocation5], 0
      %s18 = sshll.u32 %s0, 4
      %s19 = int_to_ptr.hbm [resolvable:$true] %s18
      %s20 = sshll.u32 [#allocation4], 4
      %s21 = int_to_ptr.vmem [resolvable:$true] %s20
      %26 = dma.hbm_to_vmem [thread:$0]  %s19, 49152, %s21, [#allocation5], 128, 128, 8
    $region5: #{tpu_custom_call.1} parent=1 // pred_fallthru
      _
    // Predicated region
    $region6: #{tpu_custom_call.1} parent=1 // pred_check
      _
    $region7: #{tpu_custom_call.1} parent=1 // pred_check_branch
      %28 = sbr.rel (0) target = $region9
    $region8: #{tpu_custom_call.1} parent=1 // pred_region
      %30 = vsyncadd [#allocation7], 0
      %s32 = sshll.u32 %s1, 4
      %s33 = int_to_ptr.hbm [resolvable:$true] %s32
      %35 = dma.hbm_to_smem %s33, 48, [#allocation8], [#allocation7]
    $region9: #{tpu_custom_call.1} parent=1 // pred_fallthru
      _
    // Predicated region
    $region10: #{tpu_custom_call.1} parent=1 // pred_check
      _
    $region11: #{tpu_custom_call.1} parent=1 // pred_check_branch
      %37 = sbr.rel (0) target = $region13
    $region12: #{tpu_custom_call.1} parent=1 // pred_region
      _
    $region13: #{tpu_custom_call.1} parent=1 // pred_fallthru
      _
    // Predicated region
    $region14: #{tpu_custom_call.1} parent=1 // pred_check
      _
    $region15: #{tpu_custom_call.1} parent=1 // pred_check_branch
      %39 = sbr.rel (0) target = $region17
    $region16: #{tpu_custom_call.1} parent=1 // pred_region
      _
    $region17: #{tpu_custom_call.1} parent=1 // pred_fallthru
      _
    // Predicated region
    $region18: #{tpu_custom_call.1} parent=1 // pred_check
      _
    $region19: #{tpu_custom_call.1} parent=1 // pred_check_branch
      %41 = sbr.rel (0) target = $region21
    $region20: #{tpu_custom_call.1} parent=1 // pred_region
      _
    $region21: #{tpu_custom_call.1} parent=1 // pred_fallthru
      _
    // Predicated region
    $region22: #{tpu_custom_call.1} parent=1 // pred_check
      _
    $region23: #{tpu_custom_call.1} parent=1 // pred_check_branch
      %43 = sbr.rel (0) target = $region25
    $region24: #{tpu_custom_call.1} parent=1 // pred_region
      %45 = dma.done [#allocation5], 49152
    $region25: #{tpu_custom_call.1} parent=1 // pred_fallthru
      _
    // Predicated region
    $region26: #{tpu_custom_call.1} parent=1 // pred_check
      _
    $region27: #{tpu_custom_call.1} parent=1 // pred_check_branch
      %47 = sbr.rel (0) target = $region29
    $region28: #{tpu_custom_call.1} parent=1 // pred_region
      %49 = dma.done [#allocation7], 48
    $region29: #{tpu_custom_call.1} parent=1 // pred_fallthru
      _
    %50 = sfence
    loop: start=0, step=1, limit=5
    $region30: #{tpu_custom_call.1} parent=1 // loop_pre_header
      _
    $region31: #{tpu_custom_call.1} parent=1 // loop_header
      %s52 = sphi 0, %s56
      %p53 = scmp.ge.s32.totalorder %s52, 5
      %v57 = vphi 0.0, %v4581
      %v58 = vphi 0.0, %v4582
      %v59 = vphi 0.0, %v4583
      %v60 = vphi 0.0, %v4584
      %v61 = vphi 0.0, %v4585
      %v62 = vphi 0.0, %v4586
      %v63 = vphi 0.0, %v4587
      %v64 = vphi 0.0, %v4588
      %v65 = vphi 0.0, %v4589
      %v66 = vphi 0.0, %v4590
      %v67 = vphi 0.0, %v4591
      %v68 = vphi 0.0, %v4592
      %v69 = vphi 0.0, %v4593
      %v70 = vphi 0.0, %v4594
      %v71 = vphi 0.0, %v4595
      %v72 = vphi 0.0, %v4596
      %v73 = vphi 0.0, %v4597
      %v74 = vphi 0.0, %v4598
      %v75 = vphi 0.0, %v4599
      %v76 = vphi 0.0, %v4600
      %v77 = vphi 0.0, %v4601
      %v78 = vphi 0.0, %v4602
      %v79 = vphi 0.0, %v4603
      %v80 = vphi 0.0, %v4604
    $region32: #{tpu_custom_call.1} parent=1 // loop_header_branch
      %55 = sbr.rel (%p53) target = $region36
    $region33: #{tpu_custom_call.1} parent=1 // loop_body
      %s81 = smul.u32 %s52, 20
      %s82 = sld [smem:[#allocation8 + %s81]]
      %s83 = smul.u32 %s52, 16
      %s84 = scalar_lea.vmem [#allocation4], %s83
      %v85 = vld [vmem:[%s84] sm:$0xff]
      %v86 = vld [vmem:[%s84 + $0x8] sm:$0xf]
      %v87 = vld [vmem:[%s84 + $0x10] sm:$0xff]
      %v88 = vld [vmem:[%s84 + $0x18] sm:$0xf]
      %v89 = vld [vmem:[%s84 + $0x20] sm:$0xff]
      %v90 = vld [vmem:[%s84 + $0x28] sm:$0xf]
      %v91 = vld [vmem:[%s84 + $0x30] sm:$0xff]
      %v92 = vld [vmem:[%s84 + $0x38] sm:$0xf]
      %v93 = vld [vmem:[%s84 + $0x40] sm:$0xff]
      %v94 = vld [vmem:[%s84 + $0x48] sm:$0xf]
      %v95 = vld [vmem:[%s84 + $0x50] sm:$0xff]
      %v96 = vld [vmem:[%s84 + $0x58] sm:$0xf]
      %v97 = vld [vmem:[%s84 + $0x60] sm:$0xff]
      %v98 = vld [vmem:[%s84 + $0x68] sm:$0xf]
      %v99 = vld [vmem:[%s84 + $0x70] sm:$0xff]
      %v100 = vld [vmem:[%s84 + $0x78] sm:$0xf]
      %v101 = vld [vmem:[%s84 + $0x80] sm:$0xff]
      %v102 = vld [vmem:[%s84 + $0x88] sm:$0xf]
      %v103 = vld [vmem:[%s84 + $0x90] sm:$0xff]
      %v104 = vld [vmem:[%s84 + $0x98] sm:$0xf]
      %v105 = vld [vmem:[%s84 + $0xa0] sm:$0xff]
      %v106 = vld [vmem:[%s84 + $0xa8] sm:$0xf]
      %v107 = vld [vmem:[%s84 + $0xb0] sm:$0xff]
      %v108 = vld [vmem:[%s84 + $0xb8] sm:$0xf]
      %v109 = vstv %s82
      %v110 = vmul.f32 %v109, %v85
      %v111 = vmul.f32 %v109, %v86
      %v112 = vmul.f32 %v109, %v87
      %v113 = vmul.f32 %v109, %v88
      %v114 = vmul.f32 %v109, %v89
      %v115 = vmul.f32 %v109, %v90
      %v116 = vmul.f32 %v109, %v91
      %v117 = vmul.f32 %v109, %v92
      %v118 = vmul.f32 %v109, %v93
      %v119 = vmul.f32 %v109, %v94
      %v120 = vmul.f32 %v109, %v95
      %v121 = vmul.f32 %v109, %v96
      %v122 = vmul.f32 %v109, %v97
      %v123 = vmul.f32 %v109, %v98
      %v124 = vmul.f32 %v109, %v99
      %v125 = vmul.f32 %v109, %v100
      %v126 = vmul.f32 %v109, %v101
      %v127 = vmul.f32 %v109, %v102
      %v128 = vmul.f32 %v109, %v103
      %v129 = vmul.f32 %v109, %v104
      %v130 = vmul.f32 %v109, %v105
      %v131 = vmul.f32 %v109, %v106
      %v132 = vmul.f32 %v109, %v107
      %v133 = vmul.f32 %v109, %v108
      %v134 = vadd.f32 %v57, %v110
      %v135 = vadd.f32 %v58, %v111
      %v136 = vadd.f32 %v59, %v112
      %v137 = vadd.f32 %v60, %v113
      %v138 = vadd.f32 %v61, %v114
      %v139 = vadd.f32 %v62, %v115
      %v140 = vadd.f32 %v63, %v116
      %v141 = vadd.f32 %v64, %v117
      %v142 = vadd.f32 %v65, %v118
      %v143 = vadd.f32 %v66, %v119
      %v144 = vadd.f32 %v67, %v120
      %v145 = vadd.f32 %v68, %v121
      %v146 = vadd.f32 %v69, %v122
      %v147 = vadd.f32 %v70, %v123
      %v148 = vadd.f32 %v71, %v124
      %v149 = vadd.f32 %v72, %v125
      %v150 = vadd.f32 %v73, %v126
      %v151 = vadd.f32 %v74, %v127
      %v152 = vadd.f32 %v75, %v128
      %v153 = vadd.f32 %v76, %v129
      %v154 = vadd.f32 %v77, %v130
      %v155 = vadd.f32 %v78, %v131
      %v156 = vadd.f32 %v79, %v132
      %v157 = vadd.f32 %v80, %v133
      %s158 = sadd.s32 %s81, 2
      %s159 = sld [smem:[#allocation8 + %s158]]
      %v160 = vld [vmem:[%s84 + $0x1] sm:$0xff]
      %v161 = vld [vmem:[%s84 + $0x9] sm:$0xf]
      %v162 = vld [vmem:[%s84 + $0x11] sm:$0xff]
      %v163 = vld [vmem:[%s84 + $0x19] sm:$0xf]
      %v164 = vld [vmem:[%s84 + $0x21] sm:$0xff]
      %v165 = vld [vmem:[%s84 + $0x29] sm:$0xf]
      %v166 = vld [vmem:[%s84 + $0x31] sm:$0xff]
      %v167 = vld [vmem:[%s84 + $0x39] sm:$0xf]
      %v168 = vld [vmem:[%s84 + $0x41] sm:$0xff]
      %v169 = vld [vmem:[%s84 + $0x49] sm:$0xf]
      %v170 = vld [vmem:[%s84 + $0x51] sm:$0xff]
      %v171 = vld [vmem:[%s84 + $0x59] sm:$0xf]
      %v172 = vld [vmem:[%s84 + $0x61] sm:$0xff]
      %v173 = vld [vmem:[%s84 + $0x69] sm:$0xf]
      %v174 = vld [vmem:[%s84 + $0x71] sm:$0xff]
      %v175 = vld [vmem:[%s84 + $0x79] sm:$0xf]
      %v176 = vld [vmem:[%s84 + $0x81] sm:$0xff]
      %v177 = vld [vmem:[%s84 + $0x89] sm:$0xf]
      %v178 = vld [vmem:[%s84 + $0x91] sm:$0xff]
      %v179 = vld [vmem:[%s84 + $0x99] sm:$0xf]
      %v180 = vld [vmem:[%s84 + $0xa1] sm:$0xff]
      %v181 = vld [vmem:[%s84 + $0xa9] sm:$0xf]
      %v182 = vld [vmem:[%s84 + $0xb1] sm:$0xff]
      %v183 = vld [vmem:[%s84 + $0xb9] sm:$0xf]
      %v184 = vstv %s159
      %v185 = vmul.f32 %v184, %v160
      %v186 = vmul.f32 %v184, %v161
      %v187 = vmul.f32 %v184, %v162
      %v188 = vmul.f32 %v184, %v163
      %v189 = vmul.f32 %v184, %v164
      %v190 = vmul.f32 %v184, %v165
      %v191 = vmul.f32 %v184, %v166
      %v192 = vmul.f32 %v184, %v167
      %v193 = vmul.f32 %v184, %v168
      %v194 = vmul.f32 %v184, %v169
      %v195 = vmul.f32 %v184, %v170
      %v196 = vmul.f32 %v184, %v171
      %v197 = vmul.f32 %v184, %v172
      %v198 = vmul.f32 %v184, %v173
      %v199 = vmul.f32 %v184, %v174
      %v200 = vmul.f32 %v184, %v175
      %v201 = vmul.f32 %v184, %v176
      %v202 = vmul.f32 %v184, %v177
      %v203 = vmul.f32 %v184, %v178
      %v204 = vmul.f32 %v184, %v179
      %v205 = vmul.f32 %v184, %v180
      %v206 = vmul.f32 %v184, %v181
      %v207 = vmul.f32 %v184, %v182
      %v208 = vmul.f32 %v184, %v183
      %v209 = vadd.f32 %v134, %v185
      %v210 = vadd.f32 %v135, %v186
      %v211 = vadd.f32 %v136, %v187
      %v212 = vadd.f32 %v137, %v188
      %v213 = vadd.f32 %v138, %v189
      %v214 = vadd.f32 %v139, %v190
      %v215 = vadd.f32 %v140, %v191
      %v216 = vadd.f32 %v141, %v192
      %v217 = vadd.f32 %v142, %v193
      %v218 = vadd.f32 %v143, %v194
      %v219 = vadd.f32 %v144, %v195
      %v220 = vadd.f32 %v145, %v196
      %v221 = vadd.f32 %v146, %v197
      %v222 = vadd.f32 %v147, %v198
      %v223 = vadd.f32 %v148, %v199
      %v224 = vadd.f32 %v149, %v200
      %v225 = vadd.f32 %v150, %v201
      %v226 = vadd.f32 %v151, %v202
      %v227 = vadd.f32 %v152, %v203
      %v228 = vadd.f32 %v153, %v204
      %v229 = vadd.f32 %v154, %v205
      %v230 = vadd.f32 %v155, %v206
      %v231 = vadd.f32 %v156, %v207
      %v232 = vadd.f32 %v157, %v208
      %s233 = sadd.s32 %s81, 4
      %s234 = sld [smem:[#allocation8 + %s233]]
      %v235 = vld [vmem:[%s84 + $0x2] sm:$0xff]
      %v236 = vld [vmem:[%s84 + $0xa] sm:$0xf]
      %v237 = vld [vmem:[%s84 + $0x12] sm:$0xff]
      %v238 = vld [vmem:[%s84 + $0x1a] sm:$0xf]
      %v239 = vld [vmem:[%s84 + $0x22] sm:$0xff]
      %v240 = vld [vmem:[%s84 + $0x2a] sm:$0xf]
      %v241 = vld [vmem:[%s84 + $0x32] sm:$0xff]
      %v242 = vld [vmem:[%s84 + $0x3a] sm:$0xf]
      %v243 = vld [vmem:[%s84 + $0x42] sm:$0xff]
      %v244 = vld [vmem:[%s84 + $0x4a] sm:$0xf]
      %v245 = vld [vmem:[%s84 + $0x52] sm:$0xff]
      %v246 = vld [vmem:[%s84 + $0x5a] sm:$0xf]
      %v247 = vld [vmem:[%s84 + $0x62] sm:$0xff]
      %v248 = vld [vmem:[%s84 + $0x6a] sm:$0xf]
      %v249 = vld [vmem:[%s84 + $0x72] sm:$0xff]
      %v250 = vld [vmem:[%s84 + $0x7a] sm:$0xf]
      %v251 = vld [vmem:[%s84 + $0x82] sm:$0xff]
      %v252 = vld [vmem:[%s84 + $0x8a] sm:$0xf]
      %v253 = vld [vmem:[%s84 + $0x92] sm:$0xff]
      %v254 = vld [vmem:[%s84 + $0x9a] sm:$0xf]
      %v255 = vld [vmem:[%s84 + $0xa2] sm:$0xff]
      %v256 = vld [vmem:[%s84 + $0xaa] sm:$0xf]
      %v257 = vld [vmem:[%s84 + $0xb2] sm:$0xff]
      %v258 = vld [vmem:[%s84 + $0xba] sm:$0xf]
      %v259 = vstv %s234
      %v260 = vmul.f32 %v259, %v235
      %v261 = vmul.f32 %v259, %v236
      %v262 = vmul.f32 %v259, %v237
      %v263 = vmul.f32 %v259, %v238
      %v264 = vmul.f32 %v259, %v239
      %v265 = vmul.f32 %v259, %v240
      %v266 = vmul.f32 %v259, %v241
      %v267 = vmul.f32 %v259, %v242
      %v268 = vmul.f32 %v259, %v243
      %v269 = vmul.f32 %v259, %v244
      %v270 = vmul.f32 %v259, %v245
      %v271 = vmul.f32 %v259, %v246
      %v272 = vmul.f32 %v259, %v247
      %v273 = vmul.f32 %v259, %v248
      %v274 = vmul.f32 %v259, %v249
      %v275 = vmul.f32 %v259, %v250
      %v276 = vmul.f32 %v259, %v251
      %v277 = vmul.f32 %v259, %v252
      %v278 = vmul.f32 %v259, %v253
      %v279 = vmul.f32 %v259, %v254
      %v280 = vmul.f32 %v259, %v255
      %v281 = vmul.f32 %v259, %v256
      %v282 = vmul.f32 %v259, %v257
      %v283 = vmul.f32 %v259, %v258
      %v284 = vadd.f32 %v209, %v260
      %v285 = vadd.f32 %v210, %v261
      %v286 = vadd.f32 %v211, %v262
      %v287 = vadd.f32 %v212, %v263
      %v288 = vadd.f32 %v213, %v264
      %v289 = vadd.f32 %v214, %v265
      %v290 = vadd.f32 %v215, %v266
      %v291 = vadd.f32 %v216, %v267
      %v292 = vadd.f32 %v217, %v268
      %v293 = vadd.f32 %v218, %v269
      %v294 = vadd.f32 %v219, %v270
      %v295 = vadd.f32 %v220, %v271
      %v296 = vadd.f32 %v221, %v272
      %v297 = vadd.f32 %v222, %v273
      %v298 = vadd.f32 %v223, %v274
      %v299 = vadd.f32 %v224, %v275
      %v300 = vadd.f32 %v225, %v276
      %v301 = vadd.f32 %v226, %v277
      %v302 = vadd.f32 %v227, %v278
      %v303 = vadd.f32 %v228, %v279
      %v304 = vadd.f32 %v229, %v280
      %v305 = vadd.f32 %v230, %v281
      %v306 = vadd.f32 %v231, %v282
      %v307 = vadd.f32 %v232, %v283
      %s308 = sadd.s32 %s81, 6
      %s309 = sld [smem:[#allocation8 + %s308]]
      %v310 = vld [vmem:[%s84 + $0x3] sm:$0xff]
      %v311 = vld [vmem:[%s84 + $0xb] sm:$0xf]
      %v312 = vld [vmem:[%s84 + $0x13] sm:$0xff]
      %v313 = vld [vmem:[%s84 + $0x1b] sm:$0xf]
      %v314 = vld [vmem:[%s84 + $0x23] sm:$0xff]
      %v315 = vld [vmem:[%s84 + $0x2b] sm:$0xf]
      %v316 = vld [vmem:[%s84 + $0x33] sm:$0xff]
      %v317 = vld [vmem:[%s84 + $0x3b] sm:$0xf]
      %v318 = vld [vmem:[%s84 + $0x43] sm:$0xff]
      %v319 = vld [vmem:[%s84 + $0x4b] sm:$0xf]
      %v320 = vld [vmem:[%s84 + $0x53] sm:$0xff]
      %v321 = vld [vmem:[%s84 + $0x5b] sm:$0xf]
      %v322 = vld [vmem:[%s84 + $0x63] sm:$0xff]
      %v323 = vld [vmem:[%s84 + $0x6b] sm:$0xf]
      %v324 = vld [vmem:[%s84 + $0x73] sm:$0xff]
      %v325 = vld [vmem:[%s84 + $0x7b] sm:$0xf]
      %v326 = vld [vmem:[%s84 + $0x83] sm:$0xff]
      %v327 = vld [vmem:[%s84 + $0x8b] sm:$0xf]
      %v328 = vld [vmem:[%s84 + $0x93] sm:$0xff]
      %v329 = vld [vmem:[%s84 + $0x9b] sm:$0xf]
      %v330 = vld [vmem:[%s84 + $0xa3] sm:$0xff]
      %v331 = vld [vmem:[%s84 + $0xab] sm:$0xf]
      %v332 = vld [vmem:[%s84 + $0xb3] sm:$0xff]
      %v333 = vld [vmem:[%s84 + $0xbb] sm:$0xf]
      %v334 = vstv %s309
      %v335 = vmul.f32 %v334, %v310
      %v336 = vmul.f32 %v334, %v311
      %v337 = vmul.f32 %v334, %v312
      %v338 = vmul.f32 %v334, %v313
      %v339 = vmul.f32 %v334, %v314
      %v340 = vmul.f32 %v334, %v315
      %v341 = vmul.f32 %v334, %v316
      %v342 = vmul.f32 %v334, %v317
      %v343 = vmul.f32 %v334, %v318
      %v344 = vmul.f32 %v334, %v319
      %v345 = vmul.f32 %v334, %v320
      %v346 = vmul.f32 %v334, %v321
      %v347 = vmul.f32 %v334, %v322
      %v348 = vmul.f32 %v334, %v323
      %v349 = vmul.f32 %v334, %v324
      %v350 = vmul.f32 %v334, %v325
      %v351 = vmul.f32 %v334, %v326
      %v352 = vmul.f32 %v334, %v327
      %v353 = vmul.f32 %v334, %v328
      %v354 = vmul.f32 %v334, %v329
      %v355 = vmul.f32 %v334, %v330
      %v356 = vmul.f32 %v334, %v331
      %v357 = vmul.f32 %v334, %v332
      %v358 = vmul.f32 %v334, %v333
      %v359 = vadd.f32 %v284, %v335
      %v360 = vadd.f32 %v285, %v336
      %v361 = vadd.f32 %v286, %v337
      %v362 = vadd.f32 %v287, %v338
      %v363 = vadd.f32 %v288, %v339
      %v364 = vadd.f32 %v289, %v340
      %v365 = vadd.f32 %v290, %v341
      %v366 = vadd.f32 %v291, %v342
      %v367 = vadd.f32 %v292, %v343
      %v368 = vadd.f32 %v293, %v344
      %v369 = vadd.f32 %v294, %v345
      %v370 = vadd.f32 %v295, %v346
      %v371 = vadd.f32 %v296, %v347
      %v372 = vadd.f32 %v297, %v348
      %v373 = vadd.f32 %v298, %v349
      %v374 = vadd.f32 %v299, %v350
      %v375 = vadd.f32 %v300, %v351
      %v376 = vadd.f32 %v301, %v352
      %v377 = vadd.f32 %v302, %v353
      %v378 = vadd.f32 %v303, %v354
      %v379 = vadd.f32 %v304, %v355
      %v380 = vadd.f32 %v305, %v356
      %v381 = vadd.f32 %v306, %v357
      %v382 = vadd.f32 %v307, %v358
      %s383 = sadd.s32 %s81, 8
      %s384 = sld [smem:[#allocation8 + %s383]]
      %v385 = vld [vmem:[%s84 + $0x4] sm:$0xff]
      %v386 = vld [vmem:[%s84 + $0xc] sm:$0xf]
      %v387 = vld [vmem:[%s84 + $0x14] sm:$0xff]
      %v388 = vld [vmem:[%s84 + $0x1c] sm:$0xf]
      %v389 = vld [vmem:[%s84 + $0x24] sm:$0xff]
      %v390 = vld [vmem:[%s84 + $0x2c] sm:$0xf]
      %v391 = vld [vmem:[%s84 + $0x34] sm:$0xff]
      %v392 = vld [vmem:[%s84 + $0x3c] sm:$0xf]
      %v393 = vld [vmem:[%s84 + $0x44] sm:$0xff]
      %v394 = vld [vmem:[%s84 + $0x4c] sm:$0xf]
      %v395 = vld [vmem:[%s84 + $0x54] sm:$0xff]
      %v396 = vld [vmem:[%s84 + $0x5c] sm:$0xf]
      %v397 = vld [vmem:[%s84 + $0x64] sm:$0xff]
      %v398 = vld [vmem:[%s84 + $0x6c] sm:$0xf]
      %v399 = vld [vmem:[%s84 + $0x74] sm:$0xff]
      %v400 = vld [vmem:[%s84 + $0x7c] sm:$0xf]
      %v401 = vld [vmem:[%s84 + $0x84] sm:$0xff]
      %v402 = vld [vmem:[%s84 + $0x8c] sm:$0xf]
      %v403 = vld [vmem:[%s84 + $0x94] sm:$0xff]
      %v404 = vld [vmem:[%s84 + $0x9c] sm:$0xf]
      %v405 = vld [vmem:[%s84 + $0xa4] sm:$0xff]
      %v406 = vld [vmem:[%s84 + $0xac] sm:$0xf]
      %v407 = vld [vmem:[%s84 + $0xb4] sm:$0xff]
      %v408 = vld [vmem:[%s84 + $0xbc] sm:$0xf]
      %v409 = vstv %s384
      %v410 = vmul.f32 %v409, %v385
      %v411 = vmul.f32 %v409, %v386
      %v412 = vmul.f32 %v409, %v387
      %v413 = vmul.f32 %v409, %v388
      %v414 = vmul.f32 %v409, %v389
      %v415 = vmul.f32 %v409, %v390
      %v416 = vmul.f32 %v409, %v391
      %v417 = vmul.f32 %v409, %v392
      %v418 = vmul.f32 %v409, %v393
      %v419 = vmul.f32 %v409, %v394
      %v420 = vmul.f32 %v409, %v395
      %v421 = vmul.f32 %v409, %v396
      %v422 = vmul.f32 %v409, %v397
      %v423 = vmul.f32 %v409, %v398
      %v424 = vmul.f32 %v409, %v399
      %v425 = vmul.f32 %v409, %v400
      %v426 = vmul.f32 %v409, %v401
      %v427 = vmul.f32 %v409, %v402
      %v428 = vmul.f32 %v409, %v403
      %v429 = vmul.f32 %v409, %v404
      %v430 = vmul.f32 %v409, %v405
      %v431 = vmul.f32 %v409, %v406
      %v432 = vmul.f32 %v409, %v407
      %v433 = vmul.f32 %v409, %v408
      %v434 = vadd.f32 %v359, %v410
      %v435 = vadd.f32 %v360, %v411
      %v436 = vadd.f32 %v361, %v412
      %v437 = vadd.f32 %v362, %v413
      %v438 = vadd.f32 %v363, %v414
      %v439 = vadd.f32 %v364, %v415
      %v440 = vadd.f32 %v365, %v416
      %v441 = vadd.f32 %v366, %v417
      %v442 = vadd.f32 %v367, %v418
      %v443 = vadd.f32 %v368, %v419
      %v444 = vadd.f32 %v369, %v420
      %v445 = vadd.f32 %v370, %v421
      %v446 = vadd.f32 %v371, %v422
      %v447 = vadd.f32 %v372, %v423
      %v448 = vadd.f32 %v373, %v424
      %v449 = vadd.f32 %v374, %v425
      %v450 = vadd.f32 %v375, %v426
      %v451 = vadd.f32 %v376, %v427
      %v452 = vadd.f32 %v377, %v428
      %v453 = vadd.f32 %v378, %v429
      %v454 = vadd.f32 %v379, %v430
      %v455 = vadd.f32 %v380, %v431
      %v456 = vadd.f32 %v381, %v432
      %v457 = vadd.f32 %v382, %v433
      %s458 = sadd.s32 %s81, 1
      %s459 = sld [smem:[#allocation8 + %s458]]
      %s460 = sadd.s32 %s83, 768
      %s461 = scalar_lea.vmem [#allocation4], %s460
      %v462 = vld [vmem:[%s461] sm:$0xff]
      %v463 = vld [vmem:[%s461 + $0x8] sm:$0xf]
      %v464 = vld [vmem:[%s461 + $0x10] sm:$0xff]
      %v465 = vld [vmem:[%s461 + $0x18] sm:$0xf]
      %v466 = vld [vmem:[%s461 + $0x20] sm:$0xff]
      %v467 = vld [vmem:[%s461 + $0x28] sm:$0xf]
      %v468 = vld [vmem:[%s461 + $0x30] sm:$0xff]
      %v469 = vld [vmem:[%s461 + $0x38] sm:$0xf]
      %v470 = vld [vmem:[%s461 + $0x40] sm:$0xff]
      %v471 = vld [vmem:[%s461 + $0x48] sm:$0xf]
      %v472 = vld [vmem:[%s461 + $0x50] sm:$0xff]
      %v473 = vld [vmem:[%s461 + $0x58] sm:$0xf]
      %v474 = vld [vmem:[%s461 + $0x60] sm:$0xff]
      %v475 = vld [vmem:[%s461 + $0x68] sm:$0xf]
      %v476 = vld [vmem:[%s461 + $0x70] sm:$0xff]
      %v477 = vld [vmem:[%s461 + $0x78] sm:$0xf]
      %v478 = vld [vmem:[%s461 + $0x80] sm:$0xff]
      %v479 = vld [vmem:[%s461 + $0x88] sm:$0xf]
      %v480 = vld [vmem:[%s461 + $0x90] sm:$0xff]
      %v481 = vld [vmem:[%s461 + $0x98] sm:$0xf]
      %v482 = vld [vmem:[%s461 + $0xa0] sm:$0xff]
      %v483 = vld [vmem:[%s461 + $0xa8] sm:$0xf]
      %v484 = vld [vmem:[%s461 + $0xb0] sm:$0xff]
      %v485 = vld [vmem:[%s461 + $0xb8] sm:$0xf]
      %v486 = vstv %s459
      %v487 = vmul.f32 %v486, %v462
      %v488 = vmul.f32 %v486, %v463
      %v489 = vmul.f32 %v486, %v464
      %v490 = vmul.f32 %v486, %v465
      %v491 = vmul.f32 %v486, %v466
      %v492 = vmul.f32 %v486, %v467
      %v493 = vmul.f32 %v486, %v468
      %v494 = vmul.f32 %v486, %v469
      %v495 = vmul.f32 %v486, %v470
      %v496 = vmul.f32 %v486, %v471
      %v497 = vmul.f32 %v486, %v472
      %v498 = vmul.f32 %v486, %v473
      %v499 = vmul.f32 %v486, %v474
      %v500 = vmul.f32 %v486, %v475
      %v501 = vmul.f32 %v486, %v476
      %v502 = vmul.f32 %v486, %v477
      %v503 = vmul.f32 %v486, %v478
      %v504 = vmul.f32 %v486, %v479
      %v505 = vmul.f32 %v486, %v480
      %v506 = vmul.f32 %v486, %v481
      %v507 = vmul.f32 %v486, %v482
      %v508 = vmul.f32 %v486, %v483
      %v509 = vmul.f32 %v486, %v484
      %v510 = vmul.f32 %v486, %v485
      %v511 = vadd.f32 %v434, %v487
      %v512 = vadd.f32 %v435, %v488
      %v513 = vadd.f32 %v436, %v489
      %v514 = vadd.f32 %v437, %v490
      %v515 = vadd.f32 %v438, %v491
      %v516 = vadd.f32 %v439, %v492
      %v517 = vadd.f32 %v440, %v493
      %v518 = vadd.f32 %v441, %v494
      %v519 = vadd.f32 %v442, %v495
      %v520 = vadd.f32 %v443, %v496
      %v521 = vadd.f32 %v444, %v497
      %v522 = vadd.f32 %v445, %v498
      %v523 = vadd.f32 %v446, %v499
      %v524 = vadd.f32 %v447, %v500
      %v525 = vadd.f32 %v448, %v501
      %v526 = vadd.f32 %v449, %v502
      %v527 = vadd.f32 %v450, %v503
      %v528 = vadd.f32 %v451, %v504
      %v529 = vadd.f32 %v452, %v505
      %v530 = vadd.f32 %v453, %v506
      %v531 = vadd.f32 %v454, %v507
      %v532 = vadd.f32 %v455, %v508
      %v533 = vadd.f32 %v456, %v509
      %v534 = vadd.f32 %v457, %v510
      %s535 = sadd.s32 %s81, 3
      %s536 = sld [smem:[#allocation8 + %s535]]
      %v537 = vld [vmem:[%s461 + $0x1] sm:$0xff]
      %v538 = vld [vmem:[%s461 + $0x9] sm:$0xf]
      %v539 = vld [vmem:[%s461 + $0x11] sm:$0xff]
      %v540 = vld [vmem:[%s461 + $0x19] sm:$0xf]
      %v541 = vld [vmem:[%s461 + $0x21] sm:$0xff]
      %v542 = vld [vmem:[%s461 + $0x29] sm:$0xf]
      %v543 = vld [vmem:[%s461 + $0x31] sm:$0xff]
      %v544 = vld [vmem:[%s461 + $0x39] sm:$0xf]
      %v545 = vld [vmem:[%s461 + $0x41] sm:$0xff]
      %v546 = vld [vmem:[%s461 + $0x49] sm:$0xf]
      %v547 = vld [vmem:[%s461 + $0x51] sm:$0xff]
      %v548 = vld [vmem:[%s461 + $0x59] sm:$0xf]
      %v549 = vld [vmem:[%s461 + $0x61] sm:$0xff]
      %v550 = vld [vmem:[%s461 + $0x69] sm:$0xf]
      %v551 = vld [vmem:[%s461 + $0x71] sm:$0xff]
      %v552 = vld [vmem:[%s461 + $0x79] sm:$0xf]
      %v553 = vld [vmem:[%s461 + $0x81] sm:$0xff]
      %v554 = vld [vmem:[%s461 + $0x89] sm:$0xf]
      %v555 = vld [vmem:[%s461 + $0x91] sm:$0xff]
      %v556 = vld [vmem:[%s461 + $0x99] sm:$0xf]
      %v557 = vld [vmem:[%s461 + $0xa1] sm:$0xff]
      %v558 = vld [vmem:[%s461 + $0xa9] sm:$0xf]
      %v559 = vld [vmem:[%s461 + $0xb1] sm:$0xff]
      %v560 = vld [vmem:[%s461 + $0xb9] sm:$0xf]
      %v561 = vstv %s536
      %v562 = vmul.f32 %v561, %v537
      %v563 = vmul.f32 %v561, %v538
      %v564 = vmul.f32 %v561, %v539
      %v565 = vmul.f32 %v561, %v540
      %v566 = vmul.f32 %v561, %v541
      %v567 = vmul.f32 %v561, %v542
      %v568 = vmul.f32 %v561, %v543
      %v569 = vmul.f32 %v561, %v544
      %v570 = vmul.f32 %v561, %v545
      %v571 = vmul.f32 %v561, %v546
      %v572 = vmul.f32 %v561, %v547
      %v573 = vmul.f32 %v561, %v548
      %v574 = vmul.f32 %v561, %v549
      %v575 = vmul.f32 %v561, %v550
      %v576 = vmul.f32 %v561, %v551
      %v577 = vmul.f32 %v561, %v552
      %v578 = vmul.f32 %v561, %v553
      %v579 = vmul.f32 %v561, %v554
      %v580 = vmul.f32 %v561, %v555
      %v581 = vmul.f32 %v561, %v556
      %v582 = vmul.f32 %v561, %v557
      %v583 = vmul.f32 %v561, %v558
      %v584 = vmul.f32 %v561, %v559
      %v585 = vmul.f32 %v561, %v560
      %v586 = vadd.f32 %v511, %v562
      %v587 = vadd.f32 %v512, %v563
      %v588 = vadd.f32 %v513, %v564
      %v589 = vadd.f32 %v514, %v565
      %v590 = vadd.f32 %v515, %v566
      %v591 = vadd.f32 %v516, %v567
      %v592 = vadd.f32 %v517, %v568
      %v593 = vadd.f32 %v518, %v569
      %v594 = vadd.f32 %v519, %v570
      %v595 = vadd.f32 %v520, %v571
      %v596 = vadd.f32 %v521, %v572
      %v597 = vadd.f32 %v522, %v573
      %v598 = vadd.f32 %v523, %v574
      %v599 = vadd.f32 %v524, %v575
      %v600 = vadd.f32 %v525, %v576
      %v601 = vadd.f32 %v526, %v577
      %v602 = vadd.f32 %v527, %v578
      %v603 = vadd.f32 %v528, %v579
      %v604 = vadd.f32 %v529, %v580
      %v605 = vadd.f32 %v530, %v581
      %v606 = vadd.f32 %v531, %v582
      %v607 = vadd.f32 %v532, %v583
      %v608 = vadd.f32 %v533, %v584
      %v609 = vadd.f32 %v534, %v585
      %s610 = sadd.s32 %s81, 5
      %s611 = sld [smem:[#allocation8 + %s610]]
      %v612 = vld [vmem:[%s461 + $0x2] sm:$0xff]
      %v613 = vld [vmem:[%s461 + $0xa] sm:$0xf]
      %v614 = vld [vmem:[%s461 + $0x12] sm:$0xff]
      %v615 = vld [vmem:[%s461 + $0x1a] sm:$0xf]
      %v616 = vld [vmem:[%s461 + $0x22] sm:$0xff]
      %v617 = vld [vmem:[%s461 + $0x2a] sm:$0xf]
      %v618 = vld [vmem:[%s461 + $0x32] sm:$0xff]
      %v619 = vld [vmem:[%s461 + $0x3a] sm:$0xf]
      %v620 = vld [vmem:[%s461 + $0x42] sm:$0xff]
      %v621 = vld [vmem:[%s461 + $0x4a] sm:$0xf]
      %v622 = vld [vmem:[%s461 + $0x52] sm:$0xff]
      %v623 = vld [vmem:[%s461 + $0x5a] sm:$0xf]
      %v624 = vld [vmem:[%s461 + $0x62] sm:$0xff]
      %v625 = vld [vmem:[%s461 + $0x6a] sm:$0xf]
      %v626 = vld [vmem:[%s461 + $0x72] sm:$0xff]
      %v627 = vld [vmem:[%s461 + $0x7a] sm:$0xf]
      %v628 = vld [vmem:[%s461 + $0x82] sm:$0xff]
      %v629 = vld [vmem:[%s461 + $0x8a] sm:$0xf]
      %v630 = vld [vmem:[%s461 + $0x92] sm:$0xff]
      %v631 = vld [vmem:[%s461 + $0x9a] sm:$0xf]
      %v632 = vld [vmem:[%s461 + $0xa2] sm:$0xff]
      %v633 = vld [vmem:[%s461 + $0xaa] sm:$0xf]
      %v634 = vld [vmem:[%s461 + $0xb2] sm:$0xff]
      %v635 = vld [vmem:[%s461 + $0xba] sm:$0xf]
      %v636 = vstv %s611
      %v637 = vmul.f32 %v636, %v612
      %v638 = vmul.f32 %v636, %v613
      %v639 = vmul.f32 %v636, %v614
      %v640 = vmul.f32 %v636, %v615
      %v641 = vmul.f32 %v636, %v616
      %v642 = vmul.f32 %v636, %v617
      %v643 = vmul.f32 %v636, %v618
      %v644 = vmul.f32 %v636, %v619
      %v645 = vmul.f32 %v636, %v620
      %v646 = vmul.f32 %v636, %v621
      %v647 = vmul.f32 %v636, %v622
      %v648 = vmul.f32 %v636, %v623
      %v649 = vmul.f32 %v636, %v624
      %v650 = vmul.f32 %v636, %v625
      %v651 = vmul.f32 %v636, %v626
      %v652 = vmul.f32 %v636, %v627
      %v653 = vmul.f32 %v636, %v628
      %v654 = vmul.f32 %v636, %v629
      %v655 = vmul.f32 %v636, %v630
      %v656 = vmul.f32 %v636, %v631
      %v657 = vmul.f32 %v636, %v632
      %v658 = vmul.f32 %v636, %v633
      %v659 = vmul.f32 %v636, %v634
      %v660 = vmul.f32 %v636, %v635
      %v661 = vadd.f32 %v586, %v637
      %v662 = vadd.f32 %v587, %v638
      %v663 = vadd.f32 %v588, %v639
      %v664 = vadd.f32 %v589, %v640
      %v665 = vadd.f32 %v590, %v641
      %v666 = vadd.f32 %v591, %v642
      %v667 = vadd.f32 %v592, %v643
      %v668 = vadd.f32 %v593, %v644
      %v669 = vadd.f32 %v594, %v645
      %v670 = vadd.f32 %v595, %v646
      %v671 = vadd.f32 %v596, %v647
      %v672 = vadd.f32 %v597, %v648
      %v673 = vadd.f32 %v598, %v649
      %v674 = vadd.f32 %v599, %v650
      %v675 = vadd.f32 %v600, %v651
      %v676 = vadd.f32 %v601, %v652
      %v677 = vadd.f32 %v602, %v653
      %v678 = vadd.f32 %v603, %v654
      %v679 = vadd.f32 %v604, %v655
      %v680 = vadd.f32 %v605, %v656
      %v681 = vadd.f32 %v606, %v657
      %v682 = vadd.f32 %v607, %v658
      %v683 = vadd.f32 %v608, %v659
      %v684 = vadd.f32 %v609, %v660
      %s685 = sadd.s32 %s81, 7
      %s686 = sld [smem:[#allocation8 + %s685]]
      %v687 = vld [vmem:[%s461 + $0x3] sm:$0xff]
      %v688 = vld [vmem:[%s461 + $0xb] sm:$0xf]
      %v689 = vld [vmem:[%s461 + $0x13] sm:$0xff]
      %v690 = vld [vmem:[%s461 + $0x1b] sm:$0xf]
      %v691 = vld [vmem:[%s461 + $0x23] sm:$0xff]
      %v692 = vld [vmem:[%s461 + $0x2b] sm:$0xf]
      %v693 = vld [vmem:[%s461 + $0x33] sm:$0xff]
      %v694 = vld [vmem:[%s461 + $0x3b] sm:$0xf]
      %v695 = vld [vmem:[%s461 + $0x43] sm:$0xff]
      %v696 = vld [vmem:[%s461 + $0x4b] sm:$0xf]
      %v697 = vld [vmem:[%s461 + $0x53] sm:$0xff]
      %v698 = vld [vmem:[%s461 + $0x5b] sm:$0xf]
      %v699 = vld [vmem:[%s461 + $0x63] sm:$0xff]
      %v700 = vld [vmem:[%s461 + $0x6b] sm:$0xf]
      %v701 = vld [vmem:[%s461 + $0x73] sm:$0xff]
      %v702 = vld [vmem:[%s461 + $0x7b] sm:$0xf]
      %v703 = vld [vmem:[%s461 + $0x83] sm:$0xff]
      %v704 = vld [vmem:[%s461 + $0x8b] sm:$0xf]
      %v705 = vld [vmem:[%s461 + $0x93] sm:$0xff]
      %v706 = vld [vmem:[%s461 + $0x9b] sm:$0xf]
      %v707 = vld [vmem:[%s461 + $0xa3] sm:$0xff]
      %v708 = vld [vmem:[%s461 + $0xab] sm:$0xf]
      %v709 = vld [vmem:[%s461 + $0xb3] sm:$0xff]
      %v710 = vld [vmem:[%s461 + $0xbb] sm:$0xf]
      %v711 = vstv %s686
      %v712 = vmul.f32 %v711, %v687
      %v713 = vmul.f32 %v711, %v688
      %v714 = vmul.f32 %v711, %v689
      %v715 = vmul.f32 %v711, %v690
      %v716 = vmul.f32 %v711, %v691
      %v717 = vmul.f32 %v711, %v692
      %v718 = vmul.f32 %v711, %v693
      %v719 = vmul.f32 %v711, %v694
      %v720 = vmul.f32 %v711, %v695
      %v721 = vmul.f32 %v711, %v696
      %v722 = vmul.f32 %v711, %v697
      %v723 = vmul.f32 %v711, %v698
      %v724 = vmul.f32 %v711, %v699
      %v725 = vmul.f32 %v711, %v700
      %v726 = vmul.f32 %v711, %v701
      %v727 = vmul.f32 %v711, %v702
      %v728 = vmul.f32 %v711, %v703
      %v729 = vmul.f32 %v711, %v704
      %v730 = vmul.f32 %v711, %v705
      %v731 = vmul.f32 %v711, %v706
      %v732 = vmul.f32 %v711, %v707
      %v733 = vmul.f32 %v711, %v708
      %v734 = vmul.f32 %v711, %v709
      %v735 = vmul.f32 %v711, %v710
      %v736 = vadd.f32 %v661, %v712
      %v737 = vadd.f32 %v662, %v713
      %v738 = vadd.f32 %v663, %v714
      %v739 = vadd.f32 %v664, %v715
      %v740 = vadd.f32 %v665, %v716
      %v741 = vadd.f32 %v666, %v717
      %v742 = vadd.f32 %v667, %v718
      %v743 = vadd.f32 %v668, %v719
      %v744 = vadd.f32 %v669, %v720
      %v745 = vadd.f32 %v670, %v721
      %v746 = vadd.f32 %v671, %v722
      %v747 = vadd.f32 %v672, %v723
      %v748 = vadd.f32 %v673, %v724
      %v749 = vadd.f32 %v674, %v725
      %v750 = vadd.f32 %v675, %v726
      %v751 = vadd.f32 %v676, %v727
      %v752 = vadd.f32 %v677, %v728
      %v753 = vadd.f32 %v678, %v729
      %v754 = vadd.f32 %v679, %v730
      %v755 = vadd.f32 %v680, %v731
      %v756 = vadd.f32 %v681, %v732
      %v757 = vadd.f32 %v682, %v733
      %v758 = vadd.f32 %v683, %v734
      %v759 = vadd.f32 %v684, %v735
      %s760 = sadd.s32 %s81, 9
      %s761 = sld [smem:[#allocation8 + %s760]]
      %v762 = vld [vmem:[%s461 + $0x4] sm:$0xff]
      %v763 = vld [vmem:[%s461 + $0xc] sm:$0xf]
      %v764 = vld [vmem:[%s461 + $0x14] sm:$0xff]
      %v765 = vld [vmem:[%s461 + $0x1c] sm:$0xf]
      %v766 = vld [vmem:[%s461 + $0x24] sm:$0xff]
      %v767 = vld [vmem:[%s461 + $0x2c] sm:$0xf]
      %v768 = vld [vmem:[%s461 + $0x34] sm:$0xff]
      %v769 = vld [vmem:[%s461 + $0x3c] sm:$0xf]
      %v770 = vld [vmem:[%s461 + $0x44] sm:$0xff]
      %v771 = vld [vmem:[%s461 + $0x4c] sm:$0xf]
      %v772 = vld [vmem:[%s461 + $0x54] sm:$0xff]
      %v773 = vld [vmem:[%s461 + $0x5c] sm:$0xf]
      %v774 = vld [vmem:[%s461 + $0x64] sm:$0xff]
      %v775 = vld [vmem:[%s461 + $0x6c] sm:$0xf]
      %v776 = vld [vmem:[%s461 + $0x74] sm:$0xff]
      %v777 = vld [vmem:[%s461 + $0x7c] sm:$0xf]
      %v778 = vld [vmem:[%s461 + $0x84] sm:$0xff]
      %v779 = vld [vmem:[%s461 + $0x8c] sm:$0xf]
      %v780 = vld [vmem:[%s461 + $0x94] sm:$0xff]
      %v781 = vld [vmem:[%s461 + $0x9c] sm:$0xf]
      %v782 = vld [vmem:[%s461 + $0xa4] sm:$0xff]
      %v783 = vld [vmem:[%s461 + $0xac] sm:$0xf]
      %v784 = vld [vmem:[%s461 + $0xb4] sm:$0xff]
      %v785 = vld [vmem:[%s461 + $0xbc] sm:$0xf]
      %v786 = vstv %s761
      %v787 = vmul.f32 %v786, %v762
      %v788 = vmul.f32 %v786, %v763
      %v789 = vmul.f32 %v786, %v764
      %v790 = vmul.f32 %v786, %v765
      %v791 = vmul.f32 %v786, %v766
      %v792 = vmul.f32 %v786, %v767
      %v793 = vmul.f32 %v786, %v768
      %v794 = vmul.f32 %v786, %v769
      %v795 = vmul.f32 %v786, %v770
      %v796 = vmul.f32 %v786, %v771
      %v797 = vmul.f32 %v786, %v772
      %v798 = vmul.f32 %v786, %v773
      %v799 = vmul.f32 %v786, %v774
      %v800 = vmul.f32 %v786, %v775
      %v801 = vmul.f32 %v786, %v776
      %v802 = vmul.f32 %v786, %v777
      %v803 = vmul.f32 %v786, %v778
      %v804 = vmul.f32 %v786, %v779
      %v805 = vmul.f32 %v786, %v780
      %v806 = vmul.f32 %v786, %v781
      %v807 = vmul.f32 %v786, %v782
      %v808 = vmul.f32 %v786, %v783
      %v809 = vmul.f32 %v786, %v784
      %v810 = vmul.f32 %v786, %v785
      %v811 = vadd.f32 %v736, %v787
      %v812 = vadd.f32 %v737, %v788
      %v813 = vadd.f32 %v738, %v789
      %v814 = vadd.f32 %v739, %v790
      %v815 = vadd.f32 %v740, %v791
      %v816 = vadd.f32 %v741, %v792
      %v817 = vadd.f32 %v742, %v793
      %v818 = vadd.f32 %v743, %v794
      %v819 = vadd.f32 %v744, %v795
      %v820 = vadd.f32 %v745, %v796
      %v821 = vadd.f32 %v746, %v797
      %v822 = vadd.f32 %v747, %v798
      %v823 = vadd.f32 %v748, %v799
      %v824 = vadd.f32 %v749, %v800
      %v825 = vadd.f32 %v750, %v801
      %v826 = vadd.f32 %v751, %v802
      %v827 = vadd.f32 %v752, %v803
      %v828 = vadd.f32 %v753, %v804
      %v829 = vadd.f32 %v754, %v805
      %v830 = vadd.f32 %v755, %v806
      %v831 = vadd.f32 %v756, %v807
      %v832 = vadd.f32 %v757, %v808
      %v833 = vadd.f32 %v758, %v809
      %v834 = vadd.f32 %v759, %v810
      %s835 = sadd.s32 %s81, 100
      %s836 = sld [smem:[#allocation8 + %s835]]
      %s837 = sadd.s32 %s83, 256
      %s838 = scalar_lea.vmem [#allocation4], %s837
      %v839 = vld [vmem:[%s838] sm:$0xff]
      %v840 = vld [vmem:[%s838 + $0x8] sm:$0xf]
      %v841 = vld [vmem:[%s838 + $0x10] sm:$0xff]
      %v842 = vld [vmem:[%s838 + $0x18] sm:$0xf]
      %v843 = vld [vmem:[%s838 + $0x20] sm:$0xff]
      %v844 = vld [vmem:[%s838 + $0x28] sm:$0xf]
      %v845 = vld [vmem:[%s838 + $0x30] sm:$0xff]
      %v846 = vld [vmem:[%s838 + $0x38] sm:$0xf]
      %v847 = vld [vmem:[%s838 + $0x40] sm:$0xff]
      %v848 = vld [vmem:[%s838 + $0x48] sm:$0xf]
      %v849 = vld [vmem:[%s838 + $0x50] sm:$0xff]
      %v850 = vld [vmem:[%s838 + $0x58] sm:$0xf]
      %v851 = vld [vmem:[%s838 + $0x60] sm:$0xff]
      %v852 = vld [vmem:[%s838 + $0x68] sm:$0xf]
      %v853 = vld [vmem:[%s838 + $0x70] sm:$0xff]
      %v854 = vld [vmem:[%s838 + $0x78] sm:$0xf]
      %v855 = vld [vmem:[%s838 + $0x80] sm:$0xff]
      %v856 = vld [vmem:[%s838 + $0x88] sm:$0xf]
      %v857 = vld [vmem:[%s838 + $0x90] sm:$0xff]
      %v858 = vld [vmem:[%s838 + $0x98] sm:$0xf]
      %v859 = vld [vmem:[%s838 + $0xa0] sm:$0xff]
      %v860 = vld [vmem:[%s838 + $0xa8] sm:$0xf]
      %v861 = vld [vmem:[%s838 + $0xb0] sm:$0xff]
      %v862 = vld [vmem:[%s838 + $0xb8] sm:$0xf]
      %v863 = vstv %s836
      %v864 = vmul.f32 %v863, %v839
      %v865 = vmul.f32 %v863, %v840
      %v866 = vmul.f32 %v863, %v841
      %v867 = vmul.f32 %v863, %v842
      %v868 = vmul.f32 %v863, %v843
      %v869 = vmul.f32 %v863, %v844
      %v870 = vmul.f32 %v863, %v845
      %v871 = vmul.f32 %v863, %v846
      %v872 = vmul.f32 %v863, %v847
      %v873 = vmul.f32 %v863, %v848
      %v874 = vmul.f32 %v863, %v849
      %v875 = vmul.f32 %v863, %v850
      %v876 = vmul.f32 %v863, %v851
      %v877 = vmul.f32 %v863, %v852
      %v878 = vmul.f32 %v863, %v853
      %v879 = vmul.f32 %v863, %v854
      %v880 = vmul.f32 %v863, %v855
      %v881 = vmul.f32 %v863, %v856
      %v882 = vmul.f32 %v863, %v857
      %v883 = vmul.f32 %v863, %v858
      %v884 = vmul.f32 %v863, %v859
      %v885 = vmul.f32 %v863, %v860
      %v886 = vmul.f32 %v863, %v861
      %v887 = vmul.f32 %v863, %v862
      %v888 = vadd.f32 %v811, %v864
      %v889 = vadd.f32 %v812, %v865
      %v890 = vadd.f32 %v813, %v866
      %v891 = vadd.f32 %v814, %v867
      %v892 = vadd.f32 %v815, %v868
      %v893 = vadd.f32 %v816, %v869
      %v894 = vadd.f32 %v817, %v870
      %v895 = vadd.f32 %v818, %v871
      %v896 = vadd.f32 %v819, %v872
      %v897 = vadd.f32 %v820, %v873
      %v898 = vadd.f32 %v821, %v874
      %v899 = vadd.f32 %v822, %v875
      %v900 = vadd.f32 %v823, %v876
      %v901 = vadd.f32 %v824, %v877
      %v902 = vadd.f32 %v825, %v878
      %v903 = vadd.f32 %v826, %v879
      %v904 = vadd.f32 %v827, %v880
      %v905 = vadd.f32 %v828, %v881
      %v906 = vadd.f32 %v829, %v882
      %v907 = vadd.f32 %v830, %v883
      %v908 = vadd.f32 %v831, %v884
      %v909 = vadd.f32 %v832, %v885
      %v910 = vadd.f32 %v833, %v886
      %v911 = vadd.f32 %v834, %v887
      %s912 = sadd.s32 %s81, 102
      %s913 = sld [smem:[#allocation8 + %s912]]
      %v914 = vld [vmem:[%s838 + $0x1] sm:$0xff]
      %v915 = vld [vmem:[%s838 + $0x9] sm:$0xf]
      %v916 = vld [vmem:[%s838 + $0x11] sm:$0xff]
      %v917 = vld [vmem:[%s838 + $0x19] sm:$0xf]
      %v918 = vld [vmem:[%s838 + $0x21] sm:$0xff]
      %v919 = vld [vmem:[%s838 + $0x29] sm:$0xf]
      %v920 = vld [vmem:[%s838 + $0x31] sm:$0xff]
      %v921 = vld [vmem:[%s838 + $0x39] sm:$0xf]
      %v922 = vld [vmem:[%s838 + $0x41] sm:$0xff]
      %v923 = vld [vmem:[%s838 + $0x49] sm:$0xf]
      %v924 = vld [vmem:[%s838 + $0x51] sm:$0xff]
      %v925 = vld [vmem:[%s838 + $0x59] sm:$0xf]
      %v926 = vld [vmem:[%s838 + $0x61] sm:$0xff]
      %v927 = vld [vmem:[%s838 + $0x69] sm:$0xf]
      %v928 = vld [vmem:[%s838 + $0x71] sm:$0xff]
      %v929 = vld [vmem:[%s838 + $0x79] sm:$0xf]
      %v930 = vld [vmem:[%s838 + $0x81] sm:$0xff]
      %v931 = vld [vmem:[%s838 + $0x89] sm:$0xf]
      %v932 = vld [vmem:[%s838 + $0x91] sm:$0xff]
      %v933 = vld [vmem:[%s838 + $0x99] sm:$0xf]
      %v934 = vld [vmem:[%s838 + $0xa1] sm:$0xff]
      %v935 = vld [vmem:[%s838 + $0xa9] sm:$0xf]
      %v936 = vld [vmem:[%s838 + $0xb1] sm:$0xff]
      %v937 = vld [vmem:[%s838 + $0xb9] sm:$0xf]
      %v938 = vstv %s913
      %v939 = vmul.f32 %v938, %v914
      %v940 = vmul.f32 %v938, %v915
      %v941 = vmul.f32 %v938, %v916
      %v942 = vmul.f32 %v938, %v917
      %v943 = vmul.f32 %v938, %v918
      %v944 = vmul.f32 %v938, %v919
      %v945 = vmul.f32 %v938, %v920
      %v946 = vmul.f32 %v938, %v921
      %v947 = vmul.f32 %v938, %v922
      %v948 = vmul.f32 %v938, %v923
      %v949 = vmul.f32 %v938, %v924
      %v950 = vmul.f32 %v938, %v925
      %v951 = vmul.f32 %v938, %v926
      %v952 = vmul.f32 %v938, %v927
      %v953 = vmul.f32 %v938, %v928
      %v954 = vmul.f32 %v938, %v929
      %v955 = vmul.f32 %v938, %v930
      %v956 = vmul.f32 %v938, %v931
      %v957 = vmul.f32 %v938, %v932
      %v958 = vmul.f32 %v938, %v933
      %v959 = vmul.f32 %v938, %v934
      %v960 = vmul.f32 %v938, %v935
      %v961 = vmul.f32 %v938, %v936
      %v962 = vmul.f32 %v938, %v937
      %v963 = vadd.f32 %v888, %v939
      %v964 = vadd.f32 %v889, %v940
      %v965 = vadd.f32 %v890, %v941
      %v966 = vadd.f32 %v891, %v942
      %v967 = vadd.f32 %v892, %v943
      %v968 = vadd.f32 %v893, %v944
      %v969 = vadd.f32 %v894, %v945
      %v970 = vadd.f32 %v895, %v946
      %v971 = vadd.f32 %v896, %v947
      %v972 = vadd.f32 %v897, %v948
      %v973 = vadd.f32 %v898, %v949
      %v974 = vadd.f32 %v899, %v950
      %v975 = vadd.f32 %v900, %v951
      %v976 = vadd.f32 %v901, %v952
      %v977 = vadd.f32 %v902, %v953
      %v978 = vadd.f32 %v903, %v954
      %v979 = vadd.f32 %v904, %v955
      %v980 = vadd.f32 %v905, %v956
      %v981 = vadd.f32 %v906, %v957
      %v982 = vadd.f32 %v907, %v958
      %v983 = vadd.f32 %v908, %v959
      %v984 = vadd.f32 %v909, %v960
      %v985 = vadd.f32 %v910, %v961
      %v986 = vadd.f32 %v911, %v962
      %s987 = sadd.s32 %s81, 104
      %s988 = sld [smem:[#allocation8 + %s987]]
      %v989 = vld [vmem:[%s838 + $0x2] sm:$0xff]
      %v990 = vld [vmem:[%s838 + $0xa] sm:$0xf]
      %v991 = vld [vmem:[%s838 + $0x12] sm:$0xff]
      %v992 = vld [vmem:[%s838 + $0x1a] sm:$0xf]
      %v993 = vld [vmem:[%s838 + $0x22] sm:$0xff]
      %v994 = vld [vmem:[%s838 + $0x2a] sm:$0xf]
      %v995 = vld [vmem:[%s838 + $0x32] sm:$0xff]
      %v996 = vld [vmem:[%s838 + $0x3a] sm:$0xf]
      %v997 = vld [vmem:[%s838 + $0x42] sm:$0xff]
      %v998 = vld [vmem:[%s838 + $0x4a] sm:$0xf]
      %v999 = vld [vmem:[%s838 + $0x52] sm:$0xff]
      %v1000 = vld [vmem:[%s838 + $0x5a] sm:$0xf]
      %v1001 = vld [vmem:[%s838 + $0x62] sm:$0xff]
      %v1002 = vld [vmem:[%s838 + $0x6a] sm:$0xf]
      %v1003 = vld [vmem:[%s838 + $0x72] sm:$0xff]
      %v1004 = vld [vmem:[%s838 + $0x7a] sm:$0xf]
      %v1005 = vld [vmem:[%s838 + $0x82] sm:$0xff]
      %v1006 = vld [vmem:[%s838 + $0x8a] sm:$0xf]
      %v1007 = vld [vmem:[%s838 + $0x92] sm:$0xff]
      %v1008 = vld [vmem:[%s838 + $0x9a] sm:$0xf]
      %v1009 = vld [vmem:[%s838 + $0xa2] sm:$0xff]
      %v1010 = vld [vmem:[%s838 + $0xaa] sm:$0xf]
      %v1011 = vld [vmem:[%s838 + $0xb2] sm:$0xff]
      %v1012 = vld [vmem:[%s838 + $0xba] sm:$0xf]
      %v1013 = vstv %s988
      %v1014 = vmul.f32 %v1013, %v989
      %v1015 = vmul.f32 %v1013, %v990
      %v1016 = vmul.f32 %v1013, %v991
      %v1017 = vmul.f32 %v1013, %v992
      %v1018 = vmul.f32 %v1013, %v993
      %v1019 = vmul.f32 %v1013, %v994
      %v1020 = vmul.f32 %v1013, %v995
      %v1021 = vmul.f32 %v1013, %v996
      %v1022 = vmul.f32 %v1013, %v997
      %v1023 = vmul.f32 %v1013, %v998
      %v1024 = vmul.f32 %v1013, %v999
      %v1025 = vmul.f32 %v1013, %v1000
      %v1026 = vmul.f32 %v1013, %v1001
      %v1027 = vmul.f32 %v1013, %v1002
      %v1028 = vmul.f32 %v1013, %v1003
      %v1029 = vmul.f32 %v1013, %v1004
      %v1030 = vmul.f32 %v1013, %v1005
      %v1031 = vmul.f32 %v1013, %v1006
      %v1032 = vmul.f32 %v1013, %v1007
      %v1033 = vmul.f32 %v1013, %v1008
      %v1034 = vmul.f32 %v1013, %v1009
      %v1035 = vmul.f32 %v1013, %v1010
      %v1036 = vmul.f32 %v1013, %v1011
      %v1037 = vmul.f32 %v1013, %v1012
      %v1038 = vadd.f32 %v963, %v1014
      %v1039 = vadd.f32 %v964, %v1015
      %v1040 = vadd.f32 %v965, %v1016
      %v1041 = vadd.f32 %v966, %v1017
      %v1042 = vadd.f32 %v967, %v1018
      %v1043 = vadd.f32 %v968, %v1019
      %v1044 = vadd.f32 %v969, %v1020
      %v1045 = vadd.f32 %v970, %v1021
      %v1046 = vadd.f32 %v971, %v1022
      %v1047 = vadd.f32 %v972, %v1023
      %v1048 = vadd.f32 %v973, %v1024
      %v1049 = vadd.f32 %v974, %v1025
      %v1050 = vadd.f32 %v975, %v1026
      %v1051 = vadd.f32 %v976, %v1027
      %v1052 = vadd.f32 %v977, %v1028
      %v1053 = vadd.f32 %v978, %v1029
      %v1054 = vadd.f32 %v979, %v1030
      %v1055 = vadd.f32 %v980, %v1031
      %v1056 = vadd.f32 %v981, %v1032
      %v1057 = vadd.f32 %v982, %v1033
      %v1058 = vadd.f32 %v983, %v1034
      %v1059 = vadd.f32 %v984, %v1035
      %v1060 = vadd.f32 %v985, %v1036
      %v1061 = vadd.f32 %v986, %v1037
      %s1062 = sadd.s32 %s81, 106
      %s1063 = sld [smem:[#allocation8 + %s1062]]
      %v1064 = vld [vmem:[%s838 + $0x3] sm:$0xff]
      %v1065 = vld [vmem:[%s838 + $0xb] sm:$0xf]
      %v1066 = vld [vmem:[%s838 + $0x13] sm:$0xff]
      %v1067 = vld [vmem:[%s838 + $0x1b] sm:$0xf]
      %v1068 = vld [vmem:[%s838 + $0x23] sm:$0xff]
      %v1069 = vld [vmem:[%s838 + $0x2b] sm:$0xf]
      %v1070 = vld [vmem:[%s838 + $0x33] sm:$0xff]
      %v1071 = vld [vmem:[%s838 + $0x3b] sm:$0xf]
      %v1072 = vld [vmem:[%s838 + $0x43] sm:$0xff]
      %v1073 = vld [vmem:[%s838 + $0x4b] sm:$0xf]
      %v1074 = vld [vmem:[%s838 + $0x53] sm:$0xff]
      %v1075 = vld [vmem:[%s838 + $0x5b] sm:$0xf]
      %v1076 = vld [vmem:[%s838 + $0x63] sm:$0xff]
      %v1077 = vld [vmem:[%s838 + $0x6b] sm:$0xf]
      %v1078 = vld [vmem:[%s838 + $0x73] sm:$0xff]
      %v1079 = vld [vmem:[%s838 + $0x7b] sm:$0xf]
      %v1080 = vld [vmem:[%s838 + $0x83] sm:$0xff]
      %v1081 = vld [vmem:[%s838 + $0x8b] sm:$0xf]
      %v1082 = vld [vmem:[%s838 + $0x93] sm:$0xff]
      %v1083 = vld [vmem:[%s838 + $0x9b] sm:$0xf]
      %v1084 = vld [vmem:[%s838 + $0xa3] sm:$0xff]
      %v1085 = vld [vmem:[%s838 + $0xab] sm:$0xf]
      %v1086 = vld [vmem:[%s838 + $0xb3] sm:$0xff]
      %v1087 = vld [vmem:[%s838 + $0xbb] sm:$0xf]
      %v1088 = vstv %s1063
      %v1089 = vmul.f32 %v1088, %v1064
      %v1090 = vmul.f32 %v1088, %v1065
      %v1091 = vmul.f32 %v1088, %v1066
      %v1092 = vmul.f32 %v1088, %v1067
      %v1093 = vmul.f32 %v1088, %v1068
      %v1094 = vmul.f32 %v1088, %v1069
      %v1095 = vmul.f32 %v1088, %v1070
      %v1096 = vmul.f32 %v1088, %v1071
      %v1097 = vmul.f32 %v1088, %v1072
      %v1098 = vmul.f32 %v1088, %v1073
      %v1099 = vmul.f32 %v1088, %v1074
      %v1100 = vmul.f32 %v1088, %v1075
      %v1101 = vmul.f32 %v1088, %v1076
      %v1102 = vmul.f32 %v1088, %v1077
      %v1103 = vmul.f32 %v1088, %v1078
      %v1104 = vmul.f32 %v1088, %v1079
      %v1105 = vmul.f32 %v1088, %v1080
      %v1106 = vmul.f32 %v1088, %v1081
      %v1107 = vmul.f32 %v1088, %v1082
      %v1108 = vmul.f32 %v1088, %v1083
      %v1109 = vmul.f32 %v1088, %v1084
      %v1110 = vmul.f32 %v1088, %v1085
      %v1111 = vmul.f32 %v1088, %v1086
      %v1112 = vmul.f32 %v1088, %v1087
      %v1113 = vadd.f32 %v1038, %v1089
      %v1114 = vadd.f32 %v1039, %v1090
      %v1115 = vadd.f32 %v1040, %v1091
      %v1116 = vadd.f32 %v1041, %v1092
      %v1117 = vadd.f32 %v1042, %v1093
      %v1118 = vadd.f32 %v1043, %v1094
      %v1119 = vadd.f32 %v1044, %v1095
      %v1120 = vadd.f32 %v1045, %v1096
      %v1121 = vadd.f32 %v1046, %v1097
      %v1122 = vadd.f32 %v1047, %v1098
      %v1123 = vadd.f32 %v1048, %v1099
      %v1124 = vadd.f32 %v1049, %v1100
      %v1125 = vadd.f32 %v1050, %v1101
      %v1126 = vadd.f32 %v1051, %v1102
      %v1127 = vadd.f32 %v1052, %v1103
      %v1128 = vadd.f32 %v1053, %v1104
      %v1129 = vadd.f32 %v1054, %v1105
      %v1130 = vadd.f32 %v1055, %v1106
      %v1131 = vadd.f32 %v1056, %v1107
      %v1132 = vadd.f32 %v1057, %v1108
      %v1133 = vadd.f32 %v1058, %v1109
      %v1134 = vadd.f32 %v1059, %v1110
      %v1135 = vadd.f32 %v1060, %v1111
      %v1136 = vadd.f32 %v1061, %v1112
      %s1137 = sadd.s32 %s81, 108
      %s1138 = sld [smem:[#allocation8 + %s1137]]
      %v1139 = vld [vmem:[%s838 + $0x4] sm:$0xff]
      %v1140 = vld [vmem:[%s838 + $0xc] sm:$0xf]
      %v1141 = vld [vmem:[%s838 + $0x14] sm:$0xff]
      %v1142 = vld [vmem:[%s838 + $0x1c] sm:$0xf]
      %v1143 = vld [vmem:[%s838 + $0x24] sm:$0xff]
      %v1144 = vld [vmem:[%s838 + $0x2c] sm:$0xf]
      %v1145 = vld [vmem:[%s838 + $0x34] sm:$0xff]
      %v1146 = vld [vmem:[%s838 + $0x3c] sm:$0xf]
      %v1147 = vld [vmem:[%s838 + $0x44] sm:$0xff]
      %v1148 = vld [vmem:[%s838 + $0x4c] sm:$0xf]
      %v1149 = vld [vmem:[%s838 + $0x54] sm:$0xff]
      %v1150 = vld [vmem:[%s838 + $0x5c] sm:$0xf]
      %v1151 = vld [vmem:[%s838 + $0x64] sm:$0xff]
      %v1152 = vld [vmem:[%s838 + $0x6c] sm:$0xf]
      %v1153 = vld [vmem:[%s838 + $0x74] sm:$0xff]
      %v1154 = vld [vmem:[%s838 + $0x7c] sm:$0xf]
      %v1155 = vld [vmem:[%s838 + $0x84] sm:$0xff]
      %v1156 = vld [vmem:[%s838 + $0x8c] sm:$0xf]
      %v1157 = vld [vmem:[%s838 + $0x94] sm:$0xff]
      %v1158 = vld [vmem:[%s838 + $0x9c] sm:$0xf]
      %v1159 = vld [vmem:[%s838 + $0xa4] sm:$0xff]
      %v1160 = vld [vmem:[%s838 + $0xac] sm:$0xf]
      %v1161 = vld [vmem:[%s838 + $0xb4] sm:$0xff]
      %v1162 = vld [vmem:[%s838 + $0xbc] sm:$0xf]
      %v1163 = vstv %s1138
      %v1164 = vmul.f32 %v1163, %v1139
      %v1165 = vmul.f32 %v1163, %v1140
      %v1166 = vmul.f32 %v1163, %v1141
      %v1167 = vmul.f32 %v1163, %v1142
      %v1168 = vmul.f32 %v1163, %v1143
      %v1169 = vmul.f32 %v1163, %v1144
      %v1170 = vmul.f32 %v1163, %v1145
      %v1171 = vmul.f32 %v1163, %v1146
      %v1172 = vmul.f32 %v1163, %v1147
      %v1173 = vmul.f32 %v1163, %v1148
      %v1174 = vmul.f32 %v1163, %v1149
      %v1175 = vmul.f32 %v1163, %v1150
      %v1176 = vmul.f32 %v1163, %v1151
      %v1177 = vmul.f32 %v1163, %v1152
      %v1178 = vmul.f32 %v1163, %v1153
      %v1179 = vmul.f32 %v1163, %v1154
      %v1180 = vmul.f32 %v1163, %v1155
      %v1181 = vmul.f32 %v1163, %v1156
      %v1182 = vmul.f32 %v1163, %v1157
      %v1183 = vmul.f32 %v1163, %v1158
      %v1184 = vmul.f32 %v1163, %v1159
      %v1185 = vmul.f32 %v1163, %v1160
      %v1186 = vmul.f32 %v1163, %v1161
      %v1187 = vmul.f32 %v1163, %v1162
      %v1188 = vadd.f32 %v1113, %v1164
      %v1189 = vadd.f32 %v1114, %v1165
      %v1190 = vadd.f32 %v1115, %v1166
      %v1191 = vadd.f32 %v1116, %v1167
      %v1192 = vadd.f32 %v1117, %v1168
      %v1193 = vadd.f32 %v1118, %v1169
      %v1194 = vadd.f32 %v1119, %v1170
      %v1195 = vadd.f32 %v1120, %v1171
      %v1196 = vadd.f32 %v1121, %v1172
      %v1197 = vadd.f32 %v1122, %v1173
      %v1198 = vadd.f32 %v1123, %v1174
      %v1199 = vadd.f32 %v1124, %v1175
      %v1200 = vadd.f32 %v1125, %v1176
      %v1201 = vadd.f32 %v1126, %v1177
      %v1202 = vadd.f32 %v1127, %v1178
      %v1203 = vadd.f32 %v1128, %v1179
      %v1204 = vadd.f32 %v1129, %v1180
      %v1205 = vadd.f32 %v1130, %v1181
      %v1206 = vadd.f32 %v1131, %v1182
      %v1207 = vadd.f32 %v1132, %v1183
      %v1208 = vadd.f32 %v1133, %v1184
      %v1209 = vadd.f32 %v1134, %v1185
      %v1210 = vadd.f32 %v1135, %v1186
      %v1211 = vadd.f32 %v1136, %v1187
      %s1212 = sadd.s32 %s81, 101
      %s1213 = sld [smem:[#allocation8 + %s1212]]
      %s1214 = sadd.s32 %s837, 768
      %s1215 = scalar_lea.vmem [#allocation4], %s1214
      %v1216 = vld [vmem:[%s1215] sm:$0xff]
      %v1217 = vld [vmem:[%s1215 + $0x8] sm:$0xf]
      %v1218 = vld [vmem:[%s1215 + $0x10] sm:$0xff]
      %v1219 = vld [vmem:[%s1215 + $0x18] sm:$0xf]
      %v1220 = vld [vmem:[%s1215 + $0x20] sm:$0xff]
      %v1221 = vld [vmem:[%s1215 + $0x28] sm:$0xf]
      %v1222 = vld [vmem:[%s1215 + $0x30] sm:$0xff]
      %v1223 = vld [vmem:[%s1215 + $0x38] sm:$0xf]
      %v1224 = vld [vmem:[%s1215 + $0x40] sm:$0xff]
      %v1225 = vld [vmem:[%s1215 + $0x48] sm:$0xf]
      %v1226 = vld [vmem:[%s1215 + $0x50] sm:$0xff]
      %v1227 = vld [vmem:[%s1215 + $0x58] sm:$0xf]
      %v1228 = vld [vmem:[%s1215 + $0x60] sm:$0xff]
      %v1229 = vld [vmem:[%s1215 + $0x68] sm:$0xf]
      %v1230 = vld [vmem:[%s1215 + $0x70] sm:$0xff]
      %v1231 = vld [vmem:[%s1215 + $0x78] sm:$0xf]
      %v1232 = vld [vmem:[%s1215 + $0x80] sm:$0xff]
      %v1233 = vld [vmem:[%s1215 + $0x88] sm:$0xf]
      %v1234 = vld [vmem:[%s1215 + $0x90] sm:$0xff]
      %v1235 = vld [vmem:[%s1215 + $0x98] sm:$0xf]
      %v1236 = vld [vmem:[%s1215 + $0xa0] sm:$0xff]
      %v1237 = vld [vmem:[%s1215 + $0xa8] sm:$0xf]
      %v1238 = vld [vmem:[%s1215 + $0xb0] sm:$0xff]
      %v1239 = vld [vmem:[%s1215 + $0xb8] sm:$0xf]
      %v1240 = vstv %s1213
      %v1241 = vmul.f32 %v1240, %v1216
      %v1242 = vmul.f32 %v1240, %v1217
      %v1243 = vmul.f32 %v1240, %v1218
      %v1244 = vmul.f32 %v1240, %v1219
      %v1245 = vmul.f32 %v1240, %v1220
      %v1246 = vmul.f32 %v1240, %v1221
      %v1247 = vmul.f32 %v1240, %v1222
      %v1248 = vmul.f32 %v1240, %v1223
      %v1249 = vmul.f32 %v1240, %v1224
      %v1250 = vmul.f32 %v1240, %v1225
      %v1251 = vmul.f32 %v1240, %v1226
      %v1252 = vmul.f32 %v1240, %v1227
      %v1253 = vmul.f32 %v1240, %v1228
      %v1254 = vmul.f32 %v1240, %v1229
      %v1255 = vmul.f32 %v1240, %v1230
      %v1256 = vmul.f32 %v1240, %v1231
      %v1257 = vmul.f32 %v1240, %v1232
      %v1258 = vmul.f32 %v1240, %v1233
      %v1259 = vmul.f32 %v1240, %v1234
      %v1260 = vmul.f32 %v1240, %v1235
      %v1261 = vmul.f32 %v1240, %v1236
      %v1262 = vmul.f32 %v1240, %v1237
      %v1263 = vmul.f32 %v1240, %v1238
      %v1264 = vmul.f32 %v1240, %v1239
      %v1265 = vadd.f32 %v1188, %v1241
      %v1266 = vadd.f32 %v1189, %v1242
      %v1267 = vadd.f32 %v1190, %v1243
      %v1268 = vadd.f32 %v1191, %v1244
      %v1269 = vadd.f32 %v1192, %v1245
      %v1270 = vadd.f32 %v1193, %v1246
      %v1271 = vadd.f32 %v1194, %v1247
      %v1272 = vadd.f32 %v1195, %v1248
      %v1273 = vadd.f32 %v1196, %v1249
      %v1274 = vadd.f32 %v1197, %v1250
      %v1275 = vadd.f32 %v1198, %v1251
      %v1276 = vadd.f32 %v1199, %v1252
      %v1277 = vadd.f32 %v1200, %v1253
      %v1278 = vadd.f32 %v1201, %v1254
      %v1279 = vadd.f32 %v1202, %v1255
      %v1280 = vadd.f32 %v1203, %v1256
      %v1281 = vadd.f32 %v1204, %v1257
      %v1282 = vadd.f32 %v1205, %v1258
      %v1283 = vadd.f32 %v1206, %v1259
      %v1284 = vadd.f32 %v1207, %v1260
      %v1285 = vadd.f32 %v1208, %v1261
      %v1286 = vadd.f32 %v1209, %v1262
      %v1287 = vadd.f32 %v1210, %v1263
      %v1288 = vadd.f32 %v1211, %v1264
      %s1289 = sadd.s32 %s81, 103
      %s1290 = sld [smem:[#allocation8 + %s1289]]
      %v1291 = vld [vmem:[%s1215 + $0x1] sm:$0xff]
      %v1292 = vld [vmem:[%s1215 + $0x9] sm:$0xf]
      %v1293 = vld [vmem:[%s1215 + $0x11] sm:$0xff]
      %v1294 = vld [vmem:[%s1215 + $0x19] sm:$0xf]
      %v1295 = vld [vmem:[%s1215 + $0x21] sm:$0xff]
      %v1296 = vld [vmem:[%s1215 + $0x29] sm:$0xf]
      %v1297 = vld [vmem:[%s1215 + $0x31] sm:$0xff]
      %v1298 = vld [vmem:[%s1215 + $0x39] sm:$0xf]
      %v1299 = vld [vmem:[%s1215 + $0x41] sm:$0xff]
      %v1300 = vld [vmem:[%s1215 + $0x49] sm:$0xf]
      %v1301 = vld [vmem:[%s1215 + $0x51] sm:$0xff]
      %v1302 = vld [vmem:[%s1215 + $0x59] sm:$0xf]
      %v1303 = vld [vmem:[%s1215 + $0x61] sm:$0xff]
      %v1304 = vld [vmem:[%s1215 + $0x69] sm:$0xf]
      %v1305 = vld [vmem:[%s1215 + $0x71] sm:$0xff]
      %v1306 = vld [vmem:[%s1215 + $0x79] sm:$0xf]
      %v1307 = vld [vmem:[%s1215 + $0x81] sm:$0xff]
      %v1308 = vld [vmem:[%s1215 + $0x89] sm:$0xf]
      %v1309 = vld [vmem:[%s1215 + $0x91] sm:$0xff]
      %v1310 = vld [vmem:[%s1215 + $0x99] sm:$0xf]
      %v1311 = vld [vmem:[%s1215 + $0xa1] sm:$0xff]
      %v1312 = vld [vmem:[%s1215 + $0xa9] sm:$0xf]
      %v1313 = vld [vmem:[%s1215 + $0xb1] sm:$0xff]
      %v1314 = vld [vmem:[%s1215 + $0xb9] sm:$0xf]
      %v1315 = vstv %s1290
      %v1316 = vmul.f32 %v1315, %v1291
      %v1317 = vmul.f32 %v1315, %v1292
      %v1318 = vmul.f32 %v1315, %v1293
      %v1319 = vmul.f32 %v1315, %v1294
      %v1320 = vmul.f32 %v1315, %v1295
      %v1321 = vmul.f32 %v1315, %v1296
      %v1322 = vmul.f32 %v1315, %v1297
      %v1323 = vmul.f32 %v1315, %v1298
      %v1324 = vmul.f32 %v1315, %v1299
      %v1325 = vmul.f32 %v1315, %v1300
      %v1326 = vmul.f32 %v1315, %v1301
      %v1327 = vmul.f32 %v1315, %v1302
      %v1328 = vmul.f32 %v1315, %v1303
      %v1329 = vmul.f32 %v1315, %v1304
      %v1330 = vmul.f32 %v1315, %v1305
      %v1331 = vmul.f32 %v1315, %v1306
      %v1332 = vmul.f32 %v1315, %v1307
      %v1333 = vmul.f32 %v1315, %v1308
      %v1334 = vmul.f32 %v1315, %v1309
      %v1335 = vmul.f32 %v1315, %v1310
      %v1336 = vmul.f32 %v1315, %v1311
      %v1337 = vmul.f32 %v1315, %v1312
      %v1338 = vmul.f32 %v1315, %v1313
      %v1339 = vmul.f32 %v1315, %v1314
      %v1340 = vadd.f32 %v1265, %v1316
      %v1341 = vadd.f32 %v1266, %v1317
      %v1342 = vadd.f32 %v1267, %v1318
      %v1343 = vadd.f32 %v1268, %v1319
      %v1344 = vadd.f32 %v1269, %v1320
      %v1345 = vadd.f32 %v1270, %v1321
      %v1346 = vadd.f32 %v1271, %v1322
      %v1347 = vadd.f32 %v1272, %v1323
      %v1348 = vadd.f32 %v1273, %v1324
      %v1349 = vadd.f32 %v1274, %v1325
      %v1350 = vadd.f32 %v1275, %v1326
      %v1351 = vadd.f32 %v1276, %v1327
      %v1352 = vadd.f32 %v1277, %v1328
      %v1353 = vadd.f32 %v1278, %v1329
      %v1354 = vadd.f32 %v1279, %v1330
      %v1355 = vadd.f32 %v1280, %v1331
      %v1356 = vadd.f32 %v1281, %v1332
      %v1357 = vadd.f32 %v1282, %v1333
      %v1358 = vadd.f32 %v1283, %v1334
      %v1359 = vadd.f32 %v1284, %v1335
      %v1360 = vadd.f32 %v1285, %v1336
      %v1361 = vadd.f32 %v1286, %v1337
      %v1362 = vadd.f32 %v1287, %v1338
      %v1363 = vadd.f32 %v1288, %v1339
      %s1364 = sadd.s32 %s81, 105
      %s1365 = sld [smem:[#allocation8 + %s1364]]
      %v1366 = vld [vmem:[%s1215 + $0x2] sm:$0xff]
      %v1367 = vld [vmem:[%s1215 + $0xa] sm:$0xf]
      %v1368 = vld [vmem:[%s1215 + $0x12] sm:$0xff]
      %v1369 = vld [vmem:[%s1215 + $0x1a] sm:$0xf]
      %v1370 = vld [vmem:[%s1215 + $0x22] sm:$0xff]
      %v1371 = vld [vmem:[%s1215 + $0x2a] sm:$0xf]
      %v1372 = vld [vmem:[%s1215 + $0x32] sm:$0xff]
      %v1373 = vld [vmem:[%s1215 + $0x3a] sm:$0xf]
      %v1374 = vld [vmem:[%s1215 + $0x42] sm:$0xff]
      %v1375 = vld [vmem:[%s1215 + $0x4a] sm:$0xf]
      %v1376 = vld [vmem:[%s1215 + $0x52] sm:$0xff]
      %v1377 = vld [vmem:[%s1215 + $0x5a] sm:$0xf]
      %v1378 = vld [vmem:[%s1215 + $0x62] sm:$0xff]
      %v1379 = vld [vmem:[%s1215 + $0x6a] sm:$0xf]
      %v1380 = vld [vmem:[%s1215 + $0x72] sm:$0xff]
      %v1381 = vld [vmem:[%s1215 + $0x7a] sm:$0xf]
      %v1382 = vld [vmem:[%s1215 + $0x82] sm:$0xff]
      %v1383 = vld [vmem:[%s1215 + $0x8a] sm:$0xf]
      %v1384 = vld [vmem:[%s1215 + $0x92] sm:$0xff]
      %v1385 = vld [vmem:[%s1215 + $0x9a] sm:$0xf]
      %v1386 = vld [vmem:[%s1215 + $0xa2] sm:$0xff]
      %v1387 = vld [vmem:[%s1215 + $0xaa] sm:$0xf]
      %v1388 = vld [vmem:[%s1215 + $0xb2] sm:$0xff]
      %v1389 = vld [vmem:[%s1215 + $0xba] sm:$0xf]
      %v1390 = vstv %s1365
      %v1391 = vmul.f32 %v1390, %v1366
      %v1392 = vmul.f32 %v1390, %v1367
      %v1393 = vmul.f32 %v1390, %v1368
      %v1394 = vmul.f32 %v1390, %v1369
      %v1395 = vmul.f32 %v1390, %v1370
      %v1396 = vmul.f32 %v1390, %v1371
      %v1397 = vmul.f32 %v1390, %v1372
      %v1398 = vmul.f32 %v1390, %v1373
      %v1399 = vmul.f32 %v1390, %v1374
      %v1400 = vmul.f32 %v1390, %v1375
      %v1401 = vmul.f32 %v1390, %v1376
      %v1402 = vmul.f32 %v1390, %v1377
      %v1403 = vmul.f32 %v1390, %v1378
      %v1404 = vmul.f32 %v1390, %v1379
      %v1405 = vmul.f32 %v1390, %v1380
      %v1406 = vmul.f32 %v1390, %v1381
      %v1407 = vmul.f32 %v1390, %v1382
      %v1408 = vmul.f32 %v1390, %v1383
      %v1409 = vmul.f32 %v1390, %v1384
      %v1410 = vmul.f32 %v1390, %v1385
      %v1411 = vmul.f32 %v1390, %v1386
      %v1412 = vmul.f32 %v1390, %v1387
      %v1413 = vmul.f32 %v1390, %v1388
      %v1414 = vmul.f32 %v1390, %v1389
      %v1415 = vadd.f32 %v1340, %v1391
      %v1416 = vadd.f32 %v1341, %v1392
      %v1417 = vadd.f32 %v1342, %v1393
      %v1418 = vadd.f32 %v1343, %v1394
      %v1419 = vadd.f32 %v1344, %v1395
      %v1420 = vadd.f32 %v1345, %v1396
      %v1421 = vadd.f32 %v1346, %v1397
      %v1422 = vadd.f32 %v1347, %v1398
      %v1423 = vadd.f32 %v1348, %v1399
      %v1424 = vadd.f32 %v1349, %v1400
      %v1425 = vadd.f32 %v1350, %v1401
      %v1426 = vadd.f32 %v1351, %v1402
      %v1427 = vadd.f32 %v1352, %v1403
      %v1428 = vadd.f32 %v1353, %v1404
      %v1429 = vadd.f32 %v1354, %v1405
      %v1430 = vadd.f32 %v1355, %v1406
      %v1431 = vadd.f32 %v1356, %v1407
      %v1432 = vadd.f32 %v1357, %v1408
      %v1433 = vadd.f32 %v1358, %v1409
      %v1434 = vadd.f32 %v1359, %v1410
      %v1435 = vadd.f32 %v1360, %v1411
      %v1436 = vadd.f32 %v1361, %v1412
      %v1437 = vadd.f32 %v1362, %v1413
      %v1438 = vadd.f32 %v1363, %v1414
      %s1439 = sadd.s32 %s81, 107
      %s1440 = sld [smem:[#allocation8 + %s1439]]
      %v1441 = vld [vmem:[%s1215 + $0x3] sm:$0xff]
      %v1442 = vld [vmem:[%s1215 + $0xb] sm:$0xf]
      %v1443 = vld [vmem:[%s1215 + $0x13] sm:$0xff]
      %v1444 = vld [vmem:[%s1215 + $0x1b] sm:$0xf]
      %v1445 = vld [vmem:[%s1215 + $0x23] sm:$0xff]
      %v1446 = vld [vmem:[%s1215 + $0x2b] sm:$0xf]
      %v1447 = vld [vmem:[%s1215 + $0x33] sm:$0xff]
      %v1448 = vld [vmem:[%s1215 + $0x3b] sm:$0xf]
      %v1449 = vld [vmem:[%s1215 + $0x43] sm:$0xff]
      %v1450 = vld [vmem:[%s1215 + $0x4b] sm:$0xf]
      %v1451 = vld [vmem:[%s1215 + $0x53] sm:$0xff]
      %v1452 = vld [vmem:[%s1215 + $0x5b] sm:$0xf]
      %v1453 = vld [vmem:[%s1215 + $0x63] sm:$0xff]
      %v1454 = vld [vmem:[%s1215 + $0x6b] sm:$0xf]
      %v1455 = vld [vmem:[%s1215 + $0x73] sm:$0xff]
      %v1456 = vld [vmem:[%s1215 + $0x7b] sm:$0xf]
      %v1457 = vld [vmem:[%s1215 + $0x83] sm:$0xff]
      %v1458 = vld [vmem:[%s1215 + $0x8b] sm:$0xf]
      %v1459 = vld [vmem:[%s1215 + $0x93] sm:$0xff]
      %v1460 = vld [vmem:[%s1215 + $0x9b] sm:$0xf]
      %v1461 = vld [vmem:[%s1215 + $0xa3] sm:$0xff]
      %v1462 = vld [vmem:[%s1215 + $0xab] sm:$0xf]
      %v1463 = vld [vmem:[%s1215 + $0xb3] sm:$0xff]
      %v1464 = vld [vmem:[%s1215 + $0xbb] sm:$0xf]
      %v1465 = vstv %s1440
      %v1466 = vmul.f32 %v1465, %v1441
      %v1467 = vmul.f32 %v1465, %v1442
      %v1468 = vmul.f32 %v1465, %v1443
      %v1469 = vmul.f32 %v1465, %v1444
      %v1470 = vmul.f32 %v1465, %v1445
      %v1471 = vmul.f32 %v1465, %v1446
      %v1472 = vmul.f32 %v1465, %v1447
      %v1473 = vmul.f32 %v1465, %v1448
      %v1474 = vmul.f32 %v1465, %v1449
      %v1475 = vmul.f32 %v1465, %v1450
      %v1476 = vmul.f32 %v1465, %v1451
      %v1477 = vmul.f32 %v1465, %v1452
      %v1478 = vmul.f32 %v1465, %v1453
      %v1479 = vmul.f32 %v1465, %v1454
      %v1480 = vmul.f32 %v1465, %v1455
      %v1481 = vmul.f32 %v1465, %v1456
      %v1482 = vmul.f32 %v1465, %v1457
      %v1483 = vmul.f32 %v1465, %v1458
      %v1484 = vmul.f32 %v1465, %v1459
      %v1485 = vmul.f32 %v1465, %v1460
      %v1486 = vmul.f32 %v1465, %v1461
      %v1487 = vmul.f32 %v1465, %v1462
      %v1488 = vmul.f32 %v1465, %v1463
      %v1489 = vmul.f32 %v1465, %v1464
      %v1490 = vadd.f32 %v1415, %v1466
      %v1491 = vadd.f32 %v1416, %v1467
      %v1492 = vadd.f32 %v1417, %v1468
      %v1493 = vadd.f32 %v1418, %v1469
      %v1494 = vadd.f32 %v1419, %v1470
      %v1495 = vadd.f32 %v1420, %v1471
      %v1496 = vadd.f32 %v1421, %v1472
      %v1497 = vadd.f32 %v1422, %v1473
      %v1498 = vadd.f32 %v1423, %v1474
      %v1499 = vadd.f32 %v1424, %v1475
      %v1500 = vadd.f32 %v1425, %v1476
      %v1501 = vadd.f32 %v1426, %v1477
      %v1502 = vadd.f32 %v1427, %v1478
      %v1503 = vadd.f32 %v1428, %v1479
      %v1504 = vadd.f32 %v1429, %v1480
      %v1505 = vadd.f32 %v1430, %v1481
      %v1506 = vadd.f32 %v1431, %v1482
      %v1507 = vadd.f32 %v1432, %v1483
      %v1508 = vadd.f32 %v1433, %v1484
      %v1509 = vadd.f32 %v1434, %v1485
      %v1510 = vadd.f32 %v1435, %v1486
      %v1511 = vadd.f32 %v1436, %v1487
      %v1512 = vadd.f32 %v1437, %v1488
      %v1513 = vadd.f32 %v1438, %v1489
      %s1514 = sadd.s32 %s81, 109
      %s1515 = sld [smem:[#allocation8 + %s1514]]
      %v1516 = vld [vmem:[%s1215 + $0x4] sm:$0xff]
      %v1517 = vld [vmem:[%s1215 + $0xc] sm:$0xf]
      %v1518 = vld [vmem:[%s1215 + $0x14] sm:$0xff]
      %v1519 = vld [vmem:[%s1215 + $0x1c] sm:$0xf]
      %v1520 = vld [vmem:[%s1215 + $0x24] sm:$0xff]
      %v1521 = vld [vmem:[%s1215 + $0x2c] sm:$0xf]
      %v1522 = vld [vmem:[%s1215 + $0x34] sm:$0xff]
      %v1523 = vld [vmem:[%s1215 + $0x3c] sm:$0xf]
      %v1524 = vld [vmem:[%s1215 + $0x44] sm:$0xff]
      %v1525 = vld [vmem:[%s1215 + $0x4c] sm:$0xf]
      %v1526 = vld [vmem:[%s1215 + $0x54] sm:$0xff]
      %v1527 = vld [vmem:[%s1215 + $0x5c] sm:$0xf]
      %v1528 = vld [vmem:[%s1215 + $0x64] sm:$0xff]
      %v1529 = vld [vmem:[%s1215 + $0x6c] sm:$0xf]
      %v1530 = vld [vmem:[%s1215 + $0x74] sm:$0xff]
      %v1531 = vld [vmem:[%s1215 + $0x7c] sm:$0xf]
      %v1532 = vld [vmem:[%s1215 + $0x84] sm:$0xff]
      %v1533 = vld [vmem:[%s1215 + $0x8c] sm:$0xf]
      %v1534 = vld [vmem:[%s1215 + $0x94] sm:$0xff]
      %v1535 = vld [vmem:[%s1215 + $0x9c] sm:$0xf]
      %v1536 = vld [vmem:[%s1215 + $0xa4] sm:$0xff]
      %v1537 = vld [vmem:[%s1215 + $0xac] sm:$0xf]
      %v1538 = vld [vmem:[%s1215 + $0xb4] sm:$0xff]
      %v1539 = vld [vmem:[%s1215 + $0xbc] sm:$0xf]
      %v1540 = vstv %s1515
      %v1541 = vmul.f32 %v1540, %v1516
      %v1542 = vmul.f32 %v1540, %v1517
      %v1543 = vmul.f32 %v1540, %v1518
      %v1544 = vmul.f32 %v1540, %v1519
      %v1545 = vmul.f32 %v1540, %v1520
      %v1546 = vmul.f32 %v1540, %v1521
      %v1547 = vmul.f32 %v1540, %v1522
      %v1548 = vmul.f32 %v1540, %v1523
      %v1549 = vmul.f32 %v1540, %v1524
      %v1550 = vmul.f32 %v1540, %v1525
      %v1551 = vmul.f32 %v1540, %v1526
      %v1552 = vmul.f32 %v1540, %v1527
      %v1553 = vmul.f32 %v1540, %v1528
      %v1554 = vmul.f32 %v1540, %v1529
      %v1555 = vmul.f32 %v1540, %v1530
      %v1556 = vmul.f32 %v1540, %v1531
      %v1557 = vmul.f32 %v1540, %v1532
      %v1558 = vmul.f32 %v1540, %v1533
      %v1559 = vmul.f32 %v1540, %v1534
      %v1560 = vmul.f32 %v1540, %v1535
      %v1561 = vmul.f32 %v1540, %v1536
      %v1562 = vmul.f32 %v1540, %v1537
      %v1563 = vmul.f32 %v1540, %v1538
      %v1564 = vmul.f32 %v1540, %v1539
      %v1565 = vadd.f32 %v1490, %v1541
      %v1566 = vadd.f32 %v1491, %v1542
      %v1567 = vadd.f32 %v1492, %v1543
      %v1568 = vadd.f32 %v1493, %v1544
      %v1569 = vadd.f32 %v1494, %v1545
      %v1570 = vadd.f32 %v1495, %v1546
      %v1571 = vadd.f32 %v1496, %v1547
      %v1572 = vadd.f32 %v1497, %v1548
      %v1573 = vadd.f32 %v1498, %v1549
      %v1574 = vadd.f32 %v1499, %v1550
      %v1575 = vadd.f32 %v1500, %v1551
      %v1576 = vadd.f32 %v1501, %v1552
      %v1577 = vadd.f32 %v1502, %v1553
      %v1578 = vadd.f32 %v1503, %v1554
      %v1579 = vadd.f32 %v1504, %v1555
      %v1580 = vadd.f32 %v1505, %v1556
      %v1581 = vadd.f32 %v1506, %v1557
      %v1582 = vadd.f32 %v1507, %v1558
      %v1583 = vadd.f32 %v1508, %v1559
      %v1584 = vadd.f32 %v1509, %v1560
      %v1585 = vadd.f32 %v1510, %v1561
      %v1586 = vadd.f32 %v1511, %v1562
      %v1587 = vadd.f32 %v1512, %v1563
      %v1588 = vadd.f32 %v1513, %v1564
      %s1589 = sadd.s32 %s81, 200
      %s1590 = sld [smem:[#allocation8 + %s1589]]
      %s1591 = sadd.s32 %s83, 512
      %s1592 = scalar_lea.vmem [#allocation4], %s1591
      %v1593 = vld [vmem:[%s1592] sm:$0xff]
      %v1594 = vld [vmem:[%s1592 + $0x8] sm:$0xf]
      %v1595 = vld [vmem:[%s1592 + $0x10] sm:$0xff]
      %v1596 = vld [vmem:[%s1592 + $0x18] sm:$0xf]
      %v1597 = vld [vmem:[%s1592 + $0x20] sm:$0xff]
      %v1598 = vld [vmem:[%s1592 + $0x28] sm:$0xf]
      %v1599 = vld [vmem:[%s1592 + $0x30] sm:$0xff]
      %v1600 = vld [vmem:[%s1592 + $0x38] sm:$0xf]
      %v1601 = vld [vmem:[%s1592 + $0x40] sm:$0xff]
      %v1602 = vld [vmem:[%s1592 + $0x48] sm:$0xf]
      %v1603 = vld [vmem:[%s1592 + $0x50] sm:$0xff]
      %v1604 = vld [vmem:[%s1592 + $0x58] sm:$0xf]
      %v1605 = vld [vmem:[%s1592 + $0x60] sm:$0xff]
      %v1606 = vld [vmem:[%s1592 + $0x68] sm:$0xf]
      %v1607 = vld [vmem:[%s1592 + $0x70] sm:$0xff]
      %v1608 = vld [vmem:[%s1592 + $0x78] sm:$0xf]
      %v1609 = vld [vmem:[%s1592 + $0x80] sm:$0xff]
      %v1610 = vld [vmem:[%s1592 + $0x88] sm:$0xf]
      %v1611 = vld [vmem:[%s1592 + $0x90] sm:$0xff]
      %v1612 = vld [vmem:[%s1592 + $0x98] sm:$0xf]
      %v1613 = vld [vmem:[%s1592 + $0xa0] sm:$0xff]
      %v1614 = vld [vmem:[%s1592 + $0xa8] sm:$0xf]
      %v1615 = vld [vmem:[%s1592 + $0xb0] sm:$0xff]
      %v1616 = vld [vmem:[%s1592 + $0xb8] sm:$0xf]
      %v1617 = vstv %s1590
      %v1618 = vmul.f32 %v1617, %v1593
      %v1619 = vmul.f32 %v1617, %v1594
      %v1620 = vmul.f32 %v1617, %v1595
      %v1621 = vmul.f32 %v1617, %v1596
      %v1622 = vmul.f32 %v1617, %v1597
      %v1623 = vmul.f32 %v1617, %v1598
      %v1624 = vmul.f32 %v1617, %v1599
      %v1625 = vmul.f32 %v1617, %v1600
      %v1626 = vmul.f32 %v1617, %v1601
      %v1627 = vmul.f32 %v1617, %v1602
      %v1628 = vmul.f32 %v1617, %v1603
      %v1629 = vmul.f32 %v1617, %v1604
      %v1630 = vmul.f32 %v1617, %v1605
      %v1631 = vmul.f32 %v1617, %v1606
      %v1632 = vmul.f32 %v1617, %v1607
      %v1633 = vmul.f32 %v1617, %v1608
      %v1634 = vmul.f32 %v1617, %v1609
      %v1635 = vmul.f32 %v1617, %v1610
      %v1636 = vmul.f32 %v1617, %v1611
      %v1637 = vmul.f32 %v1617, %v1612
      %v1638 = vmul.f32 %v1617, %v1613
      %v1639 = vmul.f32 %v1617, %v1614
      %v1640 = vmul.f32 %v1617, %v1615
      %v1641 = vmul.f32 %v1617, %v1616
      %v1642 = vadd.f32 %v1565, %v1618
      %v1643 = vadd.f32 %v1566, %v1619
      %v1644 = vadd.f32 %v1567, %v1620
      %v1645 = vadd.f32 %v1568, %v1621
      %v1646 = vadd.f32 %v1569, %v1622
      %v1647 = vadd.f32 %v1570, %v1623
      %v1648 = vadd.f32 %v1571, %v1624
      %v1649 = vadd.f32 %v1572, %v1625
      %v1650 = vadd.f32 %v1573, %v1626
      %v1651 = vadd.f32 %v1574, %v1627
      %v1652 = vadd.f32 %v1575, %v1628
      %v1653 = vadd.f32 %v1576, %v1629
      %v1654 = vadd.f32 %v1577, %v1630
      %v1655 = vadd.f32 %v1578, %v1631
      %v1656 = vadd.f32 %v1579, %v1632
      %v1657 = vadd.f32 %v1580, %v1633
      %v1658 = vadd.f32 %v1581, %v1634
      %v1659 = vadd.f32 %v1582, %v1635
      %v1660 = vadd.f32 %v1583, %v1636
      %v1661 = vadd.f32 %v1584, %v1637
      %v1662 = vadd.f32 %v1585, %v1638
      %v1663 = vadd.f32 %v1586, %v1639
      %v1664 = vadd.f32 %v1587, %v1640
      %v1665 = vadd.f32 %v1588, %v1641
      %s1666 = sadd.s32 %s81, 202
      %s1667 = sld [smem:[#allocation8 + %s1666]]
      %v1668 = vld [vmem:[%s1592 + $0x1] sm:$0xff]
      %v1669 = vld [vmem:[%s1592 + $0x9] sm:$0xf]
      %v1670 = vld [vmem:[%s1592 + $0x11] sm:$0xff]
      %v1671 = vld [vmem:[%s1592 + $0x19] sm:$0xf]
      %v1672 = vld [vmem:[%s1592 + $0x21] sm:$0xff]
      %v1673 = vld [vmem:[%s1592 + $0x29] sm:$0xf]
      %v1674 = vld [vmem:[%s1592 + $0x31] sm:$0xff]
      %v1675 = vld [vmem:[%s1592 + $0x39] sm:$0xf]
      %v1676 = vld [vmem:[%s1592 + $0x41] sm:$0xff]
      %v1677 = vld [vmem:[%s1592 + $0x49] sm:$0xf]
      %v1678 = vld [vmem:[%s1592 + $0x51] sm:$0xff]
      %v1679 = vld [vmem:[%s1592 + $0x59] sm:$0xf]
      %v1680 = vld [vmem:[%s1592 + $0x61] sm:$0xff]
      %v1681 = vld [vmem:[%s1592 + $0x69] sm:$0xf]
      %v1682 = vld [vmem:[%s1592 + $0x71] sm:$0xff]
      %v1683 = vld [vmem:[%s1592 + $0x79] sm:$0xf]
      %v1684 = vld [vmem:[%s1592 + $0x81] sm:$0xff]
      %v1685 = vld [vmem:[%s1592 + $0x89] sm:$0xf]
      %v1686 = vld [vmem:[%s1592 + $0x91] sm:$0xff]
      %v1687 = vld [vmem:[%s1592 + $0x99] sm:$0xf]
      %v1688 = vld [vmem:[%s1592 + $0xa1] sm:$0xff]
      %v1689 = vld [vmem:[%s1592 + $0xa9] sm:$0xf]
      %v1690 = vld [vmem:[%s1592 + $0xb1] sm:$0xff]
      %v1691 = vld [vmem:[%s1592 + $0xb9] sm:$0xf]
      %v1692 = vstv %s1667
      %v1693 = vmul.f32 %v1692, %v1668
      %v1694 = vmul.f32 %v1692, %v1669
      %v1695 = vmul.f32 %v1692, %v1670
      %v1696 = vmul.f32 %v1692, %v1671
      %v1697 = vmul.f32 %v1692, %v1672
      %v1698 = vmul.f32 %v1692, %v1673
      %v1699 = vmul.f32 %v1692, %v1674
      %v1700 = vmul.f32 %v1692, %v1675
      %v1701 = vmul.f32 %v1692, %v1676
      %v1702 = vmul.f32 %v1692, %v1677
      %v1703 = vmul.f32 %v1692, %v1678
      %v1704 = vmul.f32 %v1692, %v1679
      %v1705 = vmul.f32 %v1692, %v1680
      %v1706 = vmul.f32 %v1692, %v1681
      %v1707 = vmul.f32 %v1692, %v1682
      %v1708 = vmul.f32 %v1692, %v1683
      %v1709 = vmul.f32 %v1692, %v1684
      %v1710 = vmul.f32 %v1692, %v1685
      %v1711 = vmul.f32 %v1692, %v1686
      %v1712 = vmul.f32 %v1692, %v1687
      %v1713 = vmul.f32 %v1692, %v1688
      %v1714 = vmul.f32 %v1692, %v1689
      %v1715 = vmul.f32 %v1692, %v1690
      %v1716 = vmul.f32 %v1692, %v1691
      %v1717 = vadd.f32 %v1642, %v1693
      %v1718 = vadd.f32 %v1643, %v1694
      %v1719 = vadd.f32 %v1644, %v1695
      %v1720 = vadd.f32 %v1645, %v1696
      %v1721 = vadd.f32 %v1646, %v1697
      %v1722 = vadd.f32 %v1647, %v1698
      %v1723 = vadd.f32 %v1648, %v1699
      %v1724 = vadd.f32 %v1649, %v1700
      %v1725 = vadd.f32 %v1650, %v1701
      %v1726 = vadd.f32 %v1651, %v1702
      %v1727 = vadd.f32 %v1652, %v1703
      %v1728 = vadd.f32 %v1653, %v1704
      %v1729 = vadd.f32 %v1654, %v1705
      %v1730 = vadd.f32 %v1655, %v1706
      %v1731 = vadd.f32 %v1656, %v1707
      %v1732 = vadd.f32 %v1657, %v1708
      %v1733 = vadd.f32 %v1658, %v1709
      %v1734 = vadd.f32 %v1659, %v1710
      %v1735 = vadd.f32 %v1660, %v1711
      %v1736 = vadd.f32 %v1661, %v1712
      %v1737 = vadd.f32 %v1662, %v1713
      %v1738 = vadd.f32 %v1663, %v1714
      %v1739 = vadd.f32 %v1664, %v1715
      %v1740 = vadd.f32 %v1665, %v1716
      %s1741 = sadd.s32 %s81, 204
      %s1742 = sld [smem:[#allocation8 + %s1741]]
      %v1743 = vld [vmem:[%s1592 + $0x2] sm:$0xff]
      %v1744 = vld [vmem:[%s1592 + $0xa] sm:$0xf]
      %v1745 = vld [vmem:[%s1592 + $0x12] sm:$0xff]
      %v1746 = vld [vmem:[%s1592 + $0x1a] sm:$0xf]
      %v1747 = vld [vmem:[%s1592 + $0x22] sm:$0xff]
      %v1748 = vld [vmem:[%s1592 + $0x2a] sm:$0xf]
      %v1749 = vld [vmem:[%s1592 + $0x32] sm:$0xff]
      %v1750 = vld [vmem:[%s1592 + $0x3a] sm:$0xf]
      %v1751 = vld [vmem:[%s1592 + $0x42] sm:$0xff]
      %v1752 = vld [vmem:[%s1592 + $0x4a] sm:$0xf]
      %v1753 = vld [vmem:[%s1592 + $0x52] sm:$0xff]
      %v1754 = vld [vmem:[%s1592 + $0x5a] sm:$0xf]
      %v1755 = vld [vmem:[%s1592 + $0x62] sm:$0xff]
      %v1756 = vld [vmem:[%s1592 + $0x6a] sm:$0xf]
      %v1757 = vld [vmem:[%s1592 + $0x72] sm:$0xff]
      %v1758 = vld [vmem:[%s1592 + $0x7a] sm:$0xf]
      %v1759 = vld [vmem:[%s1592 + $0x82] sm:$0xff]
      %v1760 = vld [vmem:[%s1592 + $0x8a] sm:$0xf]
      %v1761 = vld [vmem:[%s1592 + $0x92] sm:$0xff]
      %v1762 = vld [vmem:[%s1592 + $0x9a] sm:$0xf]
      %v1763 = vld [vmem:[%s1592 + $0xa2] sm:$0xff]
      %v1764 = vld [vmem:[%s1592 + $0xaa] sm:$0xf]
      %v1765 = vld [vmem:[%s1592 + $0xb2] sm:$0xff]
      %v1766 = vld [vmem:[%s1592 + $0xba] sm:$0xf]
      %v1767 = vstv %s1742
      %v1768 = vmul.f32 %v1767, %v1743
      %v1769 = vmul.f32 %v1767, %v1744
      %v1770 = vmul.f32 %v1767, %v1745
      %v1771 = vmul.f32 %v1767, %v1746
      %v1772 = vmul.f32 %v1767, %v1747
      %v1773 = vmul.f32 %v1767, %v1748
      %v1774 = vmul.f32 %v1767, %v1749
      %v1775 = vmul.f32 %v1767, %v1750
      %v1776 = vmul.f32 %v1767, %v1751
      %v1777 = vmul.f32 %v1767, %v1752
      %v1778 = vmul.f32 %v1767, %v1753
      %v1779 = vmul.f32 %v1767, %v1754
      %v1780 = vmul.f32 %v1767, %v1755
      %v1781 = vmul.f32 %v1767, %v1756
      %v1782 = vmul.f32 %v1767, %v1757
      %v1783 = vmul.f32 %v1767, %v1758
      %v1784 = vmul.f32 %v1767, %v1759
      %v1785 = vmul.f32 %v1767, %v1760
      %v1786 = vmul.f32 %v1767, %v1761
      %v1787 = vmul.f32 %v1767, %v1762
      %v1788 = vmul.f32 %v1767, %v1763
      %v1789 = vmul.f32 %v1767, %v1764
      %v1790 = vmul.f32 %v1767, %v1765
      %v1791 = vmul.f32 %v1767, %v1766
      %v1792 = vadd.f32 %v1717, %v1768
      %v1793 = vadd.f32 %v1718, %v1769
      %v1794 = vadd.f32 %v1719, %v1770
      %v1795 = vadd.f32 %v1720, %v1771
      %v1796 = vadd.f32 %v1721, %v1772
      %v1797 = vadd.f32 %v1722, %v1773
      %v1798 = vadd.f32 %v1723, %v1774
      %v1799 = vadd.f32 %v1724, %v1775
      %v1800 = vadd.f32 %v1725, %v1776
      %v1801 = vadd.f32 %v1726, %v1777
      %v1802 = vadd.f32 %v1727, %v1778
      %v1803 = vadd.f32 %v1728, %v1779
      %v1804 = vadd.f32 %v1729, %v1780
      %v1805 = vadd.f32 %v1730, %v1781
      %v1806 = vadd.f32 %v1731, %v1782
      %v1807 = vadd.f32 %v1732, %v1783
      %v1808 = vadd.f32 %v1733, %v1784
      %v1809 = vadd.f32 %v1734, %v1785
      %v1810 = vadd.f32 %v1735, %v1786
      %v1811 = vadd.f32 %v1736, %v1787
      %v1812 = vadd.f32 %v1737, %v1788
      %v1813 = vadd.f32 %v1738, %v1789
      %v1814 = vadd.f32 %v1739, %v1790
      %v1815 = vadd.f32 %v1740, %v1791
      %s1816 = sadd.s32 %s81, 206
      %s1817 = sld [smem:[#allocation8 + %s1816]]
      %v1818 = vld [vmem:[%s1592 + $0x3] sm:$0xff]
      %v1819 = vld [vmem:[%s1592 + $0xb] sm:$0xf]
      %v1820 = vld [vmem:[%s1592 + $0x13] sm:$0xff]
      %v1821 = vld [vmem:[%s1592 + $0x1b] sm:$0xf]
      %v1822 = vld [vmem:[%s1592 + $0x23] sm:$0xff]
      %v1823 = vld [vmem:[%s1592 + $0x2b] sm:$0xf]
      %v1824 = vld [vmem:[%s1592 + $0x33] sm:$0xff]
      %v1825 = vld [vmem:[%s1592 + $0x3b] sm:$0xf]
      %v1826 = vld [vmem:[%s1592 + $0x43] sm:$0xff]
      %v1827 = vld [vmem:[%s1592 + $0x4b] sm:$0xf]
      %v1828 = vld [vmem:[%s1592 + $0x53] sm:$0xff]
      %v1829 = vld [vmem:[%s1592 + $0x5b] sm:$0xf]
      %v1830 = vld [vmem:[%s1592 + $0x63] sm:$0xff]
      %v1831 = vld [vmem:[%s1592 + $0x6b] sm:$0xf]
      %v1832 = vld [vmem:[%s1592 + $0x73] sm:$0xff]
      %v1833 = vld [vmem:[%s1592 + $0x7b] sm:$0xf]
      %v1834 = vld [vmem:[%s1592 + $0x83] sm:$0xff]
      %v1835 = vld [vmem:[%s1592 + $0x8b] sm:$0xf]
      %v1836 = vld [vmem:[%s1592 + $0x93] sm:$0xff]
      %v1837 = vld [vmem:[%s1592 + $0x9b] sm:$0xf]
      %v1838 = vld [vmem:[%s1592 + $0xa3] sm:$0xff]
      %v1839 = vld [vmem:[%s1592 + $0xab] sm:$0xf]
      %v1840 = vld [vmem:[%s1592 + $0xb3] sm:$0xff]
      %v1841 = vld [vmem:[%s1592 + $0xbb] sm:$0xf]
      %v1842 = vstv %s1817
      %v1843 = vmul.f32 %v1842, %v1818
      %v1844 = vmul.f32 %v1842, %v1819
      %v1845 = vmul.f32 %v1842, %v1820
      %v1846 = vmul.f32 %v1842, %v1821
      %v1847 = vmul.f32 %v1842, %v1822
      %v1848 = vmul.f32 %v1842, %v1823
      %v1849 = vmul.f32 %v1842, %v1824
      %v1850 = vmul.f32 %v1842, %v1825
      %v1851 = vmul.f32 %v1842, %v1826
      %v1852 = vmul.f32 %v1842, %v1827
      %v1853 = vmul.f32 %v1842, %v1828
      %v1854 = vmul.f32 %v1842, %v1829
      %v1855 = vmul.f32 %v1842, %v1830
      %v1856 = vmul.f32 %v1842, %v1831
      %v1857 = vmul.f32 %v1842, %v1832
      %v1858 = vmul.f32 %v1842, %v1833
      %v1859 = vmul.f32 %v1842, %v1834
      %v1860 = vmul.f32 %v1842, %v1835
      %v1861 = vmul.f32 %v1842, %v1836
      %v1862 = vmul.f32 %v1842, %v1837
      %v1863 = vmul.f32 %v1842, %v1838
      %v1864 = vmul.f32 %v1842, %v1839
      %v1865 = vmul.f32 %v1842, %v1840
      %v1866 = vmul.f32 %v1842, %v1841
      %v1867 = vadd.f32 %v1792, %v1843
      %v1868 = vadd.f32 %v1793, %v1844
      %v1869 = vadd.f32 %v1794, %v1845
      %v1870 = vadd.f32 %v1795, %v1846
      %v1871 = vadd.f32 %v1796, %v1847
      %v1872 = vadd.f32 %v1797, %v1848
      %v1873 = vadd.f32 %v1798, %v1849
      %v1874 = vadd.f32 %v1799, %v1850
      %v1875 = vadd.f32 %v1800, %v1851
      %v1876 = vadd.f32 %v1801, %v1852
      %v1877 = vadd.f32 %v1802, %v1853
      %v1878 = vadd.f32 %v1803, %v1854
      %v1879 = vadd.f32 %v1804, %v1855
      %v1880 = vadd.f32 %v1805, %v1856
      %v1881 = vadd.f32 %v1806, %v1857
      %v1882 = vadd.f32 %v1807, %v1858
      %v1883 = vadd.f32 %v1808, %v1859
      %v1884 = vadd.f32 %v1809, %v1860
      %v1885 = vadd.f32 %v1810, %v1861
      %v1886 = vadd.f32 %v1811, %v1862
      %v1887 = vadd.f32 %v1812, %v1863
      %v1888 = vadd.f32 %v1813, %v1864
      %v1889 = vadd.f32 %v1814, %v1865
      %v1890 = vadd.f32 %v1815, %v1866
      %s1891 = sadd.s32 %s81, 208
      %s1892 = sld [smem:[#allocation8 + %s1891]]
      %v1893 = vld [vmem:[%s1592 + $0x4] sm:$0xff]
      %v1894 = vld [vmem:[%s1592 + $0xc] sm:$0xf]
      %v1895 = vld [vmem:[%s1592 + $0x14] sm:$0xff]
      %v1896 = vld [vmem:[%s1592 + $0x1c] sm:$0xf]
      %v1897 = vld [vmem:[%s1592 + $0x24] sm:$0xff]
      %v1898 = vld [vmem:[%s1592 + $0x2c] sm:$0xf]
      %v1899 = vld [vmem:[%s1592 + $0x34] sm:$0xff]
      %v1900 = vld [vmem:[%s1592 + $0x3c] sm:$0xf]
      %v1901 = vld [vmem:[%s1592 + $0x44] sm:$0xff]
      %v1902 = vld [vmem:[%s1592 + $0x4c] sm:$0xf]
      %v1903 = vld [vmem:[%s1592 + $0x54] sm:$0xff]
      %v1904 = vld [vmem:[%s1592 + $0x5c] sm:$0xf]
      %v1905 = vld [vmem:[%s1592 + $0x64] sm:$0xff]
      %v1906 = vld [vmem:[%s1592 + $0x6c] sm:$0xf]
      %v1907 = vld [vmem:[%s1592 + $0x74] sm:$0xff]
      %v1908 = vld [vmem:[%s1592 + $0x7c] sm:$0xf]
      %v1909 = vld [vmem:[%s1592 + $0x84] sm:$0xff]
      %v1910 = vld [vmem:[%s1592 + $0x8c] sm:$0xf]
      %v1911 = vld [vmem:[%s1592 + $0x94] sm:$0xff]
      %v1912 = vld [vmem:[%s1592 + $0x9c] sm:$0xf]
      %v1913 = vld [vmem:[%s1592 + $0xa4] sm:$0xff]
      %v1914 = vld [vmem:[%s1592 + $0xac] sm:$0xf]
      %v1915 = vld [vmem:[%s1592 + $0xb4] sm:$0xff]
      %v1916 = vld [vmem:[%s1592 + $0xbc] sm:$0xf]
      %v1917 = vstv %s1892
      %v1918 = vmul.f32 %v1917, %v1893
      %v1919 = vmul.f32 %v1917, %v1894
      %v1920 = vmul.f32 %v1917, %v1895
      %v1921 = vmul.f32 %v1917, %v1896
      %v1922 = vmul.f32 %v1917, %v1897
      %v1923 = vmul.f32 %v1917, %v1898
      %v1924 = vmul.f32 %v1917, %v1899
      %v1925 = vmul.f32 %v1917, %v1900
      %v1926 = vmul.f32 %v1917, %v1901
      %v1927 = vmul.f32 %v1917, %v1902
      %v1928 = vmul.f32 %v1917, %v1903
      %v1929 = vmul.f32 %v1917, %v1904
      %v1930 = vmul.f32 %v1917, %v1905
      %v1931 = vmul.f32 %v1917, %v1906
      %v1932 = vmul.f32 %v1917, %v1907
      %v1933 = vmul.f32 %v1917, %v1908
      %v1934 = vmul.f32 %v1917, %v1909
      %v1935 = vmul.f32 %v1917, %v1910
      %v1936 = vmul.f32 %v1917, %v1911
      %v1937 = vmul.f32 %v1917, %v1912
      %v1938 = vmul.f32 %v1917, %v1913
      %v1939 = vmul.f32 %v1917, %v1914
      %v1940 = vmul.f32 %v1917, %v1915
      %v1941 = vmul.f32 %v1917, %v1916
      %v1942 = vadd.f32 %v1867, %v1918
      %v1943 = vadd.f32 %v1868, %v1919
      %v1944 = vadd.f32 %v1869, %v1920
      %v1945 = vadd.f32 %v1870, %v1921
      %v1946 = vadd.f32 %v1871, %v1922
      %v1947 = vadd.f32 %v1872, %v1923
      %v1948 = vadd.f32 %v1873, %v1924
      %v1949 = vadd.f32 %v1874, %v1925
      %v1950 = vadd.f32 %v1875, %v1926
      %v1951 = vadd.f32 %v1876, %v1927
      %v1952 = vadd.f32 %v1877, %v1928
      %v1953 = vadd.f32 %v1878, %v1929
      %v1954 = vadd.f32 %v1879, %v1930
      %v1955 = vadd.f32 %v1880, %v1931
      %v1956 = vadd.f32 %v1881, %v1932
      %v1957 = vadd.f32 %v1882, %v1933
      %v1958 = vadd.f32 %v1883, %v1934
      %v1959 = vadd.f32 %v1884, %v1935
      %v1960 = vadd.f32 %v1885, %v1936
      %v1961 = vadd.f32 %v1886, %v1937
      %v1962 = vadd.f32 %v1887, %v1938
      %v1963 = vadd.f32 %v1888, %v1939
      %v1964 = vadd.f32 %v1889, %v1940
      %v1965 = vadd.f32 %v1890, %v1941
      %s1966 = sadd.s32 %s81, 201
      %s1967 = sld [smem:[#allocation8 + %s1966]]
      %s1968 = sadd.s32 %s1591, 768
      %s1969 = scalar_lea.vmem [#allocation4], %s1968
      %v1970 = vld [vmem:[%s1969] sm:$0xff]
      %v1971 = vld [vmem:[%s1969 + $0x8] sm:$0xf]
      %v1972 = vld [vmem:[%s1969 + $0x10] sm:$0xff]
      %v1973 = vld [vmem:[%s1969 + $0x18] sm:$0xf]
      %v1974 = vld [vmem:[%s1969 + $0x20] sm:$0xff]
      %v1975 = vld [vmem:[%s1969 + $0x28] sm:$0xf]
      %v1976 = vld [vmem:[%s1969 + $0x30] sm:$0xff]
      %v1977 = vld [vmem:[%s1969 + $0x38] sm:$0xf]
      %v1978 = vld [vmem:[%s1969 + $0x40] sm:$0xff]
      %v1979 = vld [vmem:[%s1969 + $0x48] sm:$0xf]
      %v1980 = vld [vmem:[%s1969 + $0x50] sm:$0xff]
      %v1981 = vld [vmem:[%s1969 + $0x58] sm:$0xf]
      %v1982 = vld [vmem:[%s1969 + $0x60] sm:$0xff]
      %v1983 = vld [vmem:[%s1969 + $0x68] sm:$0xf]
      %v1984 = vld [vmem:[%s1969 + $0x70] sm:$0xff]
      %v1985 = vld [vmem:[%s1969 + $0x78] sm:$0xf]
      %v1986 = vld [vmem:[%s1969 + $0x80] sm:$0xff]
      %v1987 = vld [vmem:[%s1969 + $0x88] sm:$0xf]
      %v1988 = vld [vmem:[%s1969 + $0x90] sm:$0xff]
      %v1989 = vld [vmem:[%s1969 + $0x98] sm:$0xf]
      %v1990 = vld [vmem:[%s1969 + $0xa0] sm:$0xff]
      %v1991 = vld [vmem:[%s1969 + $0xa8] sm:$0xf]
      %v1992 = vld [vmem:[%s1969 + $0xb0] sm:$0xff]
      %v1993 = vld [vmem:[%s1969 + $0xb8] sm:$0xf]
      %v1994 = vstv %s1967
      %v1995 = vmul.f32 %v1994, %v1970
      %v1996 = vmul.f32 %v1994, %v1971
      %v1997 = vmul.f32 %v1994, %v1972
      %v1998 = vmul.f32 %v1994, %v1973
      %v1999 = vmul.f32 %v1994, %v1974
      %v2000 = vmul.f32 %v1994, %v1975
      %v2001 = vmul.f32 %v1994, %v1976
      %v2002 = vmul.f32 %v1994, %v1977
      %v2003 = vmul.f32 %v1994, %v1978
      %v2004 = vmul.f32 %v1994, %v1979
      %v2005 = vmul.f32 %v1994, %v1980
      %v2006 = vmul.f32 %v1994, %v1981
      %v2007 = vmul.f32 %v1994, %v1982
      %v2008 = vmul.f32 %v1994, %v1983
      %v2009 = vmul.f32 %v1994, %v1984
      %v2010 = vmul.f32 %v1994, %v1985
      %v2011 = vmul.f32 %v1994, %v1986
      %v2012 = vmul.f32 %v1994, %v1987
      %v2013 = vmul.f32 %v1994, %v1988
      %v2014 = vmul.f32 %v1994, %v1989
      %v2015 = vmul.f32 %v1994, %v1990
      %v2016 = vmul.f32 %v1994, %v1991
      %v2017 = vmul.f32 %v1994, %v1992
      %v2018 = vmul.f32 %v1994, %v1993
      %v2019 = vadd.f32 %v1942, %v1995
      %v2020 = vadd.f32 %v1943, %v1996
      %v2021 = vadd.f32 %v1944, %v1997
      %v2022 = vadd.f32 %v1945, %v1998
      %v2023 = vadd.f32 %v1946, %v1999
      %v2024 = vadd.f32 %v1947, %v2000
      %v2025 = vadd.f32 %v1948, %v2001
      %v2026 = vadd.f32 %v1949, %v2002
      %v2027 = vadd.f32 %v1950, %v2003
      %v2028 = vadd.f32 %v1951, %v2004
      %v2029 = vadd.f32 %v1952, %v2005
      %v2030 = vadd.f32 %v1953, %v2006
      %v2031 = vadd.f32 %v1954, %v2007
      %v2032 = vadd.f32 %v1955, %v2008
      %v2033 = vadd.f32 %v1956, %v2009
      %v2034 = vadd.f32 %v1957, %v2010
      %v2035 = vadd.f32 %v1958, %v2011
      %v2036 = vadd.f32 %v1959, %v2012
      %v2037 = vadd.f32 %v1960, %v2013
      %v2038 = vadd.f32 %v1961, %v2014
      %v2039 = vadd.f32 %v1962, %v2015
      %v2040 = vadd.f32 %v1963, %v2016
      %v2041 = vadd.f32 %v1964, %v2017
      %v2042 = vadd.f32 %v1965, %v2018
      %s2043 = sadd.s32 %s81, 203
      %s2044 = sld [smem:[#allocation8 + %s2043]]
      %v2045 = vld [vmem:[%s1969 + $0x1] sm:$0xff]
      %v2046 = vld [vmem:[%s1969 + $0x9] sm:$0xf]
      %v2047 = vld [vmem:[%s1969 + $0x11] sm:$0xff]
      %v2048 = vld [vmem:[%s1969 + $0x19] sm:$0xf]
      %v2049 = vld [vmem:[%s1969 + $0x21] sm:$0xff]
      %v2050 = vld [vmem:[%s1969 + $0x29] sm:$0xf]
      %v2051 = vld [vmem:[%s1969 + $0x31] sm:$0xff]
      %v2052 = vld [vmem:[%s1969 + $0x39] sm:$0xf]
      %v2053 = vld [vmem:[%s1969 + $0x41] sm:$0xff]
      %v2054 = vld [vmem:[%s1969 + $0x49] sm:$0xf]
      %v2055 = vld [vmem:[%s1969 + $0x51] sm:$0xff]
      %v2056 = vld [vmem:[%s1969 + $0x59] sm:$0xf]
      %v2057 = vld [vmem:[%s1969 + $0x61] sm:$0xff]
      %v2058 = vld [vmem:[%s1969 + $0x69] sm:$0xf]
      %v2059 = vld [vmem:[%s1969 + $0x71] sm:$0xff]
      %v2060 = vld [vmem:[%s1969 + $0x79] sm:$0xf]
      %v2061 = vld [vmem:[%s1969 + $0x81] sm:$0xff]
      %v2062 = vld [vmem:[%s1969 + $0x89] sm:$0xf]
      %v2063 = vld [vmem:[%s1969 + $0x91] sm:$0xff]
      %v2064 = vld [vmem:[%s1969 + $0x99] sm:$0xf]
      %v2065 = vld [vmem:[%s1969 + $0xa1] sm:$0xff]
      %v2066 = vld [vmem:[%s1969 + $0xa9] sm:$0xf]
      %v2067 = vld [vmem:[%s1969 + $0xb1] sm:$0xff]
      %v2068 = vld [vmem:[%s1969 + $0xb9] sm:$0xf]
      %v2069 = vstv %s2044
      %v2070 = vmul.f32 %v2069, %v2045
      %v2071 = vmul.f32 %v2069, %v2046
      %v2072 = vmul.f32 %v2069, %v2047
      %v2073 = vmul.f32 %v2069, %v2048
      %v2074 = vmul.f32 %v2069, %v2049
      %v2075 = vmul.f32 %v2069, %v2050
      %v2076 = vmul.f32 %v2069, %v2051
      %v2077 = vmul.f32 %v2069, %v2052
      %v2078 = vmul.f32 %v2069, %v2053
      %v2079 = vmul.f32 %v2069, %v2054
      %v2080 = vmul.f32 %v2069, %v2055
      %v2081 = vmul.f32 %v2069, %v2056
      %v2082 = vmul.f32 %v2069, %v2057
      %v2083 = vmul.f32 %v2069, %v2058
      %v2084 = vmul.f32 %v2069, %v2059
      %v2085 = vmul.f32 %v2069, %v2060
      %v2086 = vmul.f32 %v2069, %v2061
      %v2087 = vmul.f32 %v2069, %v2062
      %v2088 = vmul.f32 %v2069, %v2063
      %v2089 = vmul.f32 %v2069, %v2064
      %v2090 = vmul.f32 %v2069, %v2065
      %v2091 = vmul.f32 %v2069, %v2066
      %v2092 = vmul.f32 %v2069, %v2067
      %v2093 = vmul.f32 %v2069, %v2068
      %v2094 = vadd.f32 %v2019, %v2070
      %v2095 = vadd.f32 %v2020, %v2071
      %v2096 = vadd.f32 %v2021, %v2072
      %v2097 = vadd.f32 %v2022, %v2073
      %v2098 = vadd.f32 %v2023, %v2074
      %v2099 = vadd.f32 %v2024, %v2075
      %v2100 = vadd.f32 %v2025, %v2076
      %v2101 = vadd.f32 %v2026, %v2077
      %v2102 = vadd.f32 %v2027, %v2078
      %v2103 = vadd.f32 %v2028, %v2079
      %v2104 = vadd.f32 %v2029, %v2080
      %v2105 = vadd.f32 %v2030, %v2081
      %v2106 = vadd.f32 %v2031, %v2082
      %v2107 = vadd.f32 %v2032, %v2083
      %v2108 = vadd.f32 %v2033, %v2084
      %v2109 = vadd.f32 %v2034, %v2085
      %v2110 = vadd.f32 %v2035, %v2086
      %v2111 = vadd.f32 %v2036, %v2087
      %v2112 = vadd.f32 %v2037, %v2088
      %v2113 = vadd.f32 %v2038, %v2089
      %v2114 = vadd.f32 %v2039, %v2090
      %v2115 = vadd.f32 %v2040, %v2091
      %v2116 = vadd.f32 %v2041, %v2092
      %v2117 = vadd.f32 %v2042, %v2093
      %s2118 = sadd.s32 %s81, 205
      %s2119 = sld [smem:[#allocation8 + %s2118]]
      %v2120 = vld [vmem:[%s1969 + $0x2] sm:$0xff]
      %v2121 = vld [vmem:[%s1969 + $0xa] sm:$0xf]
      %v2122 = vld [vmem:[%s1969 + $0x12] sm:$0xff]
      %v2123 = vld [vmem:[%s1969 + $0x1a] sm:$0xf]
      %v2124 = vld [vmem:[%s1969 + $0x22] sm:$0xff]
      %v2125 = vld [vmem:[%s1969 + $0x2a] sm:$0xf]
      %v2126 = vld [vmem:[%s1969 + $0x32] sm:$0xff]
      %v2127 = vld [vmem:[%s1969 + $0x3a] sm:$0xf]
      %v2128 = vld [vmem:[%s1969 + $0x42] sm:$0xff]
      %v2129 = vld [vmem:[%s1969 + $0x4a] sm:$0xf]
      %v2130 = vld [vmem:[%s1969 + $0x52] sm:$0xff]
      %v2131 = vld [vmem:[%s1969 + $0x5a] sm:$0xf]
      %v2132 = vld [vmem:[%s1969 + $0x62] sm:$0xff]
      %v2133 = vld [vmem:[%s1969 + $0x6a] sm:$0xf]
      %v2134 = vld [vmem:[%s1969 + $0x72] sm:$0xff]
      %v2135 = vld [vmem:[%s1969 + $0x7a] sm:$0xf]
      %v2136 = vld [vmem:[%s1969 + $0x82] sm:$0xff]
      %v2137 = vld [vmem:[%s1969 + $0x8a] sm:$0xf]
      %v2138 = vld [vmem:[%s1969 + $0x92] sm:$0xff]
      %v2139 = vld [vmem:[%s1969 + $0x9a] sm:$0xf]
      %v2140 = vld [vmem:[%s1969 + $0xa2] sm:$0xff]
      %v2141 = vld [vmem:[%s1969 + $0xaa] sm:$0xf]
      %v2142 = vld [vmem:[%s1969 + $0xb2] sm:$0xff]
      %v2143 = vld [vmem:[%s1969 + $0xba] sm:$0xf]
      %v2144 = vstv %s2119
      %v2145 = vmul.f32 %v2144, %v2120
      %v2146 = vmul.f32 %v2144, %v2121
      %v2147 = vmul.f32 %v2144, %v2122
      %v2148 = vmul.f32 %v2144, %v2123
      %v2149 = vmul.f32 %v2144, %v2124
      %v2150 = vmul.f32 %v2144, %v2125
      %v2151 = vmul.f32 %v2144, %v2126
      %v2152 = vmul.f32 %v2144, %v2127
      %v2153 = vmul.f32 %v2144, %v2128
      %v2154 = vmul.f32 %v2144, %v2129
      %v2155 = vmul.f32 %v2144, %v2130
      %v2156 = vmul.f32 %v2144, %v2131
      %v2157 = vmul.f32 %v2144, %v2132
      %v2158 = vmul.f32 %v2144, %v2133
      %v2159 = vmul.f32 %v2144, %v2134
      %v2160 = vmul.f32 %v2144, %v2135
      %v2161 = vmul.f32 %v2144, %v2136
      %v2162 = vmul.f32 %v2144, %v2137
      %v2163 = vmul.f32 %v2144, %v2138
      %v2164 = vmul.f32 %v2144, %v2139
      %v2165 = vmul.f32 %v2144, %v2140
      %v2166 = vmul.f32 %v2144, %v2141
      %v2167 = vmul.f32 %v2144, %v2142
      %v2168 = vmul.f32 %v2144, %v2143
      %v2169 = vadd.f32 %v2094, %v2145
      %v2170 = vadd.f32 %v2095, %v2146
      %v2171 = vadd.f32 %v2096, %v2147
      %v2172 = vadd.f32 %v2097, %v2148
      %v2173 = vadd.f32 %v2098, %v2149
      %v2174 = vadd.f32 %v2099, %v2150
      %v2175 = vadd.f32 %v2100, %v2151
      %v2176 = vadd.f32 %v2101, %v2152
      %v2177 = vadd.f32 %v2102, %v2153
      %v2178 = vadd.f32 %v2103, %v2154
      %v2179 = vadd.f32 %v2104, %v2155
      %v2180 = vadd.f32 %v2105, %v2156
      %v2181 = vadd.f32 %v2106, %v2157
      %v2182 = vadd.f32 %v2107, %v2158
      %v2183 = vadd.f32 %v2108, %v2159
      %v2184 = vadd.f32 %v2109, %v2160
      %v2185 = vadd.f32 %v2110, %v2161
      %v2186 = vadd.f32 %v2111, %v2162
      %v2187 = vadd.f32 %v2112, %v2163
      %v2188 = vadd.f32 %v2113, %v2164
      %v2189 = vadd.f32 %v2114, %v2165
      %v2190 = vadd.f32 %v2115, %v2166
      %v2191 = vadd.f32 %v2116, %v2167
      %v2192 = vadd.f32 %v2117, %v2168
      %s2193 = sadd.s32 %s81, 207
      %s2194 = sld [smem:[#allocation8 + %s2193]]
      %v2195 = vld [vmem:[%s1969 + $0x3] sm:$0xff]
      %v2196 = vld [vmem:[%s1969 + $0xb] sm:$0xf]
      %v2197 = vld [vmem:[%s1969 + $0x13] sm:$0xff]
      %v2198 = vld [vmem:[%s1969 + $0x1b] sm:$0xf]
      %v2199 = vld [vmem:[%s1969 + $0x23] sm:$0xff]
      %v2200 = vld [vmem:[%s1969 + $0x2b] sm:$0xf]
      %v2201 = vld [vmem:[%s1969 + $0x33] sm:$0xff]
      %v2202 = vld [vmem:[%s1969 + $0x3b] sm:$0xf]
      %v2203 = vld [vmem:[%s1969 + $0x43] sm:$0xff]
      %v2204 = vld [vmem:[%s1969 + $0x4b] sm:$0xf]
      %v2205 = vld [vmem:[%s1969 + $0x53] sm:$0xff]
      %v2206 = vld [vmem:[%s1969 + $0x5b] sm:$0xf]
      %v2207 = vld [vmem:[%s1969 + $0x63] sm:$0xff]
      %v2208 = vld [vmem:[%s1969 + $0x6b] sm:$0xf]
      %v2209 = vld [vmem:[%s1969 + $0x73] sm:$0xff]
      %v2210 = vld [vmem:[%s1969 + $0x7b] sm:$0xf]
      %v2211 = vld [vmem:[%s1969 + $0x83] sm:$0xff]
      %v2212 = vld [vmem:[%s1969 + $0x8b] sm:$0xf]
      %v2213 = vld [vmem:[%s1969 + $0x93] sm:$0xff]
      %v2214 = vld [vmem:[%s1969 + $0x9b] sm:$0xf]
      %v2215 = vld [vmem:[%s1969 + $0xa3] sm:$0xff]
      %v2216 = vld [vmem:[%s1969 + $0xab] sm:$0xf]
      %v2217 = vld [vmem:[%s1969 + $0xb3] sm:$0xff]
      %v2218 = vld [vmem:[%s1969 + $0xbb] sm:$0xf]
      %v2219 = vstv %s2194
      %v2220 = vmul.f32 %v2219, %v2195
      %v2221 = vmul.f32 %v2219, %v2196
      %v2222 = vmul.f32 %v2219, %v2197
      %v2223 = vmul.f32 %v2219, %v2198
      %v2224 = vmul.f32 %v2219, %v2199
      %v2225 = vmul.f32 %v2219, %v2200
      %v2226 = vmul.f32 %v2219, %v2201
      %v2227 = vmul.f32 %v2219, %v2202
      %v2228 = vmul.f32 %v2219, %v2203
      %v2229 = vmul.f32 %v2219, %v2204
      %v2230 = vmul.f32 %v2219, %v2205
      %v2231 = vmul.f32 %v2219, %v2206
      %v2232 = vmul.f32 %v2219, %v2207
      %v2233 = vmul.f32 %v2219, %v2208
      %v2234 = vmul.f32 %v2219, %v2209
      %v2235 = vmul.f32 %v2219, %v2210
      %v2236 = vmul.f32 %v2219, %v2211
      %v2237 = vmul.f32 %v2219, %v2212
      %v2238 = vmul.f32 %v2219, %v2213
      %v2239 = vmul.f32 %v2219, %v2214
      %v2240 = vmul.f32 %v2219, %v2215
      %v2241 = vmul.f32 %v2219, %v2216
      %v2242 = vmul.f32 %v2219, %v2217
      %v2243 = vmul.f32 %v2219, %v2218
      %v2244 = vadd.f32 %v2169, %v2220
      %v2245 = vadd.f32 %v2170, %v2221
      %v2246 = vadd.f32 %v2171, %v2222
      %v2247 = vadd.f32 %v2172, %v2223
      %v2248 = vadd.f32 %v2173, %v2224
      %v2249 = vadd.f32 %v2174, %v2225
      %v2250 = vadd.f32 %v2175, %v2226
      %v2251 = vadd.f32 %v2176, %v2227
      %v2252 = vadd.f32 %v2177, %v2228
      %v2253 = vadd.f32 %v2178, %v2229
      %v2254 = vadd.f32 %v2179, %v2230
      %v2255 = vadd.f32 %v2180, %v2231
      %v2256 = vadd.f32 %v2181, %v2232
      %v2257 = vadd.f32 %v2182, %v2233
      %v2258 = vadd.f32 %v2183, %v2234
      %v2259 = vadd.f32 %v2184, %v2235
      %v2260 = vadd.f32 %v2185, %v2236
      %v2261 = vadd.f32 %v2186, %v2237
      %v2262 = vadd.f32 %v2187, %v2238
      %v2263 = vadd.f32 %v2188, %v2239
      %v2264 = vadd.f32 %v2189, %v2240
      %v2265 = vadd.f32 %v2190, %v2241
      %v2266 = vadd.f32 %v2191, %v2242
      %v2267 = vadd.f32 %v2192, %v2243
      %s2268 = sadd.s32 %s81, 209
      %s2269 = sld [smem:[#allocation8 + %s2268]]
      %v2270 = vld [vmem:[%s1969 + $0x4] sm:$0xff]
      %v2271 = vld [vmem:[%s1969 + $0xc] sm:$0xf]
      %v2272 = vld [vmem:[%s1969 + $0x14] sm:$0xff]
      %v2273 = vld [vmem:[%s1969 + $0x1c] sm:$0xf]
      %v2274 = vld [vmem:[%s1969 + $0x24] sm:$0xff]
      %v2275 = vld [vmem:[%s1969 + $0x2c] sm:$0xf]
      %v2276 = vld [vmem:[%s1969 + $0x34] sm:$0xff]
      %v2277 = vld [vmem:[%s1969 + $0x3c] sm:$0xf]
      %v2278 = vld [vmem:[%s1969 + $0x44] sm:$0xff]
      %v2279 = vld [vmem:[%s1969 + $0x4c] sm:$0xf]
      %v2280 = vld [vmem:[%s1969 + $0x54] sm:$0xff]
      %v2281 = vld [vmem:[%s1969 + $0x5c] sm:$0xf]
      %v2282 = vld [vmem:[%s1969 + $0x64] sm:$0xff]
      %v2283 = vld [vmem:[%s1969 + $0x6c] sm:$0xf]
      %v2284 = vld [vmem:[%s1969 + $0x74] sm:$0xff]
      %v2285 = vld [vmem:[%s1969 + $0x7c] sm:$0xf]
      %v2286 = vld [vmem:[%s1969 + $0x84] sm:$0xff]
      %v2287 = vld [vmem:[%s1969 + $0x8c] sm:$0xf]
      %v2288 = vld [vmem:[%s1969 + $0x94] sm:$0xff]
      %v2289 = vld [vmem:[%s1969 + $0x9c] sm:$0xf]
      %v2290 = vld [vmem:[%s1969 + $0xa4] sm:$0xff]
      %v2291 = vld [vmem:[%s1969 + $0xac] sm:$0xf]
      %v2292 = vld [vmem:[%s1969 + $0xb4] sm:$0xff]
      %v2293 = vld [vmem:[%s1969 + $0xbc] sm:$0xf]
      %v2294 = vstv %s2269
      %v2295 = vmul.f32 %v2294, %v2270
      %v2296 = vmul.f32 %v2294, %v2271
      %v2297 = vmul.f32 %v2294, %v2272
      %v2298 = vmul.f32 %v2294, %v2273
      %v2299 = vmul.f32 %v2294, %v2274
      %v2300 = vmul.f32 %v2294, %v2275
      %v2301 = vmul.f32 %v2294, %v2276
      %v2302 = vmul.f32 %v2294, %v2277
      %v2303 = vmul.f32 %v2294, %v2278
      %v2304 = vmul.f32 %v2294, %v2279
      %v2305 = vmul.f32 %v2294, %v2280
      %v2306 = vmul.f32 %v2294, %v2281
      %v2307 = vmul.f32 %v2294, %v2282
      %v2308 = vmul.f32 %v2294, %v2283
      %v2309 = vmul.f32 %v2294, %v2284
      %v2310 = vmul.f32 %v2294, %v2285
      %v2311 = vmul.f32 %v2294, %v2286
      %v2312 = vmul.f32 %v2294, %v2287
      %v2313 = vmul.f32 %v2294, %v2288
      %v2314 = vmul.f32 %v2294, %v2289
      %v2315 = vmul.f32 %v2294, %v2290
      %v2316 = vmul.f32 %v2294, %v2291
      %v2317 = vmul.f32 %v2294, %v2292
      %v2318 = vmul.f32 %v2294, %v2293
      %v2319 = vadd.f32 %v2244, %v2295
      %v2320 = vadd.f32 %v2245, %v2296
      %v2321 = vadd.f32 %v2246, %v2297
      %v2322 = vadd.f32 %v2247, %v2298
      %v2323 = vadd.f32 %v2248, %v2299
      %v2324 = vadd.f32 %v2249, %v2300
      %v2325 = vadd.f32 %v2250, %v2301
      %v2326 = vadd.f32 %v2251, %v2302
      %v2327 = vadd.f32 %v2252, %v2303
      %v2328 = vadd.f32 %v2253, %v2304
      %v2329 = vadd.f32 %v2254, %v2305
      %v2330 = vadd.f32 %v2255, %v2306
      %v2331 = vadd.f32 %v2256, %v2307
      %v2332 = vadd.f32 %v2257, %v2308
      %v2333 = vadd.f32 %v2258, %v2309
      %v2334 = vadd.f32 %v2259, %v2310
      %v2335 = vadd.f32 %v2260, %v2311
      %v2336 = vadd.f32 %v2261, %v2312
      %v2337 = vadd.f32 %v2262, %v2313
      %v2338 = vadd.f32 %v2263, %v2314
      %v2339 = vadd.f32 %v2264, %v2315
      %v2340 = vadd.f32 %v2265, %v2316
      %v2341 = vadd.f32 %v2266, %v2317
      %v2342 = vadd.f32 %v2267, %v2318
      %s2343 = sadd.s32 %s81, 10
      %s2344 = sld [smem:[#allocation8 + %s2343]]
      %s2345 = sadd.s32 %s83, 1536
      %s2346 = scalar_lea.vmem [#allocation4], %s2345
      %v2347 = vld [vmem:[%s2346] sm:$0xff]
      %v2348 = vld [vmem:[%s2346 + $0x8] sm:$0xf]
      %v2349 = vld [vmem:[%s2346 + $0x10] sm:$0xff]
      %v2350 = vld [vmem:[%s2346 + $0x18] sm:$0xf]
      %v2351 = vld [vmem:[%s2346 + $0x20] sm:$0xff]
      %v2352 = vld [vmem:[%s2346 + $0x28] sm:$0xf]
      %v2353 = vld [vmem:[%s2346 + $0x30] sm:$0xff]
      %v2354 = vld [vmem:[%s2346 + $0x38] sm:$0xf]
      %v2355 = vld [vmem:[%s2346 + $0x40] sm:$0xff]
      %v2356 = vld [vmem:[%s2346 + $0x48] sm:$0xf]
      %v2357 = vld [vmem:[%s2346 + $0x50] sm:$0xff]
      %v2358 = vld [vmem:[%s2346 + $0x58] sm:$0xf]
      %v2359 = vld [vmem:[%s2346 + $0x60] sm:$0xff]
      %v2360 = vld [vmem:[%s2346 + $0x68] sm:$0xf]
      %v2361 = vld [vmem:[%s2346 + $0x70] sm:$0xff]
      %v2362 = vld [vmem:[%s2346 + $0x78] sm:$0xf]
      %v2363 = vld [vmem:[%s2346 + $0x80] sm:$0xff]
      %v2364 = vld [vmem:[%s2346 + $0x88] sm:$0xf]
      %v2365 = vld [vmem:[%s2346 + $0x90] sm:$0xff]
      %v2366 = vld [vmem:[%s2346 + $0x98] sm:$0xf]
      %v2367 = vld [vmem:[%s2346 + $0xa0] sm:$0xff]
      %v2368 = vld [vmem:[%s2346 + $0xa8] sm:$0xf]
      %v2369 = vld [vmem:[%s2346 + $0xb0] sm:$0xff]
      %v2370 = vld [vmem:[%s2346 + $0xb8] sm:$0xf]
      %v2371 = vstv %s2344
      %v2372 = vmul.f32 %v2371, %v2347
      %v2373 = vmul.f32 %v2371, %v2348
      %v2374 = vmul.f32 %v2371, %v2349
      %v2375 = vmul.f32 %v2371, %v2350
      %v2376 = vmul.f32 %v2371, %v2351
      %v2377 = vmul.f32 %v2371, %v2352
      %v2378 = vmul.f32 %v2371, %v2353
      %v2379 = vmul.f32 %v2371, %v2354
      %v2380 = vmul.f32 %v2371, %v2355
      %v2381 = vmul.f32 %v2371, %v2356
      %v2382 = vmul.f32 %v2371, %v2357
      %v2383 = vmul.f32 %v2371, %v2358
      %v2384 = vmul.f32 %v2371, %v2359
      %v2385 = vmul.f32 %v2371, %v2360
      %v2386 = vmul.f32 %v2371, %v2361
      %v2387 = vmul.f32 %v2371, %v2362
      %v2388 = vmul.f32 %v2371, %v2363
      %v2389 = vmul.f32 %v2371, %v2364
      %v2390 = vmul.f32 %v2371, %v2365
      %v2391 = vmul.f32 %v2371, %v2366
      %v2392 = vmul.f32 %v2371, %v2367
      %v2393 = vmul.f32 %v2371, %v2368
      %v2394 = vmul.f32 %v2371, %v2369
      %v2395 = vmul.f32 %v2371, %v2370
      %v2396 = vadd.f32 %v2319, %v2372
      %v2397 = vadd.f32 %v2320, %v2373
      %v2398 = vadd.f32 %v2321, %v2374
      %v2399 = vadd.f32 %v2322, %v2375
      %v2400 = vadd.f32 %v2323, %v2376
      %v2401 = vadd.f32 %v2324, %v2377
      %v2402 = vadd.f32 %v2325, %v2378
      %v2403 = vadd.f32 %v2326, %v2379
      %v2404 = vadd.f32 %v2327, %v2380
      %v2405 = vadd.f32 %v2328, %v2381
      %v2406 = vadd.f32 %v2329, %v2382
      %v2407 = vadd.f32 %v2330, %v2383
      %v2408 = vadd.f32 %v2331, %v2384
      %v2409 = vadd.f32 %v2332, %v2385
      %v2410 = vadd.f32 %v2333, %v2386
      %v2411 = vadd.f32 %v2334, %v2387
      %v2412 = vadd.f32 %v2335, %v2388
      %v2413 = vadd.f32 %v2336, %v2389
      %v2414 = vadd.f32 %v2337, %v2390
      %v2415 = vadd.f32 %v2338, %v2391
      %v2416 = vadd.f32 %v2339, %v2392
      %v2417 = vadd.f32 %v2340, %v2393
      %v2418 = vadd.f32 %v2341, %v2394
      %v2419 = vadd.f32 %v2342, %v2395
      %s2420 = sadd.s32 %s81, 12
      %s2421 = sld [smem:[#allocation8 + %s2420]]
      %v2422 = vld [vmem:[%s2346 + $0x1] sm:$0xff]
      %v2423 = vld [vmem:[%s2346 + $0x9] sm:$0xf]
      %v2424 = vld [vmem:[%s2346 + $0x11] sm:$0xff]
      %v2425 = vld [vmem:[%s2346 + $0x19] sm:$0xf]
      %v2426 = vld [vmem:[%s2346 + $0x21] sm:$0xff]
      %v2427 = vld [vmem:[%s2346 + $0x29] sm:$0xf]
      %v2428 = vld [vmem:[%s2346 + $0x31] sm:$0xff]
      %v2429 = vld [vmem:[%s2346 + $0x39] sm:$0xf]
      %v2430 = vld [vmem:[%s2346 + $0x41] sm:$0xff]
      %v2431 = vld [vmem:[%s2346 + $0x49] sm:$0xf]
      %v2432 = vld [vmem:[%s2346 + $0x51] sm:$0xff]
      %v2433 = vld [vmem:[%s2346 + $0x59] sm:$0xf]
      %v2434 = vld [vmem:[%s2346 + $0x61] sm:$0xff]
      %v2435 = vld [vmem:[%s2346 + $0x69] sm:$0xf]
      %v2436 = vld [vmem:[%s2346 + $0x71] sm:$0xff]
      %v2437 = vld [vmem:[%s2346 + $0x79] sm:$0xf]
      %v2438 = vld [vmem:[%s2346 + $0x81] sm:$0xff]
      %v2439 = vld [vmem:[%s2346 + $0x89] sm:$0xf]
      %v2440 = vld [vmem:[%s2346 + $0x91] sm:$0xff]
      %v2441 = vld [vmem:[%s2346 + $0x99] sm:$0xf]
      %v2442 = vld [vmem:[%s2346 + $0xa1] sm:$0xff]
      %v2443 = vld [vmem:[%s2346 + $0xa9] sm:$0xf]
      %v2444 = vld [vmem:[%s2346 + $0xb1] sm:$0xff]
      %v2445 = vld [vmem:[%s2346 + $0xb9] sm:$0xf]
      %v2446 = vstv %s2421
      %v2447 = vmul.f32 %v2446, %v2422
      %v2448 = vmul.f32 %v2446, %v2423
      %v2449 = vmul.f32 %v2446, %v2424
      %v2450 = vmul.f32 %v2446, %v2425
      %v2451 = vmul.f32 %v2446, %v2426
      %v2452 = vmul.f32 %v2446, %v2427
      %v2453 = vmul.f32 %v2446, %v2428
      %v2454 = vmul.f32 %v2446, %v2429
      %v2455 = vmul.f32 %v2446, %v2430
      %v2456 = vmul.f32 %v2446, %v2431
      %v2457 = vmul.f32 %v2446, %v2432
      %v2458 = vmul.f32 %v2446, %v2433
      %v2459 = vmul.f32 %v2446, %v2434
      %v2460 = vmul.f32 %v2446, %v2435
      %v2461 = vmul.f32 %v2446, %v2436
      %v2462 = vmul.f32 %v2446, %v2437
      %v2463 = vmul.f32 %v2446, %v2438
      %v2464 = vmul.f32 %v2446, %v2439
      %v2465 = vmul.f32 %v2446, %v2440
      %v2466 = vmul.f32 %v2446, %v2441
      %v2467 = vmul.f32 %v2446, %v2442
      %v2468 = vmul.f32 %v2446, %v2443
      %v2469 = vmul.f32 %v2446, %v2444
      %v2470 = vmul.f32 %v2446, %v2445
      %v2471 = vadd.f32 %v2396, %v2447
      %v2472 = vadd.f32 %v2397, %v2448
      %v2473 = vadd.f32 %v2398, %v2449
      %v2474 = vadd.f32 %v2399, %v2450
      %v2475 = vadd.f32 %v2400, %v2451
      %v2476 = vadd.f32 %v2401, %v2452
      %v2477 = vadd.f32 %v2402, %v2453
      %v2478 = vadd.f32 %v2403, %v2454
      %v2479 = vadd.f32 %v2404, %v2455
      %v2480 = vadd.f32 %v2405, %v2456
      %v2481 = vadd.f32 %v2406, %v2457
      %v2482 = vadd.f32 %v2407, %v2458
      %v2483 = vadd.f32 %v2408, %v2459
      %v2484 = vadd.f32 %v2409, %v2460
      %v2485 = vadd.f32 %v2410, %v2461
      %v2486 = vadd.f32 %v2411, %v2462
      %v2487 = vadd.f32 %v2412, %v2463
      %v2488 = vadd.f32 %v2413, %v2464
      %v2489 = vadd.f32 %v2414, %v2465
      %v2490 = vadd.f32 %v2415, %v2466
      %v2491 = vadd.f32 %v2416, %v2467
      %v2492 = vadd.f32 %v2417, %v2468
      %v2493 = vadd.f32 %v2418, %v2469
      %v2494 = vadd.f32 %v2419, %v2470
      %s2495 = sadd.s32 %s81, 14
      %s2496 = sld [smem:[#allocation8 + %s2495]]
      %v2497 = vld [vmem:[%s2346 + $0x2] sm:$0xff]
      %v2498 = vld [vmem:[%s2346 + $0xa] sm:$0xf]
      %v2499 = vld [vmem:[%s2346 + $0x12] sm:$0xff]
      %v2500 = vld [vmem:[%s2346 + $0x1a] sm:$0xf]
      %v2501 = vld [vmem:[%s2346 + $0x22] sm:$0xff]
      %v2502 = vld [vmem:[%s2346 + $0x2a] sm:$0xf]
      %v2503 = vld [vmem:[%s2346 + $0x32] sm:$0xff]
      %v2504 = vld [vmem:[%s2346 + $0x3a] sm:$0xf]
      %v2505 = vld [vmem:[%s2346 + $0x42] sm:$0xff]
      %v2506 = vld [vmem:[%s2346 + $0x4a] sm:$0xf]
      %v2507 = vld [vmem:[%s2346 + $0x52] sm:$0xff]
      %v2508 = vld [vmem:[%s2346 + $0x5a] sm:$0xf]
      %v2509 = vld [vmem:[%s2346 + $0x62] sm:$0xff]
      %v2510 = vld [vmem:[%s2346 + $0x6a] sm:$0xf]
      %v2511 = vld [vmem:[%s2346 + $0x72] sm:$0xff]
      %v2512 = vld [vmem:[%s2346 + $0x7a] sm:$0xf]
      %v2513 = vld [vmem:[%s2346 + $0x82] sm:$0xff]
      %v2514 = vld [vmem:[%s2346 + $0x8a] sm:$0xf]
      %v2515 = vld [vmem:[%s2346 + $0x92] sm:$0xff]
      %v2516 = vld [vmem:[%s2346 + $0x9a] sm:$0xf]
      %v2517 = vld [vmem:[%s2346 + $0xa2] sm:$0xff]
      %v2518 = vld [vmem:[%s2346 + $0xaa] sm:$0xf]
      %v2519 = vld [vmem:[%s2346 + $0xb2] sm:$0xff]
      %v2520 = vld [vmem:[%s2346 + $0xba] sm:$0xf]
      %v2521 = vstv %s2496
      %v2522 = vmul.f32 %v2521, %v2497
      %v2523 = vmul.f32 %v2521, %v2498
      %v2524 = vmul.f32 %v2521, %v2499
      %v2525 = vmul.f32 %v2521, %v2500
      %v2526 = vmul.f32 %v2521, %v2501
      %v2527 = vmul.f32 %v2521, %v2502
      %v2528 = vmul.f32 %v2521, %v2503
      %v2529 = vmul.f32 %v2521, %v2504
      %v2530 = vmul.f32 %v2521, %v2505
      %v2531 = vmul.f32 %v2521, %v2506
      %v2532 = vmul.f32 %v2521, %v2507
      %v2533 = vmul.f32 %v2521, %v2508
      %v2534 = vmul.f32 %v2521, %v2509
      %v2535 = vmul.f32 %v2521, %v2510
      %v2536 = vmul.f32 %v2521, %v2511
      %v2537 = vmul.f32 %v2521, %v2512
      %v2538 = vmul.f32 %v2521, %v2513
      %v2539 = vmul.f32 %v2521, %v2514
      %v2540 = vmul.f32 %v2521, %v2515
      %v2541 = vmul.f32 %v2521, %v2516
      %v2542 = vmul.f32 %v2521, %v2517
      %v2543 = vmul.f32 %v2521, %v2518
      %v2544 = vmul.f32 %v2521, %v2519
      %v2545 = vmul.f32 %v2521, %v2520
      %v2546 = vadd.f32 %v2471, %v2522
      %v2547 = vadd.f32 %v2472, %v2523
      %v2548 = vadd.f32 %v2473, %v2524
      %v2549 = vadd.f32 %v2474, %v2525
      %v2550 = vadd.f32 %v2475, %v2526
      %v2551 = vadd.f32 %v2476, %v2527
      %v2552 = vadd.f32 %v2477, %v2528
      %v2553 = vadd.f32 %v2478, %v2529
      %v2554 = vadd.f32 %v2479, %v2530
      %v2555 = vadd.f32 %v2480, %v2531
      %v2556 = vadd.f32 %v2481, %v2532
      %v2557 = vadd.f32 %v2482, %v2533
      %v2558 = vadd.f32 %v2483, %v2534
      %v2559 = vadd.f32 %v2484, %v2535
      %v2560 = vadd.f32 %v2485, %v2536
      %v2561 = vadd.f32 %v2486, %v2537
      %v2562 = vadd.f32 %v2487, %v2538
      %v2563 = vadd.f32 %v2488, %v2539
      %v2564 = vadd.f32 %v2489, %v2540
      %v2565 = vadd.f32 %v2490, %v2541
      %v2566 = vadd.f32 %v2491, %v2542
      %v2567 = vadd.f32 %v2492, %v2543
      %v2568 = vadd.f32 %v2493, %v2544
      %v2569 = vadd.f32 %v2494, %v2545
      %s2570 = sadd.s32 %s81, 16
      %s2571 = sld [smem:[#allocation8 + %s2570]]
      %v2572 = vld [vmem:[%s2346 + $0x3] sm:$0xff]
      %v2573 = vld [vmem:[%s2346 + $0xb] sm:$0xf]
      %v2574 = vld [vmem:[%s2346 + $0x13] sm:$0xff]
      %v2575 = vld [vmem:[%s2346 + $0x1b] sm:$0xf]
      %v2576 = vld [vmem:[%s2346 + $0x23] sm:$0xff]
      %v2577 = vld [vmem:[%s2346 + $0x2b] sm:$0xf]
      %v2578 = vld [vmem:[%s2346 + $0x33] sm:$0xff]
      %v2579 = vld [vmem:[%s2346 + $0x3b] sm:$0xf]
      %v2580 = vld [vmem:[%s2346 + $0x43] sm:$0xff]
      %v2581 = vld [vmem:[%s2346 + $0x4b] sm:$0xf]
      %v2582 = vld [vmem:[%s2346 + $0x53] sm:$0xff]
      %v2583 = vld [vmem:[%s2346 + $0x5b] sm:$0xf]
      %v2584 = vld [vmem:[%s2346 + $0x63] sm:$0xff]
      %v2585 = vld [vmem:[%s2346 + $0x6b] sm:$0xf]
      %v2586 = vld [vmem:[%s2346 + $0x73] sm:$0xff]
      %v2587 = vld [vmem:[%s2346 + $0x7b] sm:$0xf]
      %v2588 = vld [vmem:[%s2346 + $0x83] sm:$0xff]
      %v2589 = vld [vmem:[%s2346 + $0x8b] sm:$0xf]
      %v2590 = vld [vmem:[%s2346 + $0x93] sm:$0xff]
      %v2591 = vld [vmem:[%s2346 + $0x9b] sm:$0xf]
      %v2592 = vld [vmem:[%s2346 + $0xa3] sm:$0xff]
      %v2593 = vld [vmem:[%s2346 + $0xab] sm:$0xf]
      %v2594 = vld [vmem:[%s2346 + $0xb3] sm:$0xff]
      %v2595 = vld [vmem:[%s2346 + $0xbb] sm:$0xf]
      %v2596 = vstv %s2571
      %v2597 = vmul.f32 %v2596, %v2572
      %v2598 = vmul.f32 %v2596, %v2573
      %v2599 = vmul.f32 %v2596, %v2574
      %v2600 = vmul.f32 %v2596, %v2575
      %v2601 = vmul.f32 %v2596, %v2576
      %v2602 = vmul.f32 %v2596, %v2577
      %v2603 = vmul.f32 %v2596, %v2578
      %v2604 = vmul.f32 %v2596, %v2579
      %v2605 = vmul.f32 %v2596, %v2580
      %v2606 = vmul.f32 %v2596, %v2581
      %v2607 = vmul.f32 %v2596, %v2582
      %v2608 = vmul.f32 %v2596, %v2583
      %v2609 = vmul.f32 %v2596, %v2584
      %v2610 = vmul.f32 %v2596, %v2585
      %v2611 = vmul.f32 %v2596, %v2586
      %v2612 = vmul.f32 %v2596, %v2587
      %v2613 = vmul.f32 %v2596, %v2588
      %v2614 = vmul.f32 %v2596, %v2589
      %v2615 = vmul.f32 %v2596, %v2590
      %v2616 = vmul.f32 %v2596, %v2591
      %v2617 = vmul.f32 %v2596, %v2592
      %v2618 = vmul.f32 %v2596, %v2593
      %v2619 = vmul.f32 %v2596, %v2594
      %v2620 = vmul.f32 %v2596, %v2595
      %v2621 = vadd.f32 %v2546, %v2597
      %v2622 = vadd.f32 %v2547, %v2598
      %v2623 = vadd.f32 %v2548, %v2599
      %v2624 = vadd.f32 %v2549, %v2600
      %v2625 = vadd.f32 %v2550, %v2601
      %v2626 = vadd.f32 %v2551, %v2602
      %v2627 = vadd.f32 %v2552, %v2603
      %v2628 = vadd.f32 %v2553, %v2604
      %v2629 = vadd.f32 %v2554, %v2605
      %v2630 = vadd.f32 %v2555, %v2606
      %v2631 = vadd.f32 %v2556, %v2607
      %v2632 = vadd.f32 %v2557, %v2608
      %v2633 = vadd.f32 %v2558, %v2609
      %v2634 = vadd.f32 %v2559, %v2610
      %v2635 = vadd.f32 %v2560, %v2611
      %v2636 = vadd.f32 %v2561, %v2612
      %v2637 = vadd.f32 %v2562, %v2613
      %v2638 = vadd.f32 %v2563, %v2614
      %v2639 = vadd.f32 %v2564, %v2615
      %v2640 = vadd.f32 %v2565, %v2616
      %v2641 = vadd.f32 %v2566, %v2617
      %v2642 = vadd.f32 %v2567, %v2618
      %v2643 = vadd.f32 %v2568, %v2619
      %v2644 = vadd.f32 %v2569, %v2620
      %s2645 = sadd.s32 %s81, 18
      %s2646 = sld [smem:[#allocation8 + %s2645]]
      %v2647 = vld [vmem:[%s2346 + $0x4] sm:$0xff]
      %v2648 = vld [vmem:[%s2346 + $0xc] sm:$0xf]
      %v2649 = vld [vmem:[%s2346 + $0x14] sm:$0xff]
      %v2650 = vld [vmem:[%s2346 + $0x1c] sm:$0xf]
      %v2651 = vld [vmem:[%s2346 + $0x24] sm:$0xff]
      %v2652 = vld [vmem:[%s2346 + $0x2c] sm:$0xf]
      %v2653 = vld [vmem:[%s2346 + $0x34] sm:$0xff]
      %v2654 = vld [vmem:[%s2346 + $0x3c] sm:$0xf]
      %v2655 = vld [vmem:[%s2346 + $0x44] sm:$0xff]
      %v2656 = vld [vmem:[%s2346 + $0x4c] sm:$0xf]
      %v2657 = vld [vmem:[%s2346 + $0x54] sm:$0xff]
      %v2658 = vld [vmem:[%s2346 + $0x5c] sm:$0xf]
      %v2659 = vld [vmem:[%s2346 + $0x64] sm:$0xff]
      %v2660 = vld [vmem:[%s2346 + $0x6c] sm:$0xf]
      %v2661 = vld [vmem:[%s2346 + $0x74] sm:$0xff]
      %v2662 = vld [vmem:[%s2346 + $0x7c] sm:$0xf]
      %v2663 = vld [vmem:[%s2346 + $0x84] sm:$0xff]
      %v2664 = vld [vmem:[%s2346 + $0x8c] sm:$0xf]
      %v2665 = vld [vmem:[%s2346 + $0x94] sm:$0xff]
      %v2666 = vld [vmem:[%s2346 + $0x9c] sm:$0xf]
      %v2667 = vld [vmem:[%s2346 + $0xa4] sm:$0xff]
      %v2668 = vld [vmem:[%s2346 + $0xac] sm:$0xf]
      %v2669 = vld [vmem:[%s2346 + $0xb4] sm:$0xff]
      %v2670 = vld [vmem:[%s2346 + $0xbc] sm:$0xf]
      %v2671 = vstv %s2646
      %v2672 = vmul.f32 %v2671, %v2647
      %v2673 = vmul.f32 %v2671, %v2648
      %v2674 = vmul.f32 %v2671, %v2649
      %v2675 = vmul.f32 %v2671, %v2650
      %v2676 = vmul.f32 %v2671, %v2651
      %v2677 = vmul.f32 %v2671, %v2652
      %v2678 = vmul.f32 %v2671, %v2653
      %v2679 = vmul.f32 %v2671, %v2654
      %v2680 = vmul.f32 %v2671, %v2655
      %v2681 = vmul.f32 %v2671, %v2656
      %v2682 = vmul.f32 %v2671, %v2657
      %v2683 = vmul.f32 %v2671, %v2658
      %v2684 = vmul.f32 %v2671, %v2659
      %v2685 = vmul.f32 %v2671, %v2660
      %v2686 = vmul.f32 %v2671, %v2661
      %v2687 = vmul.f32 %v2671, %v2662
      %v2688 = vmul.f32 %v2671, %v2663
      %v2689 = vmul.f32 %v2671, %v2664
      %v2690 = vmul.f32 %v2671, %v2665
      %v2691 = vmul.f32 %v2671, %v2666
      %v2692 = vmul.f32 %v2671, %v2667
      %v2693 = vmul.f32 %v2671, %v2668
      %v2694 = vmul.f32 %v2671, %v2669
      %v2695 = vmul.f32 %v2671, %v2670
      %v2696 = vadd.f32 %v2621, %v2672
      %v2697 = vadd.f32 %v2622, %v2673
      %v2698 = vadd.f32 %v2623, %v2674
      %v2699 = vadd.f32 %v2624, %v2675
      %v2700 = vadd.f32 %v2625, %v2676
      %v2701 = vadd.f32 %v2626, %v2677
      %v2702 = vadd.f32 %v2627, %v2678
      %v2703 = vadd.f32 %v2628, %v2679
      %v2704 = vadd.f32 %v2629, %v2680
      %v2705 = vadd.f32 %v2630, %v2681
      %v2706 = vadd.f32 %v2631, %v2682
      %v2707 = vadd.f32 %v2632, %v2683
      %v2708 = vadd.f32 %v2633, %v2684
      %v2709 = vadd.f32 %v2634, %v2685
      %v2710 = vadd.f32 %v2635, %v2686
      %v2711 = vadd.f32 %v2636, %v2687
      %v2712 = vadd.f32 %v2637, %v2688
      %v2713 = vadd.f32 %v2638, %v2689
      %v2714 = vadd.f32 %v2639, %v2690
      %v2715 = vadd.f32 %v2640, %v2691
      %v2716 = vadd.f32 %v2641, %v2692
      %v2717 = vadd.f32 %v2642, %v2693
      %v2718 = vadd.f32 %v2643, %v2694
      %v2719 = vadd.f32 %v2644, %v2695
      %s2720 = sadd.s32 %s81, 11
      %s2721 = sld [smem:[#allocation8 + %s2720]]
      %s2722 = sadd.s32 %s460, 1536
      %s2723 = scalar_lea.vmem [#allocation4], %s2722
      %v2724 = vld [vmem:[%s2723] sm:$0xff]
      %v2725 = vld [vmem:[%s2723 + $0x8] sm:$0xf]
      %v2726 = vld [vmem:[%s2723 + $0x10] sm:$0xff]
      %v2727 = vld [vmem:[%s2723 + $0x18] sm:$0xf]
      %v2728 = vld [vmem:[%s2723 + $0x20] sm:$0xff]
      %v2729 = vld [vmem:[%s2723 + $0x28] sm:$0xf]
      %v2730 = vld [vmem:[%s2723 + $0x30] sm:$0xff]
      %v2731 = vld [vmem:[%s2723 + $0x38] sm:$0xf]
      %v2732 = vld [vmem:[%s2723 + $0x40] sm:$0xff]
      %v2733 = vld [vmem:[%s2723 + $0x48] sm:$0xf]
      %v2734 = vld [vmem:[%s2723 + $0x50] sm:$0xff]
      %v2735 = vld [vmem:[%s2723 + $0x58] sm:$0xf]
      %v2736 = vld [vmem:[%s2723 + $0x60] sm:$0xff]
      %v2737 = vld [vmem:[%s2723 + $0x68] sm:$0xf]
      %v2738 = vld [vmem:[%s2723 + $0x70] sm:$0xff]
      %v2739 = vld [vmem:[%s2723 + $0x78] sm:$0xf]
      %v2740 = vld [vmem:[%s2723 + $0x80] sm:$0xff]
      %v2741 = vld [vmem:[%s2723 + $0x88] sm:$0xf]
      %v2742 = vld [vmem:[%s2723 + $0x90] sm:$0xff]
      %v2743 = vld [vmem:[%s2723 + $0x98] sm:$0xf]
      %v2744 = vld [vmem:[%s2723 + $0xa0] sm:$0xff]
      %v2745 = vld [vmem:[%s2723 + $0xa8] sm:$0xf]
      %v2746 = vld [vmem:[%s2723 + $0xb0] sm:$0xff]
      %v2747 = vld [vmem:[%s2723 + $0xb8] sm:$0xf]
      %v2748 = vstv %s2721
      %v2749 = vmul.f32 %v2748, %v2724
      %v2750 = vmul.f32 %v2748, %v2725
      %v2751 = vmul.f32 %v2748, %v2726
      %v2752 = vmul.f32 %v2748, %v2727
      %v2753 = vmul.f32 %v2748, %v2728
      %v2754 = vmul.f32 %v2748, %v2729
      %v2755 = vmul.f32 %v2748, %v2730
      %v2756 = vmul.f32 %v2748, %v2731
      %v2757 = vmul.f32 %v2748, %v2732
      %v2758 = vmul.f32 %v2748, %v2733
      %v2759 = vmul.f32 %v2748, %v2734
      %v2760 = vmul.f32 %v2748, %v2735
      %v2761 = vmul.f32 %v2748, %v2736
      %v2762 = vmul.f32 %v2748, %v2737
      %v2763 = vmul.f32 %v2748, %v2738
      %v2764 = vmul.f32 %v2748, %v2739
      %v2765 = vmul.f32 %v2748, %v2740
      %v2766 = vmul.f32 %v2748, %v2741
      %v2767 = vmul.f32 %v2748, %v2742
      %v2768 = vmul.f32 %v2748, %v2743
      %v2769 = vmul.f32 %v2748, %v2744
      %v2770 = vmul.f32 %v2748, %v2745
      %v2771 = vmul.f32 %v2748, %v2746
      %v2772 = vmul.f32 %v2748, %v2747
      %v2773 = vadd.f32 %v2696, %v2749
      %v2774 = vadd.f32 %v2697, %v2750
      %v2775 = vadd.f32 %v2698, %v2751
      %v2776 = vadd.f32 %v2699, %v2752
      %v2777 = vadd.f32 %v2700, %v2753
      %v2778 = vadd.f32 %v2701, %v2754
      %v2779 = vadd.f32 %v2702, %v2755
      %v2780 = vadd.f32 %v2703, %v2756
      %v2781 = vadd.f32 %v2704, %v2757
      %v2782 = vadd.f32 %v2705, %v2758
      %v2783 = vadd.f32 %v2706, %v2759
      %v2784 = vadd.f32 %v2707, %v2760
      %v2785 = vadd.f32 %v2708, %v2761
      %v2786 = vadd.f32 %v2709, %v2762
      %v2787 = vadd.f32 %v2710, %v2763
      %v2788 = vadd.f32 %v2711, %v2764
      %v2789 = vadd.f32 %v2712, %v2765
      %v2790 = vadd.f32 %v2713, %v2766
      %v2791 = vadd.f32 %v2714, %v2767
      %v2792 = vadd.f32 %v2715, %v2768
      %v2793 = vadd.f32 %v2716, %v2769
      %v2794 = vadd.f32 %v2717, %v2770
      %v2795 = vadd.f32 %v2718, %v2771
      %v2796 = vadd.f32 %v2719, %v2772
      %s2797 = sadd.s32 %s81, 13
      %s2798 = sld [smem:[#allocation8 + %s2797]]
      %v2799 = vld [vmem:[%s2723 + $0x1] sm:$0xff]
      %v2800 = vld [vmem:[%s2723 + $0x9] sm:$0xf]
      %v2801 = vld [vmem:[%s2723 + $0x11] sm:$0xff]
      %v2802 = vld [vmem:[%s2723 + $0x19] sm:$0xf]
      %v2803 = vld [vmem:[%s2723 + $0x21] sm:$0xff]
      %v2804 = vld [vmem:[%s2723 + $0x29] sm:$0xf]
      %v2805 = vld [vmem:[%s2723 + $0x31] sm:$0xff]
      %v2806 = vld [vmem:[%s2723 + $0x39] sm:$0xf]
      %v2807 = vld [vmem:[%s2723 + $0x41] sm:$0xff]
      %v2808 = vld [vmem:[%s2723 + $0x49] sm:$0xf]
      %v2809 = vld [vmem:[%s2723 + $0x51] sm:$0xff]
      %v2810 = vld [vmem:[%s2723 + $0x59] sm:$0xf]
      %v2811 = vld [vmem:[%s2723 + $0x61] sm:$0xff]
      %v2812 = vld [vmem:[%s2723 + $0x69] sm:$0xf]
      %v2813 = vld [vmem:[%s2723 + $0x71] sm:$0xff]
      %v2814 = vld [vmem:[%s2723 + $0x79] sm:$0xf]
      %v2815 = vld [vmem:[%s2723 + $0x81] sm:$0xff]
      %v2816 = vld [vmem:[%s2723 + $0x89] sm:$0xf]
      %v2817 = vld [vmem:[%s2723 + $0x91] sm:$0xff]
      %v2818 = vld [vmem:[%s2723 + $0x99] sm:$0xf]
      %v2819 = vld [vmem:[%s2723 + $0xa1] sm:$0xff]
      %v2820 = vld [vmem:[%s2723 + $0xa9] sm:$0xf]
      %v2821 = vld [vmem:[%s2723 + $0xb1] sm:$0xff]
      %v2822 = vld [vmem:[%s2723 + $0xb9] sm:$0xf]
      %v2823 = vstv %s2798
      %v2824 = vmul.f32 %v2823, %v2799
      %v2825 = vmul.f32 %v2823, %v2800
      %v2826 = vmul.f32 %v2823, %v2801
      %v2827 = vmul.f32 %v2823, %v2802
      %v2828 = vmul.f32 %v2823, %v2803
      %v2829 = vmul.f32 %v2823, %v2804
      %v2830 = vmul.f32 %v2823, %v2805
      %v2831 = vmul.f32 %v2823, %v2806
      %v2832 = vmul.f32 %v2823, %v2807
      %v2833 = vmul.f32 %v2823, %v2808
      %v2834 = vmul.f32 %v2823, %v2809
      %v2835 = vmul.f32 %v2823, %v2810
      %v2836 = vmul.f32 %v2823, %v2811
      %v2837 = vmul.f32 %v2823, %v2812
      %v2838 = vmul.f32 %v2823, %v2813
      %v2839 = vmul.f32 %v2823, %v2814
      %v2840 = vmul.f32 %v2823, %v2815
      %v2841 = vmul.f32 %v2823, %v2816
      %v2842 = vmul.f32 %v2823, %v2817
      %v2843 = vmul.f32 %v2823, %v2818
      %v2844 = vmul.f32 %v2823, %v2819
      %v2845 = vmul.f32 %v2823, %v2820
      %v2846 = vmul.f32 %v2823, %v2821
      %v2847 = vmul.f32 %v2823, %v2822
      %v2848 = vadd.f32 %v2773, %v2824
      %v2849 = vadd.f32 %v2774, %v2825
      %v2850 = vadd.f32 %v2775, %v2826
      %v2851 = vadd.f32 %v2776, %v2827
      %v2852 = vadd.f32 %v2777, %v2828
      %v2853 = vadd.f32 %v2778, %v2829
      %v2854 = vadd.f32 %v2779, %v2830
      %v2855 = vadd.f32 %v2780, %v2831
      %v2856 = vadd.f32 %v2781, %v2832
      %v2857 = vadd.f32 %v2782, %v2833
      %v2858 = vadd.f32 %v2783, %v2834
      %v2859 = vadd.f32 %v2784, %v2835
      %v2860 = vadd.f32 %v2785, %v2836
      %v2861 = vadd.f32 %v2786, %v2837
      %v2862 = vadd.f32 %v2787, %v2838
      %v2863 = vadd.f32 %v2788, %v2839
      %v2864 = vadd.f32 %v2789, %v2840
      %v2865 = vadd.f32 %v2790, %v2841
      %v2866 = vadd.f32 %v2791, %v2842
      %v2867 = vadd.f32 %v2792, %v2843
      %v2868 = vadd.f32 %v2793, %v2844
      %v2869 = vadd.f32 %v2794, %v2845
      %v2870 = vadd.f32 %v2795, %v2846
      %v2871 = vadd.f32 %v2796, %v2847
      %s2872 = sadd.s32 %s81, 15
      %s2873 = sld [smem:[#allocation8 + %s2872]]
      %v2874 = vld [vmem:[%s2723 + $0x2] sm:$0xff]
      %v2875 = vld [vmem:[%s2723 + $0xa] sm:$0xf]
      %v2876 = vld [vmem:[%s2723 + $0x12] sm:$0xff]
      %v2877 = vld [vmem:[%s2723 + $0x1a] sm:$0xf]
      %v2878 = vld [vmem:[%s2723 + $0x22] sm:$0xff]
      %v2879 = vld [vmem:[%s2723 + $0x2a] sm:$0xf]
      %v2880 = vld [vmem:[%s2723 + $0x32] sm:$0xff]
      %v2881 = vld [vmem:[%s2723 + $0x3a] sm:$0xf]
      %v2882 = vld [vmem:[%s2723 + $0x42] sm:$0xff]
      %v2883 = vld [vmem:[%s2723 + $0x4a] sm:$0xf]
      %v2884 = vld [vmem:[%s2723 + $0x52] sm:$0xff]
      %v2885 = vld [vmem:[%s2723 + $0x5a] sm:$0xf]
      %v2886 = vld [vmem:[%s2723 + $0x62] sm:$0xff]
      %v2887 = vld [vmem:[%s2723 + $0x6a] sm:$0xf]
      %v2888 = vld [vmem:[%s2723 + $0x72] sm:$0xff]
      %v2889 = vld [vmem:[%s2723 + $0x7a] sm:$0xf]
      %v2890 = vld [vmem:[%s2723 + $0x82] sm:$0xff]
      %v2891 = vld [vmem:[%s2723 + $0x8a] sm:$0xf]
      %v2892 = vld [vmem:[%s2723 + $0x92] sm:$0xff]
      %v2893 = vld [vmem:[%s2723 + $0x9a] sm:$0xf]
      %v2894 = vld [vmem:[%s2723 + $0xa2] sm:$0xff]
      %v2895 = vld [vmem:[%s2723 + $0xaa] sm:$0xf]
      %v2896 = vld [vmem:[%s2723 + $0xb2] sm:$0xff]
      %v2897 = vld [vmem:[%s2723 + $0xba] sm:$0xf]
      %v2898 = vstv %s2873
      %v2899 = vmul.f32 %v2898, %v2874
      %v2900 = vmul.f32 %v2898, %v2875
      %v2901 = vmul.f32 %v2898, %v2876
      %v2902 = vmul.f32 %v2898, %v2877
      %v2903 = vmul.f32 %v2898, %v2878
      %v2904 = vmul.f32 %v2898, %v2879
      %v2905 = vmul.f32 %v2898, %v2880
      %v2906 = vmul.f32 %v2898, %v2881
      %v2907 = vmul.f32 %v2898, %v2882
      %v2908 = vmul.f32 %v2898, %v2883
      %v2909 = vmul.f32 %v2898, %v2884
      %v2910 = vmul.f32 %v2898, %v2885
      %v2911 = vmul.f32 %v2898, %v2886
      %v2912 = vmul.f32 %v2898, %v2887
      %v2913 = vmul.f32 %v2898, %v2888
      %v2914 = vmul.f32 %v2898, %v2889
      %v2915 = vmul.f32 %v2898, %v2890
      %v2916 = vmul.f32 %v2898, %v2891
      %v2917 = vmul.f32 %v2898, %v2892
      %v2918 = vmul.f32 %v2898, %v2893
      %v2919 = vmul.f32 %v2898, %v2894
      %v2920 = vmul.f32 %v2898, %v2895
      %v2921 = vmul.f32 %v2898, %v2896
      %v2922 = vmul.f32 %v2898, %v2897
      %v2923 = vadd.f32 %v2848, %v2899
      %v2924 = vadd.f32 %v2849, %v2900
      %v2925 = vadd.f32 %v2850, %v2901
      %v2926 = vadd.f32 %v2851, %v2902
      %v2927 = vadd.f32 %v2852, %v2903
      %v2928 = vadd.f32 %v2853, %v2904
      %v2929 = vadd.f32 %v2854, %v2905
      %v2930 = vadd.f32 %v2855, %v2906
      %v2931 = vadd.f32 %v2856, %v2907
      %v2932 = vadd.f32 %v2857, %v2908
      %v2933 = vadd.f32 %v2858, %v2909
      %v2934 = vadd.f32 %v2859, %v2910
      %v2935 = vadd.f32 %v2860, %v2911
      %v2936 = vadd.f32 %v2861, %v2912
      %v2937 = vadd.f32 %v2862, %v2913
      %v2938 = vadd.f32 %v2863, %v2914
      %v2939 = vadd.f32 %v2864, %v2915
      %v2940 = vadd.f32 %v2865, %v2916
      %v2941 = vadd.f32 %v2866, %v2917
      %v2942 = vadd.f32 %v2867, %v2918
      %v2943 = vadd.f32 %v2868, %v2919
      %v2944 = vadd.f32 %v2869, %v2920
      %v2945 = vadd.f32 %v2870, %v2921
      %v2946 = vadd.f32 %v2871, %v2922
      %s2947 = sadd.s32 %s81, 17
      %s2948 = sld [smem:[#allocation8 + %s2947]]
      %v2949 = vld [vmem:[%s2723 + $0x3] sm:$0xff]
      %v2950 = vld [vmem:[%s2723 + $0xb] sm:$0xf]
      %v2951 = vld [vmem:[%s2723 + $0x13] sm:$0xff]
      %v2952 = vld [vmem:[%s2723 + $0x1b] sm:$0xf]
      %v2953 = vld [vmem:[%s2723 + $0x23] sm:$0xff]
      %v2954 = vld [vmem:[%s2723 + $0x2b] sm:$0xf]
      %v2955 = vld [vmem:[%s2723 + $0x33] sm:$0xff]
      %v2956 = vld [vmem:[%s2723 + $0x3b] sm:$0xf]
      %v2957 = vld [vmem:[%s2723 + $0x43] sm:$0xff]
      %v2958 = vld [vmem:[%s2723 + $0x4b] sm:$0xf]
      %v2959 = vld [vmem:[%s2723 + $0x53] sm:$0xff]
      %v2960 = vld [vmem:[%s2723 + $0x5b] sm:$0xf]
      %v2961 = vld [vmem:[%s2723 + $0x63] sm:$0xff]
      %v2962 = vld [vmem:[%s2723 + $0x6b] sm:$0xf]
      %v2963 = vld [vmem:[%s2723 + $0x73] sm:$0xff]
      %v2964 = vld [vmem:[%s2723 + $0x7b] sm:$0xf]
      %v2965 = vld [vmem:[%s2723 + $0x83] sm:$0xff]
      %v2966 = vld [vmem:[%s2723 + $0x8b] sm:$0xf]
      %v2967 = vld [vmem:[%s2723 + $0x93] sm:$0xff]
      %v2968 = vld [vmem:[%s2723 + $0x9b] sm:$0xf]
      %v2969 = vld [vmem:[%s2723 + $0xa3] sm:$0xff]
      %v2970 = vld [vmem:[%s2723 + $0xab] sm:$0xf]
      %v2971 = vld [vmem:[%s2723 + $0xb3] sm:$0xff]
      %v2972 = vld [vmem:[%s2723 + $0xbb] sm:$0xf]
      %v2973 = vstv %s2948
      %v2974 = vmul.f32 %v2973, %v2949
      %v2975 = vmul.f32 %v2973, %v2950
      %v2976 = vmul.f32 %v2973, %v2951
      %v2977 = vmul.f32 %v2973, %v2952
      %v2978 = vmul.f32 %v2973, %v2953
      %v2979 = vmul.f32 %v2973, %v2954
      %v2980 = vmul.f32 %v2973, %v2955
      %v2981 = vmul.f32 %v2973, %v2956
      %v2982 = vmul.f32 %v2973, %v2957
      %v2983 = vmul.f32 %v2973, %v2958
      %v2984 = vmul.f32 %v2973, %v2959
      %v2985 = vmul.f32 %v2973, %v2960
      %v2986 = vmul.f32 %v2973, %v2961
      %v2987 = vmul.f32 %v2973, %v2962
      %v2988 = vmul.f32 %v2973, %v2963
      %v2989 = vmul.f32 %v2973, %v2964
      %v2990 = vmul.f32 %v2973, %v2965
      %v2991 = vmul.f32 %v2973, %v2966
      %v2992 = vmul.f32 %v2973, %v2967
      %v2993 = vmul.f32 %v2973, %v2968
      %v2994 = vmul.f32 %v2973, %v2969
      %v2995 = vmul.f32 %v2973, %v2970
      %v2996 = vmul.f32 %v2973, %v2971
      %v2997 = vmul.f32 %v2973, %v2972
      %v2998 = vadd.f32 %v2923, %v2974
      %v2999 = vadd.f32 %v2924, %v2975
      %v3000 = vadd.f32 %v2925, %v2976
      %v3001 = vadd.f32 %v2926, %v2977
      %v3002 = vadd.f32 %v2927, %v2978
      %v3003 = vadd.f32 %v2928, %v2979
      %v3004 = vadd.f32 %v2929, %v2980
      %v3005 = vadd.f32 %v2930, %v2981
      %v3006 = vadd.f32 %v2931, %v2982
      %v3007 = vadd.f32 %v2932, %v2983
      %v3008 = vadd.f32 %v2933, %v2984
      %v3009 = vadd.f32 %v2934, %v2985
      %v3010 = vadd.f32 %v2935, %v2986
      %v3011 = vadd.f32 %v2936, %v2987
      %v3012 = vadd.f32 %v2937, %v2988
      %v3013 = vadd.f32 %v2938, %v2989
      %v3014 = vadd.f32 %v2939, %v2990
      %v3015 = vadd.f32 %v2940, %v2991
      %v3016 = vadd.f32 %v2941, %v2992
      %v3017 = vadd.f32 %v2942, %v2993
      %v3018 = vadd.f32 %v2943, %v2994
      %v3019 = vadd.f32 %v2944, %v2995
      %v3020 = vadd.f32 %v2945, %v2996
      %v3021 = vadd.f32 %v2946, %v2997
      %s3022 = sadd.s32 %s81, 19
      %s3023 = sld [smem:[#allocation8 + %s3022]]
      %v3024 = vld [vmem:[%s2723 + $0x4] sm:$0xff]
      %v3025 = vld [vmem:[%s2723 + $0xc] sm:$0xf]
      %v3026 = vld [vmem:[%s2723 + $0x14] sm:$0xff]
      %v3027 = vld [vmem:[%s2723 + $0x1c] sm:$0xf]
      %v3028 = vld [vmem:[%s2723 + $0x24] sm:$0xff]
      %v3029 = vld [vmem:[%s2723 + $0x2c] sm:$0xf]
      %v3030 = vld [vmem:[%s2723 + $0x34] sm:$0xff]
      %v3031 = vld [vmem:[%s2723 + $0x3c] sm:$0xf]
      %v3032 = vld [vmem:[%s2723 + $0x44] sm:$0xff]
      %v3033 = vld [vmem:[%s2723 + $0x4c] sm:$0xf]
      %v3034 = vld [vmem:[%s2723 + $0x54] sm:$0xff]
      %v3035 = vld [vmem:[%s2723 + $0x5c] sm:$0xf]
      %v3036 = vld [vmem:[%s2723 + $0x64] sm:$0xff]
      %v3037 = vld [vmem:[%s2723 + $0x6c] sm:$0xf]
      %v3038 = vld [vmem:[%s2723 + $0x74] sm:$0xff]
      %v3039 = vld [vmem:[%s2723 + $0x7c] sm:$0xf]
      %v3040 = vld [vmem:[%s2723 + $0x84] sm:$0xff]
      %v3041 = vld [vmem:[%s2723 + $0x8c] sm:$0xf]
      %v3042 = vld [vmem:[%s2723 + $0x94] sm:$0xff]
      %v3043 = vld [vmem:[%s2723 + $0x9c] sm:$0xf]
      %v3044 = vld [vmem:[%s2723 + $0xa4] sm:$0xff]
      %v3045 = vld [vmem:[%s2723 + $0xac] sm:$0xf]
      %v3046 = vld [vmem:[%s2723 + $0xb4] sm:$0xff]
      %v3047 = vld [vmem:[%s2723 + $0xbc] sm:$0xf]
      %v3048 = vstv %s3023
      %v3049 = vmul.f32 %v3048, %v3024
      %v3050 = vmul.f32 %v3048, %v3025
      %v3051 = vmul.f32 %v3048, %v3026
      %v3052 = vmul.f32 %v3048, %v3027
      %v3053 = vmul.f32 %v3048, %v3028
      %v3054 = vmul.f32 %v3048, %v3029
      %v3055 = vmul.f32 %v3048, %v3030
      %v3056 = vmul.f32 %v3048, %v3031
      %v3057 = vmul.f32 %v3048, %v3032
      %v3058 = vmul.f32 %v3048, %v3033
      %v3059 = vmul.f32 %v3048, %v3034
      %v3060 = vmul.f32 %v3048, %v3035
      %v3061 = vmul.f32 %v3048, %v3036
      %v3062 = vmul.f32 %v3048, %v3037
      %v3063 = vmul.f32 %v3048, %v3038
      %v3064 = vmul.f32 %v3048, %v3039
      %v3065 = vmul.f32 %v3048, %v3040
      %v3066 = vmul.f32 %v3048, %v3041
      %v3067 = vmul.f32 %v3048, %v3042
      %v3068 = vmul.f32 %v3048, %v3043
      %v3069 = vmul.f32 %v3048, %v3044
      %v3070 = vmul.f32 %v3048, %v3045
      %v3071 = vmul.f32 %v3048, %v3046
      %v3072 = vmul.f32 %v3048, %v3047
      %v3073 = vadd.f32 %v2998, %v3049
      %v3074 = vadd.f32 %v2999, %v3050
      %v3075 = vadd.f32 %v3000, %v3051
      %v3076 = vadd.f32 %v3001, %v3052
      %v3077 = vadd.f32 %v3002, %v3053
      %v3078 = vadd.f32 %v3003, %v3054
      %v3079 = vadd.f32 %v3004, %v3055
      %v3080 = vadd.f32 %v3005, %v3056
      %v3081 = vadd.f32 %v3006, %v3057
      %v3082 = vadd.f32 %v3007, %v3058
      %v3083 = vadd.f32 %v3008, %v3059
      %v3084 = vadd.f32 %v3009, %v3060
      %v3085 = vadd.f32 %v3010, %v3061
      %v3086 = vadd.f32 %v3011, %v3062
      %v3087 = vadd.f32 %v3012, %v3063
      %v3088 = vadd.f32 %v3013, %v3064
      %v3089 = vadd.f32 %v3014, %v3065
      %v3090 = vadd.f32 %v3015, %v3066
      %v3091 = vadd.f32 %v3016, %v3067
      %v3092 = vadd.f32 %v3017, %v3068
      %v3093 = vadd.f32 %v3018, %v3069
      %v3094 = vadd.f32 %v3019, %v3070
      %v3095 = vadd.f32 %v3020, %v3071
      %v3096 = vadd.f32 %v3021, %v3072
      %s3097 = sadd.s32 %s81, 110
      %s3098 = sld [smem:[#allocation8 + %s3097]]
      %s3099 = sadd.s32 %s837, 1536
      %s3100 = scalar_lea.vmem [#allocation4], %s3099
      %v3101 = vld [vmem:[%s3100] sm:$0xff]
      %v3102 = vld [vmem:[%s3100 + $0x8] sm:$0xf]
      %v3103 = vld [vmem:[%s3100 + $0x10] sm:$0xff]
      %v3104 = vld [vmem:[%s3100 + $0x18] sm:$0xf]
      %v3105 = vld [vmem:[%s3100 + $0x20] sm:$0xff]
      %v3106 = vld [vmem:[%s3100 + $0x28] sm:$0xf]
      %v3107 = vld [vmem:[%s3100 + $0x30] sm:$0xff]
      %v3108 = vld [vmem:[%s3100 + $0x38] sm:$0xf]
      %v3109 = vld [vmem:[%s3100 + $0x40] sm:$0xff]
      %v3110 = vld [vmem:[%s3100 + $0x48] sm:$0xf]
      %v3111 = vld [vmem:[%s3100 + $0x50] sm:$0xff]
      %v3112 = vld [vmem:[%s3100 + $0x58] sm:$0xf]
      %v3113 = vld [vmem:[%s3100 + $0x60] sm:$0xff]
      %v3114 = vld [vmem:[%s3100 + $0x68] sm:$0xf]
      %v3115 = vld [vmem:[%s3100 + $0x70] sm:$0xff]
      %v3116 = vld [vmem:[%s3100 + $0x78] sm:$0xf]
      %v3117 = vld [vmem:[%s3100 + $0x80] sm:$0xff]
      %v3118 = vld [vmem:[%s3100 + $0x88] sm:$0xf]
      %v3119 = vld [vmem:[%s3100 + $0x90] sm:$0xff]
      %v3120 = vld [vmem:[%s3100 + $0x98] sm:$0xf]
      %v3121 = vld [vmem:[%s3100 + $0xa0] sm:$0xff]
      %v3122 = vld [vmem:[%s3100 + $0xa8] sm:$0xf]
      %v3123 = vld [vmem:[%s3100 + $0xb0] sm:$0xff]
      %v3124 = vld [vmem:[%s3100 + $0xb8] sm:$0xf]
      %v3125 = vstv %s3098
      %v3126 = vmul.f32 %v3125, %v3101
      %v3127 = vmul.f32 %v3125, %v3102
      %v3128 = vmul.f32 %v3125, %v3103
      %v3129 = vmul.f32 %v3125, %v3104
      %v3130 = vmul.f32 %v3125, %v3105
      %v3131 = vmul.f32 %v3125, %v3106
      %v3132 = vmul.f32 %v3125, %v3107
      %v3133 = vmul.f32 %v3125, %v3108
      %v3134 = vmul.f32 %v3125, %v3109
      %v3135 = vmul.f32 %v3125, %v3110
      %v3136 = vmul.f32 %v3125, %v3111
      %v3137 = vmul.f32 %v3125, %v3112
      %v3138 = vmul.f32 %v3125, %v3113
      %v3139 = vmul.f32 %v3125, %v3114
      %v3140 = vmul.f32 %v3125, %v3115
      %v3141 = vmul.f32 %v3125, %v3116
      %v3142 = vmul.f32 %v3125, %v3117
      %v3143 = vmul.f32 %v3125, %v3118
      %v3144 = vmul.f32 %v3125, %v3119
      %v3145 = vmul.f32 %v3125, %v3120
      %v3146 = vmul.f32 %v3125, %v3121
      %v3147 = vmul.f32 %v3125, %v3122
      %v3148 = vmul.f32 %v3125, %v3123
      %v3149 = vmul.f32 %v3125, %v3124
      %v3150 = vadd.f32 %v3073, %v3126
      %v3151 = vadd.f32 %v3074, %v3127
      %v3152 = vadd.f32 %v3075, %v3128
      %v3153 = vadd.f32 %v3076, %v3129
      %v3154 = vadd.f32 %v3077, %v3130
      %v3155 = vadd.f32 %v3078, %v3131
      %v3156 = vadd.f32 %v3079, %v3132
      %v3157 = vadd.f32 %v3080, %v3133
      %v3158 = vadd.f32 %v3081, %v3134
      %v3159 = vadd.f32 %v3082, %v3135
      %v3160 = vadd.f32 %v3083, %v3136
      %v3161 = vadd.f32 %v3084, %v3137
      %v3162 = vadd.f32 %v3085, %v3138
      %v3163 = vadd.f32 %v3086, %v3139
      %v3164 = vadd.f32 %v3087, %v3140
      %v3165 = vadd.f32 %v3088, %v3141
      %v3166 = vadd.f32 %v3089, %v3142
      %v3167 = vadd.f32 %v3090, %v3143
      %v3168 = vadd.f32 %v3091, %v3144
      %v3169 = vadd.f32 %v3092, %v3145
      %v3170 = vadd.f32 %v3093, %v3146
      %v3171 = vadd.f32 %v3094, %v3147
      %v3172 = vadd.f32 %v3095, %v3148
      %v3173 = vadd.f32 %v3096, %v3149
      %s3174 = sadd.s32 %s81, 112
      %s3175 = sld [smem:[#allocation8 + %s3174]]
      %v3176 = vld [vmem:[%s3100 + $0x1] sm:$0xff]
      %v3177 = vld [vmem:[%s3100 + $0x9] sm:$0xf]
      %v3178 = vld [vmem:[%s3100 + $0x11] sm:$0xff]
      %v3179 = vld [vmem:[%s3100 + $0x19] sm:$0xf]
      %v3180 = vld [vmem:[%s3100 + $0x21] sm:$0xff]
      %v3181 = vld [vmem:[%s3100 + $0x29] sm:$0xf]
      %v3182 = vld [vmem:[%s3100 + $0x31] sm:$0xff]
      %v3183 = vld [vmem:[%s3100 + $0x39] sm:$0xf]
      %v3184 = vld [vmem:[%s3100 + $0x41] sm:$0xff]
      %v3185 = vld [vmem:[%s3100 + $0x49] sm:$0xf]
      %v3186 = vld [vmem:[%s3100 + $0x51] sm:$0xff]
      %v3187 = vld [vmem:[%s3100 + $0x59] sm:$0xf]
      %v3188 = vld [vmem:[%s3100 + $0x61] sm:$0xff]
      %v3189 = vld [vmem:[%s3100 + $0x69] sm:$0xf]
      %v3190 = vld [vmem:[%s3100 + $0x71] sm:$0xff]
      %v3191 = vld [vmem:[%s3100 + $0x79] sm:$0xf]
      %v3192 = vld [vmem:[%s3100 + $0x81] sm:$0xff]
      %v3193 = vld [vmem:[%s3100 + $0x89] sm:$0xf]
      %v3194 = vld [vmem:[%s3100 + $0x91] sm:$0xff]
      %v3195 = vld [vmem:[%s3100 + $0x99] sm:$0xf]
      %v3196 = vld [vmem:[%s3100 + $0xa1] sm:$0xff]
      %v3197 = vld [vmem:[%s3100 + $0xa9] sm:$0xf]
      %v3198 = vld [vmem:[%s3100 + $0xb1] sm:$0xff]
      %v3199 = vld [vmem:[%s3100 + $0xb9] sm:$0xf]
      %v3200 = vstv %s3175
      %v3201 = vmul.f32 %v3200, %v3176
      %v3202 = vmul.f32 %v3200, %v3177
      %v3203 = vmul.f32 %v3200, %v3178
      %v3204 = vmul.f32 %v3200, %v3179
      %v3205 = vmul.f32 %v3200, %v3180
      %v3206 = vmul.f32 %v3200, %v3181
      %v3207 = vmul.f32 %v3200, %v3182
      %v3208 = vmul.f32 %v3200, %v3183
      %v3209 = vmul.f32 %v3200, %v3184
      %v3210 = vmul.f32 %v3200, %v3185
      %v3211 = vmul.f32 %v3200, %v3186
      %v3212 = vmul.f32 %v3200, %v3187
      %v3213 = vmul.f32 %v3200, %v3188
      %v3214 = vmul.f32 %v3200, %v3189
      %v3215 = vmul.f32 %v3200, %v3190
      %v3216 = vmul.f32 %v3200, %v3191
      %v3217 = vmul.f32 %v3200, %v3192
      %v3218 = vmul.f32 %v3200, %v3193
      %v3219 = vmul.f32 %v3200, %v3194
      %v3220 = vmul.f32 %v3200, %v3195
      %v3221 = vmul.f32 %v3200, %v3196
      %v3222 = vmul.f32 %v3200, %v3197
      %v3223 = vmul.f32 %v3200, %v3198
      %v3224 = vmul.f32 %v3200, %v3199
      %v3225 = vadd.f32 %v3150, %v3201
      %v3226 = vadd.f32 %v3151, %v3202
      %v3227 = vadd.f32 %v3152, %v3203
      %v3228 = vadd.f32 %v3153, %v3204
      %v3229 = vadd.f32 %v3154, %v3205
      %v3230 = vadd.f32 %v3155, %v3206
      %v3231 = vadd.f32 %v3156, %v3207
      %v3232 = vadd.f32 %v3157, %v3208
      %v3233 = vadd.f32 %v3158, %v3209
      %v3234 = vadd.f32 %v3159, %v3210
      %v3235 = vadd.f32 %v3160, %v3211
      %v3236 = vadd.f32 %v3161, %v3212
      %v3237 = vadd.f32 %v3162, %v3213
      %v3238 = vadd.f32 %v3163, %v3214
      %v3239 = vadd.f32 %v3164, %v3215
      %v3240 = vadd.f32 %v3165, %v3216
      %v3241 = vadd.f32 %v3166, %v3217
      %v3242 = vadd.f32 %v3167, %v3218
      %v3243 = vadd.f32 %v3168, %v3219
      %v3244 = vadd.f32 %v3169, %v3220
      %v3245 = vadd.f32 %v3170, %v3221
      %v3246 = vadd.f32 %v3171, %v3222
      %v3247 = vadd.f32 %v3172, %v3223
      %v3248 = vadd.f32 %v3173, %v3224
      %s3249 = sadd.s32 %s81, 114
      %s3250 = sld [smem:[#allocation8 + %s3249]]
      %v3251 = vld [vmem:[%s3100 + $0x2] sm:$0xff]
      %v3252 = vld [vmem:[%s3100 + $0xa] sm:$0xf]
      %v3253 = vld [vmem:[%s3100 + $0x12] sm:$0xff]
      %v3254 = vld [vmem:[%s3100 + $0x1a] sm:$0xf]
      %v3255 = vld [vmem:[%s3100 + $0x22] sm:$0xff]
      %v3256 = vld [vmem:[%s3100 + $0x2a] sm:$0xf]
      %v3257 = vld [vmem:[%s3100 + $0x32] sm:$0xff]
      %v3258 = vld [vmem:[%s3100 + $0x3a] sm:$0xf]
      %v3259 = vld [vmem:[%s3100 + $0x42] sm:$0xff]
      %v3260 = vld [vmem:[%s3100 + $0x4a] sm:$0xf]
      %v3261 = vld [vmem:[%s3100 + $0x52] sm:$0xff]
      %v3262 = vld [vmem:[%s3100 + $0x5a] sm:$0xf]
      %v3263 = vld [vmem:[%s3100 + $0x62] sm:$0xff]
      %v3264 = vld [vmem:[%s3100 + $0x6a] sm:$0xf]
      %v3265 = vld [vmem:[%s3100 + $0x72] sm:$0xff]
      %v3266 = vld [vmem:[%s3100 + $0x7a] sm:$0xf]
      %v3267 = vld [vmem:[%s3100 + $0x82] sm:$0xff]
      %v3268 = vld [vmem:[%s3100 + $0x8a] sm:$0xf]
      %v3269 = vld [vmem:[%s3100 + $0x92] sm:$0xff]
      %v3270 = vld [vmem:[%s3100 + $0x9a] sm:$0xf]
      %v3271 = vld [vmem:[%s3100 + $0xa2] sm:$0xff]
      %v3272 = vld [vmem:[%s3100 + $0xaa] sm:$0xf]
      %v3273 = vld [vmem:[%s3100 + $0xb2] sm:$0xff]
      %v3274 = vld [vmem:[%s3100 + $0xba] sm:$0xf]
      %v3275 = vstv %s3250
      %v3276 = vmul.f32 %v3275, %v3251
      %v3277 = vmul.f32 %v3275, %v3252
      %v3278 = vmul.f32 %v3275, %v3253
      %v3279 = vmul.f32 %v3275, %v3254
      %v3280 = vmul.f32 %v3275, %v3255
      %v3281 = vmul.f32 %v3275, %v3256
      %v3282 = vmul.f32 %v3275, %v3257
      %v3283 = vmul.f32 %v3275, %v3258
      %v3284 = vmul.f32 %v3275, %v3259
      %v3285 = vmul.f32 %v3275, %v3260
      %v3286 = vmul.f32 %v3275, %v3261
      %v3287 = vmul.f32 %v3275, %v3262
      %v3288 = vmul.f32 %v3275, %v3263
      %v3289 = vmul.f32 %v3275, %v3264
      %v3290 = vmul.f32 %v3275, %v3265
      %v3291 = vmul.f32 %v3275, %v3266
      %v3292 = vmul.f32 %v3275, %v3267
      %v3293 = vmul.f32 %v3275, %v3268
      %v3294 = vmul.f32 %v3275, %v3269
      %v3295 = vmul.f32 %v3275, %v3270
      %v3296 = vmul.f32 %v3275, %v3271
      %v3297 = vmul.f32 %v3275, %v3272
      %v3298 = vmul.f32 %v3275, %v3273
      %v3299 = vmul.f32 %v3275, %v3274
      %v3300 = vadd.f32 %v3225, %v3276
      %v3301 = vadd.f32 %v3226, %v3277
      %v3302 = vadd.f32 %v3227, %v3278
      %v3303 = vadd.f32 %v3228, %v3279
      %v3304 = vadd.f32 %v3229, %v3280
      %v3305 = vadd.f32 %v3230, %v3281
      %v3306 = vadd.f32 %v3231, %v3282
      %v3307 = vadd.f32 %v3232, %v3283
      %v3308 = vadd.f32 %v3233, %v3284
      %v3309 = vadd.f32 %v3234, %v3285
      %v3310 = vadd.f32 %v3235, %v3286
      %v3311 = vadd.f32 %v3236, %v3287
      %v3312 = vadd.f32 %v3237, %v3288
      %v3313 = vadd.f32 %v3238, %v3289
      %v3314 = vadd.f32 %v3239, %v3290
      %v3315 = vadd.f32 %v3240, %v3291
      %v3316 = vadd.f32 %v3241, %v3292
      %v3317 = vadd.f32 %v3242, %v3293
      %v3318 = vadd.f32 %v3243, %v3294
      %v3319 = vadd.f32 %v3244, %v3295
      %v3320 = vadd.f32 %v3245, %v3296
      %v3321 = vadd.f32 %v3246, %v3297
      %v3322 = vadd.f32 %v3247, %v3298
      %v3323 = vadd.f32 %v3248, %v3299
      %s3324 = sadd.s32 %s81, 116
      %s3325 = sld [smem:[#allocation8 + %s3324]]
      %v3326 = vld [vmem:[%s3100 + $0x3] sm:$0xff]
      %v3327 = vld [vmem:[%s3100 + $0xb] sm:$0xf]
      %v3328 = vld [vmem:[%s3100 + $0x13] sm:$0xff]
      %v3329 = vld [vmem:[%s3100 + $0x1b] sm:$0xf]
      %v3330 = vld [vmem:[%s3100 + $0x23] sm:$0xff]
      %v3331 = vld [vmem:[%s3100 + $0x2b] sm:$0xf]
      %v3332 = vld [vmem:[%s3100 + $0x33] sm:$0xff]
      %v3333 = vld [vmem:[%s3100 + $0x3b] sm:$0xf]
      %v3334 = vld [vmem:[%s3100 + $0x43] sm:$0xff]
      %v3335 = vld [vmem:[%s3100 + $0x4b] sm:$0xf]
      %v3336 = vld [vmem:[%s3100 + $0x53] sm:$0xff]
      %v3337 = vld [vmem:[%s3100 + $0x5b] sm:$0xf]
      %v3338 = vld [vmem:[%s3100 + $0x63] sm:$0xff]
      %v3339 = vld [vmem:[%s3100 + $0x6b] sm:$0xf]
      %v3340 = vld [vmem:[%s3100 + $0x73] sm:$0xff]
      %v3341 = vld [vmem:[%s3100 + $0x7b] sm:$0xf]
      %v3342 = vld [vmem:[%s3100 + $0x83] sm:$0xff]
      %v3343 = vld [vmem:[%s3100 + $0x8b] sm:$0xf]
      %v3344 = vld [vmem:[%s3100 + $0x93] sm:$0xff]
      %v3345 = vld [vmem:[%s3100 + $0x9b] sm:$0xf]
      %v3346 = vld [vmem:[%s3100 + $0xa3] sm:$0xff]
      %v3347 = vld [vmem:[%s3100 + $0xab] sm:$0xf]
      %v3348 = vld [vmem:[%s3100 + $0xb3] sm:$0xff]
      %v3349 = vld [vmem:[%s3100 + $0xbb] sm:$0xf]
      %v3350 = vstv %s3325
      %v3351 = vmul.f32 %v3350, %v3326
      %v3352 = vmul.f32 %v3350, %v3327
      %v3353 = vmul.f32 %v3350, %v3328
      %v3354 = vmul.f32 %v3350, %v3329
      %v3355 = vmul.f32 %v3350, %v3330
      %v3356 = vmul.f32 %v3350, %v3331
      %v3357 = vmul.f32 %v3350, %v3332
      %v3358 = vmul.f32 %v3350, %v3333
      %v3359 = vmul.f32 %v3350, %v3334
      %v3360 = vmul.f32 %v3350, %v3335
      %v3361 = vmul.f32 %v3350, %v3336
      %v3362 = vmul.f32 %v3350, %v3337
      %v3363 = vmul.f32 %v3350, %v3338
      %v3364 = vmul.f32 %v3350, %v3339
      %v3365 = vmul.f32 %v3350, %v3340
      %v3366 = vmul.f32 %v3350, %v3341
      %v3367 = vmul.f32 %v3350, %v3342
      %v3368 = vmul.f32 %v3350, %v3343
      %v3369 = vmul.f32 %v3350, %v3344
      %v3370 = vmul.f32 %v3350, %v3345
      %v3371 = vmul.f32 %v3350, %v3346
      %v3372 = vmul.f32 %v3350, %v3347
      %v3373 = vmul.f32 %v3350, %v3348
      %v3374 = vmul.f32 %v3350, %v3349
      %v3375 = vadd.f32 %v3300, %v3351
      %v3376 = vadd.f32 %v3301, %v3352
      %v3377 = vadd.f32 %v3302, %v3353
      %v3378 = vadd.f32 %v3303, %v3354
      %v3379 = vadd.f32 %v3304, %v3355
      %v3380 = vadd.f32 %v3305, %v3356
      %v3381 = vadd.f32 %v3306, %v3357
      %v3382 = vadd.f32 %v3307, %v3358
      %v3383 = vadd.f32 %v3308, %v3359
      %v3384 = vadd.f32 %v3309, %v3360
      %v3385 = vadd.f32 %v3310, %v3361
      %v3386 = vadd.f32 %v3311, %v3362
      %v3387 = vadd.f32 %v3312, %v3363
      %v3388 = vadd.f32 %v3313, %v3364
      %v3389 = vadd.f32 %v3314, %v3365
      %v3390 = vadd.f32 %v3315, %v3366
      %v3391 = vadd.f32 %v3316, %v3367
      %v3392 = vadd.f32 %v3317, %v3368
      %v3393 = vadd.f32 %v3318, %v3369
      %v3394 = vadd.f32 %v3319, %v3370
      %v3395 = vadd.f32 %v3320, %v3371
      %v3396 = vadd.f32 %v3321, %v3372
      %v3397 = vadd.f32 %v3322, %v3373
      %v3398 = vadd.f32 %v3323, %v3374
      %s3399 = sadd.s32 %s81, 118
      %s3400 = sld [smem:[#allocation8 + %s3399]]
      %v3401 = vld [vmem:[%s3100 + $0x4] sm:$0xff]
      %v3402 = vld [vmem:[%s3100 + $0xc] sm:$0xf]
      %v3403 = vld [vmem:[%s3100 + $0x14] sm:$0xff]
      %v3404 = vld [vmem:[%s3100 + $0x1c] sm:$0xf]
      %v3405 = vld [vmem:[%s3100 + $0x24] sm:$0xff]
      %v3406 = vld [vmem:[%s3100 + $0x2c] sm:$0xf]
      %v3407 = vld [vmem:[%s3100 + $0x34] sm:$0xff]
      %v3408 = vld [vmem:[%s3100 + $0x3c] sm:$0xf]
      %v3409 = vld [vmem:[%s3100 + $0x44] sm:$0xff]
      %v3410 = vld [vmem:[%s3100 + $0x4c] sm:$0xf]
      %v3411 = vld [vmem:[%s3100 + $0x54] sm:$0xff]
      %v3412 = vld [vmem:[%s3100 + $0x5c] sm:$0xf]
      %v3413 = vld [vmem:[%s3100 + $0x64] sm:$0xff]
      %v3414 = vld [vmem:[%s3100 + $0x6c] sm:$0xf]
      %v3415 = vld [vmem:[%s3100 + $0x74] sm:$0xff]
      %v3416 = vld [vmem:[%s3100 + $0x7c] sm:$0xf]
      %v3417 = vld [vmem:[%s3100 + $0x84] sm:$0xff]
      %v3418 = vld [vmem:[%s3100 + $0x8c] sm:$0xf]
      %v3419 = vld [vmem:[%s3100 + $0x94] sm:$0xff]
      %v3420 = vld [vmem:[%s3100 + $0x9c] sm:$0xf]
      %v3421 = vld [vmem:[%s3100 + $0xa4] sm:$0xff]
      %v3422 = vld [vmem:[%s3100 + $0xac] sm:$0xf]
      %v3423 = vld [vmem:[%s3100 + $0xb4] sm:$0xff]
      %v3424 = vld [vmem:[%s3100 + $0xbc] sm:$0xf]
      %v3425 = vstv %s3400
      %v3426 = vmul.f32 %v3425, %v3401
      %v3427 = vmul.f32 %v3425, %v3402
      %v3428 = vmul.f32 %v3425, %v3403
      %v3429 = vmul.f32 %v3425, %v3404
      %v3430 = vmul.f32 %v3425, %v3405
      %v3431 = vmul.f32 %v3425, %v3406
      %v3432 = vmul.f32 %v3425, %v3407
      %v3433 = vmul.f32 %v3425, %v3408
      %v3434 = vmul.f32 %v3425, %v3409
      %v3435 = vmul.f32 %v3425, %v3410
      %v3436 = vmul.f32 %v3425, %v3411
      %v3437 = vmul.f32 %v3425, %v3412
      %v3438 = vmul.f32 %v3425, %v3413
      %v3439 = vmul.f32 %v3425, %v3414
      %v3440 = vmul.f32 %v3425, %v3415
      %v3441 = vmul.f32 %v3425, %v3416
      %v3442 = vmul.f32 %v3425, %v3417
      %v3443 = vmul.f32 %v3425, %v3418
      %v3444 = vmul.f32 %v3425, %v3419
      %v3445 = vmul.f32 %v3425, %v3420
      %v3446 = vmul.f32 %v3425, %v3421
      %v3447 = vmul.f32 %v3425, %v3422
      %v3448 = vmul.f32 %v3425, %v3423
      %v3449 = vmul.f32 %v3425, %v3424
      %v3450 = vadd.f32 %v3375, %v3426
      %v3451 = vadd.f32 %v3376, %v3427
      %v3452 = vadd.f32 %v3377, %v3428
      %v3453 = vadd.f32 %v3378, %v3429
      %v3454 = vadd.f32 %v3379, %v3430
      %v3455 = vadd.f32 %v3380, %v3431
      %v3456 = vadd.f32 %v3381, %v3432
      %v3457 = vadd.f32 %v3382, %v3433
      %v3458 = vadd.f32 %v3383, %v3434
      %v3459 = vadd.f32 %v3384, %v3435
      %v3460 = vadd.f32 %v3385, %v3436
      %v3461 = vadd.f32 %v3386, %v3437
      %v3462 = vadd.f32 %v3387, %v3438
      %v3463 = vadd.f32 %v3388, %v3439
      %v3464 = vadd.f32 %v3389, %v3440
      %v3465 = vadd.f32 %v3390, %v3441
      %v3466 = vadd.f32 %v3391, %v3442
      %v3467 = vadd.f32 %v3392, %v3443
      %v3468 = vadd.f32 %v3393, %v3444
      %v3469 = vadd.f32 %v3394, %v3445
      %v3470 = vadd.f32 %v3395, %v3446
      %v3471 = vadd.f32 %v3396, %v3447
      %v3472 = vadd.f32 %v3397, %v3448
      %v3473 = vadd.f32 %v3398, %v3449
      %s3474 = sadd.s32 %s81, 111
      %s3475 = sld [smem:[#allocation8 + %s3474]]
      %s3476 = sadd.s32 %s1214, 1536
      %s3477 = scalar_lea.vmem [#allocation4], %s3476
      %v3478 = vld [vmem:[%s3477] sm:$0xff]
      %v3479 = vld [vmem:[%s3477 + $0x8] sm:$0xf]
      %v3480 = vld [vmem:[%s3477 + $0x10] sm:$0xff]
      %v3481 = vld [vmem:[%s3477 + $0x18] sm:$0xf]
      %v3482 = vld [vmem:[%s3477 + $0x20] sm:$0xff]
      %v3483 = vld [vmem:[%s3477 + $0x28] sm:$0xf]
      %v3484 = vld [vmem:[%s3477 + $0x30] sm:$0xff]
      %v3485 = vld [vmem:[%s3477 + $0x38] sm:$0xf]
      %v3486 = vld [vmem:[%s3477 + $0x40] sm:$0xff]
      %v3487 = vld [vmem:[%s3477 + $0x48] sm:$0xf]
      %v3488 = vld [vmem:[%s3477 + $0x50] sm:$0xff]
      %v3489 = vld [vmem:[%s3477 + $0x58] sm:$0xf]
      %v3490 = vld [vmem:[%s3477 + $0x60] sm:$0xff]
      %v3491 = vld [vmem:[%s3477 + $0x68] sm:$0xf]
      %v3492 = vld [vmem:[%s3477 + $0x70] sm:$0xff]
      %v3493 = vld [vmem:[%s3477 + $0x78] sm:$0xf]
      %v3494 = vld [vmem:[%s3477 + $0x80] sm:$0xff]
      %v3495 = vld [vmem:[%s3477 + $0x88] sm:$0xf]
      %v3496 = vld [vmem:[%s3477 + $0x90] sm:$0xff]
      %v3497 = vld [vmem:[%s3477 + $0x98] sm:$0xf]
      %v3498 = vld [vmem:[%s3477 + $0xa0] sm:$0xff]
      %v3499 = vld [vmem:[%s3477 + $0xa8] sm:$0xf]
      %v3500 = vld [vmem:[%s3477 + $0xb0] sm:$0xff]
      %v3501 = vld [vmem:[%s3477 + $0xb8] sm:$0xf]
      %v3502 = vstv %s3475
      %v3503 = vmul.f32 %v3502, %v3478
      %v3504 = vmul.f32 %v3502, %v3479
      %v3505 = vmul.f32 %v3502, %v3480
      %v3506 = vmul.f32 %v3502, %v3481
      %v3507 = vmul.f32 %v3502, %v3482
      %v3508 = vmul.f32 %v3502, %v3483
      %v3509 = vmul.f32 %v3502, %v3484
      %v3510 = vmul.f32 %v3502, %v3485
      %v3511 = vmul.f32 %v3502, %v3486
      %v3512 = vmul.f32 %v3502, %v3487
      %v3513 = vmul.f32 %v3502, %v3488
      %v3514 = vmul.f32 %v3502, %v3489
      %v3515 = vmul.f32 %v3502, %v3490
      %v3516 = vmul.f32 %v3502, %v3491
      %v3517 = vmul.f32 %v3502, %v3492
      %v3518 = vmul.f32 %v3502, %v3493
      %v3519 = vmul.f32 %v3502, %v3494
      %v3520 = vmul.f32 %v3502, %v3495
      %v3521 = vmul.f32 %v3502, %v3496
      %v3522 = vmul.f32 %v3502, %v3497
      %v3523 = vmul.f32 %v3502, %v3498
      %v3524 = vmul.f32 %v3502, %v3499
      %v3525 = vmul.f32 %v3502, %v3500
      %v3526 = vmul.f32 %v3502, %v3501
      %v3527 = vadd.f32 %v3450, %v3503
      %v3528 = vadd.f32 %v3451, %v3504
      %v3529 = vadd.f32 %v3452, %v3505
      %v3530 = vadd.f32 %v3453, %v3506
      %v3531 = vadd.f32 %v3454, %v3507
      %v3532 = vadd.f32 %v3455, %v3508
      %v3533 = vadd.f32 %v3456, %v3509
      %v3534 = vadd.f32 %v3457, %v3510
      %v3535 = vadd.f32 %v3458, %v3511
      %v3536 = vadd.f32 %v3459, %v3512
      %v3537 = vadd.f32 %v3460, %v3513
      %v3538 = vadd.f32 %v3461, %v3514
      %v3539 = vadd.f32 %v3462, %v3515
      %v3540 = vadd.f32 %v3463, %v3516
      %v3541 = vadd.f32 %v3464, %v3517
      %v3542 = vadd.f32 %v3465, %v3518
      %v3543 = vadd.f32 %v3466, %v3519
      %v3544 = vadd.f32 %v3467, %v3520
      %v3545 = vadd.f32 %v3468, %v3521
      %v3546 = vadd.f32 %v3469, %v3522
      %v3547 = vadd.f32 %v3470, %v3523
      %v3548 = vadd.f32 %v3471, %v3524
      %v3549 = vadd.f32 %v3472, %v3525
      %v3550 = vadd.f32 %v3473, %v3526
      %s3551 = sadd.s32 %s81, 113
      %s3552 = sld [smem:[#allocation8 + %s3551]]
      %v3553 = vld [vmem:[%s3477 + $0x1] sm:$0xff]
      %v3554 = vld [vmem:[%s3477 + $0x9] sm:$0xf]
      %v3555 = vld [vmem:[%s3477 + $0x11] sm:$0xff]
      %v3556 = vld [vmem:[%s3477 + $0x19] sm:$0xf]
      %v3557 = vld [vmem:[%s3477 + $0x21] sm:$0xff]
      %v3558 = vld [vmem:[%s3477 + $0x29] sm:$0xf]
      %v3559 = vld [vmem:[%s3477 + $0x31] sm:$0xff]
      %v3560 = vld [vmem:[%s3477 + $0x39] sm:$0xf]
      %v3561 = vld [vmem:[%s3477 + $0x41] sm:$0xff]
      %v3562 = vld [vmem:[%s3477 + $0x49] sm:$0xf]
      %v3563 = vld [vmem:[%s3477 + $0x51] sm:$0xff]
      %v3564 = vld [vmem:[%s3477 + $0x59] sm:$0xf]
      %v3565 = vld [vmem:[%s3477 + $0x61] sm:$0xff]
      %v3566 = vld [vmem:[%s3477 + $0x69] sm:$0xf]
      %v3567 = vld [vmem:[%s3477 + $0x71] sm:$0xff]
      %v3568 = vld [vmem:[%s3477 + $0x79] sm:$0xf]
      %v3569 = vld [vmem:[%s3477 + $0x81] sm:$0xff]
      %v3570 = vld [vmem:[%s3477 + $0x89] sm:$0xf]
      %v3571 = vld [vmem:[%s3477 + $0x91] sm:$0xff]
      %v3572 = vld [vmem:[%s3477 + $0x99] sm:$0xf]
      %v3573 = vld [vmem:[%s3477 + $0xa1] sm:$0xff]
      %v3574 = vld [vmem:[%s3477 + $0xa9] sm:$0xf]
      %v3575 = vld [vmem:[%s3477 + $0xb1] sm:$0xff]
      %v3576 = vld [vmem:[%s3477 + $0xb9] sm:$0xf]
      %v3577 = vstv %s3552
      %v3578 = vmul.f32 %v3577, %v3553
      %v3579 = vmul.f32 %v3577, %v3554
      %v3580 = vmul.f32 %v3577, %v3555
      %v3581 = vmul.f32 %v3577, %v3556
      %v3582 = vmul.f32 %v3577, %v3557
      %v3583 = vmul.f32 %v3577, %v3558
      %v3584 = vmul.f32 %v3577, %v3559
      %v3585 = vmul.f32 %v3577, %v3560
      %v3586 = vmul.f32 %v3577, %v3561
      %v3587 = vmul.f32 %v3577, %v3562
      %v3588 = vmul.f32 %v3577, %v3563
      %v3589 = vmul.f32 %v3577, %v3564
      %v3590 = vmul.f32 %v3577, %v3565
      %v3591 = vmul.f32 %v3577, %v3566
      %v3592 = vmul.f32 %v3577, %v3567
      %v3593 = vmul.f32 %v3577, %v3568
      %v3594 = vmul.f32 %v3577, %v3569
      %v3595 = vmul.f32 %v3577, %v3570
      %v3596 = vmul.f32 %v3577, %v3571
      %v3597 = vmul.f32 %v3577, %v3572
      %v3598 = vmul.f32 %v3577, %v3573
      %v3599 = vmul.f32 %v3577, %v3574
      %v3600 = vmul.f32 %v3577, %v3575
      %v3601 = vmul.f32 %v3577, %v3576
      %v3602 = vadd.f32 %v3527, %v3578
      %v3603 = vadd.f32 %v3528, %v3579
      %v3604 = vadd.f32 %v3529, %v3580
      %v3605 = vadd.f32 %v3530, %v3581
      %v3606 = vadd.f32 %v3531, %v3582
      %v3607 = vadd.f32 %v3532, %v3583
      %v3608 = vadd.f32 %v3533, %v3584
      %v3609 = vadd.f32 %v3534, %v3585
      %v3610 = vadd.f32 %v3535, %v3586
      %v3611 = vadd.f32 %v3536, %v3587
      %v3612 = vadd.f32 %v3537, %v3588
      %v3613 = vadd.f32 %v3538, %v3589
      %v3614 = vadd.f32 %v3539, %v3590
      %v3615 = vadd.f32 %v3540, %v3591
      %v3616 = vadd.f32 %v3541, %v3592
      %v3617 = vadd.f32 %v3542, %v3593
      %v3618 = vadd.f32 %v3543, %v3594
      %v3619 = vadd.f32 %v3544, %v3595
      %v3620 = vadd.f32 %v3545, %v3596
      %v3621 = vadd.f32 %v3546, %v3597
      %v3622 = vadd.f32 %v3547, %v3598
      %v3623 = vadd.f32 %v3548, %v3599
      %v3624 = vadd.f32 %v3549, %v3600
      %v3625 = vadd.f32 %v3550, %v3601
      %s3626 = sadd.s32 %s81, 115
      %s3627 = sld [smem:[#allocation8 + %s3626]]
      %v3628 = vld [vmem:[%s3477 + $0x2] sm:$0xff]
      %v3629 = vld [vmem:[%s3477 + $0xa] sm:$0xf]
      %v3630 = vld [vmem:[%s3477 + $0x12] sm:$0xff]
      %v3631 = vld [vmem:[%s3477 + $0x1a] sm:$0xf]
      %v3632 = vld [vmem:[%s3477 + $0x22] sm:$0xff]
      %v3633 = vld [vmem:[%s3477 + $0x2a] sm:$0xf]
      %v3634 = vld [vmem:[%s3477 + $0x32] sm:$0xff]
      %v3635 = vld [vmem:[%s3477 + $0x3a] sm:$0xf]
      %v3636 = vld [vmem:[%s3477 + $0x42] sm:$0xff]
      %v3637 = vld [vmem:[%s3477 + $0x4a] sm:$0xf]
      %v3638 = vld [vmem:[%s3477 + $0x52] sm:$0xff]
      %v3639 = vld [vmem:[%s3477 + $0x5a] sm:$0xf]
      %v3640 = vld [vmem:[%s3477 + $0x62] sm:$0xff]
      %v3641 = vld [vmem:[%s3477 + $0x6a] sm:$0xf]
      %v3642 = vld [vmem:[%s3477 + $0x72] sm:$0xff]
      %v3643 = vld [vmem:[%s3477 + $0x7a] sm:$0xf]
      %v3644 = vld [vmem:[%s3477 + $0x82] sm:$0xff]
      %v3645 = vld [vmem:[%s3477 + $0x8a] sm:$0xf]
      %v3646 = vld [vmem:[%s3477 + $0x92] sm:$0xff]
      %v3647 = vld [vmem:[%s3477 + $0x9a] sm:$0xf]
      %v3648 = vld [vmem:[%s3477 + $0xa2] sm:$0xff]
      %v3649 = vld [vmem:[%s3477 + $0xaa] sm:$0xf]
      %v3650 = vld [vmem:[%s3477 + $0xb2] sm:$0xff]
      %v3651 = vld [vmem:[%s3477 + $0xba] sm:$0xf]
      %v3652 = vstv %s3627
      %v3653 = vmul.f32 %v3652, %v3628
      %v3654 = vmul.f32 %v3652, %v3629
      %v3655 = vmul.f32 %v3652, %v3630
      %v3656 = vmul.f32 %v3652, %v3631
      %v3657 = vmul.f32 %v3652, %v3632
      %v3658 = vmul.f32 %v3652, %v3633
      %v3659 = vmul.f32 %v3652, %v3634
      %v3660 = vmul.f32 %v3652, %v3635
      %v3661 = vmul.f32 %v3652, %v3636
      %v3662 = vmul.f32 %v3652, %v3637
      %v3663 = vmul.f32 %v3652, %v3638
      %v3664 = vmul.f32 %v3652, %v3639
      %v3665 = vmul.f32 %v3652, %v3640
      %v3666 = vmul.f32 %v3652, %v3641
      %v3667 = vmul.f32 %v3652, %v3642
      %v3668 = vmul.f32 %v3652, %v3643
      %v3669 = vmul.f32 %v3652, %v3644
      %v3670 = vmul.f32 %v3652, %v3645
      %v3671 = vmul.f32 %v3652, %v3646
      %v3672 = vmul.f32 %v3652, %v3647
      %v3673 = vmul.f32 %v3652, %v3648
      %v3674 = vmul.f32 %v3652, %v3649
      %v3675 = vmul.f32 %v3652, %v3650
      %v3676 = vmul.f32 %v3652, %v3651
      %v3677 = vadd.f32 %v3602, %v3653
      %v3678 = vadd.f32 %v3603, %v3654
      %v3679 = vadd.f32 %v3604, %v3655
      %v3680 = vadd.f32 %v3605, %v3656
      %v3681 = vadd.f32 %v3606, %v3657
      %v3682 = vadd.f32 %v3607, %v3658
      %v3683 = vadd.f32 %v3608, %v3659
      %v3684 = vadd.f32 %v3609, %v3660
      %v3685 = vadd.f32 %v3610, %v3661
      %v3686 = vadd.f32 %v3611, %v3662
      %v3687 = vadd.f32 %v3612, %v3663
      %v3688 = vadd.f32 %v3613, %v3664
      %v3689 = vadd.f32 %v3614, %v3665
      %v3690 = vadd.f32 %v3615, %v3666
      %v3691 = vadd.f32 %v3616, %v3667
      %v3692 = vadd.f32 %v3617, %v3668
      %v3693 = vadd.f32 %v3618, %v3669
      %v3694 = vadd.f32 %v3619, %v3670
      %v3695 = vadd.f32 %v3620, %v3671
      %v3696 = vadd.f32 %v3621, %v3672
      %v3697 = vadd.f32 %v3622, %v3673
      %v3698 = vadd.f32 %v3623, %v3674
      %v3699 = vadd.f32 %v3624, %v3675
      %v3700 = vadd.f32 %v3625, %v3676
      %s3701 = sadd.s32 %s81, 117
      %s3702 = sld [smem:[#allocation8 + %s3701]]
      %v3703 = vld [vmem:[%s3477 + $0x3] sm:$0xff]
      %v3704 = vld [vmem:[%s3477 + $0xb] sm:$0xf]
      %v3705 = vld [vmem:[%s3477 + $0x13] sm:$0xff]
      %v3706 = vld [vmem:[%s3477 + $0x1b] sm:$0xf]
      %v3707 = vld [vmem:[%s3477 + $0x23] sm:$0xff]
      %v3708 = vld [vmem:[%s3477 + $0x2b] sm:$0xf]
      %v3709 = vld [vmem:[%s3477 + $0x33] sm:$0xff]
      %v3710 = vld [vmem:[%s3477 + $0x3b] sm:$0xf]
      %v3711 = vld [vmem:[%s3477 + $0x43] sm:$0xff]
      %v3712 = vld [vmem:[%s3477 + $0x4b] sm:$0xf]
      %v3713 = vld [vmem:[%s3477 + $0x53] sm:$0xff]
      %v3714 = vld [vmem:[%s3477 + $0x5b] sm:$0xf]
      %v3715 = vld [vmem:[%s3477 + $0x63] sm:$0xff]
      %v3716 = vld [vmem:[%s3477 + $0x6b] sm:$0xf]
      %v3717 = vld [vmem:[%s3477 + $0x73] sm:$0xff]
      %v3718 = vld [vmem:[%s3477 + $0x7b] sm:$0xf]
      %v3719 = vld [vmem:[%s3477 + $0x83] sm:$0xff]
      %v3720 = vld [vmem:[%s3477 + $0x8b] sm:$0xf]
      %v3721 = vld [vmem:[%s3477 + $0x93] sm:$0xff]
      %v3722 = vld [vmem:[%s3477 + $0x9b] sm:$0xf]
      %v3723 = vld [vmem:[%s3477 + $0xa3] sm:$0xff]
      %v3724 = vld [vmem:[%s3477 + $0xab] sm:$0xf]
      %v3725 = vld [vmem:[%s3477 + $0xb3] sm:$0xff]
      %v3726 = vld [vmem:[%s3477 + $0xbb] sm:$0xf]
      %v3727 = vstv %s3702
      %v3728 = vmul.f32 %v3727, %v3703
      %v3729 = vmul.f32 %v3727, %v3704
      %v3730 = vmul.f32 %v3727, %v3705
      %v3731 = vmul.f32 %v3727, %v3706
      %v3732 = vmul.f32 %v3727, %v3707
      %v3733 = vmul.f32 %v3727, %v3708
      %v3734 = vmul.f32 %v3727, %v3709
      %v3735 = vmul.f32 %v3727, %v3710
      %v3736 = vmul.f32 %v3727, %v3711
      %v3737 = vmul.f32 %v3727, %v3712
      %v3738 = vmul.f32 %v3727, %v3713
      %v3739 = vmul.f32 %v3727, %v3714
      %v3740 = vmul.f32 %v3727, %v3715
      %v3741 = vmul.f32 %v3727, %v3716
      %v3742 = vmul.f32 %v3727, %v3717
      %v3743 = vmul.f32 %v3727, %v3718
      %v3744 = vmul.f32 %v3727, %v3719
      %v3745 = vmul.f32 %v3727, %v3720
      %v3746 = vmul.f32 %v3727, %v3721
      %v3747 = vmul.f32 %v3727, %v3722
      %v3748 = vmul.f32 %v3727, %v3723
      %v3749 = vmul.f32 %v3727, %v3724
      %v3750 = vmul.f32 %v3727, %v3725
      %v3751 = vmul.f32 %v3727, %v3726
      %v3752 = vadd.f32 %v3677, %v3728
      %v3753 = vadd.f32 %v3678, %v3729
      %v3754 = vadd.f32 %v3679, %v3730
      %v3755 = vadd.f32 %v3680, %v3731
      %v3756 = vadd.f32 %v3681, %v3732
      %v3757 = vadd.f32 %v3682, %v3733
      %v3758 = vadd.f32 %v3683, %v3734
      %v3759 = vadd.f32 %v3684, %v3735
      %v3760 = vadd.f32 %v3685, %v3736
      %v3761 = vadd.f32 %v3686, %v3737
      %v3762 = vadd.f32 %v3687, %v3738
      %v3763 = vadd.f32 %v3688, %v3739
      %v3764 = vadd.f32 %v3689, %v3740
      %v3765 = vadd.f32 %v3690, %v3741
      %v3766 = vadd.f32 %v3691, %v3742
      %v3767 = vadd.f32 %v3692, %v3743
      %v3768 = vadd.f32 %v3693, %v3744
      %v3769 = vadd.f32 %v3694, %v3745
      %v3770 = vadd.f32 %v3695, %v3746
      %v3771 = vadd.f32 %v3696, %v3747
      %v3772 = vadd.f32 %v3697, %v3748
      %v3773 = vadd.f32 %v3698, %v3749
      %v3774 = vadd.f32 %v3699, %v3750
      %v3775 = vadd.f32 %v3700, %v3751
      %s3776 = sadd.s32 %s81, 119
      %s3777 = sld [smem:[#allocation8 + %s3776]]
      %v3778 = vld [vmem:[%s3477 + $0x4] sm:$0xff]
      %v3779 = vld [vmem:[%s3477 + $0xc] sm:$0xf]
      %v3780 = vld [vmem:[%s3477 + $0x14] sm:$0xff]
      %v3781 = vld [vmem:[%s3477 + $0x1c] sm:$0xf]
      %v3782 = vld [vmem:[%s3477 + $0x24] sm:$0xff]
      %v3783 = vld [vmem:[%s3477 + $0x2c] sm:$0xf]
      %v3784 = vld [vmem:[%s3477 + $0x34] sm:$0xff]
      %v3785 = vld [vmem:[%s3477 + $0x3c] sm:$0xf]
      %v3786 = vld [vmem:[%s3477 + $0x44] sm:$0xff]
      %v3787 = vld [vmem:[%s3477 + $0x4c] sm:$0xf]
      %v3788 = vld [vmem:[%s3477 + $0x54] sm:$0xff]
      %v3789 = vld [vmem:[%s3477 + $0x5c] sm:$0xf]
      %v3790 = vld [vmem:[%s3477 + $0x64] sm:$0xff]
      %v3791 = vld [vmem:[%s3477 + $0x6c] sm:$0xf]
      %v3792 = vld [vmem:[%s3477 + $0x74] sm:$0xff]
      %v3793 = vld [vmem:[%s3477 + $0x7c] sm:$0xf]
      %v3794 = vld [vmem:[%s3477 + $0x84] sm:$0xff]
      %v3795 = vld [vmem:[%s3477 + $0x8c] sm:$0xf]
      %v3796 = vld [vmem:[%s3477 + $0x94] sm:$0xff]
      %v3797 = vld [vmem:[%s3477 + $0x9c] sm:$0xf]
      %v3798 = vld [vmem:[%s3477 + $0xa4] sm:$0xff]
      %v3799 = vld [vmem:[%s3477 + $0xac] sm:$0xf]
      %v3800 = vld [vmem:[%s3477 + $0xb4] sm:$0xff]
      %v3801 = vld [vmem:[%s3477 + $0xbc] sm:$0xf]
      %v3802 = vstv %s3777
      %v3803 = vmul.f32 %v3802, %v3778
      %v3804 = vmul.f32 %v3802, %v3779
      %v3805 = vmul.f32 %v3802, %v3780
      %v3806 = vmul.f32 %v3802, %v3781
      %v3807 = vmul.f32 %v3802, %v3782
      %v3808 = vmul.f32 %v3802, %v3783
      %v3809 = vmul.f32 %v3802, %v3784
      %v3810 = vmul.f32 %v3802, %v3785
      %v3811 = vmul.f32 %v3802, %v3786
      %v3812 = vmul.f32 %v3802, %v3787
      %v3813 = vmul.f32 %v3802, %v3788
      %v3814 = vmul.f32 %v3802, %v3789
      %v3815 = vmul.f32 %v3802, %v3790
      %v3816 = vmul.f32 %v3802, %v3791
      %v3817 = vmul.f32 %v3802, %v3792
      %v3818 = vmul.f32 %v3802, %v3793
      %v3819 = vmul.f32 %v3802, %v3794
      %v3820 = vmul.f32 %v3802, %v3795
      %v3821 = vmul.f32 %v3802, %v3796
      %v3822 = vmul.f32 %v3802, %v3797
      %v3823 = vmul.f32 %v3802, %v3798
      %v3824 = vmul.f32 %v3802, %v3799
      %v3825 = vmul.f32 %v3802, %v3800
      %v3826 = vmul.f32 %v3802, %v3801
      %v3827 = vadd.f32 %v3752, %v3803
      %v3828 = vadd.f32 %v3753, %v3804
      %v3829 = vadd.f32 %v3754, %v3805
      %v3830 = vadd.f32 %v3755, %v3806
      %v3831 = vadd.f32 %v3756, %v3807
      %v3832 = vadd.f32 %v3757, %v3808
      %v3833 = vadd.f32 %v3758, %v3809
      %v3834 = vadd.f32 %v3759, %v3810
      %v3835 = vadd.f32 %v3760, %v3811
      %v3836 = vadd.f32 %v3761, %v3812
      %v3837 = vadd.f32 %v3762, %v3813
      %v3838 = vadd.f32 %v3763, %v3814
      %v3839 = vadd.f32 %v3764, %v3815
      %v3840 = vadd.f32 %v3765, %v3816
      %v3841 = vadd.f32 %v3766, %v3817
      %v3842 = vadd.f32 %v3767, %v3818
      %v3843 = vadd.f32 %v3768, %v3819
      %v3844 = vadd.f32 %v3769, %v3820
      %v3845 = vadd.f32 %v3770, %v3821
      %v3846 = vadd.f32 %v3771, %v3822
      %v3847 = vadd.f32 %v3772, %v3823
      %v3848 = vadd.f32 %v3773, %v3824
      %v3849 = vadd.f32 %v3774, %v3825
      %v3850 = vadd.f32 %v3775, %v3826
      %s3851 = sadd.s32 %s81, 210
      %s3852 = sld [smem:[#allocation8 + %s3851]]
      %s3853 = sadd.s32 %s1591, 1536
      %s3854 = scalar_lea.vmem [#allocation4], %s3853
      %v3855 = vld [vmem:[%s3854] sm:$0xff]
      %v3856 = vld [vmem:[%s3854 + $0x8] sm:$0xf]
      %v3857 = vld [vmem:[%s3854 + $0x10] sm:$0xff]
      %v3858 = vld [vmem:[%s3854 + $0x18] sm:$0xf]
      %v3859 = vld [vmem:[%s3854 + $0x20] sm:$0xff]
      %v3860 = vld [vmem:[%s3854 + $0x28] sm:$0xf]
      %v3861 = vld [vmem:[%s3854 + $0x30] sm:$0xff]
      %v3862 = vld [vmem:[%s3854 + $0x38] sm:$0xf]
      %v3863 = vld [vmem:[%s3854 + $0x40] sm:$0xff]
      %v3864 = vld [vmem:[%s3854 + $0x48] sm:$0xf]
      %v3865 = vld [vmem:[%s3854 + $0x50] sm:$0xff]
      %v3866 = vld [vmem:[%s3854 + $0x58] sm:$0xf]
      %v3867 = vld [vmem:[%s3854 + $0x60] sm:$0xff]
      %v3868 = vld [vmem:[%s3854 + $0x68] sm:$0xf]
      %v3869 = vld [vmem:[%s3854 + $0x70] sm:$0xff]
      %v3870 = vld [vmem:[%s3854 + $0x78] sm:$0xf]
      %v3871 = vld [vmem:[%s3854 + $0x80] sm:$0xff]
      %v3872 = vld [vmem:[%s3854 + $0x88] sm:$0xf]
      %v3873 = vld [vmem:[%s3854 + $0x90] sm:$0xff]
      %v3874 = vld [vmem:[%s3854 + $0x98] sm:$0xf]
      %v3875 = vld [vmem:[%s3854 + $0xa0] sm:$0xff]
      %v3876 = vld [vmem:[%s3854 + $0xa8] sm:$0xf]
      %v3877 = vld [vmem:[%s3854 + $0xb0] sm:$0xff]
      %v3878 = vld [vmem:[%s3854 + $0xb8] sm:$0xf]
      %v3879 = vstv %s3852
      %v3880 = vmul.f32 %v3879, %v3855
      %v3881 = vmul.f32 %v3879, %v3856
      %v3882 = vmul.f32 %v3879, %v3857
      %v3883 = vmul.f32 %v3879, %v3858
      %v3884 = vmul.f32 %v3879, %v3859
      %v3885 = vmul.f32 %v3879, %v3860
      %v3886 = vmul.f32 %v3879, %v3861
      %v3887 = vmul.f32 %v3879, %v3862
      %v3888 = vmul.f32 %v3879, %v3863
      %v3889 = vmul.f32 %v3879, %v3864
      %v3890 = vmul.f32 %v3879, %v3865
      %v3891 = vmul.f32 %v3879, %v3866
      %v3892 = vmul.f32 %v3879, %v3867
      %v3893 = vmul.f32 %v3879, %v3868
      %v3894 = vmul.f32 %v3879, %v3869
      %v3895 = vmul.f32 %v3879, %v3870
      %v3896 = vmul.f32 %v3879, %v3871
      %v3897 = vmul.f32 %v3879, %v3872
      %v3898 = vmul.f32 %v3879, %v3873
      %v3899 = vmul.f32 %v3879, %v3874
      %v3900 = vmul.f32 %v3879, %v3875
      %v3901 = vmul.f32 %v3879, %v3876
      %v3902 = vmul.f32 %v3879, %v3877
      %v3903 = vmul.f32 %v3879, %v3878
      %v3904 = vadd.f32 %v3827, %v3880
      %v3905 = vadd.f32 %v3828, %v3881
      %v3906 = vadd.f32 %v3829, %v3882
      %v3907 = vadd.f32 %v3830, %v3883
      %v3908 = vadd.f32 %v3831, %v3884
      %v3909 = vadd.f32 %v3832, %v3885
      %v3910 = vadd.f32 %v3833, %v3886
      %v3911 = vadd.f32 %v3834, %v3887
      %v3912 = vadd.f32 %v3835, %v3888
      %v3913 = vadd.f32 %v3836, %v3889
      %v3914 = vadd.f32 %v3837, %v3890
      %v3915 = vadd.f32 %v3838, %v3891
      %v3916 = vadd.f32 %v3839, %v3892
      %v3917 = vadd.f32 %v3840, %v3893
      %v3918 = vadd.f32 %v3841, %v3894
      %v3919 = vadd.f32 %v3842, %v3895
      %v3920 = vadd.f32 %v3843, %v3896
      %v3921 = vadd.f32 %v3844, %v3897
      %v3922 = vadd.f32 %v3845, %v3898
      %v3923 = vadd.f32 %v3846, %v3899
      %v3924 = vadd.f32 %v3847, %v3900
      %v3925 = vadd.f32 %v3848, %v3901
      %v3926 = vadd.f32 %v3849, %v3902
      %v3927 = vadd.f32 %v3850, %v3903
      %s3928 = sadd.s32 %s81, 212
      %s3929 = sld [smem:[#allocation8 + %s3928]]
      %v3930 = vld [vmem:[%s3854 + $0x1] sm:$0xff]
      %v3931 = vld [vmem:[%s3854 + $0x9] sm:$0xf]
      %v3932 = vld [vmem:[%s3854 + $0x11] sm:$0xff]
      %v3933 = vld [vmem:[%s3854 + $0x19] sm:$0xf]
      %v3934 = vld [vmem:[%s3854 + $0x21] sm:$0xff]
      %v3935 = vld [vmem:[%s3854 + $0x29] sm:$0xf]
      %v3936 = vld [vmem:[%s3854 + $0x31] sm:$0xff]
      %v3937 = vld [vmem:[%s3854 + $0x39] sm:$0xf]
      %v3938 = vld [vmem:[%s3854 + $0x41] sm:$0xff]
      %v3939 = vld [vmem:[%s3854 + $0x49] sm:$0xf]
      %v3940 = vld [vmem:[%s3854 + $0x51] sm:$0xff]
      %v3941 = vld [vmem:[%s3854 + $0x59] sm:$0xf]
      %v3942 = vld [vmem:[%s3854 + $0x61] sm:$0xff]
      %v3943 = vld [vmem:[%s3854 + $0x69] sm:$0xf]
      %v3944 = vld [vmem:[%s3854 + $0x71] sm:$0xff]
      %v3945 = vld [vmem:[%s3854 + $0x79] sm:$0xf]
      %v3946 = vld [vmem:[%s3854 + $0x81] sm:$0xff]
      %v3947 = vld [vmem:[%s3854 + $0x89] sm:$0xf]
      %v3948 = vld [vmem:[%s3854 + $0x91] sm:$0xff]
      %v3949 = vld [vmem:[%s3854 + $0x99] sm:$0xf]
      %v3950 = vld [vmem:[%s3854 + $0xa1] sm:$0xff]
      %v3951 = vld [vmem:[%s3854 + $0xa9] sm:$0xf]
      %v3952 = vld [vmem:[%s3854 + $0xb1] sm:$0xff]
      %v3953 = vld [vmem:[%s3854 + $0xb9] sm:$0xf]
      %v3954 = vstv %s3929
      %v3955 = vmul.f32 %v3954, %v3930
      %v3956 = vmul.f32 %v3954, %v3931
      %v3957 = vmul.f32 %v3954, %v3932
      %v3958 = vmul.f32 %v3954, %v3933
      %v3959 = vmul.f32 %v3954, %v3934
      %v3960 = vmul.f32 %v3954, %v3935
      %v3961 = vmul.f32 %v3954, %v3936
      %v3962 = vmul.f32 %v3954, %v3937
      %v3963 = vmul.f32 %v3954, %v3938
      %v3964 = vmul.f32 %v3954, %v3939
      %v3965 = vmul.f32 %v3954, %v3940
      %v3966 = vmul.f32 %v3954, %v3941
      %v3967 = vmul.f32 %v3954, %v3942
      %v3968 = vmul.f32 %v3954, %v3943
      %v3969 = vmul.f32 %v3954, %v3944
      %v3970 = vmul.f32 %v3954, %v3945
      %v3971 = vmul.f32 %v3954, %v3946
      %v3972 = vmul.f32 %v3954, %v3947
      %v3973 = vmul.f32 %v3954, %v3948
      %v3974 = vmul.f32 %v3954, %v3949
      %v3975 = vmul.f32 %v3954, %v3950
      %v3976 = vmul.f32 %v3954, %v3951
      %v3977 = vmul.f32 %v3954, %v3952
      %v3978 = vmul.f32 %v3954, %v3953
      %v3979 = vadd.f32 %v3904, %v3955
      %v3980 = vadd.f32 %v3905, %v3956
      %v3981 = vadd.f32 %v3906, %v3957
      %v3982 = vadd.f32 %v3907, %v3958
      %v3983 = vadd.f32 %v3908, %v3959
      %v3984 = vadd.f32 %v3909, %v3960
      %v3985 = vadd.f32 %v3910, %v3961
      %v3986 = vadd.f32 %v3911, %v3962
      %v3987 = vadd.f32 %v3912, %v3963
      %v3988 = vadd.f32 %v3913, %v3964
      %v3989 = vadd.f32 %v3914, %v3965
      %v3990 = vadd.f32 %v3915, %v3966
      %v3991 = vadd.f32 %v3916, %v3967
      %v3992 = vadd.f32 %v3917, %v3968
      %v3993 = vadd.f32 %v3918, %v3969
      %v3994 = vadd.f32 %v3919, %v3970
      %v3995 = vadd.f32 %v3920, %v3971
      %v3996 = vadd.f32 %v3921, %v3972
      %v3997 = vadd.f32 %v3922, %v3973
      %v3998 = vadd.f32 %v3923, %v3974
      %v3999 = vadd.f32 %v3924, %v3975
      %v4000 = vadd.f32 %v3925, %v3976
      %v4001 = vadd.f32 %v3926, %v3977
      %v4002 = vadd.f32 %v3927, %v3978
      %s4003 = sadd.s32 %s81, 214
      %s4004 = sld [smem:[#allocation8 + %s4003]]
      %v4005 = vld [vmem:[%s3854 + $0x2] sm:$0xff]
      %v4006 = vld [vmem:[%s3854 + $0xa] sm:$0xf]
      %v4007 = vld [vmem:[%s3854 + $0x12] sm:$0xff]
      %v4008 = vld [vmem:[%s3854 + $0x1a] sm:$0xf]
      %v4009 = vld [vmem:[%s3854 + $0x22] sm:$0xff]
      %v4010 = vld [vmem:[%s3854 + $0x2a] sm:$0xf]
      %v4011 = vld [vmem:[%s3854 + $0x32] sm:$0xff]
      %v4012 = vld [vmem:[%s3854 + $0x3a] sm:$0xf]
      %v4013 = vld [vmem:[%s3854 + $0x42] sm:$0xff]
      %v4014 = vld [vmem:[%s3854 + $0x4a] sm:$0xf]
      %v4015 = vld [vmem:[%s3854 + $0x52] sm:$0xff]
      %v4016 = vld [vmem:[%s3854 + $0x5a] sm:$0xf]
      %v4017 = vld [vmem:[%s3854 + $0x62] sm:$0xff]
      %v4018 = vld [vmem:[%s3854 + $0x6a] sm:$0xf]
      %v4019 = vld [vmem:[%s3854 + $0x72] sm:$0xff]
      %v4020 = vld [vmem:[%s3854 + $0x7a] sm:$0xf]
      %v4021 = vld [vmem:[%s3854 + $0x82] sm:$0xff]
      %v4022 = vld [vmem:[%s3854 + $0x8a] sm:$0xf]
      %v4023 = vld [vmem:[%s3854 + $0x92] sm:$0xff]
      %v4024 = vld [vmem:[%s3854 + $0x9a] sm:$0xf]
      %v4025 = vld [vmem:[%s3854 + $0xa2] sm:$0xff]
      %v4026 = vld [vmem:[%s3854 + $0xaa] sm:$0xf]
      %v4027 = vld [vmem:[%s3854 + $0xb2] sm:$0xff]
      %v4028 = vld [vmem:[%s3854 + $0xba] sm:$0xf]
      %v4029 = vstv %s4004
      %v4030 = vmul.f32 %v4029, %v4005
      %v4031 = vmul.f32 %v4029, %v4006
      %v4032 = vmul.f32 %v4029, %v4007
      %v4033 = vmul.f32 %v4029, %v4008
      %v4034 = vmul.f32 %v4029, %v4009
      %v4035 = vmul.f32 %v4029, %v4010
      %v4036 = vmul.f32 %v4029, %v4011
      %v4037 = vmul.f32 %v4029, %v4012
      %v4038 = vmul.f32 %v4029, %v4013
      %v4039 = vmul.f32 %v4029, %v4014
      %v4040 = vmul.f32 %v4029, %v4015
      %v4041 = vmul.f32 %v4029, %v4016
      %v4042 = vmul.f32 %v4029, %v4017
      %v4043 = vmul.f32 %v4029, %v4018
      %v4044 = vmul.f32 %v4029, %v4019
      %v4045 = vmul.f32 %v4029, %v4020
      %v4046 = vmul.f32 %v4029, %v4021
      %v4047 = vmul.f32 %v4029, %v4022
      %v4048 = vmul.f32 %v4029, %v4023
      %v4049 = vmul.f32 %v4029, %v4024
      %v4050 = vmul.f32 %v4029, %v4025
      %v4051 = vmul.f32 %v4029, %v4026
      %v4052 = vmul.f32 %v4029, %v4027
      %v4053 = vmul.f32 %v4029, %v4028
      %v4054 = vadd.f32 %v3979, %v4030
      %v4055 = vadd.f32 %v3980, %v4031
      %v4056 = vadd.f32 %v3981, %v4032
      %v4057 = vadd.f32 %v3982, %v4033
      %v4058 = vadd.f32 %v3983, %v4034
      %v4059 = vadd.f32 %v3984, %v4035
      %v4060 = vadd.f32 %v3985, %v4036
      %v4061 = vadd.f32 %v3986, %v4037
      %v4062 = vadd.f32 %v3987, %v4038
      %v4063 = vadd.f32 %v3988, %v4039
      %v4064 = vadd.f32 %v3989, %v4040
      %v4065 = vadd.f32 %v3990, %v4041
      %v4066 = vadd.f32 %v3991, %v4042
      %v4067 = vadd.f32 %v3992, %v4043
      %v4068 = vadd.f32 %v3993, %v4044
      %v4069 = vadd.f32 %v3994, %v4045
      %v4070 = vadd.f32 %v3995, %v4046
      %v4071 = vadd.f32 %v3996, %v4047
      %v4072 = vadd.f32 %v3997, %v4048
      %v4073 = vadd.f32 %v3998, %v4049
      %v4074 = vadd.f32 %v3999, %v4050
      %v4075 = vadd.f32 %v4000, %v4051
      %v4076 = vadd.f32 %v4001, %v4052
      %v4077 = vadd.f32 %v4002, %v4053
      %s4078 = sadd.s32 %s81, 216
      %s4079 = sld [smem:[#allocation8 + %s4078]]
      %v4080 = vld [vmem:[%s3854 + $0x3] sm:$0xff]
      %v4081 = vld [vmem:[%s3854 + $0xb] sm:$0xf]
      %v4082 = vld [vmem:[%s3854 + $0x13] sm:$0xff]
      %v4083 = vld [vmem:[%s3854 + $0x1b] sm:$0xf]
      %v4084 = vld [vmem:[%s3854 + $0x23] sm:$0xff]
      %v4085 = vld [vmem:[%s3854 + $0x2b] sm:$0xf]
      %v4086 = vld [vmem:[%s3854 + $0x33] sm:$0xff]
      %v4087 = vld [vmem:[%s3854 + $0x3b] sm:$0xf]
      %v4088 = vld [vmem:[%s3854 + $0x43] sm:$0xff]
      %v4089 = vld [vmem:[%s3854 + $0x4b] sm:$0xf]
      %v4090 = vld [vmem:[%s3854 + $0x53] sm:$0xff]
      %v4091 = vld [vmem:[%s3854 + $0x5b] sm:$0xf]
      %v4092 = vld [vmem:[%s3854 + $0x63] sm:$0xff]
      %v4093 = vld [vmem:[%s3854 + $0x6b] sm:$0xf]
      %v4094 = vld [vmem:[%s3854 + $0x73] sm:$0xff]
      %v4095 = vld [vmem:[%s3854 + $0x7b] sm:$0xf]
      %v4096 = vld [vmem:[%s3854 + $0x83] sm:$0xff]
      %v4097 = vld [vmem:[%s3854 + $0x8b] sm:$0xf]
      %v4098 = vld [vmem:[%s3854 + $0x93] sm:$0xff]
      %v4099 = vld [vmem:[%s3854 + $0x9b] sm:$0xf]
      %v4100 = vld [vmem:[%s3854 + $0xa3] sm:$0xff]
      %v4101 = vld [vmem:[%s3854 + $0xab] sm:$0xf]
      %v4102 = vld [vmem:[%s3854 + $0xb3] sm:$0xff]
      %v4103 = vld [vmem:[%s3854 + $0xbb] sm:$0xf]
      %v4104 = vstv %s4079
      %v4105 = vmul.f32 %v4104, %v4080
      %v4106 = vmul.f32 %v4104, %v4081
      %v4107 = vmul.f32 %v4104, %v4082
      %v4108 = vmul.f32 %v4104, %v4083
      %v4109 = vmul.f32 %v4104, %v4084
      %v4110 = vmul.f32 %v4104, %v4085
      %v4111 = vmul.f32 %v4104, %v4086
      %v4112 = vmul.f32 %v4104, %v4087
      %v4113 = vmul.f32 %v4104, %v4088
      %v4114 = vmul.f32 %v4104, %v4089
      %v4115 = vmul.f32 %v4104, %v4090
      %v4116 = vmul.f32 %v4104, %v4091
      %v4117 = vmul.f32 %v4104, %v4092
      %v4118 = vmul.f32 %v4104, %v4093
      %v4119 = vmul.f32 %v4104, %v4094
      %v4120 = vmul.f32 %v4104, %v4095
      %v4121 = vmul.f32 %v4104, %v4096
      %v4122 = vmul.f32 %v4104, %v4097
      %v4123 = vmul.f32 %v4104, %v4098
      %v4124 = vmul.f32 %v4104, %v4099
      %v4125 = vmul.f32 %v4104, %v4100
      %v4126 = vmul.f32 %v4104, %v4101
      %v4127 = vmul.f32 %v4104, %v4102
      %v4128 = vmul.f32 %v4104, %v4103
      %v4129 = vadd.f32 %v4054, %v4105
      %v4130 = vadd.f32 %v4055, %v4106
      %v4131 = vadd.f32 %v4056, %v4107
      %v4132 = vadd.f32 %v4057, %v4108
      %v4133 = vadd.f32 %v4058, %v4109
      %v4134 = vadd.f32 %v4059, %v4110
      %v4135 = vadd.f32 %v4060, %v4111
      %v4136 = vadd.f32 %v4061, %v4112
      %v4137 = vadd.f32 %v4062, %v4113
      %v4138 = vadd.f32 %v4063, %v4114
      %v4139 = vadd.f32 %v4064, %v4115
      %v4140 = vadd.f32 %v4065, %v4116
      %v4141 = vadd.f32 %v4066, %v4117
      %v4142 = vadd.f32 %v4067, %v4118
      %v4143 = vadd.f32 %v4068, %v4119
      %v4144 = vadd.f32 %v4069, %v4120
      %v4145 = vadd.f32 %v4070, %v4121
      %v4146 = vadd.f32 %v4071, %v4122
      %v4147 = vadd.f32 %v4072, %v4123
      %v4148 = vadd.f32 %v4073, %v4124
      %v4149 = vadd.f32 %v4074, %v4125
      %v4150 = vadd.f32 %v4075, %v4126
      %v4151 = vadd.f32 %v4076, %v4127
      %v4152 = vadd.f32 %v4077, %v4128
      %s4153 = sadd.s32 %s81, 218
      %s4154 = sld [smem:[#allocation8 + %s4153]]
      %v4155 = vld [vmem:[%s3854 + $0x4] sm:$0xff]
      %v4156 = vld [vmem:[%s3854 + $0xc] sm:$0xf]
      %v4157 = vld [vmem:[%s3854 + $0x14] sm:$0xff]
      %v4158 = vld [vmem:[%s3854 + $0x1c] sm:$0xf]
      %v4159 = vld [vmem:[%s3854 + $0x24] sm:$0xff]
      %v4160 = vld [vmem:[%s3854 + $0x2c] sm:$0xf]
      %v4161 = vld [vmem:[%s3854 + $0x34] sm:$0xff]
      %v4162 = vld [vmem:[%s3854 + $0x3c] sm:$0xf]
      %v4163 = vld [vmem:[%s3854 + $0x44] sm:$0xff]
      %v4164 = vld [vmem:[%s3854 + $0x4c] sm:$0xf]
      %v4165 = vld [vmem:[%s3854 + $0x54] sm:$0xff]
      %v4166 = vld [vmem:[%s3854 + $0x5c] sm:$0xf]
      %v4167 = vld [vmem:[%s3854 + $0x64] sm:$0xff]
      %v4168 = vld [vmem:[%s3854 + $0x6c] sm:$0xf]
      %v4169 = vld [vmem:[%s3854 + $0x74] sm:$0xff]
      %v4170 = vld [vmem:[%s3854 + $0x7c] sm:$0xf]
      %v4171 = vld [vmem:[%s3854 + $0x84] sm:$0xff]
      %v4172 = vld [vmem:[%s3854 + $0x8c] sm:$0xf]
      %v4173 = vld [vmem:[%s3854 + $0x94] sm:$0xff]
      %v4174 = vld [vmem:[%s3854 + $0x9c] sm:$0xf]
      %v4175 = vld [vmem:[%s3854 + $0xa4] sm:$0xff]
      %v4176 = vld [vmem:[%s3854 + $0xac] sm:$0xf]
      %v4177 = vld [vmem:[%s3854 + $0xb4] sm:$0xff]
      %v4178 = vld [vmem:[%s3854 + $0xbc] sm:$0xf]
      %v4179 = vstv %s4154
      %v4180 = vmul.f32 %v4179, %v4155
      %v4181 = vmul.f32 %v4179, %v4156
      %v4182 = vmul.f32 %v4179, %v4157
      %v4183 = vmul.f32 %v4179, %v4158
      %v4184 = vmul.f32 %v4179, %v4159
      %v4185 = vmul.f32 %v4179, %v4160
      %v4186 = vmul.f32 %v4179, %v4161
      %v4187 = vmul.f32 %v4179, %v4162
      %v4188 = vmul.f32 %v4179, %v4163
      %v4189 = vmul.f32 %v4179, %v4164
      %v4190 = vmul.f32 %v4179, %v4165
      %v4191 = vmul.f32 %v4179, %v4166
      %v4192 = vmul.f32 %v4179, %v4167
      %v4193 = vmul.f32 %v4179, %v4168
      %v4194 = vmul.f32 %v4179, %v4169
      %v4195 = vmul.f32 %v4179, %v4170
      %v4196 = vmul.f32 %v4179, %v4171
      %v4197 = vmul.f32 %v4179, %v4172
      %v4198 = vmul.f32 %v4179, %v4173
      %v4199 = vmul.f32 %v4179, %v4174
      %v4200 = vmul.f32 %v4179, %v4175
      %v4201 = vmul.f32 %v4179, %v4176
      %v4202 = vmul.f32 %v4179, %v4177
      %v4203 = vmul.f32 %v4179, %v4178
      %v4204 = vadd.f32 %v4129, %v4180
      %v4205 = vadd.f32 %v4130, %v4181
      %v4206 = vadd.f32 %v4131, %v4182
      %v4207 = vadd.f32 %v4132, %v4183
      %v4208 = vadd.f32 %v4133, %v4184
      %v4209 = vadd.f32 %v4134, %v4185
      %v4210 = vadd.f32 %v4135, %v4186
      %v4211 = vadd.f32 %v4136, %v4187
      %v4212 = vadd.f32 %v4137, %v4188
      %v4213 = vadd.f32 %v4138, %v4189
      %v4214 = vadd.f32 %v4139, %v4190
      %v4215 = vadd.f32 %v4140, %v4191
      %v4216 = vadd.f32 %v4141, %v4192
      %v4217 = vadd.f32 %v4142, %v4193
      %v4218 = vadd.f32 %v4143, %v4194
      %v4219 = vadd.f32 %v4144, %v4195
      %v4220 = vadd.f32 %v4145, %v4196
      %v4221 = vadd.f32 %v4146, %v4197
      %v4222 = vadd.f32 %v4147, %v4198
      %v4223 = vadd.f32 %v4148, %v4199
      %v4224 = vadd.f32 %v4149, %v4200
      %v4225 = vadd.f32 %v4150, %v4201
      %v4226 = vadd.f32 %v4151, %v4202
      %v4227 = vadd.f32 %v4152, %v4203
      %s4228 = sadd.s32 %s81, 211
      %s4229 = sld [smem:[#allocation8 + %s4228]]
      %s4230 = sadd.s32 %s1968, 1536
      %s4231 = scalar_lea.vmem [#allocation4], %s4230
      %v4232 = vld [vmem:[%s4231] sm:$0xff]
      %v4233 = vld [vmem:[%s4231 + $0x8] sm:$0xf]
      %v4234 = vld [vmem:[%s4231 + $0x10] sm:$0xff]
      %v4235 = vld [vmem:[%s4231 + $0x18] sm:$0xf]
      %v4236 = vld [vmem:[%s4231 + $0x20] sm:$0xff]
      %v4237 = vld [vmem:[%s4231 + $0x28] sm:$0xf]
      %v4238 = vld [vmem:[%s4231 + $0x30] sm:$0xff]
      %v4239 = vld [vmem:[%s4231 + $0x38] sm:$0xf]
      %v4240 = vld [vmem:[%s4231 + $0x40] sm:$0xff]
      %v4241 = vld [vmem:[%s4231 + $0x48] sm:$0xf]
      %v4242 = vld [vmem:[%s4231 + $0x50] sm:$0xff]
      %v4243 = vld [vmem:[%s4231 + $0x58] sm:$0xf]
      %v4244 = vld [vmem:[%s4231 + $0x60] sm:$0xff]
      %v4245 = vld [vmem:[%s4231 + $0x68] sm:$0xf]
      %v4246 = vld [vmem:[%s4231 + $0x70] sm:$0xff]
      %v4247 = vld [vmem:[%s4231 + $0x78] sm:$0xf]
      %v4248 = vld [vmem:[%s4231 + $0x80] sm:$0xff]
      %v4249 = vld [vmem:[%s4231 + $0x88] sm:$0xf]
      %v4250 = vld [vmem:[%s4231 + $0x90] sm:$0xff]
      %v4251 = vld [vmem:[%s4231 + $0x98] sm:$0xf]
      %v4252 = vld [vmem:[%s4231 + $0xa0] sm:$0xff]
      %v4253 = vld [vmem:[%s4231 + $0xa8] sm:$0xf]
      %v4254 = vld [vmem:[%s4231 + $0xb0] sm:$0xff]
      %v4255 = vld [vmem:[%s4231 + $0xb8] sm:$0xf]
      %v4256 = vstv %s4229
      %v4257 = vmul.f32 %v4256, %v4232
      %v4258 = vmul.f32 %v4256, %v4233
      %v4259 = vmul.f32 %v4256, %v4234
      %v4260 = vmul.f32 %v4256, %v4235
      %v4261 = vmul.f32 %v4256, %v4236
      %v4262 = vmul.f32 %v4256, %v4237
      %v4263 = vmul.f32 %v4256, %v4238
      %v4264 = vmul.f32 %v4256, %v4239
      %v4265 = vmul.f32 %v4256, %v4240
      %v4266 = vmul.f32 %v4256, %v4241
      %v4267 = vmul.f32 %v4256, %v4242
      %v4268 = vmul.f32 %v4256, %v4243
      %v4269 = vmul.f32 %v4256, %v4244
      %v4270 = vmul.f32 %v4256, %v4245
      %v4271 = vmul.f32 %v4256, %v4246
      %v4272 = vmul.f32 %v4256, %v4247
      %v4273 = vmul.f32 %v4256, %v4248
      %v4274 = vmul.f32 %v4256, %v4249
      %v4275 = vmul.f32 %v4256, %v4250
      %v4276 = vmul.f32 %v4256, %v4251
      %v4277 = vmul.f32 %v4256, %v4252
      %v4278 = vmul.f32 %v4256, %v4253
      %v4279 = vmul.f32 %v4256, %v4254
      %v4280 = vmul.f32 %v4256, %v4255
      %v4281 = vadd.f32 %v4204, %v4257
      %v4282 = vadd.f32 %v4205, %v4258
      %v4283 = vadd.f32 %v4206, %v4259
      %v4284 = vadd.f32 %v4207, %v4260
      %v4285 = vadd.f32 %v4208, %v4261
      %v4286 = vadd.f32 %v4209, %v4262
      %v4287 = vadd.f32 %v4210, %v4263
      %v4288 = vadd.f32 %v4211, %v4264
      %v4289 = vadd.f32 %v4212, %v4265
      %v4290 = vadd.f32 %v4213, %v4266
      %v4291 = vadd.f32 %v4214, %v4267
      %v4292 = vadd.f32 %v4215, %v4268
      %v4293 = vadd.f32 %v4216, %v4269
      %v4294 = vadd.f32 %v4217, %v4270
      %v4295 = vadd.f32 %v4218, %v4271
      %v4296 = vadd.f32 %v4219, %v4272
      %v4297 = vadd.f32 %v4220, %v4273
      %v4298 = vadd.f32 %v4221, %v4274
      %v4299 = vadd.f32 %v4222, %v4275
      %v4300 = vadd.f32 %v4223, %v4276
      %v4301 = vadd.f32 %v4224, %v4277
      %v4302 = vadd.f32 %v4225, %v4278
      %v4303 = vadd.f32 %v4226, %v4279
      %v4304 = vadd.f32 %v4227, %v4280
      %s4305 = sadd.s32 %s81, 213
      %s4306 = sld [smem:[#allocation8 + %s4305]]
      %v4307 = vld [vmem:[%s4231 + $0x1] sm:$0xff]
      %v4308 = vld [vmem:[%s4231 + $0x9] sm:$0xf]
      %v4309 = vld [vmem:[%s4231 + $0x11] sm:$0xff]
      %v4310 = vld [vmem:[%s4231 + $0x19] sm:$0xf]
      %v4311 = vld [vmem:[%s4231 + $0x21] sm:$0xff]
      %v4312 = vld [vmem:[%s4231 + $0x29] sm:$0xf]
      %v4313 = vld [vmem:[%s4231 + $0x31] sm:$0xff]
      %v4314 = vld [vmem:[%s4231 + $0x39] sm:$0xf]
      %v4315 = vld [vmem:[%s4231 + $0x41] sm:$0xff]
      %v4316 = vld [vmem:[%s4231 + $0x49] sm:$0xf]
      %v4317 = vld [vmem:[%s4231 + $0x51] sm:$0xff]
      %v4318 = vld [vmem:[%s4231 + $0x59] sm:$0xf]
      %v4319 = vld [vmem:[%s4231 + $0x61] sm:$0xff]
      %v4320 = vld [vmem:[%s4231 + $0x69] sm:$0xf]
      %v4321 = vld [vmem:[%s4231 + $0x71] sm:$0xff]
      %v4322 = vld [vmem:[%s4231 + $0x79] sm:$0xf]
      %v4323 = vld [vmem:[%s4231 + $0x81] sm:$0xff]
      %v4324 = vld [vmem:[%s4231 + $0x89] sm:$0xf]
      %v4325 = vld [vmem:[%s4231 + $0x91] sm:$0xff]
      %v4326 = vld [vmem:[%s4231 + $0x99] sm:$0xf]
      %v4327 = vld [vmem:[%s4231 + $0xa1] sm:$0xff]
      %v4328 = vld [vmem:[%s4231 + $0xa9] sm:$0xf]
      %v4329 = vld [vmem:[%s4231 + $0xb1] sm:$0xff]
      %v4330 = vld [vmem:[%s4231 + $0xb9] sm:$0xf]
      %v4331 = vstv %s4306
      %v4332 = vmul.f32 %v4331, %v4307
      %v4333 = vmul.f32 %v4331, %v4308
      %v4334 = vmul.f32 %v4331, %v4309
      %v4335 = vmul.f32 %v4331, %v4310
      %v4336 = vmul.f32 %v4331, %v4311
      %v4337 = vmul.f32 %v4331, %v4312
      %v4338 = vmul.f32 %v4331, %v4313
      %v4339 = vmul.f32 %v4331, %v4314
      %v4340 = vmul.f32 %v4331, %v4315
      %v4341 = vmul.f32 %v4331, %v4316
      %v4342 = vmul.f32 %v4331, %v4317
      %v4343 = vmul.f32 %v4331, %v4318
      %v4344 = vmul.f32 %v4331, %v4319
      %v4345 = vmul.f32 %v4331, %v4320
      %v4346 = vmul.f32 %v4331, %v4321
      %v4347 = vmul.f32 %v4331, %v4322
      %v4348 = vmul.f32 %v4331, %v4323
      %v4349 = vmul.f32 %v4331, %v4324
      %v4350 = vmul.f32 %v4331, %v4325
      %v4351 = vmul.f32 %v4331, %v4326
      %v4352 = vmul.f32 %v4331, %v4327
      %v4353 = vmul.f32 %v4331, %v4328
      %v4354 = vmul.f32 %v4331, %v4329
      %v4355 = vmul.f32 %v4331, %v4330
      %v4356 = vadd.f32 %v4281, %v4332
      %v4357 = vadd.f32 %v4282, %v4333
      %v4358 = vadd.f32 %v4283, %v4334
      %v4359 = vadd.f32 %v4284, %v4335
      %v4360 = vadd.f32 %v4285, %v4336
      %v4361 = vadd.f32 %v4286, %v4337
      %v4362 = vadd.f32 %v4287, %v4338
      %v4363 = vadd.f32 %v4288, %v4339
      %v4364 = vadd.f32 %v4289, %v4340
      %v4365 = vadd.f32 %v4290, %v4341
      %v4366 = vadd.f32 %v4291, %v4342
      %v4367 = vadd.f32 %v4292, %v4343
      %v4368 = vadd.f32 %v4293, %v4344
      %v4369 = vadd.f32 %v4294, %v4345
      %v4370 = vadd.f32 %v4295, %v4346
      %v4371 = vadd.f32 %v4296, %v4347
      %v4372 = vadd.f32 %v4297, %v4348
      %v4373 = vadd.f32 %v4298, %v4349
      %v4374 = vadd.f32 %v4299, %v4350
      %v4375 = vadd.f32 %v4300, %v4351
      %v4376 = vadd.f32 %v4301, %v4352
      %v4377 = vadd.f32 %v4302, %v4353
      %v4378 = vadd.f32 %v4303, %v4354
      %v4379 = vadd.f32 %v4304, %v4355
      %s4380 = sadd.s32 %s81, 215
      %s4381 = sld [smem:[#allocation8 + %s4380]]
      %v4382 = vld [vmem:[%s4231 + $0x2] sm:$0xff]
      %v4383 = vld [vmem:[%s4231 + $0xa] sm:$0xf]
      %v4384 = vld [vmem:[%s4231 + $0x12] sm:$0xff]
      %v4385 = vld [vmem:[%s4231 + $0x1a] sm:$0xf]
      %v4386 = vld [vmem:[%s4231 + $0x22] sm:$0xff]
      %v4387 = vld [vmem:[%s4231 + $0x2a] sm:$0xf]
      %v4388 = vld [vmem:[%s4231 + $0x32] sm:$0xff]
      %v4389 = vld [vmem:[%s4231 + $0x3a] sm:$0xf]
      %v4390 = vld [vmem:[%s4231 + $0x42] sm:$0xff]
      %v4391 = vld [vmem:[%s4231 + $0x4a] sm:$0xf]
      %v4392 = vld [vmem:[%s4231 + $0x52] sm:$0xff]
      %v4393 = vld [vmem:[%s4231 + $0x5a] sm:$0xf]
      %v4394 = vld [vmem:[%s4231 + $0x62] sm:$0xff]
      %v4395 = vld [vmem:[%s4231 + $0x6a] sm:$0xf]
      %v4396 = vld [vmem:[%s4231 + $0x72] sm:$0xff]
      %v4397 = vld [vmem:[%s4231 + $0x7a] sm:$0xf]
      %v4398 = vld [vmem:[%s4231 + $0x82] sm:$0xff]
      %v4399 = vld [vmem:[%s4231 + $0x8a] sm:$0xf]
      %v4400 = vld [vmem:[%s4231 + $0x92] sm:$0xff]
      %v4401 = vld [vmem:[%s4231 + $0x9a] sm:$0xf]
      %v4402 = vld [vmem:[%s4231 + $0xa2] sm:$0xff]
      %v4403 = vld [vmem:[%s4231 + $0xaa] sm:$0xf]
      %v4404 = vld [vmem:[%s4231 + $0xb2] sm:$0xff]
      %v4405 = vld [vmem:[%s4231 + $0xba] sm:$0xf]
      %v4406 = vstv %s4381
      %v4407 = vmul.f32 %v4406, %v4382
      %v4408 = vmul.f32 %v4406, %v4383
      %v4409 = vmul.f32 %v4406, %v4384
      %v4410 = vmul.f32 %v4406, %v4385
      %v4411 = vmul.f32 %v4406, %v4386
      %v4412 = vmul.f32 %v4406, %v4387
      %v4413 = vmul.f32 %v4406, %v4388
      %v4414 = vmul.f32 %v4406, %v4389
      %v4415 = vmul.f32 %v4406, %v4390
      %v4416 = vmul.f32 %v4406, %v4391
      %v4417 = vmul.f32 %v4406, %v4392
      %v4418 = vmul.f32 %v4406, %v4393
      %v4419 = vmul.f32 %v4406, %v4394
      %v4420 = vmul.f32 %v4406, %v4395
      %v4421 = vmul.f32 %v4406, %v4396
      %v4422 = vmul.f32 %v4406, %v4397
      %v4423 = vmul.f32 %v4406, %v4398
      %v4424 = vmul.f32 %v4406, %v4399
      %v4425 = vmul.f32 %v4406, %v4400
      %v4426 = vmul.f32 %v4406, %v4401
      %v4427 = vmul.f32 %v4406, %v4402
      %v4428 = vmul.f32 %v4406, %v4403
      %v4429 = vmul.f32 %v4406, %v4404
      %v4430 = vmul.f32 %v4406, %v4405
      %v4431 = vadd.f32 %v4356, %v4407
      %v4432 = vadd.f32 %v4357, %v4408
      %v4433 = vadd.f32 %v4358, %v4409
      %v4434 = vadd.f32 %v4359, %v4410
      %v4435 = vadd.f32 %v4360, %v4411
      %v4436 = vadd.f32 %v4361, %v4412
      %v4437 = vadd.f32 %v4362, %v4413
      %v4438 = vadd.f32 %v4363, %v4414
      %v4439 = vadd.f32 %v4364, %v4415
      %v4440 = vadd.f32 %v4365, %v4416
      %v4441 = vadd.f32 %v4366, %v4417
      %v4442 = vadd.f32 %v4367, %v4418
      %v4443 = vadd.f32 %v4368, %v4419
      %v4444 = vadd.f32 %v4369, %v4420
      %v4445 = vadd.f32 %v4370, %v4421
      %v4446 = vadd.f32 %v4371, %v4422
      %v4447 = vadd.f32 %v4372, %v4423
      %v4448 = vadd.f32 %v4373, %v4424
      %v4449 = vadd.f32 %v4374, %v4425
      %v4450 = vadd.f32 %v4375, %v4426
      %v4451 = vadd.f32 %v4376, %v4427
      %v4452 = vadd.f32 %v4377, %v4428
      %v4453 = vadd.f32 %v4378, %v4429
      %v4454 = vadd.f32 %v4379, %v4430
      %s4455 = sadd.s32 %s81, 217
      %s4456 = sld [smem:[#allocation8 + %s4455]]
      %v4457 = vld [vmem:[%s4231 + $0x3] sm:$0xff]
      %v4458 = vld [vmem:[%s4231 + $0xb] sm:$0xf]
      %v4459 = vld [vmem:[%s4231 + $0x13] sm:$0xff]
      %v4460 = vld [vmem:[%s4231 + $0x1b] sm:$0xf]
      %v4461 = vld [vmem:[%s4231 + $0x23] sm:$0xff]
      %v4462 = vld [vmem:[%s4231 + $0x2b] sm:$0xf]
      %v4463 = vld [vmem:[%s4231 + $0x33] sm:$0xff]
      %v4464 = vld [vmem:[%s4231 + $0x3b] sm:$0xf]
      %v4465 = vld [vmem:[%s4231 + $0x43] sm:$0xff]
      %v4466 = vld [vmem:[%s4231 + $0x4b] sm:$0xf]
      %v4467 = vld [vmem:[%s4231 + $0x53] sm:$0xff]
      %v4468 = vld [vmem:[%s4231 + $0x5b] sm:$0xf]
      %v4469 = vld [vmem:[%s4231 + $0x63] sm:$0xff]
      %v4470 = vld [vmem:[%s4231 + $0x6b] sm:$0xf]
      %v4471 = vld [vmem:[%s4231 + $0x73] sm:$0xff]
      %v4472 = vld [vmem:[%s4231 + $0x7b] sm:$0xf]
      %v4473 = vld [vmem:[%s4231 + $0x83] sm:$0xff]
      %v4474 = vld [vmem:[%s4231 + $0x8b] sm:$0xf]
      %v4475 = vld [vmem:[%s4231 + $0x93] sm:$0xff]
      %v4476 = vld [vmem:[%s4231 + $0x9b] sm:$0xf]
      %v4477 = vld [vmem:[%s4231 + $0xa3] sm:$0xff]
      %v4478 = vld [vmem:[%s4231 + $0xab] sm:$0xf]
      %v4479 = vld [vmem:[%s4231 + $0xb3] sm:$0xff]
      %v4480 = vld [vmem:[%s4231 + $0xbb] sm:$0xf]
      %v4481 = vstv %s4456
      %v4482 = vmul.f32 %v4481, %v4457
      %v4483 = vmul.f32 %v4481, %v4458
      %v4484 = vmul.f32 %v4481, %v4459
      %v4485 = vmul.f32 %v4481, %v4460
      %v4486 = vmul.f32 %v4481, %v4461
      %v4487 = vmul.f32 %v4481, %v4462
      %v4488 = vmul.f32 %v4481, %v4463
      %v4489 = vmul.f32 %v4481, %v4464
      %v4490 = vmul.f32 %v4481, %v4465
      %v4491 = vmul.f32 %v4481, %v4466
      %v4492 = vmul.f32 %v4481, %v4467
      %v4493 = vmul.f32 %v4481, %v4468
      %v4494 = vmul.f32 %v4481, %v4469
      %v4495 = vmul.f32 %v4481, %v4470
      %v4496 = vmul.f32 %v4481, %v4471
      %v4497 = vmul.f32 %v4481, %v4472
      %v4498 = vmul.f32 %v4481, %v4473
      %v4499 = vmul.f32 %v4481, %v4474
      %v4500 = vmul.f32 %v4481, %v4475
      %v4501 = vmul.f32 %v4481, %v4476
      %v4502 = vmul.f32 %v4481, %v4477
      %v4503 = vmul.f32 %v4481, %v4478
      %v4504 = vmul.f32 %v4481, %v4479
      %v4505 = vmul.f32 %v4481, %v4480
      %v4506 = vadd.f32 %v4431, %v4482
      %v4507 = vadd.f32 %v4432, %v4483
      %v4508 = vadd.f32 %v4433, %v4484
      %v4509 = vadd.f32 %v4434, %v4485
      %v4510 = vadd.f32 %v4435, %v4486
      %v4511 = vadd.f32 %v4436, %v4487
      %v4512 = vadd.f32 %v4437, %v4488
      %v4513 = vadd.f32 %v4438, %v4489
      %v4514 = vadd.f32 %v4439, %v4490
      %v4515 = vadd.f32 %v4440, %v4491
      %v4516 = vadd.f32 %v4441, %v4492
      %v4517 = vadd.f32 %v4442, %v4493
      %v4518 = vadd.f32 %v4443, %v4494
      %v4519 = vadd.f32 %v4444, %v4495
      %v4520 = vadd.f32 %v4445, %v4496
      %v4521 = vadd.f32 %v4446, %v4497
      %v4522 = vadd.f32 %v4447, %v4498
      %v4523 = vadd.f32 %v4448, %v4499
      %v4524 = vadd.f32 %v4449, %v4500
      %v4525 = vadd.f32 %v4450, %v4501
      %v4526 = vadd.f32 %v4451, %v4502
      %v4527 = vadd.f32 %v4452, %v4503
      %v4528 = vadd.f32 %v4453, %v4504
      %v4529 = vadd.f32 %v4454, %v4505
      %s4530 = sadd.s32 %s81, 219
      %s4531 = sld [smem:[#allocation8 + %s4530]]
      %v4532 = vld [vmem:[%s4231 + $0x4] sm:$0xff]
      %v4533 = vld [vmem:[%s4231 + $0xc] sm:$0xf]
      %v4534 = vld [vmem:[%s4231 + $0x14] sm:$0xff]
      %v4535 = vld [vmem:[%s4231 + $0x1c] sm:$0xf]
      %v4536 = vld [vmem:[%s4231 + $0x24] sm:$0xff]
      %v4537 = vld [vmem:[%s4231 + $0x2c] sm:$0xf]
      %v4538 = vld [vmem:[%s4231 + $0x34] sm:$0xff]
      %v4539 = vld [vmem:[%s4231 + $0x3c] sm:$0xf]
      %v4540 = vld [vmem:[%s4231 + $0x44] sm:$0xff]
      %v4541 = vld [vmem:[%s4231 + $0x4c] sm:$0xf]
      %v4542 = vld [vmem:[%s4231 + $0x54] sm:$0xff]
      %v4543 = vld [vmem:[%s4231 + $0x5c] sm:$0xf]
      %v4544 = vld [vmem:[%s4231 + $0x64] sm:$0xff]
      %v4545 = vld [vmem:[%s4231 + $0x6c] sm:$0xf]
      %v4546 = vld [vmem:[%s4231 + $0x74] sm:$0xff]
      %v4547 = vld [vmem:[%s4231 + $0x7c] sm:$0xf]
      %v4548 = vld [vmem:[%s4231 + $0x84] sm:$0xff]
      %v4549 = vld [vmem:[%s4231 + $0x8c] sm:$0xf]
      %v4550 = vld [vmem:[%s4231 + $0x94] sm:$0xff]
      %v4551 = vld [vmem:[%s4231 + $0x9c] sm:$0xf]
      %v4552 = vld [vmem:[%s4231 + $0xa4] sm:$0xff]
      %v4553 = vld [vmem:[%s4231 + $0xac] sm:$0xf]
      %v4554 = vld [vmem:[%s4231 + $0xb4] sm:$0xff]
      %v4555 = vld [vmem:[%s4231 + $0xbc] sm:$0xf]
      %v4556 = vstv %s4531
      %v4557 = vmul.f32 %v4556, %v4532
      %v4558 = vmul.f32 %v4556, %v4533
      %v4559 = vmul.f32 %v4556, %v4534
      %v4560 = vmul.f32 %v4556, %v4535
      %v4561 = vmul.f32 %v4556, %v4536
      %v4562 = vmul.f32 %v4556, %v4537
      %v4563 = vmul.f32 %v4556, %v4538
      %v4564 = vmul.f32 %v4556, %v4539
      %v4565 = vmul.f32 %v4556, %v4540
      %v4566 = vmul.f32 %v4556, %v4541
      %v4567 = vmul.f32 %v4556, %v4542
      %v4568 = vmul.f32 %v4556, %v4543
      %v4569 = vmul.f32 %v4556, %v4544
      %v4570 = vmul.f32 %v4556, %v4545
      %v4571 = vmul.f32 %v4556, %v4546
      %v4572 = vmul.f32 %v4556, %v4547
      %v4573 = vmul.f32 %v4556, %v4548
      %v4574 = vmul.f32 %v4556, %v4549
      %v4575 = vmul.f32 %v4556, %v4550
      %v4576 = vmul.f32 %v4556, %v4551
      %v4577 = vmul.f32 %v4556, %v4552
      %v4578 = vmul.f32 %v4556, %v4553
      %v4579 = vmul.f32 %v4556, %v4554
      %v4580 = vmul.f32 %v4556, %v4555
      %v4581 = vadd.f32 %v4506, %v4557
      %v4582 = vadd.f32 %v4507, %v4558
      %v4583 = vadd.f32 %v4508, %v4559
      %v4584 = vadd.f32 %v4509, %v4560
      %v4585 = vadd.f32 %v4510, %v4561
      %v4586 = vadd.f32 %v4511, %v4562
      %v4587 = vadd.f32 %v4512, %v4563
      %v4588 = vadd.f32 %v4513, %v4564
      %v4589 = vadd.f32 %v4514, %v4565
      %v4590 = vadd.f32 %v4515, %v4566
      %v4591 = vadd.f32 %v4516, %v4567
      %v4592 = vadd.f32 %v4517, %v4568
      %v4593 = vadd.f32 %v4518, %v4569
      %v4594 = vadd.f32 %v4519, %v4570
      %v4595 = vadd.f32 %v4520, %v4571
      %v4596 = vadd.f32 %v4521, %v4572
      %v4597 = vadd.f32 %v4522, %v4573
      %v4598 = vadd.f32 %v4523, %v4574
      %v4599 = vadd.f32 %v4524, %v4575
      %v4600 = vadd.f32 %v4525, %v4576
      %v4601 = vadd.f32 %v4526, %v4577
      %v4602 = vadd.f32 %v4527, %v4578
      %v4603 = vadd.f32 %v4528, %v4579
      %v4604 = vadd.f32 %v4529, %v4580
    $region34: #{tpu_custom_call.1} parent=1 // loop_footer
      %s56 = sadd.s32 1, %s52
    $region35: #{tpu_custom_call.1} parent=1 // loop_footer_branch
      %51 = sbr.rel target = $region31
    $region36: #{tpu_custom_call.1} parent=1 // loop_exit
      _
    %s4605 = sld [smem:[#allocation3]]
    %v4606 = vstv %s4605
    %v4607 = vadd.f32 %v57, %v4606
    %v4608 = vadd.f32 %v58, %v4606
    %v4609 = vadd.f32 %v59, %v4606
    %v4610 = vadd.f32 %v60, %v4606
    %v4611 = vadd.f32 %v61, %v4606
    %v4612 = vadd.f32 %v62, %v4606
    %v4613 = vadd.f32 %v63, %v4606
    %v4614 = vadd.f32 %v64, %v4606
    %v4615 = vadd.f32 %v65, %v4606
    %v4616 = vadd.f32 %v66, %v4606
    %v4617 = vadd.f32 %v67, %v4606
    %v4618 = vadd.f32 %v68, %v4606
    %v4619 = vadd.f32 %v69, %v4606
    %v4620 = vadd.f32 %v70, %v4606
    %v4621 = vadd.f32 %v71, %v4606
    %v4622 = vadd.f32 %v72, %v4606
    %v4623 = vadd.f32 %v73, %v4606
    %v4624 = vadd.f32 %v74, %v4606
    %v4625 = vadd.f32 %v75, %v4606
    %v4626 = vadd.f32 %v76, %v4606
    %v4627 = vadd.f32 %v77, %v4606
    %v4628 = vadd.f32 %v78, %v4606
    %v4629 = vadd.f32 %v79, %v4606
    %v4630 = vadd.f32 %v80, %v4606
    %v4631 = vmax.f32 %v4607, 0.0
    %v4632 = vmax.f32 %v4608, 0.0
    %v4633 = vmax.f32 %v4609, 0.0
    %v4634 = vmax.f32 %v4610, 0.0
    %v4635 = vmax.f32 %v4611, 0.0
    %v4636 = vmax.f32 %v4612, 0.0
    %v4637 = vmax.f32 %v4613, 0.0
    %v4638 = vmax.f32 %v4614, 0.0
    %v4639 = vmax.f32 %v4615, 0.0
    %v4640 = vmax.f32 %v4616, 0.0
    %v4641 = vmax.f32 %v4617, 0.0
    %v4642 = vmax.f32 %v4618, 0.0
    %v4643 = vmax.f32 %v4619, 0.0
    %v4644 = vmax.f32 %v4620, 0.0
    %v4645 = vmax.f32 %v4621, 0.0
    %v4646 = vmax.f32 %v4622, 0.0
    %v4647 = vmax.f32 %v4623, 0.0
    %v4648 = vmax.f32 %v4624, 0.0
    %v4649 = vmax.f32 %v4625, 0.0
    %v4650 = vmax.f32 %v4626, 0.0
    %v4651 = vmax.f32 %v4627, 0.0
    %v4652 = vmax.f32 %v4628, 0.0
    %v4653 = vmax.f32 %v4629, 0.0
    %v4654 = vmax.f32 %v4630, 0.0
    %4655 = vst [vmem:[#allocation2] sm:$0xff] %v4631
    %4656 = vst [vmem:[#allocation2 + $0x8] sm:$0xf] %v4632
    %4657 = vst [vmem:[#allocation2 + $0xc] sm:$0xff] %v4633
    %4658 = vst [vmem:[#allocation2 + $0x14] sm:$0xf] %v4634
    %4659 = vst [vmem:[#allocation2 + $0x18] sm:$0xff] %v4635
    %4660 = vst [vmem:[#allocation2 + $0x20] sm:$0xf] %v4636
    %4661 = vst [vmem:[#allocation2 + $0x24] sm:$0xff] %v4637
    %4662 = vst [vmem:[#allocation2 + $0x2c] sm:$0xf] %v4638
    %4663 = vst [vmem:[#allocation2 + $0x30] sm:$0xff] %v4639
    %4664 = vst [vmem:[#allocation2 + $0x38] sm:$0xf] %v4640
    %4665 = vst [vmem:[#allocation2 + $0x3c] sm:$0xff] %v4641
    %4666 = vst [vmem:[#allocation2 + $0x44] sm:$0xf] %v4642
    %4667 = vst [vmem:[#allocation2 + $0x48] sm:$0xff] %v4643
    %4668 = vst [vmem:[#allocation2 + $0x50] sm:$0xf] %v4644
    %4669 = vst [vmem:[#allocation2 + $0x54] sm:$0xff] %v4645
    %4670 = vst [vmem:[#allocation2 + $0x5c] sm:$0xf] %v4646
    %4671 = vst [vmem:[#allocation2 + $0x60] sm:$0xff] %v4647
    %4672 = vst [vmem:[#allocation2 + $0x68] sm:$0xf] %v4648
    %4673 = vst [vmem:[#allocation2 + $0x6c] sm:$0xff] %v4649
    %4674 = vst [vmem:[#allocation2 + $0x74] sm:$0xf] %v4650
    %4675 = vst [vmem:[#allocation2 + $0x78] sm:$0xff] %v4651
    %4676 = vst [vmem:[#allocation2 + $0x80] sm:$0xf] %v4652
    %4677 = vst [vmem:[#allocation2 + $0x84] sm:$0xff] %v4653
    %4678 = vst [vmem:[#allocation2 + $0x8c] sm:$0xf] %v4654
    %v4679 = vld [vmem:[%s3] sm:$0xff]
    %v4680 = vld [vmem:[%s3 + $0x8] sm:$0xff]
    %v4681 = vld [vmem:[%s3 + $0x10] sm:$0xff]
    %v4682 = vld [vmem:[%s3 + $0x18] sm:$0xff]
    %v4683 = vld [vmem:[%s3 + $0x20] sm:$0xff]
    %v4684 = vld [vmem:[%s3 + $0x28] sm:$0xff]
    %v4685 = vld [vmem:[%s3 + $0x30] sm:$0xff]
    %v4686 = vld [vmem:[%s3 + $0x38] sm:$0xff]
    %v4687 = vld [vmem:[%s3 + $0x40] sm:$0xff]
    %v4688 = vld [vmem:[%s3 + $0x48] sm:$0xff]
    %v4689 = vld [vmem:[%s3 + $0x50] sm:$0xff]
    %v4690 = vld [vmem:[%s3 + $0x58] sm:$0xff]
    %v4691 = vld [vmem:[%s3 + $0x60] sm:$0xff]
    %v4692 = vld [vmem:[%s3 + $0x68] sm:$0xff]
    %v4693 = vld [vmem:[%s3 + $0x70] sm:$0xff]
    %v4694 = vld [vmem:[%s3 + $0x78] sm:$0xff]
    %v4695 = vld [vmem:[%s3 + $0x80] sm:$0xff]
    %v4696 = vld [vmem:[%s3 + $0x88] sm:$0xff]
    %v4697 = vld [vmem:[%s3 + $0x90] sm:$0xff]
    %v4698 = vld [vmem:[%s3 + $0x98] sm:$0xff]
    %v4699 = vld [vmem:[%s3 + $0xa0] sm:$0xff]
    %v4700 = vld [vmem:[%s3 + $0xa8] sm:$0xff]
    %v4701 = vld [vmem:[%s3 + $0xb0] sm:$0xff]
    %v4702 = vld [vmem:[%s3 + $0xb8] sm:$0xff]
    %v4703 = vld [vmem:[%s3 + $0xc0] sm:$0xff]
    %v4704 = vld [vmem:[%s3 + $0xc8] sm:$0xff]
    %v4705 = vld [vmem:[%s3 + $0xd0] sm:$0xff]
    %v4706 = vld [vmem:[%s3 + $0xd8] sm:$0xff]
    %v4707 = vld [vmem:[%s3 + $0xe0] sm:$0xff]
    %v4708 = vld [vmem:[%s3 + $0xe8] sm:$0xff]
    %v4709 = vld [vmem:[%s3 + $0xf0] sm:$0xff]
    %v4710 = vld [vmem:[%s3 + $0xf8] sm:$0xff]
    %v4711 = vld [vmem:[#allocation2] sm:$0xff]
    %v4712 = vld [vmem:[#allocation2 + $0x8] sm:$0xff]
    %v4713 = vld [vmem:[#allocation2 + $0x10] sm:$0xff]
    %v4714 = vld [vmem:[#allocation2 + $0x18] sm:$0xff]
    %v4715 = vld [vmem:[#allocation2 + $0x20] sm:$0xff]
    %v4716 = vld [vmem:[#allocation2 + $0x28] sm:$0xff]
    %v4717 = vld [vmem:[#allocation2 + $0x30] sm:$0xff]
    %v4718 = vld [vmem:[#allocation2 + $0x38] sm:$0xff]
    %v4719 = vld [vmem:[#allocation2 + $0x40] sm:$0xff]
    %v4720 = vld [vmem:[#allocation2 + $0x48] sm:$0xff]
    %v4721 = vld [vmem:[#allocation2 + $0x50] sm:$0xff]
    %v4722 = vld [vmem:[#allocation2 + $0x58] sm:$0xff]
    %v4723 = vld [vmem:[#allocation2 + $0x60] sm:$0xff]
    %v4724 = vld [vmem:[#allocation2 + $0x68] sm:$0xff]
    %v4725 = vld [vmem:[#allocation2 + $0x70] sm:$0xff]
    %v4726 = vld [vmem:[#allocation2 + $0x78] sm:$0xff]
    %v4727 = vld [vmem:[#allocation2 + $0x80] sm:$0xff]
    %v4728 = vld [vmem:[#allocation2 + $0x88] sm:$0xff]
    %v4729 = vld [vmem:[%s4] sm:$0xff]
    %v4730 = vld [vmem:[%s4 + $0x8] sm:$0xff]
    %v4731 = vld [vmem:[%s4 + $0x10] sm:$0xff]
    %v4732 = vld [vmem:[%s4 + $0x18] sm:$0xff]
    %v4733 = vld [vmem:[%s4 + $0x20] sm:$0xff]
    %v4734 = vld [vmem:[%s4 + $0x28] sm:$0xff]
    %v4735 = vld [vmem:[%s4 + $0x30] sm:$0xff]
    %v4736 = vld [vmem:[%s4 + $0x38] sm:$0xff]
    %v4737 = vld [vmem:[%s4 + $0x40] sm:$0xff]
    %v4738 = vld [vmem:[%s4 + $0x48] sm:$0xff]
    %v4739 = vld [vmem:[%s4 + $0x50] sm:$0xff]
    %v4740 = vld [vmem:[%s4 + $0x58] sm:$0xff]
    %v4741 = vld [vmem:[%s4 + $0x60] sm:$0xff]
    %v4742 = vld [vmem:[%s4 + $0x68] sm:$0xff]
    %v4743 = vld [vmem:[%s4 + $0x70] sm:$0xff]
    %v4744 = vld [vmem:[%s4 + $0x78] sm:$0xff]
    %4746 = vset.pattern.permute.xlu0 0
    %4747 = vperm.xlu0 %4746, %v4729
    %v4748 = vpop.permute.xlu0 %4747
    %4751 = vset.pattern.permute.xlu0 0
    %4752 = vperm.xlu0 %4751, %v4730
    %v4753 = vpop.permute.xlu0 %4752
    %4756 = vset.pattern.permute.xlu0 0
    %4757 = vperm.xlu0 %4756, %v4731
    %v4758 = vpop.permute.xlu0 %4757
    %4761 = vset.pattern.permute.xlu0 0
    %4762 = vperm.xlu0 %4761, %v4732
    %v4763 = vpop.permute.xlu0 %4762
    %4766 = vset.pattern.permute.xlu0 0
    %4767 = vperm.xlu0 %4766, %v4733
    %v4768 = vpop.permute.xlu0 %4767
    %4771 = vset.pattern.permute.xlu0 0
    %4772 = vperm.xlu0 %4771, %v4734
    %v4773 = vpop.permute.xlu0 %4772
    %4776 = vset.pattern.permute.xlu0 0
    %4777 = vperm.xlu0 %4776, %v4735
    %v4778 = vpop.permute.xlu0 %4777
    %4781 = vset.pattern.permute.xlu0 0
    %4782 = vperm.xlu0 %4781, %v4736
    %v4783 = vpop.permute.xlu0 %4782
    %4786 = vset.pattern.permute.xlu0 0
    %4787 = vperm.xlu0 %4786, %v4737
    %v4788 = vpop.permute.xlu0 %4787
    %4791 = vset.pattern.permute.xlu0 0
    %4792 = vperm.xlu0 %4791, %v4738
    %v4793 = vpop.permute.xlu0 %4792
    %4796 = vset.pattern.permute.xlu0 0
    %4797 = vperm.xlu0 %4796, %v4739
    %v4798 = vpop.permute.xlu0 %4797
    %4801 = vset.pattern.permute.xlu0 0
    %4802 = vperm.xlu0 %4801, %v4740
    %v4803 = vpop.permute.xlu0 %4802
    %4806 = vset.pattern.permute.xlu0 0
    %4807 = vperm.xlu0 %4806, %v4741
    %v4808 = vpop.permute.xlu0 %4807
    %4811 = vset.pattern.permute.xlu0 0
    %4812 = vperm.xlu0 %4811, %v4742
    %v4813 = vpop.permute.xlu0 %4812
    %4816 = vset.pattern.permute.xlu0 0
    %4817 = vperm.xlu0 %4816, %v4743
    %v4818 = vpop.permute.xlu0 %4817
    %4821 = vset.pattern.permute.xlu0 0
    %4822 = vperm.xlu0 %4821, %v4744
    %v4823 = vpop.permute.xlu0 %4822
    %vm4825 = vcmask 130048
    %v4827 = vsel %vm4825, %v4680, 0
    %v4830 = vsel %vm4825, %v4682, 0
    %v4833 = vsel %vm4825, %v4684, 0
    %v4836 = vsel %vm4825, %v4686, 0
    %v4839 = vsel %vm4825, %v4688, 0
    %v4842 = vsel %vm4825, %v4690, 0
    %v4845 = vsel %vm4825, %v4692, 0
    %v4848 = vsel %vm4825, %v4694, 0
    %v4851 = vsel %vm4825, %v4696, 0
    %v4854 = vsel %vm4825, %v4698, 0
    %v4857 = vsel %vm4825, %v4700, 0
    %v4860 = vsel %vm4825, %v4702, 0
    %v4863 = vsel %vm4825, %v4704, 0
    %v4866 = vsel %vm4825, %v4706, 0
    %v4869 = vsel %vm4825, %v4708, 0
    %v4872 = vsel %vm4825, %v4710, 0
    %4874 = vmatpush.msra.mxu0 %v4726
    %4875 = vmatpush.msra.mxu0 %v4725
    %4876 = vmatpush.msra.mxu0 %v4724
    %4877 = vmatpush.msra.mxu0 %v4723
    %4878 = vmatpush.msra.mxu0 %v4722
    %4879 = vmatpush.msra.mxu0 %v4721
    %4880 = vmatpush.msra.mxu0 %v4720
    %4881 = vmatpush.msra.mxu0 %v4719
    %4882 = vmatpush.msra.mxu0 %v4718
    %4883 = vmatpush.msra.mxu0 %v4717
    %4884 = vmatpush.msra.mxu0 %v4716
    %4885 = vmatpush.msra.mxu0 %v4715
    %4886 = vmatpush.msra.mxu0 %v4714
    %4887 = vmatpush.msra.mxu0 %v4713
    %4888 = vmatpush.msra.mxu0 %v4712
    %4889 = vmatpush.msra.mxu0 %v4711
    %4890 = vmatmul.f32.gmra.mxu0 %v4679
    %v4891 = vpop.f32.mrf.mxu0
    %v4892 = vadd.f32 %v4748, %v4891
    %4893 = vmatmul.f32.gmra.mxu0 %v4681
    %v4894 = vpop.f32.mrf.mxu0
    %v4895 = vadd.f32 %v4753, %v4894
    %4896 = vmatmul.f32.gmra.mxu0 %v4683
    %v4897 = vpop.f32.mrf.mxu0
    %v4898 = vadd.f32 %v4758, %v4897
    %4899 = vmatmul.f32.gmra.mxu0 %v4685
    %v4900 = vpop.f32.mrf.mxu0
    %v4901 = vadd.f32 %v4763, %v4900
    %4902 = vmatmul.f32.gmra.mxu0 %v4687
    %v4903 = vpop.f32.mrf.mxu0
    %v4904 = vadd.f32 %v4768, %v4903
    %4905 = vmatmul.f32.gmra.mxu0 %v4689
    %v4906 = vpop.f32.mrf.mxu0
    %v4907 = vadd.f32 %v4773, %v4906
    %4908 = vmatmul.f32.gmra.mxu0 %v4691
    %v4909 = vpop.f32.mrf.mxu0
    %v4910 = vadd.f32 %v4778, %v4909
    %4911 = vmatmul.f32.gmra.mxu0 %v4693
    %v4912 = vpop.f32.mrf.mxu0
    %v4913 = vadd.f32 %v4783, %v4912
    %4914 = vmatmul.f32.gmra.mxu0 %v4695
    %v4915 = vpop.f32.mrf.mxu0
    %v4916 = vadd.f32 %v4788, %v4915
    %4917 = vmatmul.f32.gmra.mxu0 %v4697
    %v4918 = vpop.f32.mrf.mxu0
    %v4919 = vadd.f32 %v4793, %v4918
    %4920 = vmatmul.f32.gmra.mxu0 %v4699
    %v4921 = vpop.f32.mrf.mxu0
    %v4922 = vadd.f32 %v4798, %v4921
    %4923 = vmatmul.f32.gmra.mxu0 %v4701
    %v4924 = vpop.f32.mrf.mxu0
    %v4925 = vadd.f32 %v4803, %v4924
    %4926 = vmatmul.f32.gmra.mxu0 %v4703
    %v4927 = vpop.f32.mrf.mxu0
    %v4928 = vadd.f32 %v4808, %v4927
    %4929 = vmatmul.f32.gmra.mxu0 %v4705
    %v4930 = vpop.f32.mrf.mxu0
    %v4931 = vadd.f32 %v4813, %v4930
    %4932 = vmatmul.f32.gmra.mxu0 %v4707
    %v4933 = vpop.f32.mrf.mxu0
    %v4934 = vadd.f32 %v4818, %v4933
    %4935 = vmatmul.f32.gmra.mxu0 %v4709
    %v4936 = vpop.f32.mrf.mxu0
    %v4937 = vadd.f32 %v4823, %v4936
    %4938 = vdwg.mxu0
    %4939 = vmatpush.msra.mxu0 0.0
    %4940 = vmatpush.msra.mxu0 0.0
    %4941 = vmatpush.msra.mxu0 0.0
    %4942 = vmatpush.msra.mxu0 0.0
    %4943 = vmatpush.msra.mxu0 0.0
    %4944 = vmatpush.msra.mxu0 0.0
    %4945 = vmatpush.msra.mxu0 0.0
    %4946 = vmatpush.msra.mxu0 0.0
    %4947 = vmatpush.msra.mxu0 0.0
    %4948 = vmatpush.msra.mxu0 0.0
    %4949 = vmatpush.msra.mxu0 0.0
    %4950 = vmatpush.msra.mxu0 0.0
    %4951 = vmatpush.msra.mxu0 0.0
    %4952 = vmatpush.msra.mxu0 0.0
    %4953 = vmatpush.msra.mxu0 %v4728
    %4954 = vmatpush.msra.mxu0 %v4727
    %4955 = vmatmul.f32.gmra.mxu0 %v4827
    %v4956 = vpop.f32.mrf.mxu0
    %v4957 = vadd.f32 %v4892, %v4956
    %4958 = vmatmul.f32.gmra.mxu0 %v4830
    %v4959 = vpop.f32.mrf.mxu0
    %v4960 = vadd.f32 %v4895, %v4959
    %4961 = vmatmul.f32.gmra.mxu0 %v4833
    %v4962 = vpop.f32.mrf.mxu0
    %v4963 = vadd.f32 %v4898, %v4962
    %4964 = vmatmul.f32.gmra.mxu0 %v4836
    %v4965 = vpop.f32.mrf.mxu0
    %v4966 = vadd.f32 %v4901, %v4965
    %4967 = vmatmul.f32.gmra.mxu0 %v4839
    %v4968 = vpop.f32.mrf.mxu0
    %v4969 = vadd.f32 %v4904, %v4968
    %4970 = vmatmul.f32.gmra.mxu0 %v4842
    %v4971 = vpop.f32.mrf.mxu0
    %v4972 = vadd.f32 %v4907, %v4971
    %4973 = vmatmul.f32.gmra.mxu0 %v4845
    %v4974 = vpop.f32.mrf.mxu0
    %v4975 = vadd.f32 %v4910, %v4974
    %4976 = vmatmul.f32.gmra.mxu0 %v4848
    %v4977 = vpop.f32.mrf.mxu0
    %v4978 = vadd.f32 %v4913, %v4977
    %4979 = vmatmul.f32.gmra.mxu0 %v4851
    %v4980 = vpop.f32.mrf.mxu0
    %v4981 = vadd.f32 %v4916, %v4980
    %4982 = vmatmul.f32.gmra.mxu0 %v4854
    %v4983 = vpop.f32.mrf.mxu0
    %v4984 = vadd.f32 %v4919, %v4983
    %4985 = vmatmul.f32.gmra.mxu0 %v4857
    %v4986 = vpop.f32.mrf.mxu0
    %v4987 = vadd.f32 %v4922, %v4986
    %4988 = vmatmul.f32.gmra.mxu0 %v4860
    %v4989 = vpop.f32.mrf.mxu0
    %v4990 = vadd.f32 %v4925, %v4989
    %4991 = vmatmul.f32.gmra.mxu0 %v4863
    %v4992 = vpop.f32.mrf.mxu0
    %v4993 = vadd.f32 %v4928, %v4992
    %4994 = vmatmul.f32.gmra.mxu0 %v4866
    %v4995 = vpop.f32.mrf.mxu0
    %v4996 = vadd.f32 %v4931, %v4995
    %4997 = vmatmul.f32.gmra.mxu0 %v4869
    %v4998 = vpop.f32.mrf.mxu0
    %v4999 = vadd.f32 %v4934, %v4998
    %5000 = vmatmul.f32.gmra.mxu0 %v4872
    %v5001 = vpop.f32.mrf.mxu0
    %v5002 = vadd.f32 %v4937, %v5001
    %5003 = vdwg.mxu0
    %5004 = vst [vmem:[#allocation9] sm:$0xff] %v4957
    %5005 = vst [vmem:[#allocation9 + $0x8] sm:$0xff] %v4960
    %5006 = vst [vmem:[#allocation9 + $0x10] sm:$0xff] %v4963
    %5007 = vst [vmem:[#allocation9 + $0x18] sm:$0xff] %v4966
    %5008 = vst [vmem:[#allocation9 + $0x20] sm:$0xff] %v4969
    %5009 = vst [vmem:[#allocation9 + $0x28] sm:$0xff] %v4972
    %5010 = vst [vmem:[#allocation9 + $0x30] sm:$0xff] %v4975
    %5011 = vst [vmem:[#allocation9 + $0x38] sm:$0xff] %v4978
    %5012 = vst [vmem:[#allocation9 + $0x40] sm:$0xff] %v4981
    %5013 = vst [vmem:[#allocation9 + $0x48] sm:$0xff] %v4984
    %5014 = vst [vmem:[#allocation9 + $0x50] sm:$0xff] %v4987
    %5015 = vst [vmem:[#allocation9 + $0x58] sm:$0xff] %v4990
    %5016 = vst [vmem:[#allocation9 + $0x60] sm:$0xff] %v4993
    %5017 = vst [vmem:[#allocation9 + $0x68] sm:$0xff] %v4996
    %5018 = vst [vmem:[#allocation9 + $0x70] sm:$0xff] %v4999
    %5019 = vst [vmem:[#allocation9 + $0x78] sm:$0xff] %v5002
    // Predicated region
    $region37: #{tpu_custom_call.1} parent=1 // pred_check
      _
    $region38: #{tpu_custom_call.1} parent=1 // pred_check_branch
      %5021 = sbr.rel (0) target = $region40
    $region39: #{tpu_custom_call.1} parent=1 // pred_region
      %5023 = vsyncadd [#allocation6], 0
      %s5024 = sshll.u32 [#allocation9], 4
      %s5025 = int_to_ptr.vmem [resolvable:$true] %s5024
      %s5026 = sshll.u32 %s5, 4
      %s5027 = int_to_ptr.hbm [resolvable:$true] %s5026
      %5032 = dma.vmem_to_hbm [thread:$0]  %s5025, 2048, %s5027, [#allocation6], 128, 128, 8
    $region40: #{tpu_custom_call.1} parent=1 // pred_fallthru
      _
    // Predicated region
    $region41: #{tpu_custom_call.1} parent=1 // pred_check
      _
    $region42: #{tpu_custom_call.1} parent=1 // pred_check_branch
      %5034 = sbr.rel (0) target = $region44
    $region43: #{tpu_custom_call.1} parent=1 // pred_region
      %5036 = dma.done [#allocation6], 2048
    $region44: #{tpu_custom_call.1} parent=1 // pred_fallthru
      _
    %5037 = vsyncpa [#allocation5], 1
    %5038 = vsyncpa [#allocation6], 1
    %5039 = vsyncpa [#allocation7], 1

</llo_original>
